<compile_context>
chip_gen: v5e
topology: v5e:2x2
jax: 0.10.0
libtpu: 0.0.40
codegen_flags: <defaults>
</compile_context>

<pallas_src>
import jax
import jax.numpy as jnp
from jax.experimental import pallas as pl
from jax.experimental.pallas import tpu as pltpu


def _multilinear_kernel(x_ref, w_ref, b_ref, o_ref):
    # x_ref: (tb, hn, H)  w_ref: (hn, H, K)  b_ref: (1, hn, K)  o_ref: (tb, hn, K)
    acc = jnp.einsum(
        "bnh,nhk->bnk",
        x_ref[...],
        w_ref[...],
        preferred_element_type=jnp.float32,
    )
    o_ref[...] = (acc + b_ref[...].astype(jnp.float32)).astype(o_ref.dtype)


def _vmem_limit_bytes():
    """Generation-aware scoped-VMEM limit (leave the compiler headroom)."""
    try:
        cap = pltpu.get_tpu_info().vmem_capacity_bytes
    except Exception:
        cap = 64 * 1024 * 1024  # conservative (v7x-sized) fallback
    # 75% of physical, capped at 96 MiB (v5e/v6e have 128 MiB, v7x 64 MiB).
    return min(int(cap * 3 // 4), 96 * 1024 * 1024)


def _choose_tiles(B, N, H, K, itemsize, vmem_limit_bytes):
    """Pick (tb, hn): batch tile (MXU M dim) and sublane-aligned head block."""
    budget = int(0.85 * vmem_limit_bytes)

    def working_set(tb, hn):
        x_blk = tb * hn * H * itemsize
        w_blk = hn * H * K * itemsize
        b_blk = hn * K * itemsize
        o_blk = tb * hn * K * itemsize
        pipelined = 2 * (x_blk + w_blk + b_blk + o_blk)  # double-buffered DMA blocks
        temps = 3 * tb * hn * K * 4                      # f32 acc + relayout temporaries
        return pipelined + temps

    def head_candidates(single_batch_step):
        # hn must be a multiple of 8 (sublane) or equal to the full dim N.
        cands = []
        top = (N // 8) * 8
        if single_batch_step and N >= 16:
            # Keep >= 2 steps on the parallel head axis so v7x's second
            # TensorCore gets work when the batch axis collapses to one step.
            half = -(-(N // 2) // 8) * 8
            top = min(top, max(half, 8))
        else:
            cands.append(N)  # full-dim block is always layout-legal
        hn = top
        while hn >= 8:
            cands.append(hn)
            hn -= 8
        if not cands:
            cands.append(N)  # N < 8: full dim is the only legal choice
        return cands

    # Batch-tile targets: 256 fills the v6e/v7x MXU M dim; 128 is enough on
    # v5e.  Shrink before giving up on a large head block.
    for tb_try in (256, 128, 64, 32, 16, 8, 1):
        tb = min(B, tb_try)
        single_batch_step = (-(-B // tb)) == 1
        for hn in head_candidates(single_batch_step):
            if working_set(tb, hn) <= budget:
                return tb, hn
    # Nothing fits the budget (pathological H*K): smallest legal tiles.
    return min(B, 8), (8 if N >= 8 else N)


def multi_linear(x_bnh: jax.Array, weight: jax.Array, bias: jax.Array) -> jax.Array:
    """einsum('bnh,nhk->bnk', x, weight) + bias    (bias shape (1, N, K))."""
    B, N, H = x_bnh.shape
    N_w, H_w, K = weight.shape
    assert (N, H) == (N_w, H_w)
    assert bias.shape == (1, N, K)
    # TODO(synk): if production K is not a multiple of 128, pad K in the
    # out_spec to keep the output lane-dense (avoids masked vst.msk stores).

    itemsize = jnp.dtype(x_bnh.dtype).itemsize
    vmem_limit = _vmem_limit_bytes()
    tb, hn = _choose_tiles(B, N, H, K, itemsize, vmem_limit)

    # Head axis outer, batch axis innermost: weight block index is constant
    # across the inner batch loop, so it is DMA'd from HBM exactly once.
    grid = (pl.cdiv(N, hn), pl.cdiv(B, tb))

    cost = pl.CostEstimate(
        flops=2 * B * N * H * K,
        bytes_accessed=itemsize * (B * N * H + N * H * K + N * K + B * N * K),
        transcendentals=0,
    )

    return pl.pallas_call(
        _multilinear_kernel,
        out_shape=jax.ShapeDtypeStruct((B, N, K), x_bnh.dtype),
        grid_spec=pltpu.PrefetchScalarGridSpec(
            num_scalar_prefetch=0,
            grid=grid,
            in_specs=[
                # x (B, N, H): batch tile, head block, full H
                pl.BlockSpec((tb, hn, H), lambda n, b: (b, n, 0)),
                # weight (N, H, K): head block, full (H, K); ignores batch idx
                pl.BlockSpec((hn, H, K), lambda n, b: (n, 0, 0)),
                # bias (1, N, K): head block; ignores batch idx
                pl.BlockSpec((1, hn, K), lambda n, b: (0, n, 0)),
            ],
            # write straight into native (B, N, K); last dim lane-dense
            out_specs=pl.BlockSpec((tb, hn, K), lambda n, b: (b, n, 0)),
        ),
        compiler_params=pltpu.CompilerParams(
            dimension_semantics=("parallel", "parallel"),
            vmem_limit_bytes=vmem_limit,
        ),
        cost_estimate=cost,
    )(x_bnh, weight, bias)


def _xavier_normal(key, shape, dtype=jnp.float32):
    """PyTorch nn.init.xavier_normal_ semantics."""
    fan_out = shape[0]
    fan_in = shape[1]
    receptive = 1
    for s in shape[2:]:
        receptive *= s
    fan_in *= receptive
    fan_out *= receptive
    std = (2.0 / (fan_in + fan_out)) ** 0.5
    return std * jax.random.normal(key, shape, dtype=dtype)


if __name__ == "__main__":
    B, N, H, K = 8, 4, 128, 128

    key = jax.random.PRNGKey(0)
    k_x, k_w, k_b = jax.random.split(key, 3)

    x = jax.random.normal(k_x, (B, N, H), dtype=jnp.float32)
    weight = _xavier_normal(k_w, (N, H, K))      # `shape` arg of MultiLinear
    bias = _xavier_normal(k_b, (1, N, K))        # `bias_shape` arg of MultiLinear

    out = multi_linear(x, weight, bias)
    jax.block_until_ready(out)

    # correctness check against the pure-JAX reference of the forward pass
    ref = (
        jnp.einsum("bnh,nhk->bnk", x, weight, precision=jax.lax.Precision.HIGHEST)
        + bias
    )
    assert out.shape == (B, N, K)
    assert jnp.allclose(out, ref, atol=1e-2, rtol=1e-2), float(
        jnp.max(jnp.abs(out - ref))
    )

    print("KERNEL_OK")
</pallas_src>

<mosaic_0001>
module attributes {stable_mosaic.version = 11 : i64} {
  func.func @_multilinear_kernel(%arg0: i32, %arg1: i32, %arg2: memref<8x4x128xf32, #tpu.memory_space<vmem>>, %arg3: memref<4x128x128xf32, #tpu.memory_space<vmem>>, %arg4: memref<1x4x128xf32, #tpu.memory_space<vmem>>, %arg5: memref<8x4x128xf32, #tpu.memory_space<vmem>>) attributes {dimension_semantics = [#tpu.dimension_semantics<parallel>, #tpu.dimension_semantics<parallel>], iteration_bounds = array<i64: 1, 1>, scalar_prefetch = 0 : i64, scratch_operands = 0 : i64, tpu.core_type = #tpu.core_type<tc>, window_params = [{transform_indices = @transform_0, window_bounds = array<i64: 8, 4, 128>}, {transform_indices = @transform_1, window_bounds = array<i64: 4, 128, 128>}, {transform_indices = @transform_2, window_bounds = array<i64: 1, 4, 128>}, {transform_indices = @transform_3, window_bounds = array<i64: 8, 4, 128>}]} {
    %c0 = arith.constant 0 : index
    %c0_0 = arith.constant 0 : index
    %c0_1 = arith.constant 0 : index
    %0 = vector.load %arg2[%c0, %c0_0, %c0_1] : memref<8x4x128xf32, #tpu.memory_space<vmem>>, vector<8x4x128xf32>
    %c0_2 = arith.constant 0 : index
    %c0_3 = arith.constant 0 : index
    %c0_4 = arith.constant 0 : index
    %1 = vector.load %arg3[%c0_2, %c0_3, %c0_4] : memref<4x128x128xf32, #tpu.memory_space<vmem>>, vector<4x128x128xf32>
    "tpu.trace_start"() <{level = 10 : i32, message = "bnh,nhk->bnk"}> : () -> ()
    %cst = arith.constant dense<0.000000e+00> : vector<4x128x8xf32>
    %2 = tpu.matmul %1, %0, %cst {dimension_numbers = #tpu.dot_dimension_numbers<[1], [2], [2], [0], [0, 0, 0, 2, 1, 0], [0], [1]>} : vector<4x128x128xf32>, vector<8x4x128xf32>, vector<4x128x8xf32> -> vector<4x128x8xf32>
    %3 = tpu.transpose %2, [2, 0, 1] : vector<4x128x8xf32> -> vector<8x4x128xf32>
    "tpu.trace_stop"() : () -> ()
    %c0_5 = arith.constant 0 : index
    %c0_6 = arith.constant 0 : index
    %c0_7 = arith.constant 0 : index
    %4 = vector.load %arg4[%c0_5, %c0_6, %c0_7] : memref<1x4x128xf32, #tpu.memory_space<vmem>>, vector<1x4x128xf32>
    %5 = vector.broadcast %4 : vector<1x4x128xf32> to vector<8x4x128xf32>
    %6 = arith.addf %3, %5 : vector<8x4x128xf32>
    %c0_8 = arith.constant 0 : index
    %c0_9 = arith.constant 0 : index
    %c0_10 = arith.constant 0 : index
    %7 = vector.load %arg5[%c0_8, %c0_9, %c0_10] : memref<8x4x128xf32, #tpu.memory_space<vmem>>, vector<8x4x128xf32>
    tpu.vector_store %arg5[%c0_8, %c0_9, %c0_10], %6 {strides = array<i32>} : memref<8x4x128xf32, #tpu.memory_space<vmem>>, vector<8x4x128xf32>,
    return
  }
  func.func @transform_0(%arg0: i32, %arg1: i32) -> (i32, i32, i32) {
    %c0_i32 = arith.constant 0 : i32
    %c0_i32_0 = arith.constant 0 : i32
    return %arg1, %arg0, %c0_i32 : i32, i32, i32
  }
  func.func @transform_1(%arg0: i32, %arg1: i32) -> (i32, i32, i32) {
    %c0_i32 = arith.constant 0 : i32
    %c0_i32_0 = arith.constant 0 : i32
    %c0_i32_1 = arith.constant 0 : i32
    return %arg0, %c0_i32, %c0_i32_0 : i32, i32, i32
  }
  func.func @transform_2(%arg0: i32, %arg1: i32) -> (i32, i32, i32) {
    %c0_i32 = arith.constant 0 : i32
    %c0_i32_0 = arith.constant 0 : i32
    %c0_i32_1 = arith.constant 0 : i32
    return %c0_i32, %arg0, %c0_i32_0 : i32, i32, i32
  }
  func.func @transform_3(%arg0: i32, %arg1: i32) -> (i32, i32, i32) {
    %c0_i32 = arith.constant 0 : i32
    %c0_i32_0 = arith.constant 0 : i32
    return %arg1, %arg0, %c0_i32 : i32, i32, i32
  }
}

</mosaic_0001>

<llo_original>
// kernel: tpu_custom_call.1
$region0: #{tpu_custom_call.1}
  #allocation0 [shape = 'u32[]', space=smem, size = 0x4, offset = 0x4, fixed_abs, tag = 'smem constant byte address 0x4 - core index']
  #allocation1 [shape = 'u32[72,128]{1,0:T(1,128)}', space=vmem, size = 0x9000, scoped, tag = 'internal scratch']
  %s0 = inlined_call_operand.hbm [shape: f32[8,4,128], index: 0, kind: input, shape index: {}]
  %s1 = inlined_call_operand.hbm [shape: f32[4,128,128], index: 1, kind: input, shape index: {}]
  %s2 = inlined_call_operand.hbm [shape: f32[1,4,128], index: 2, kind: input, shape index: {}]
  %s3 = inlined_call_operand.hbm [shape: f32[8,4,128], index: 3, kind: output, shape index: {}]
  %s4 = sld [smem:[#allocation0]]
  $region34: #{tpu_custom_call.1} parent=0
    _
  %s6 = ssub.s32 1, %s4
  %s7 = scalar_select 0, %s6, %s4
  $region1: #{tpu_custom_call.1} parent=0
    #allocation2 [shape = 'u8[16384]{0}', space=vmem, size = 0x4000, scoped, tag = 'input window, operand 0, single buffered']
    #allocation3 [shape = 's32[1]{0}', space=sflag, size = 0x4, scoped, tag = 'scoped memory for tpu_custom_call.1']
    #allocation4 [shape = 's32[1]{0}', space=sflag, size = 0x4, scoped, tag = 'scoped memory for tpu_custom_call.1']
    #allocation5 [shape = 'u8[262144]{0}', space=vmem, size = 0x40000, scoped, tag = 'input window, operand 1, single buffered']
    #allocation6 [shape = 's32[1]{0}', space=sflag, size = 0x4, scoped, tag = 'scoped memory for tpu_custom_call.1']
    #allocation7 [shape = 'u8[2048]{0}', space=vmem, size = 0x800, scoped, tag = 'input window, operand 2, single buffered']
    #allocation8 [shape = 'u8[16384]{0}', space=vmem, size = 0x4000, scoped, tag = 'output window, operand 0, single buffered']
    %8 = vsyncpa [#allocation3], 0
    %9 = vsyncpa [#allocation6], 0
    %10 = vsyncpa [#allocation4], 0
    // Predicated region
    $region2: #{tpu_custom_call.1} parent=1 // pred_check
      _
    $region3: #{tpu_custom_call.1} parent=1 // pred_check_branch
      %12 = sbr.rel (0) target = $region5
    $region4: #{tpu_custom_call.1} parent=1 // pred_region
      %14 = vsyncadd [#allocation3], 0
      %s15 = sshll.u32 %s0, 4
      %s16 = int_to_ptr.hbm [resolvable:$true] %s15
      %s17 = sshll.u32 [#allocation2], 4
      %s18 = int_to_ptr.vmem [resolvable:$true] %s17
      %23 = dma.hbm_to_vmem [thread:$0]  %s16, 512, %s18, [#allocation3], 64, 64, 4
    $region5: #{tpu_custom_call.1} parent=1 // pred_fallthru
      _
    // Predicated region
    $region6: #{tpu_custom_call.1} parent=1 // pred_check
      _
    $region7: #{tpu_custom_call.1} parent=1 // pred_check_branch
      %25 = sbr.rel (0) target = $region9
    $region8: #{tpu_custom_call.1} parent=1 // pred_region
      %27 = vsyncadd [#allocation6], 0
      %s28 = sshll.u32 %s1, 4
      %s29 = int_to_ptr.hbm [resolvable:$true] %s28
      %s30 = sshll.u32 [#allocation5], 4
      %s31 = int_to_ptr.vmem [resolvable:$true] %s30
      %36 = dma.hbm_to_vmem [thread:$0]  %s29, 8192, %s31, [#allocation6], 128, 128, 8
    $region9: #{tpu_custom_call.1} parent=1 // pred_fallthru
      _
    // Predicated region
    $region10: #{tpu_custom_call.1} parent=1 // pred_check
      _
    $region11: #{tpu_custom_call.1} parent=1 // pred_check_branch
      %38 = sbr.rel (0) target = $region13
    $region12: #{tpu_custom_call.1} parent=1 // pred_region
      %40 = vsyncadd [#allocation6], 0
      %s42 = sshll.u32 %s2, 4
      %s43 = int_to_ptr.hbm [resolvable:$true] %s42
      %s44 = sshll.u32 [#allocation7], 4
      %s45 = int_to_ptr.vmem [resolvable:$true] %s44
      %47 = dma.hbm_to_vmem [thread:$0]  %s43, 64, %s45, [#allocation6]
    $region13: #{tpu_custom_call.1} parent=1 // pred_fallthru
      _
    // Predicated region
    $region14: #{tpu_custom_call.1} parent=1 // pred_check
      _
    $region15: #{tpu_custom_call.1} parent=1 // pred_check_branch
      %49 = sbr.rel (0) target = $region17
    $region16: #{tpu_custom_call.1} parent=1 // pred_region
      %51 = dma.done [#allocation3], 512
    $region17: #{tpu_custom_call.1} parent=1 // pred_fallthru
      _
    // Predicated region
    $region18: #{tpu_custom_call.1} parent=1 // pred_check
      _
    $region19: #{tpu_custom_call.1} parent=1 // pred_check_branch
      %53 = sbr.rel (0) target = $region21
    $region20: #{tpu_custom_call.1} parent=1 // pred_region
      %55 = dma.done [#allocation6], 8192
    $region21: #{tpu_custom_call.1} parent=1 // pred_fallthru
      _
    // Predicated region
    $region22: #{tpu_custom_call.1} parent=1 // pred_check
      _
    $region23: #{tpu_custom_call.1} parent=1 // pred_check_branch
      %57 = sbr.rel (0) target = $region25
    $region24: #{tpu_custom_call.1} parent=1 // pred_region
      %59 = dma.done [#allocation6], 64
    $region25: #{tpu_custom_call.1} parent=1 // pred_fallthru
      _
    %v60 = vld [vmem:[#allocation2] sm:$0xf]
    %v61 = vld [vmem:[#allocation2 + $0x4] sm:$0xf]
    %v62 = vld [vmem:[#allocation2 + $0x8] sm:$0xf]
    %v63 = vld [vmem:[#allocation2 + $0xc] sm:$0xf]
    %v64 = vld [vmem:[#allocation2 + $0x10] sm:$0xf]
    %v65 = vld [vmem:[#allocation2 + $0x14] sm:$0xf]
    %v66 = vld [vmem:[#allocation2 + $0x18] sm:$0xf]
    %v67 = vld [vmem:[#allocation2 + $0x1c] sm:$0xf]
    %v68 = vld [vmem:[#allocation5] sm:$0xff]
    %v69 = vld [vmem:[#allocation5 + $0x8] sm:$0xff]
    %v70 = vld [vmem:[#allocation5 + $0x10] sm:$0xff]
    %v71 = vld [vmem:[#allocation5 + $0x18] sm:$0xff]
    %v72 = vld [vmem:[#allocation5 + $0x20] sm:$0xff]
    %v73 = vld [vmem:[#allocation5 + $0x28] sm:$0xff]
    %v74 = vld [vmem:[#allocation5 + $0x30] sm:$0xff]
    %v75 = vld [vmem:[#allocation5 + $0x38] sm:$0xff]
    %v76 = vld [vmem:[#allocation5 + $0x40] sm:$0xff]
    %v77 = vld [vmem:[#allocation5 + $0x48] sm:$0xff]
    %v78 = vld [vmem:[#allocation5 + $0x50] sm:$0xff]
    %v79 = vld [vmem:[#allocation5 + $0x58] sm:$0xff]
    %v80 = vld [vmem:[#allocation5 + $0x60] sm:$0xff]
    %v81 = vld [vmem:[#allocation5 + $0x68] sm:$0xff]
    %v82 = vld [vmem:[#allocation5 + $0x70] sm:$0xff]
    %v83 = vld [vmem:[#allocation5 + $0x78] sm:$0xff]
    %v84 = vld [vmem:[#allocation5 + $0x80] sm:$0xff]
    %v85 = vld [vmem:[#allocation5 + $0x88] sm:$0xff]
    %v86 = vld [vmem:[#allocation5 + $0x90] sm:$0xff]
    %v87 = vld [vmem:[#allocation5 + $0x98] sm:$0xff]
    %v88 = vld [vmem:[#allocation5 + $0xa0] sm:$0xff]
    %v89 = vld [vmem:[#allocation5 + $0xa8] sm:$0xff]
    %v90 = vld [vmem:[#allocation5 + $0xb0] sm:$0xff]
    %v91 = vld [vmem:[#allocation5 + $0xb8] sm:$0xff]
    %v92 = vld [vmem:[#allocation5 + $0xc0] sm:$0xff]
    %v93 = vld [vmem:[#allocation5 + $0xc8] sm:$0xff]
    %v94 = vld [vmem:[#allocation5 + $0xd0] sm:$0xff]
    %v95 = vld [vmem:[#allocation5 + $0xd8] sm:$0xff]
    %v96 = vld [vmem:[#allocation5 + $0xe0] sm:$0xff]
    %v97 = vld [vmem:[#allocation5 + $0xe8] sm:$0xff]
    %v98 = vld [vmem:[#allocation5 + $0xf0] sm:$0xff]
    %v99 = vld [vmem:[#allocation5 + $0xf8] sm:$0xff]
    %v100 = vld [vmem:[#allocation5 + $0x100] sm:$0xff]
    %v101 = vld [vmem:[#allocation5 + $0x108] sm:$0xff]
    %v102 = vld [vmem:[#allocation5 + $0x110] sm:$0xff]
    %v103 = vld [vmem:[#allocation5 + $0x118] sm:$0xff]
    %v104 = vld [vmem:[#allocation5 + $0x120] sm:$0xff]
    %v105 = vld [vmem:[#allocation5 + $0x128] sm:$0xff]
    %v106 = vld [vmem:[#allocation5 + $0x130] sm:$0xff]
    %v107 = vld [vmem:[#allocation5 + $0x138] sm:$0xff]
    %v108 = vld [vmem:[#allocation5 + $0x140] sm:$0xff]
    %v109 = vld [vmem:[#allocation5 + $0x148] sm:$0xff]
    %v110 = vld [vmem:[#allocation5 + $0x150] sm:$0xff]
    %v111 = vld [vmem:[#allocation5 + $0x158] sm:$0xff]
    %v112 = vld [vmem:[#allocation5 + $0x160] sm:$0xff]
    %v113 = vld [vmem:[#allocation5 + $0x168] sm:$0xff]
    %v114 = vld [vmem:[#allocation5 + $0x170] sm:$0xff]
    %v115 = vld [vmem:[#allocation5 + $0x178] sm:$0xff]
    %v116 = vld [vmem:[#allocation5 + $0x180] sm:$0xff]
    %v117 = vld [vmem:[#allocation5 + $0x188] sm:$0xff]
    %v118 = vld [vmem:[#allocation5 + $0x190] sm:$0xff]
    %v119 = vld [vmem:[#allocation5 + $0x198] sm:$0xff]
    %v120 = vld [vmem:[#allocation5 + $0x1a0] sm:$0xff]
    %v121 = vld [vmem:[#allocation5 + $0x1a8] sm:$0xff]
    %v122 = vld [vmem:[#allocation5 + $0x1b0] sm:$0xff]
    %v123 = vld [vmem:[#allocation5 + $0x1b8] sm:$0xff]
    %v124 = vld [vmem:[#allocation5 + $0x1c0] sm:$0xff]
    %v125 = vld [vmem:[#allocation5 + $0x1c8] sm:$0xff]
    %v126 = vld [vmem:[#allocation5 + $0x1d0] sm:$0xff]
    %v127 = vld [vmem:[#allocation5 + $0x1d8] sm:$0xff]
    %v128 = vld [vmem:[#allocation5 + $0x1e0] sm:$0xff]
    %v129 = vld [vmem:[#allocation5 + $0x1e8] sm:$0xff]
    %v130 = vld [vmem:[#allocation5 + $0x1f0] sm:$0xff]
    %v131 = vld [vmem:[#allocation5 + $0x1f8] sm:$0xff]
    %132 = vxpose.xlu0.b32.start [1/16] %v60, 128
    %133 = vxpose.xlu0.b32.cont [2/16] 0.0, 128
    %134 = vxpose.xlu0.b32.cont [3/16] 0.0, 128
    %135 = vxpose.xlu0.b32.cont [4/16] 0.0, 128
    %136 = vxpose.xlu0.b32.cont [5/16] 0.0, 128
    %137 = vxpose.xlu0.b32.cont [6/16] 0.0, 128
    %138 = vxpose.xlu0.b32.cont [7/16] 0.0, 128
    %139 = vxpose.xlu0.b32.cont [8/16] 0.0, 128
    %140 = vxpose.xlu0.b32.cont [9/16] 0.0, 128
    %141 = vxpose.xlu0.b32.cont [10/16] 0.0, 128
    %142 = vxpose.xlu0.b32.cont [11/16] 0.0, 128
    %143 = vxpose.xlu0.b32.cont [12/16] 0.0, 128
    %144 = vxpose.xlu0.b32.cont [13/16] 0.0, 128
    %145 = vxpose.xlu0.b32.cont [14/16] 0.0, 128
    %146 = vxpose.xlu0.b32.cont [15/16] 0.0, 128
    %147 = vxpose.xlu0.b32.end [16/16] 0.0, 128
    %v148 = vpop.trf.xlu0
    %v149 = vpop.trf.xlu0
    %v150 = vpop.trf.xlu0
    %v151 = vpop.trf.xlu0
    %v152 = vpop.trf.xlu0
    %v153 = vpop.trf.xlu0
    %v154 = vpop.trf.xlu0
    %v155 = vpop.trf.xlu0
    %v156 = vpop.trf.xlu0
    %v157 = vpop.trf.xlu0
    %v158 = vpop.trf.xlu0
    %v159 = vpop.trf.xlu0
    %v160 = vpop.trf.xlu0
    %v161 = vpop.trf.xlu0
    %v162 = vpop.trf.xlu0
    %v163 = vpop.trf.xlu0
    %164 = vxpose.xlu0.b32.start [1/16] %v61, 128
    %165 = vxpose.xlu0.b32.cont [2/16] 0.0, 128
    %166 = vxpose.xlu0.b32.cont [3/16] 0.0, 128
    %167 = vxpose.xlu0.b32.cont [4/16] 0.0, 128
    %168 = vxpose.xlu0.b32.cont [5/16] 0.0, 128
    %169 = vxpose.xlu0.b32.cont [6/16] 0.0, 128
    %170 = vxpose.xlu0.b32.cont [7/16] 0.0, 128
    %171 = vxpose.xlu0.b32.cont [8/16] 0.0, 128
    %172 = vxpose.xlu0.b32.cont [9/16] 0.0, 128
    %173 = vxpose.xlu0.b32.cont [10/16] 0.0, 128
    %174 = vxpose.xlu0.b32.cont [11/16] 0.0, 128
    %175 = vxpose.xlu0.b32.cont [12/16] 0.0, 128
    %176 = vxpose.xlu0.b32.cont [13/16] 0.0, 128
    %177 = vxpose.xlu0.b32.cont [14/16] 0.0, 128
    %178 = vxpose.xlu0.b32.cont [15/16] 0.0, 128
    %179 = vxpose.xlu0.b32.end [16/16] 0.0, 128
    %v180 = vpop.trf.xlu0
    %v181 = vpop.trf.xlu0
    %v182 = vpop.trf.xlu0
    %v183 = vpop.trf.xlu0
    %v184 = vpop.trf.xlu0
    %v185 = vpop.trf.xlu0
    %v186 = vpop.trf.xlu0
    %v187 = vpop.trf.xlu0
    %v188 = vpop.trf.xlu0
    %v189 = vpop.trf.xlu0
    %v190 = vpop.trf.xlu0
    %v191 = vpop.trf.xlu0
    %v192 = vpop.trf.xlu0
    %v193 = vpop.trf.xlu0
    %v194 = vpop.trf.xlu0
    %v195 = vpop.trf.xlu0
    %196 = vxpose.xlu0.b32.start [1/16] %v62, 128
    %197 = vxpose.xlu0.b32.cont [2/16] 0.0, 128
    %198 = vxpose.xlu0.b32.cont [3/16] 0.0, 128
    %199 = vxpose.xlu0.b32.cont [4/16] 0.0, 128
    %200 = vxpose.xlu0.b32.cont [5/16] 0.0, 128
    %201 = vxpose.xlu0.b32.cont [6/16] 0.0, 128
    %202 = vxpose.xlu0.b32.cont [7/16] 0.0, 128
    %203 = vxpose.xlu0.b32.cont [8/16] 0.0, 128
    %204 = vxpose.xlu0.b32.cont [9/16] 0.0, 128
    %205 = vxpose.xlu0.b32.cont [10/16] 0.0, 128
    %206 = vxpose.xlu0.b32.cont [11/16] 0.0, 128
    %207 = vxpose.xlu0.b32.cont [12/16] 0.0, 128
    %208 = vxpose.xlu0.b32.cont [13/16] 0.0, 128
    %209 = vxpose.xlu0.b32.cont [14/16] 0.0, 128
    %210 = vxpose.xlu0.b32.cont [15/16] 0.0, 128
    %211 = vxpose.xlu0.b32.end [16/16] 0.0, 128
    %v212 = vpop.trf.xlu0
    %v213 = vpop.trf.xlu0
    %v214 = vpop.trf.xlu0
    %v215 = vpop.trf.xlu0
    %v216 = vpop.trf.xlu0
    %v217 = vpop.trf.xlu0
    %v218 = vpop.trf.xlu0
    %v219 = vpop.trf.xlu0
    %v220 = vpop.trf.xlu0
    %v221 = vpop.trf.xlu0
    %v222 = vpop.trf.xlu0
    %v223 = vpop.trf.xlu0
    %v224 = vpop.trf.xlu0
    %v225 = vpop.trf.xlu0
    %v226 = vpop.trf.xlu0
    %v227 = vpop.trf.xlu0
    %228 = vxpose.xlu0.b32.start [1/16] %v63, 128
    %229 = vxpose.xlu0.b32.cont [2/16] 0.0, 128
    %230 = vxpose.xlu0.b32.cont [3/16] 0.0, 128
    %231 = vxpose.xlu0.b32.cont [4/16] 0.0, 128
    %232 = vxpose.xlu0.b32.cont [5/16] 0.0, 128
    %233 = vxpose.xlu0.b32.cont [6/16] 0.0, 128
    %234 = vxpose.xlu0.b32.cont [7/16] 0.0, 128
    %235 = vxpose.xlu0.b32.cont [8/16] 0.0, 128
    %236 = vxpose.xlu0.b32.cont [9/16] 0.0, 128
    %237 = vxpose.xlu0.b32.cont [10/16] 0.0, 128
    %238 = vxpose.xlu0.b32.cont [11/16] 0.0, 128
    %239 = vxpose.xlu0.b32.cont [12/16] 0.0, 128
    %240 = vxpose.xlu0.b32.cont [13/16] 0.0, 128
    %241 = vxpose.xlu0.b32.cont [14/16] 0.0, 128
    %242 = vxpose.xlu0.b32.cont [15/16] 0.0, 128
    %243 = vxpose.xlu0.b32.end [16/16] 0.0, 128
    %v244 = vpop.trf.xlu0
    %v245 = vpop.trf.xlu0
    %v246 = vpop.trf.xlu0
    %v247 = vpop.trf.xlu0
    %v248 = vpop.trf.xlu0
    %v249 = vpop.trf.xlu0
    %v250 = vpop.trf.xlu0
    %v251 = vpop.trf.xlu0
    %v252 = vpop.trf.xlu0
    %v253 = vpop.trf.xlu0
    %v254 = vpop.trf.xlu0
    %v255 = vpop.trf.xlu0
    %v256 = vpop.trf.xlu0
    %v257 = vpop.trf.xlu0
    %v258 = vpop.trf.xlu0
    %v259 = vpop.trf.xlu0
    %260 = vxpose.xlu0.b32.start [1/16] %v64, 128
    %261 = vxpose.xlu0.b32.cont [2/16] 0.0, 128
    %262 = vxpose.xlu0.b32.cont [3/16] 0.0, 128
    %263 = vxpose.xlu0.b32.cont [4/16] 0.0, 128
    %264 = vxpose.xlu0.b32.cont [5/16] 0.0, 128
    %265 = vxpose.xlu0.b32.cont [6/16] 0.0, 128
    %266 = vxpose.xlu0.b32.cont [7/16] 0.0, 128
    %267 = vxpose.xlu0.b32.cont [8/16] 0.0, 128
    %268 = vxpose.xlu0.b32.cont [9/16] 0.0, 128
    %269 = vxpose.xlu0.b32.cont [10/16] 0.0, 128
    %270 = vxpose.xlu0.b32.cont [11/16] 0.0, 128
    %271 = vxpose.xlu0.b32.cont [12/16] 0.0, 128
    %272 = vxpose.xlu0.b32.cont [13/16] 0.0, 128
    %273 = vxpose.xlu0.b32.cont [14/16] 0.0, 128
    %274 = vxpose.xlu0.b32.cont [15/16] 0.0, 128
    %275 = vxpose.xlu0.b32.end [16/16] 0.0, 128
    %v276 = vpop.trf.xlu0
    %v277 = vpop.trf.xlu0
    %v278 = vpop.trf.xlu0
    %v279 = vpop.trf.xlu0
    %v280 = vpop.trf.xlu0
    %v281 = vpop.trf.xlu0
    %v282 = vpop.trf.xlu0
    %v283 = vpop.trf.xlu0
    %v284 = vpop.trf.xlu0
    %v285 = vpop.trf.xlu0
    %v286 = vpop.trf.xlu0
    %v287 = vpop.trf.xlu0
    %v288 = vpop.trf.xlu0
    %v289 = vpop.trf.xlu0
    %v290 = vpop.trf.xlu0
    %v291 = vpop.trf.xlu0
    %292 = vxpose.xlu0.b32.start [1/16] %v65, 128
    %293 = vxpose.xlu0.b32.cont [2/16] 0.0, 128
    %294 = vxpose.xlu0.b32.cont [3/16] 0.0, 128
    %295 = vxpose.xlu0.b32.cont [4/16] 0.0, 128
    %296 = vxpose.xlu0.b32.cont [5/16] 0.0, 128
    %297 = vxpose.xlu0.b32.cont [6/16] 0.0, 128
    %298 = vxpose.xlu0.b32.cont [7/16] 0.0, 128
    %299 = vxpose.xlu0.b32.cont [8/16] 0.0, 128
    %300 = vxpose.xlu0.b32.cont [9/16] 0.0, 128
    %301 = vxpose.xlu0.b32.cont [10/16] 0.0, 128
    %302 = vxpose.xlu0.b32.cont [11/16] 0.0, 128
    %303 = vxpose.xlu0.b32.cont [12/16] 0.0, 128
    %304 = vxpose.xlu0.b32.cont [13/16] 0.0, 128
    %305 = vxpose.xlu0.b32.cont [14/16] 0.0, 128
    %306 = vxpose.xlu0.b32.cont [15/16] 0.0, 128
    %307 = vxpose.xlu0.b32.end [16/16] 0.0, 128
    %v308 = vpop.trf.xlu0
    %v309 = vpop.trf.xlu0
    %v310 = vpop.trf.xlu0
    %v311 = vpop.trf.xlu0
    %v312 = vpop.trf.xlu0
    %v313 = vpop.trf.xlu0
    %v314 = vpop.trf.xlu0
    %v315 = vpop.trf.xlu0
    %v316 = vpop.trf.xlu0
    %v317 = vpop.trf.xlu0
    %v318 = vpop.trf.xlu0
    %v319 = vpop.trf.xlu0
    %v320 = vpop.trf.xlu0
    %v321 = vpop.trf.xlu0
    %v322 = vpop.trf.xlu0
    %v323 = vpop.trf.xlu0
    %324 = vxpose.xlu0.b32.start [1/16] %v66, 128
    %325 = vxpose.xlu0.b32.cont [2/16] 0.0, 128
    %326 = vxpose.xlu0.b32.cont [3/16] 0.0, 128
    %327 = vxpose.xlu0.b32.cont [4/16] 0.0, 128
    %328 = vxpose.xlu0.b32.cont [5/16] 0.0, 128
    %329 = vxpose.xlu0.b32.cont [6/16] 0.0, 128
    %330 = vxpose.xlu0.b32.cont [7/16] 0.0, 128
    %331 = vxpose.xlu0.b32.cont [8/16] 0.0, 128
    %332 = vxpose.xlu0.b32.cont [9/16] 0.0, 128
    %333 = vxpose.xlu0.b32.cont [10/16] 0.0, 128
    %334 = vxpose.xlu0.b32.cont [11/16] 0.0, 128
    %335 = vxpose.xlu0.b32.cont [12/16] 0.0, 128
    %336 = vxpose.xlu0.b32.cont [13/16] 0.0, 128
    %337 = vxpose.xlu0.b32.cont [14/16] 0.0, 128
    %338 = vxpose.xlu0.b32.cont [15/16] 0.0, 128
    %339 = vxpose.xlu0.b32.end [16/16] 0.0, 128
    %v340 = vpop.trf.xlu0
    %v341 = vpop.trf.xlu0
    %v342 = vpop.trf.xlu0
    %v343 = vpop.trf.xlu0
    %v344 = vpop.trf.xlu0
    %v345 = vpop.trf.xlu0
    %v346 = vpop.trf.xlu0
    %v347 = vpop.trf.xlu0
    %v348 = vpop.trf.xlu0
    %v349 = vpop.trf.xlu0
    %v350 = vpop.trf.xlu0
    %v351 = vpop.trf.xlu0
    %v352 = vpop.trf.xlu0
    %v353 = vpop.trf.xlu0
    %v354 = vpop.trf.xlu0
    %v355 = vpop.trf.xlu0
    %356 = vxpose.xlu0.b32.start [1/16] %v67, 128
    %357 = vxpose.xlu0.b32.cont [2/16] 0.0, 128
    %358 = vxpose.xlu0.b32.cont [3/16] 0.0, 128
    %359 = vxpose.xlu0.b32.cont [4/16] 0.0, 128
    %360 = vxpose.xlu0.b32.cont [5/16] 0.0, 128
    %361 = vxpose.xlu0.b32.cont [6/16] 0.0, 128
    %362 = vxpose.xlu0.b32.cont [7/16] 0.0, 128
    %363 = vxpose.xlu0.b32.cont [8/16] 0.0, 128
    %364 = vxpose.xlu0.b32.cont [9/16] 0.0, 128
    %365 = vxpose.xlu0.b32.cont [10/16] 0.0, 128
    %366 = vxpose.xlu0.b32.cont [11/16] 0.0, 128
    %367 = vxpose.xlu0.b32.cont [12/16] 0.0, 128
    %368 = vxpose.xlu0.b32.cont [13/16] 0.0, 128
    %369 = vxpose.xlu0.b32.cont [14/16] 0.0, 128
    %370 = vxpose.xlu0.b32.cont [15/16] 0.0, 128
    %371 = vxpose.xlu0.b32.end [16/16] 0.0, 128
    %v372 = vpop.trf.xlu0
    %v373 = vpop.trf.xlu0
    %v374 = vpop.trf.xlu0
    %v375 = vpop.trf.xlu0
    %v376 = vpop.trf.xlu0
    %v377 = vpop.trf.xlu0
    %v378 = vpop.trf.xlu0
    %v379 = vpop.trf.xlu0
    %v380 = vpop.trf.xlu0
    %v381 = vpop.trf.xlu0
    %v382 = vpop.trf.xlu0
    %v383 = vpop.trf.xlu0
    %v384 = vpop.trf.xlu0
    %v385 = vpop.trf.xlu0
    %v386 = vpop.trf.xlu0
    %v387 = vpop.trf.xlu0
    %v388 = vrot.slane %v212, 4
    %vm389 = vcmask 1047556
    %v390 = vsel %vm389, %v388, %v148
    %v391 = vrot.slane %v148, 4
    %v392 = vsel %vm389, %v212, %v391
    %v394 = vunpack.c.l.s4 1983009808
    %v395 = vunpack.c.0.s8 %v394
    %v396 = vperm.slane %v390, %v395
    %v398 = vunpack.c.l.s4 1983009808
    %v399 = vunpack.c.0.s8 %v398
    %v400 = vperm.slane %v392, %v399
    %v401 = vrot.slane %v244, 4
    %v402 = vsel %vm389, %v401, %v180
    %v403 = vrot.slane %v180, 4
    %v404 = vsel %vm389, %v244, %v403
    %v406 = vunpack.c.l.s4 1983009808
    %v407 = vunpack.c.0.s8 %v406
    %v408 = vperm.slane %v402, %v407
    %v410 = vunpack.c.l.s4 1983009808
    %v411 = vunpack.c.0.s8 %v410
    %v412 = vperm.slane %v404, %v411
    %v413 = vrot.slane %v340, 4
    %v414 = vsel %vm389, %v413, %v276
    %v415 = vrot.slane %v276, 4
    %v416 = vsel %vm389, %v340, %v415
    %v418 = vunpack.c.l.s4 1983009808
    %v419 = vunpack.c.0.s8 %v418
    %v420 = vperm.slane %v414, %v419
    %v422 = vunpack.c.l.s4 1983009808
    %v423 = vunpack.c.0.s8 %v422
    %v424 = vperm.slane %v416, %v423
    %v425 = vrot.slane %v372, 4
    %v426 = vsel %vm389, %v425, %v308
    %v427 = vrot.slane %v308, 4
    %v428 = vsel %vm389, %v372, %v427
    %v430 = vunpack.c.l.s4 1983009808
    %v431 = vunpack.c.0.s8 %v430
    %v432 = vperm.slane %v426, %v431
    %v434 = vunpack.c.l.s4 1983009808
    %v435 = vunpack.c.0.s8 %v434
    %v436 = vperm.slane %v428, %v435
    %v437 = vrot.slane %v408, 4
    %v438 = vsel %vm389, %v437, %v396
    %v439 = vrot.slane %v396, 4
    %v440 = vsel %vm389, %v408, %v439
    %v442 = vunpack.c.l.s4 1934713408
    %v443 = vunpack.c.0.s8 %v442
    %v444 = vperm.slane %v438, %v443
    %v446 = vunpack.c.l.s4 1934713408
    %v447 = vunpack.c.0.s8 %v446
    %v448 = vperm.slane %v440, %v447
    %v449 = vrot.slane %v412, 4
    %v450 = vsel %vm389, %v449, %v400
    %v451 = vrot.slane %v400, 4
    %v452 = vsel %vm389, %v412, %v451
    %v454 = vunpack.c.l.s4 1934713408
    %v455 = vunpack.c.0.s8 %v454
    %v456 = vperm.slane %v450, %v455
    %v458 = vunpack.c.l.s4 1934713408
    %v459 = vunpack.c.0.s8 %v458
    %v460 = vperm.slane %v452, %v459
    %v461 = vrot.slane %v432, 4
    %v462 = vsel %vm389, %v461, %v420
    %v463 = vrot.slane %v420, 4
    %v464 = vsel %vm389, %v432, %v463
    %v466 = vunpack.c.l.s4 1934713408
    %v467 = vunpack.c.0.s8 %v466
    %v468 = vperm.slane %v462, %v467
    %v470 = vunpack.c.l.s4 1934713408
    %v471 = vunpack.c.0.s8 %v470
    %v472 = vperm.slane %v464, %v471
    %v473 = vrot.slane %v436, 4
    %v474 = vsel %vm389, %v473, %v424
    %v475 = vrot.slane %v424, 4
    %v476 = vsel %vm389, %v436, %v475
    %v478 = vunpack.c.l.s4 1934713408
    %v479 = vunpack.c.0.s8 %v478
    %v480 = vperm.slane %v474, %v479
    %v482 = vunpack.c.l.s4 1934713408
    %v483 = vunpack.c.0.s8 %v482
    %v484 = vperm.slane %v476, %v483
    %v485 = vrot.slane %v468, 4
    %v486 = vsel %vm389, %v485, %v444
    %v487 = vrot.slane %v444, 4
    %v488 = vsel %vm389, %v468, %v487
    %v489 = vrot.slane %v472, 4
    %v490 = vsel %vm389, %v489, %v448
    %v491 = vrot.slane %v448, 4
    %v492 = vsel %vm389, %v472, %v491
    %v493 = vrot.slane %v480, 4
    %v494 = vsel %vm389, %v493, %v456
    %v495 = vrot.slane %v456, 4
    %v496 = vsel %vm389, %v480, %v495
    %v497 = vrot.slane %v484, 4
    %v498 = vsel %vm389, %v497, %v460
    %v499 = vrot.slane %v460, 4
    %v500 = vsel %vm389, %v484, %v499
    %v501 = vrot.slane %v213, 4
    %v502 = vsel %vm389, %v501, %v149
    %v503 = vrot.slane %v149, 4
    %v504 = vsel %vm389, %v213, %v503
    %v506 = vunpack.c.l.s4 1983009808
    %v507 = vunpack.c.0.s8 %v506
    %v508 = vperm.slane %v502, %v507
    %v510 = vunpack.c.l.s4 1983009808
    %v511 = vunpack.c.0.s8 %v510
    %v512 = vperm.slane %v504, %v511
    %v513 = vrot.slane %v245, 4
    %v514 = vsel %vm389, %v513, %v181
    %v515 = vrot.slane %v181, 4
    %v516 = vsel %vm389, %v245, %v515
    %v518 = vunpack.c.l.s4 1983009808
    %v519 = vunpack.c.0.s8 %v518
    %v520 = vperm.slane %v514, %v519
    %v522 = vunpack.c.l.s4 1983009808
    %v523 = vunpack.c.0.s8 %v522
    %v524 = vperm.slane %v516, %v523
    %v525 = vrot.slane %v341, 4
    %v526 = vsel %vm389, %v525, %v277
    %v527 = vrot.slane %v277, 4
    %v528 = vsel %vm389, %v341, %v527
    %v530 = vunpack.c.l.s4 1983009808
    %v531 = vunpack.c.0.s8 %v530
    %v532 = vperm.slane %v526, %v531
    %v534 = vunpack.c.l.s4 1983009808
    %v535 = vunpack.c.0.s8 %v534
    %v536 = vperm.slane %v528, %v535
    %v537 = vrot.slane %v373, 4
    %v538 = vsel %vm389, %v537, %v309
    %v539 = vrot.slane %v309, 4
    %v540 = vsel %vm389, %v373, %v539
    %v542 = vunpack.c.l.s4 1983009808
    %v543 = vunpack.c.0.s8 %v542
    %v544 = vperm.slane %v538, %v543
    %v546 = vunpack.c.l.s4 1983009808
    %v547 = vunpack.c.0.s8 %v546
    %v548 = vperm.slane %v540, %v547
    %v549 = vrot.slane %v520, 4
    %v550 = vsel %vm389, %v549, %v508
    %v551 = vrot.slane %v508, 4
    %v552 = vsel %vm389, %v520, %v551
    %v554 = vunpack.c.l.s4 1934713408
    %v555 = vunpack.c.0.s8 %v554
    %v556 = vperm.slane %v550, %v555
    %v558 = vunpack.c.l.s4 1934713408
    %v559 = vunpack.c.0.s8 %v558
    %v560 = vperm.slane %v552, %v559
    %v561 = vrot.slane %v524, 4
    %v562 = vsel %vm389, %v561, %v512
    %v563 = vrot.slane %v512, 4
    %v564 = vsel %vm389, %v524, %v563
    %v566 = vunpack.c.l.s4 1934713408
    %v567 = vunpack.c.0.s8 %v566
    %v568 = vperm.slane %v562, %v567
    %v570 = vunpack.c.l.s4 1934713408
    %v571 = vunpack.c.0.s8 %v570
    %v572 = vperm.slane %v564, %v571
    %v573 = vrot.slane %v544, 4
    %v574 = vsel %vm389, %v573, %v532
    %v575 = vrot.slane %v532, 4
    %v576 = vsel %vm389, %v544, %v575
    %v578 = vunpack.c.l.s4 1934713408
    %v579 = vunpack.c.0.s8 %v578
    %v580 = vperm.slane %v574, %v579
    %v582 = vunpack.c.l.s4 1934713408
    %v583 = vunpack.c.0.s8 %v582
    %v584 = vperm.slane %v576, %v583
    %v585 = vrot.slane %v548, 4
    %v586 = vsel %vm389, %v585, %v536
    %v587 = vrot.slane %v536, 4
    %v588 = vsel %vm389, %v548, %v587
    %v590 = vunpack.c.l.s4 1934713408
    %v591 = vunpack.c.0.s8 %v590
    %v592 = vperm.slane %v586, %v591
    %v594 = vunpack.c.l.s4 1934713408
    %v595 = vunpack.c.0.s8 %v594
    %v596 = vperm.slane %v588, %v595
    %v597 = vrot.slane %v580, 4
    %v598 = vsel %vm389, %v597, %v556
    %v599 = vrot.slane %v556, 4
    %v600 = vsel %vm389, %v580, %v599
    %v601 = vrot.slane %v584, 4
    %v602 = vsel %vm389, %v601, %v560
    %v603 = vrot.slane %v560, 4
    %v604 = vsel %vm389, %v584, %v603
    %v605 = vrot.slane %v592, 4
    %v606 = vsel %vm389, %v605, %v568
    %v607 = vrot.slane %v568, 4
    %v608 = vsel %vm389, %v592, %v607
    %v609 = vrot.slane %v596, 4
    %v610 = vsel %vm389, %v609, %v572
    %v611 = vrot.slane %v572, 4
    %v612 = vsel %vm389, %v596, %v611
    %v613 = vrot.slane %v214, 4
    %v614 = vsel %vm389, %v613, %v150
    %v615 = vrot.slane %v150, 4
    %v616 = vsel %vm389, %v214, %v615
    %v618 = vunpack.c.l.s4 1983009808
    %v619 = vunpack.c.0.s8 %v618
    %v620 = vperm.slane %v614, %v619
    %v622 = vunpack.c.l.s4 1983009808
    %v623 = vunpack.c.0.s8 %v622
    %v624 = vperm.slane %v616, %v623
    %v625 = vrot.slane %v246, 4
    %v626 = vsel %vm389, %v625, %v182
    %v627 = vrot.slane %v182, 4
    %v628 = vsel %vm389, %v246, %v627
    %v630 = vunpack.c.l.s4 1983009808
    %v631 = vunpack.c.0.s8 %v630
    %v632 = vperm.slane %v626, %v631
    %v634 = vunpack.c.l.s4 1983009808
    %v635 = vunpack.c.0.s8 %v634
    %v636 = vperm.slane %v628, %v635
    %v637 = vrot.slane %v342, 4
    %v638 = vsel %vm389, %v637, %v278
    %v639 = vrot.slane %v278, 4
    %v640 = vsel %vm389, %v342, %v639
    %v642 = vunpack.c.l.s4 1983009808
    %v643 = vunpack.c.0.s8 %v642
    %v644 = vperm.slane %v638, %v643
    %v646 = vunpack.c.l.s4 1983009808
    %v647 = vunpack.c.0.s8 %v646
    %v648 = vperm.slane %v640, %v647
    %v649 = vrot.slane %v374, 4
    %v650 = vsel %vm389, %v649, %v310
    %v651 = vrot.slane %v310, 4
    %v652 = vsel %vm389, %v374, %v651
    %v654 = vunpack.c.l.s4 1983009808
    %v655 = vunpack.c.0.s8 %v654
    %v656 = vperm.slane %v650, %v655
    %v658 = vunpack.c.l.s4 1983009808
    %v659 = vunpack.c.0.s8 %v658
    %v660 = vperm.slane %v652, %v659
    %v661 = vrot.slane %v632, 4
    %v662 = vsel %vm389, %v661, %v620
    %v663 = vrot.slane %v620, 4
    %v664 = vsel %vm389, %v632, %v663
    %v666 = vunpack.c.l.s4 1934713408
    %v667 = vunpack.c.0.s8 %v666
    %v668 = vperm.slane %v662, %v667
    %v670 = vunpack.c.l.s4 1934713408
    %v671 = vunpack.c.0.s8 %v670
    %v672 = vperm.slane %v664, %v671
    %v673 = vrot.slane %v636, 4
    %v674 = vsel %vm389, %v673, %v624
    %v675 = vrot.slane %v624, 4
    %v676 = vsel %vm389, %v636, %v675
    %v678 = vunpack.c.l.s4 1934713408
    %v679 = vunpack.c.0.s8 %v678
    %v680 = vperm.slane %v674, %v679
    %v682 = vunpack.c.l.s4 1934713408
    %v683 = vunpack.c.0.s8 %v682
    %v684 = vperm.slane %v676, %v683
    %v685 = vrot.slane %v656, 4
    %v686 = vsel %vm389, %v685, %v644
    %v687 = vrot.slane %v644, 4
    %v688 = vsel %vm389, %v656, %v687
    %v690 = vunpack.c.l.s4 1934713408
    %v691 = vunpack.c.0.s8 %v690
    %v692 = vperm.slane %v686, %v691
    %v694 = vunpack.c.l.s4 1934713408
    %v695 = vunpack.c.0.s8 %v694
    %v696 = vperm.slane %v688, %v695
    %v697 = vrot.slane %v660, 4
    %v698 = vsel %vm389, %v697, %v648
    %v699 = vrot.slane %v648, 4
    %v700 = vsel %vm389, %v660, %v699
    %v702 = vunpack.c.l.s4 1934713408
    %v703 = vunpack.c.0.s8 %v702
    %v704 = vperm.slane %v698, %v703
    %v706 = vunpack.c.l.s4 1934713408
    %v707 = vunpack.c.0.s8 %v706
    %v708 = vperm.slane %v700, %v707
    %v709 = vrot.slane %v692, 4
    %v710 = vsel %vm389, %v709, %v668
    %v711 = vrot.slane %v668, 4
    %v712 = vsel %vm389, %v692, %v711
    %v713 = vrot.slane %v696, 4
    %v714 = vsel %vm389, %v713, %v672
    %v715 = vrot.slane %v672, 4
    %v716 = vsel %vm389, %v696, %v715
    %v717 = vrot.slane %v704, 4
    %v718 = vsel %vm389, %v717, %v680
    %v719 = vrot.slane %v680, 4
    %v720 = vsel %vm389, %v704, %v719
    %v721 = vrot.slane %v708, 4
    %v722 = vsel %vm389, %v721, %v684
    %v723 = vrot.slane %v684, 4
    %v724 = vsel %vm389, %v708, %v723
    %v725 = vrot.slane %v215, 4
    %v726 = vsel %vm389, %v725, %v151
    %v727 = vrot.slane %v151, 4
    %v728 = vsel %vm389, %v215, %v727
    %v730 = vunpack.c.l.s4 1983009808
    %v731 = vunpack.c.0.s8 %v730
    %v732 = vperm.slane %v726, %v731
    %v734 = vunpack.c.l.s4 1983009808
    %v735 = vunpack.c.0.s8 %v734
    %v736 = vperm.slane %v728, %v735
    %v737 = vrot.slane %v247, 4
    %v738 = vsel %vm389, %v737, %v183
    %v739 = vrot.slane %v183, 4
    %v740 = vsel %vm389, %v247, %v739
    %v742 = vunpack.c.l.s4 1983009808
    %v743 = vunpack.c.0.s8 %v742
    %v744 = vperm.slane %v738, %v743
    %v746 = vunpack.c.l.s4 1983009808
    %v747 = vunpack.c.0.s8 %v746
    %v748 = vperm.slane %v740, %v747
    %v749 = vrot.slane %v343, 4
    %v750 = vsel %vm389, %v749, %v279
    %v751 = vrot.slane %v279, 4
    %v752 = vsel %vm389, %v343, %v751
    %v754 = vunpack.c.l.s4 1983009808
    %v755 = vunpack.c.0.s8 %v754
    %v756 = vperm.slane %v750, %v755
    %v758 = vunpack.c.l.s4 1983009808
    %v759 = vunpack.c.0.s8 %v758
    %v760 = vperm.slane %v752, %v759
    %v761 = vrot.slane %v375, 4
    %v762 = vsel %vm389, %v761, %v311
    %v763 = vrot.slane %v311, 4
    %v764 = vsel %vm389, %v375, %v763
    %v766 = vunpack.c.l.s4 1983009808
    %v767 = vunpack.c.0.s8 %v766
    %v768 = vperm.slane %v762, %v767
    %v770 = vunpack.c.l.s4 1983009808
    %v771 = vunpack.c.0.s8 %v770
    %v772 = vperm.slane %v764, %v771
    %v773 = vrot.slane %v744, 4
    %v774 = vsel %vm389, %v773, %v732
    %v775 = vrot.slane %v732, 4
    %v776 = vsel %vm389, %v744, %v775
    %v778 = vunpack.c.l.s4 1934713408
    %v779 = vunpack.c.0.s8 %v778
    %v780 = vperm.slane %v774, %v779
    %v782 = vunpack.c.l.s4 1934713408
    %v783 = vunpack.c.0.s8 %v782
    %v784 = vperm.slane %v776, %v783
    %v785 = vrot.slane %v748, 4
    %v786 = vsel %vm389, %v785, %v736
    %v787 = vrot.slane %v736, 4
    %v788 = vsel %vm389, %v748, %v787
    %v790 = vunpack.c.l.s4 1934713408
    %v791 = vunpack.c.0.s8 %v790
    %v792 = vperm.slane %v786, %v791
    %v794 = vunpack.c.l.s4 1934713408
    %v795 = vunpack.c.0.s8 %v794
    %v796 = vperm.slane %v788, %v795
    %v797 = vrot.slane %v768, 4
    %v798 = vsel %vm389, %v797, %v756
    %v799 = vrot.slane %v756, 4
    %v800 = vsel %vm389, %v768, %v799
    %v802 = vunpack.c.l.s4 1934713408
    %v803 = vunpack.c.0.s8 %v802
    %v804 = vperm.slane %v798, %v803
    %v806 = vunpack.c.l.s4 1934713408
    %v807 = vunpack.c.0.s8 %v806
    %v808 = vperm.slane %v800, %v807
    %v809 = vrot.slane %v772, 4
    %v810 = vsel %vm389, %v809, %v760
    %v811 = vrot.slane %v760, 4
    %v812 = vsel %vm389, %v772, %v811
    %v814 = vunpack.c.l.s4 1934713408
    %v815 = vunpack.c.0.s8 %v814
    %v816 = vperm.slane %v810, %v815
    %v818 = vunpack.c.l.s4 1934713408
    %v819 = vunpack.c.0.s8 %v818
    %v820 = vperm.slane %v812, %v819
    %v821 = vrot.slane %v804, 4
    %v822 = vsel %vm389, %v821, %v780
    %v823 = vrot.slane %v780, 4
    %v824 = vsel %vm389, %v804, %v823
    %v825 = vrot.slane %v808, 4
    %v826 = vsel %vm389, %v825, %v784
    %v827 = vrot.slane %v784, 4
    %v828 = vsel %vm389, %v808, %v827
    %v829 = vrot.slane %v816, 4
    %v830 = vsel %vm389, %v829, %v792
    %v831 = vrot.slane %v792, 4
    %v832 = vsel %vm389, %v816, %v831
    %v833 = vrot.slane %v820, 4
    %v834 = vsel %vm389, %v833, %v796
    %v835 = vrot.slane %v796, 4
    %v836 = vsel %vm389, %v820, %v835
    %v837 = vrot.slane %v216, 4
    %v838 = vsel %vm389, %v837, %v152
    %v839 = vrot.slane %v152, 4
    %v840 = vsel %vm389, %v216, %v839
    %v842 = vunpack.c.l.s4 1983009808
    %v843 = vunpack.c.0.s8 %v842
    %v844 = vperm.slane %v838, %v843
    %v846 = vunpack.c.l.s4 1983009808
    %v847 = vunpack.c.0.s8 %v846
    %v848 = vperm.slane %v840, %v847
    %v849 = vrot.slane %v248, 4
    %v850 = vsel %vm389, %v849, %v184
    %v851 = vrot.slane %v184, 4
    %v852 = vsel %vm389, %v248, %v851
    %v854 = vunpack.c.l.s4 1983009808
    %v855 = vunpack.c.0.s8 %v854
    %v856 = vperm.slane %v850, %v855
    %v858 = vunpack.c.l.s4 1983009808
    %v859 = vunpack.c.0.s8 %v858
    %v860 = vperm.slane %v852, %v859
    %v861 = vrot.slane %v344, 4
    %v862 = vsel %vm389, %v861, %v280
    %v863 = vrot.slane %v280, 4
    %v864 = vsel %vm389, %v344, %v863
    %v866 = vunpack.c.l.s4 1983009808
    %v867 = vunpack.c.0.s8 %v866
    %v868 = vperm.slane %v862, %v867
    %v870 = vunpack.c.l.s4 1983009808
    %v871 = vunpack.c.0.s8 %v870
    %v872 = vperm.slane %v864, %v871
    %v873 = vrot.slane %v376, 4
    %v874 = vsel %vm389, %v873, %v312
    %v875 = vrot.slane %v312, 4
    %v876 = vsel %vm389, %v376, %v875
    %v878 = vunpack.c.l.s4 1983009808
    %v879 = vunpack.c.0.s8 %v878
    %v880 = vperm.slane %v874, %v879
    %v882 = vunpack.c.l.s4 1983009808
    %v883 = vunpack.c.0.s8 %v882
    %v884 = vperm.slane %v876, %v883
    %v885 = vrot.slane %v856, 4
    %v886 = vsel %vm389, %v885, %v844
    %v887 = vrot.slane %v844, 4
    %v888 = vsel %vm389, %v856, %v887
    %v890 = vunpack.c.l.s4 1934713408
    %v891 = vunpack.c.0.s8 %v890
    %v892 = vperm.slane %v886, %v891
    %v894 = vunpack.c.l.s4 1934713408
    %v895 = vunpack.c.0.s8 %v894
    %v896 = vperm.slane %v888, %v895
    %v897 = vrot.slane %v860, 4
    %v898 = vsel %vm389, %v897, %v848
    %v899 = vrot.slane %v848, 4
    %v900 = vsel %vm389, %v860, %v899
    %v902 = vunpack.c.l.s4 1934713408
    %v903 = vunpack.c.0.s8 %v902
    %v904 = vperm.slane %v898, %v903
    %v906 = vunpack.c.l.s4 1934713408
    %v907 = vunpack.c.0.s8 %v906
    %v908 = vperm.slane %v900, %v907
    %v909 = vrot.slane %v880, 4
    %v910 = vsel %vm389, %v909, %v868
    %v911 = vrot.slane %v868, 4
    %v912 = vsel %vm389, %v880, %v911
    %v914 = vunpack.c.l.s4 1934713408
    %v915 = vunpack.c.0.s8 %v914
    %v916 = vperm.slane %v910, %v915
    %v918 = vunpack.c.l.s4 1934713408
    %v919 = vunpack.c.0.s8 %v918
    %v920 = vperm.slane %v912, %v919
    %v921 = vrot.slane %v884, 4
    %v922 = vsel %vm389, %v921, %v872
    %v923 = vrot.slane %v872, 4
    %v924 = vsel %vm389, %v884, %v923
    %v926 = vunpack.c.l.s4 1934713408
    %v927 = vunpack.c.0.s8 %v926
    %v928 = vperm.slane %v922, %v927
    %v930 = vunpack.c.l.s4 1934713408
    %v931 = vunpack.c.0.s8 %v930
    %v932 = vperm.slane %v924, %v931
    %v933 = vrot.slane %v916, 4
    %v934 = vsel %vm389, %v933, %v892
    %v935 = vrot.slane %v892, 4
    %v936 = vsel %vm389, %v916, %v935
    %v937 = vrot.slane %v920, 4
    %v938 = vsel %vm389, %v937, %v896
    %v939 = vrot.slane %v896, 4
    %v940 = vsel %vm389, %v920, %v939
    %v941 = vrot.slane %v928, 4
    %v942 = vsel %vm389, %v941, %v904
    %v943 = vrot.slane %v904, 4
    %v944 = vsel %vm389, %v928, %v943
    %v945 = vrot.slane %v932, 4
    %v946 = vsel %vm389, %v945, %v908
    %v947 = vrot.slane %v908, 4
    %v948 = vsel %vm389, %v932, %v947
    %v949 = vrot.slane %v217, 4
    %v950 = vsel %vm389, %v949, %v153
    %v951 = vrot.slane %v153, 4
    %v952 = vsel %vm389, %v217, %v951
    %v954 = vunpack.c.l.s4 1983009808
    %v955 = vunpack.c.0.s8 %v954
    %v956 = vperm.slane %v950, %v955
    %v958 = vunpack.c.l.s4 1983009808
    %v959 = vunpack.c.0.s8 %v958
    %v960 = vperm.slane %v952, %v959
    %v961 = vrot.slane %v249, 4
    %v962 = vsel %vm389, %v961, %v185
    %v963 = vrot.slane %v185, 4
    %v964 = vsel %vm389, %v249, %v963
    %v966 = vunpack.c.l.s4 1983009808
    %v967 = vunpack.c.0.s8 %v966
    %v968 = vperm.slane %v962, %v967
    %v970 = vunpack.c.l.s4 1983009808
    %v971 = vunpack.c.0.s8 %v970
    %v972 = vperm.slane %v964, %v971
    %v973 = vrot.slane %v345, 4
    %v974 = vsel %vm389, %v973, %v281
    %v975 = vrot.slane %v281, 4
    %v976 = vsel %vm389, %v345, %v975
    %v978 = vunpack.c.l.s4 1983009808
    %v979 = vunpack.c.0.s8 %v978
    %v980 = vperm.slane %v974, %v979
    %v982 = vunpack.c.l.s4 1983009808
    %v983 = vunpack.c.0.s8 %v982
    %v984 = vperm.slane %v976, %v983
    %v985 = vrot.slane %v377, 4
    %v986 = vsel %vm389, %v985, %v313
    %v987 = vrot.slane %v313, 4
    %v988 = vsel %vm389, %v377, %v987
    %v990 = vunpack.c.l.s4 1983009808
    %v991 = vunpack.c.0.s8 %v990
    %v992 = vperm.slane %v986, %v991
    %v994 = vunpack.c.l.s4 1983009808
    %v995 = vunpack.c.0.s8 %v994
    %v996 = vperm.slane %v988, %v995
    %v997 = vrot.slane %v968, 4
    %v998 = vsel %vm389, %v997, %v956
    %v999 = vrot.slane %v956, 4
    %v1000 = vsel %vm389, %v968, %v999
    %v1002 = vunpack.c.l.s4 1934713408
    %v1003 = vunpack.c.0.s8 %v1002
    %v1004 = vperm.slane %v998, %v1003
    %v1006 = vunpack.c.l.s4 1934713408
    %v1007 = vunpack.c.0.s8 %v1006
    %v1008 = vperm.slane %v1000, %v1007
    %v1009 = vrot.slane %v972, 4
    %v1010 = vsel %vm389, %v1009, %v960
    %v1011 = vrot.slane %v960, 4
    %v1012 = vsel %vm389, %v972, %v1011
    %v1014 = vunpack.c.l.s4 1934713408
    %v1015 = vunpack.c.0.s8 %v1014
    %v1016 = vperm.slane %v1010, %v1015
    %v1018 = vunpack.c.l.s4 1934713408
    %v1019 = vunpack.c.0.s8 %v1018
    %v1020 = vperm.slane %v1012, %v1019
    %v1021 = vrot.slane %v992, 4
    %v1022 = vsel %vm389, %v1021, %v980
    %v1023 = vrot.slane %v980, 4
    %v1024 = vsel %vm389, %v992, %v1023
    %v1026 = vunpack.c.l.s4 1934713408
    %v1027 = vunpack.c.0.s8 %v1026
    %v1028 = vperm.slane %v1022, %v1027
    %v1030 = vunpack.c.l.s4 1934713408
    %v1031 = vunpack.c.0.s8 %v1030
    %v1032 = vperm.slane %v1024, %v1031
    %v1033 = vrot.slane %v996, 4
    %v1034 = vsel %vm389, %v1033, %v984
    %v1035 = vrot.slane %v984, 4
    %v1036 = vsel %vm389, %v996, %v1035
    %v1038 = vunpack.c.l.s4 1934713408
    %v1039 = vunpack.c.0.s8 %v1038
    %v1040 = vperm.slane %v1034, %v1039
    %v1042 = vunpack.c.l.s4 1934713408
    %v1043 = vunpack.c.0.s8 %v1042
    %v1044 = vperm.slane %v1036, %v1043
    %v1045 = vrot.slane %v1028, 4
    %v1046 = vsel %vm389, %v1045, %v1004
    %v1047 = vrot.slane %v1004, 4
    %v1048 = vsel %vm389, %v1028, %v1047
    %v1049 = vrot.slane %v1032, 4
    %v1050 = vsel %vm389, %v1049, %v1008
    %v1051 = vrot.slane %v1008, 4
    %v1052 = vsel %vm389, %v1032, %v1051
    %v1053 = vrot.slane %v1040, 4
    %v1054 = vsel %vm389, %v1053, %v1016
    %v1055 = vrot.slane %v1016, 4
    %v1056 = vsel %vm389, %v1040, %v1055
    %v1057 = vrot.slane %v1044, 4
    %v1058 = vsel %vm389, %v1057, %v1020
    %v1059 = vrot.slane %v1020, 4
    %v1060 = vsel %vm389, %v1044, %v1059
    %v1061 = vrot.slane %v218, 4
    %v1062 = vsel %vm389, %v1061, %v154
    %v1063 = vrot.slane %v154, 4
    %v1064 = vsel %vm389, %v218, %v1063
    %v1066 = vunpack.c.l.s4 1983009808
    %v1067 = vunpack.c.0.s8 %v1066
    %v1068 = vperm.slane %v1062, %v1067
    %v1070 = vunpack.c.l.s4 1983009808
    %v1071 = vunpack.c.0.s8 %v1070
    %v1072 = vperm.slane %v1064, %v1071
    %v1073 = vrot.slane %v250, 4
    %v1074 = vsel %vm389, %v1073, %v186
    %v1075 = vrot.slane %v186, 4
    %v1076 = vsel %vm389, %v250, %v1075
    %v1078 = vunpack.c.l.s4 1983009808
    %v1079 = vunpack.c.0.s8 %v1078
    %v1080 = vperm.slane %v1074, %v1079
    %v1082 = vunpack.c.l.s4 1983009808
    %v1083 = vunpack.c.0.s8 %v1082
    %v1084 = vperm.slane %v1076, %v1083
    %v1085 = vrot.slane %v346, 4
    %v1086 = vsel %vm389, %v1085, %v282
    %v1087 = vrot.slane %v282, 4
    %v1088 = vsel %vm389, %v346, %v1087
    %v1090 = vunpack.c.l.s4 1983009808
    %v1091 = vunpack.c.0.s8 %v1090
    %v1092 = vperm.slane %v1086, %v1091
    %v1094 = vunpack.c.l.s4 1983009808
    %v1095 = vunpack.c.0.s8 %v1094
    %v1096 = vperm.slane %v1088, %v1095
    %v1097 = vrot.slane %v378, 4
    %v1098 = vsel %vm389, %v1097, %v314
    %v1099 = vrot.slane %v314, 4
    %v1100 = vsel %vm389, %v378, %v1099
    %v1102 = vunpack.c.l.s4 1983009808
    %v1103 = vunpack.c.0.s8 %v1102
    %v1104 = vperm.slane %v1098, %v1103
    %v1106 = vunpack.c.l.s4 1983009808
    %v1107 = vunpack.c.0.s8 %v1106
    %v1108 = vperm.slane %v1100, %v1107
    %v1109 = vrot.slane %v1080, 4
    %v1110 = vsel %vm389, %v1109, %v1068
    %v1111 = vrot.slane %v1068, 4
    %v1112 = vsel %vm389, %v1080, %v1111
    %v1114 = vunpack.c.l.s4 1934713408
    %v1115 = vunpack.c.0.s8 %v1114
    %v1116 = vperm.slane %v1110, %v1115
    %v1118 = vunpack.c.l.s4 1934713408
    %v1119 = vunpack.c.0.s8 %v1118
    %v1120 = vperm.slane %v1112, %v1119
    %v1121 = vrot.slane %v1084, 4
    %v1122 = vsel %vm389, %v1121, %v1072
    %v1123 = vrot.slane %v1072, 4
    %v1124 = vsel %vm389, %v1084, %v1123
    %v1126 = vunpack.c.l.s4 1934713408
    %v1127 = vunpack.c.0.s8 %v1126
    %v1128 = vperm.slane %v1122, %v1127
    %v1130 = vunpack.c.l.s4 1934713408
    %v1131 = vunpack.c.0.s8 %v1130
    %v1132 = vperm.slane %v1124, %v1131
    %v1133 = vrot.slane %v1104, 4
    %v1134 = vsel %vm389, %v1133, %v1092
    %v1135 = vrot.slane %v1092, 4
    %v1136 = vsel %vm389, %v1104, %v1135
    %v1138 = vunpack.c.l.s4 1934713408
    %v1139 = vunpack.c.0.s8 %v1138
    %v1140 = vperm.slane %v1134, %v1139
    %v1142 = vunpack.c.l.s4 1934713408
    %v1143 = vunpack.c.0.s8 %v1142
    %v1144 = vperm.slane %v1136, %v1143
    %v1145 = vrot.slane %v1108, 4
    %v1146 = vsel %vm389, %v1145, %v1096
    %v1147 = vrot.slane %v1096, 4
    %v1148 = vsel %vm389, %v1108, %v1147
    %v1150 = vunpack.c.l.s4 1934713408
    %v1151 = vunpack.c.0.s8 %v1150
    %v1152 = vperm.slane %v1146, %v1151
    %v1154 = vunpack.c.l.s4 1934713408
    %v1155 = vunpack.c.0.s8 %v1154
    %v1156 = vperm.slane %v1148, %v1155
    %v1157 = vrot.slane %v1140, 4
    %v1158 = vsel %vm389, %v1157, %v1116
    %v1159 = vrot.slane %v1116, 4
    %v1160 = vsel %vm389, %v1140, %v1159
    %v1161 = vrot.slane %v1144, 4
    %v1162 = vsel %vm389, %v1161, %v1120
    %v1163 = vrot.slane %v1120, 4
    %v1164 = vsel %vm389, %v1144, %v1163
    %v1165 = vrot.slane %v1152, 4
    %v1166 = vsel %vm389, %v1165, %v1128
    %v1167 = vrot.slane %v1128, 4
    %v1168 = vsel %vm389, %v1152, %v1167
    %v1169 = vrot.slane %v1156, 4
    %v1170 = vsel %vm389, %v1169, %v1132
    %v1171 = vrot.slane %v1132, 4
    %v1172 = vsel %vm389, %v1156, %v1171
    %v1173 = vrot.slane %v219, 4
    %v1174 = vsel %vm389, %v1173, %v155
    %v1175 = vrot.slane %v155, 4
    %v1176 = vsel %vm389, %v219, %v1175
    %v1178 = vunpack.c.l.s4 1983009808
    %v1179 = vunpack.c.0.s8 %v1178
    %v1180 = vperm.slane %v1174, %v1179
    %v1182 = vunpack.c.l.s4 1983009808
    %v1183 = vunpack.c.0.s8 %v1182
    %v1184 = vperm.slane %v1176, %v1183
    %v1185 = vrot.slane %v251, 4
    %v1186 = vsel %vm389, %v1185, %v187
    %v1187 = vrot.slane %v187, 4
    %v1188 = vsel %vm389, %v251, %v1187
    %v1190 = vunpack.c.l.s4 1983009808
    %v1191 = vunpack.c.0.s8 %v1190
    %v1192 = vperm.slane %v1186, %v1191
    %v1194 = vunpack.c.l.s4 1983009808
    %v1195 = vunpack.c.0.s8 %v1194
    %v1196 = vperm.slane %v1188, %v1195
    %v1197 = vrot.slane %v347, 4
    %v1198 = vsel %vm389, %v1197, %v283
    %v1199 = vrot.slane %v283, 4
    %v1200 = vsel %vm389, %v347, %v1199
    %v1202 = vunpack.c.l.s4 1983009808
    %v1203 = vunpack.c.0.s8 %v1202
    %v1204 = vperm.slane %v1198, %v1203
    %v1206 = vunpack.c.l.s4 1983009808
    %v1207 = vunpack.c.0.s8 %v1206
    %v1208 = vperm.slane %v1200, %v1207
    %v1209 = vrot.slane %v379, 4
    %v1210 = vsel %vm389, %v1209, %v315
    %v1211 = vrot.slane %v315, 4
    %v1212 = vsel %vm389, %v379, %v1211
    %v1214 = vunpack.c.l.s4 1983009808
    %v1215 = vunpack.c.0.s8 %v1214
    %v1216 = vperm.slane %v1210, %v1215
    %v1218 = vunpack.c.l.s4 1983009808
    %v1219 = vunpack.c.0.s8 %v1218
    %v1220 = vperm.slane %v1212, %v1219
    %v1221 = vrot.slane %v1192, 4
    %v1222 = vsel %vm389, %v1221, %v1180
    %v1223 = vrot.slane %v1180, 4
    %v1224 = vsel %vm389, %v1192, %v1223
    %v1226 = vunpack.c.l.s4 1934713408
    %v1227 = vunpack.c.0.s8 %v1226
    %v1228 = vperm.slane %v1222, %v1227
    %v1230 = vunpack.c.l.s4 1934713408
    %v1231 = vunpack.c.0.s8 %v1230
    %v1232 = vperm.slane %v1224, %v1231
    %v1233 = vrot.slane %v1196, 4
    %v1234 = vsel %vm389, %v1233, %v1184
    %v1235 = vrot.slane %v1184, 4
    %v1236 = vsel %vm389, %v1196, %v1235
    %v1238 = vunpack.c.l.s4 1934713408
    %v1239 = vunpack.c.0.s8 %v1238
    %v1240 = vperm.slane %v1234, %v1239
    %v1242 = vunpack.c.l.s4 1934713408
    %v1243 = vunpack.c.0.s8 %v1242
    %v1244 = vperm.slane %v1236, %v1243
    %v1245 = vrot.slane %v1216, 4
    %v1246 = vsel %vm389, %v1245, %v1204
    %v1247 = vrot.slane %v1204, 4
    %v1248 = vsel %vm389, %v1216, %v1247
    %v1250 = vunpack.c.l.s4 1934713408
    %v1251 = vunpack.c.0.s8 %v1250
    %v1252 = vperm.slane %v1246, %v1251
    %v1254 = vunpack.c.l.s4 1934713408
    %v1255 = vunpack.c.0.s8 %v1254
    %v1256 = vperm.slane %v1248, %v1255
    %v1257 = vrot.slane %v1220, 4
    %v1258 = vsel %vm389, %v1257, %v1208
    %v1259 = vrot.slane %v1208, 4
    %v1260 = vsel %vm389, %v1220, %v1259
    %v1262 = vunpack.c.l.s4 1934713408
    %v1263 = vunpack.c.0.s8 %v1262
    %v1264 = vperm.slane %v1258, %v1263
    %v1266 = vunpack.c.l.s4 1934713408
    %v1267 = vunpack.c.0.s8 %v1266
    %v1268 = vperm.slane %v1260, %v1267
    %v1269 = vrot.slane %v1252, 4
    %v1270 = vsel %vm389, %v1269, %v1228
    %v1271 = vrot.slane %v1228, 4
    %v1272 = vsel %vm389, %v1252, %v1271
    %v1273 = vrot.slane %v1256, 4
    %v1274 = vsel %vm389, %v1273, %v1232
    %v1275 = vrot.slane %v1232, 4
    %v1276 = vsel %vm389, %v1256, %v1275
    %v1277 = vrot.slane %v1264, 4
    %v1278 = vsel %vm389, %v1277, %v1240
    %v1279 = vrot.slane %v1240, 4
    %v1280 = vsel %vm389, %v1264, %v1279
    %v1281 = vrot.slane %v1268, 4
    %v1282 = vsel %vm389, %v1281, %v1244
    %v1283 = vrot.slane %v1244, 4
    %v1284 = vsel %vm389, %v1268, %v1283
    %v1285 = vrot.slane %v220, 4
    %v1286 = vsel %vm389, %v1285, %v156
    %v1287 = vrot.slane %v156, 4
    %v1288 = vsel %vm389, %v220, %v1287
    %v1290 = vunpack.c.l.s4 1983009808
    %v1291 = vunpack.c.0.s8 %v1290
    %v1292 = vperm.slane %v1286, %v1291
    %v1294 = vunpack.c.l.s4 1983009808
    %v1295 = vunpack.c.0.s8 %v1294
    %v1296 = vperm.slane %v1288, %v1295
    %v1297 = vrot.slane %v252, 4
    %v1298 = vsel %vm389, %v1297, %v188
    %v1299 = vrot.slane %v188, 4
    %v1300 = vsel %vm389, %v252, %v1299
    %v1302 = vunpack.c.l.s4 1983009808
    %v1303 = vunpack.c.0.s8 %v1302
    %v1304 = vperm.slane %v1298, %v1303
    %v1306 = vunpack.c.l.s4 1983009808
    %v1307 = vunpack.c.0.s8 %v1306
    %v1308 = vperm.slane %v1300, %v1307
    %v1309 = vrot.slane %v348, 4
    %v1310 = vsel %vm389, %v1309, %v284
    %v1311 = vrot.slane %v284, 4
    %v1312 = vsel %vm389, %v348, %v1311
    %v1314 = vunpack.c.l.s4 1983009808
    %v1315 = vunpack.c.0.s8 %v1314
    %v1316 = vperm.slane %v1310, %v1315
    %v1318 = vunpack.c.l.s4 1983009808
    %v1319 = vunpack.c.0.s8 %v1318
    %v1320 = vperm.slane %v1312, %v1319
    %v1321 = vrot.slane %v380, 4
    %v1322 = vsel %vm389, %v1321, %v316
    %v1323 = vrot.slane %v316, 4
    %v1324 = vsel %vm389, %v380, %v1323
    %v1326 = vunpack.c.l.s4 1983009808
    %v1327 = vunpack.c.0.s8 %v1326
    %v1328 = vperm.slane %v1322, %v1327
    %v1330 = vunpack.c.l.s4 1983009808
    %v1331 = vunpack.c.0.s8 %v1330
    %v1332 = vperm.slane %v1324, %v1331
    %v1333 = vrot.slane %v1304, 4
    %v1334 = vsel %vm389, %v1333, %v1292
    %v1335 = vrot.slane %v1292, 4
    %v1336 = vsel %vm389, %v1304, %v1335
    %v1338 = vunpack.c.l.s4 1934713408
    %v1339 = vunpack.c.0.s8 %v1338
    %v1340 = vperm.slane %v1334, %v1339
    %v1342 = vunpack.c.l.s4 1934713408
    %v1343 = vunpack.c.0.s8 %v1342
    %v1344 = vperm.slane %v1336, %v1343
    %v1345 = vrot.slane %v1308, 4
    %v1346 = vsel %vm389, %v1345, %v1296
    %v1347 = vrot.slane %v1296, 4
    %v1348 = vsel %vm389, %v1308, %v1347
    %v1350 = vunpack.c.l.s4 1934713408
    %v1351 = vunpack.c.0.s8 %v1350
    %v1352 = vperm.slane %v1346, %v1351
    %v1354 = vunpack.c.l.s4 1934713408
    %v1355 = vunpack.c.0.s8 %v1354
    %v1356 = vperm.slane %v1348, %v1355
    %v1357 = vrot.slane %v1328, 4
    %v1358 = vsel %vm389, %v1357, %v1316
    %v1359 = vrot.slane %v1316, 4
    %v1360 = vsel %vm389, %v1328, %v1359
    %v1362 = vunpack.c.l.s4 1934713408
    %v1363 = vunpack.c.0.s8 %v1362
    %v1364 = vperm.slane %v1358, %v1363
    %v1366 = vunpack.c.l.s4 1934713408
    %v1367 = vunpack.c.0.s8 %v1366
    %v1368 = vperm.slane %v1360, %v1367
    %v1369 = vrot.slane %v1332, 4
    %v1370 = vsel %vm389, %v1369, %v1320
    %v1371 = vrot.slane %v1320, 4
    %v1372 = vsel %vm389, %v1332, %v1371
    %v1374 = vunpack.c.l.s4 1934713408
    %v1375 = vunpack.c.0.s8 %v1374
    %v1376 = vperm.slane %v1370, %v1375
    %v1378 = vunpack.c.l.s4 1934713408
    %v1379 = vunpack.c.0.s8 %v1378
    %v1380 = vperm.slane %v1372, %v1379
    %v1381 = vrot.slane %v1364, 4
    %v1382 = vsel %vm389, %v1381, %v1340
    %v1383 = vrot.slane %v1340, 4
    %v1384 = vsel %vm389, %v1364, %v1383
    %v1385 = vrot.slane %v1368, 4
    %v1386 = vsel %vm389, %v1385, %v1344
    %v1387 = vrot.slane %v1344, 4
    %v1388 = vsel %vm389, %v1368, %v1387
    %v1389 = vrot.slane %v1376, 4
    %v1390 = vsel %vm389, %v1389, %v1352
    %v1391 = vrot.slane %v1352, 4
    %v1392 = vsel %vm389, %v1376, %v1391
    %v1393 = vrot.slane %v1380, 4
    %v1394 = vsel %vm389, %v1393, %v1356
    %v1395 = vrot.slane %v1356, 4
    %v1396 = vsel %vm389, %v1380, %v1395
    %v1397 = vrot.slane %v221, 4
    %v1398 = vsel %vm389, %v1397, %v157
    %v1399 = vrot.slane %v157, 4
    %v1400 = vsel %vm389, %v221, %v1399
    %v1402 = vunpack.c.l.s4 1983009808
    %v1403 = vunpack.c.0.s8 %v1402
    %v1404 = vperm.slane %v1398, %v1403
    %v1406 = vunpack.c.l.s4 1983009808
    %v1407 = vunpack.c.0.s8 %v1406
    %v1408 = vperm.slane %v1400, %v1407
    %v1409 = vrot.slane %v253, 4
    %v1410 = vsel %vm389, %v1409, %v189
    %v1411 = vrot.slane %v189, 4
    %v1412 = vsel %vm389, %v253, %v1411
    %v1414 = vunpack.c.l.s4 1983009808
    %v1415 = vunpack.c.0.s8 %v1414
    %v1416 = vperm.slane %v1410, %v1415
    %v1418 = vunpack.c.l.s4 1983009808
    %v1419 = vunpack.c.0.s8 %v1418
    %v1420 = vperm.slane %v1412, %v1419
    %v1421 = vrot.slane %v349, 4
    %v1422 = vsel %vm389, %v1421, %v285
    %v1423 = vrot.slane %v285, 4
    %v1424 = vsel %vm389, %v349, %v1423
    %v1426 = vunpack.c.l.s4 1983009808
    %v1427 = vunpack.c.0.s8 %v1426
    %v1428 = vperm.slane %v1422, %v1427
    %v1430 = vunpack.c.l.s4 1983009808
    %v1431 = vunpack.c.0.s8 %v1430
    %v1432 = vperm.slane %v1424, %v1431
    %v1433 = vrot.slane %v381, 4
    %v1434 = vsel %vm389, %v1433, %v317
    %v1435 = vrot.slane %v317, 4
    %v1436 = vsel %vm389, %v381, %v1435
    %v1438 = vunpack.c.l.s4 1983009808
    %v1439 = vunpack.c.0.s8 %v1438
    %v1440 = vperm.slane %v1434, %v1439
    %v1442 = vunpack.c.l.s4 1983009808
    %v1443 = vunpack.c.0.s8 %v1442
    %v1444 = vperm.slane %v1436, %v1443
    %v1445 = vrot.slane %v1416, 4
    %v1446 = vsel %vm389, %v1445, %v1404
    %v1447 = vrot.slane %v1404, 4
    %v1448 = vsel %vm389, %v1416, %v1447
    %v1450 = vunpack.c.l.s4 1934713408
    %v1451 = vunpack.c.0.s8 %v1450
    %v1452 = vperm.slane %v1446, %v1451
    %v1454 = vunpack.c.l.s4 1934713408
    %v1455 = vunpack.c.0.s8 %v1454
    %v1456 = vperm.slane %v1448, %v1455
    %v1457 = vrot.slane %v1420, 4
    %v1458 = vsel %vm389, %v1457, %v1408
    %v1459 = vrot.slane %v1408, 4
    %v1460 = vsel %vm389, %v1420, %v1459
    %v1462 = vunpack.c.l.s4 1934713408
    %v1463 = vunpack.c.0.s8 %v1462
    %v1464 = vperm.slane %v1458, %v1463
    %v1466 = vunpack.c.l.s4 1934713408
    %v1467 = vunpack.c.0.s8 %v1466
    %v1468 = vperm.slane %v1460, %v1467
    %v1469 = vrot.slane %v1440, 4
    %v1470 = vsel %vm389, %v1469, %v1428
    %v1471 = vrot.slane %v1428, 4
    %v1472 = vsel %vm389, %v1440, %v1471
    %v1474 = vunpack.c.l.s4 1934713408
    %v1475 = vunpack.c.0.s8 %v1474
    %v1476 = vperm.slane %v1470, %v1475
    %v1478 = vunpack.c.l.s4 1934713408
    %v1479 = vunpack.c.0.s8 %v1478
    %v1480 = vperm.slane %v1472, %v1479
    %v1481 = vrot.slane %v1444, 4
    %v1482 = vsel %vm389, %v1481, %v1432
    %v1483 = vrot.slane %v1432, 4
    %v1484 = vsel %vm389, %v1444, %v1483
    %v1486 = vunpack.c.l.s4 1934713408
    %v1487 = vunpack.c.0.s8 %v1486
    %v1488 = vperm.slane %v1482, %v1487
    %v1490 = vunpack.c.l.s4 1934713408
    %v1491 = vunpack.c.0.s8 %v1490
    %v1492 = vperm.slane %v1484, %v1491
    %v1493 = vrot.slane %v1476, 4
    %v1494 = vsel %vm389, %v1493, %v1452
    %v1495 = vrot.slane %v1452, 4
    %v1496 = vsel %vm389, %v1476, %v1495
    %v1497 = vrot.slane %v1480, 4
    %v1498 = vsel %vm389, %v1497, %v1456
    %v1499 = vrot.slane %v1456, 4
    %v1500 = vsel %vm389, %v1480, %v1499
    %v1501 = vrot.slane %v1488, 4
    %v1502 = vsel %vm389, %v1501, %v1464
    %v1503 = vrot.slane %v1464, 4
    %v1504 = vsel %vm389, %v1488, %v1503
    %v1505 = vrot.slane %v1492, 4
    %v1506 = vsel %vm389, %v1505, %v1468
    %v1507 = vrot.slane %v1468, 4
    %v1508 = vsel %vm389, %v1492, %v1507
    %v1509 = vrot.slane %v222, 4
    %v1510 = vsel %vm389, %v1509, %v158
    %v1511 = vrot.slane %v158, 4
    %v1512 = vsel %vm389, %v222, %v1511
    %v1514 = vunpack.c.l.s4 1983009808
    %v1515 = vunpack.c.0.s8 %v1514
    %v1516 = vperm.slane %v1510, %v1515
    %v1518 = vunpack.c.l.s4 1983009808
    %v1519 = vunpack.c.0.s8 %v1518
    %v1520 = vperm.slane %v1512, %v1519
    %v1521 = vrot.slane %v254, 4
    %v1522 = vsel %vm389, %v1521, %v190
    %v1523 = vrot.slane %v190, 4
    %v1524 = vsel %vm389, %v254, %v1523
    %v1526 = vunpack.c.l.s4 1983009808
    %v1527 = vunpack.c.0.s8 %v1526
    %v1528 = vperm.slane %v1522, %v1527
    %v1530 = vunpack.c.l.s4 1983009808
    %v1531 = vunpack.c.0.s8 %v1530
    %v1532 = vperm.slane %v1524, %v1531
    %v1533 = vrot.slane %v350, 4
    %v1534 = vsel %vm389, %v1533, %v286
    %v1535 = vrot.slane %v286, 4
    %v1536 = vsel %vm389, %v350, %v1535
    %v1538 = vunpack.c.l.s4 1983009808
    %v1539 = vunpack.c.0.s8 %v1538
    %v1540 = vperm.slane %v1534, %v1539
    %v1542 = vunpack.c.l.s4 1983009808
    %v1543 = vunpack.c.0.s8 %v1542
    %v1544 = vperm.slane %v1536, %v1543
    %v1545 = vrot.slane %v382, 4
    %v1546 = vsel %vm389, %v1545, %v318
    %v1547 = vrot.slane %v318, 4
    %v1548 = vsel %vm389, %v382, %v1547
    %v1550 = vunpack.c.l.s4 1983009808
    %v1551 = vunpack.c.0.s8 %v1550
    %v1552 = vperm.slane %v1546, %v1551
    %v1554 = vunpack.c.l.s4 1983009808
    %v1555 = vunpack.c.0.s8 %v1554
    %v1556 = vperm.slane %v1548, %v1555
    %v1557 = vrot.slane %v1528, 4
    %v1558 = vsel %vm389, %v1557, %v1516
    %v1559 = vrot.slane %v1516, 4
    %v1560 = vsel %vm389, %v1528, %v1559
    %v1562 = vunpack.c.l.s4 1934713408
    %v1563 = vunpack.c.0.s8 %v1562
    %v1564 = vperm.slane %v1558, %v1563
    %v1566 = vunpack.c.l.s4 1934713408
    %v1567 = vunpack.c.0.s8 %v1566
    %v1568 = vperm.slane %v1560, %v1567
    %v1569 = vrot.slane %v1532, 4
    %v1570 = vsel %vm389, %v1569, %v1520
    %v1571 = vrot.slane %v1520, 4
    %v1572 = vsel %vm389, %v1532, %v1571
    %v1574 = vunpack.c.l.s4 1934713408
    %v1575 = vunpack.c.0.s8 %v1574
    %v1576 = vperm.slane %v1570, %v1575
    %v1578 = vunpack.c.l.s4 1934713408
    %v1579 = vunpack.c.0.s8 %v1578
    %v1580 = vperm.slane %v1572, %v1579
    %v1581 = vrot.slane %v1552, 4
    %v1582 = vsel %vm389, %v1581, %v1540
    %v1583 = vrot.slane %v1540, 4
    %v1584 = vsel %vm389, %v1552, %v1583
    %v1586 = vunpack.c.l.s4 1934713408
    %v1587 = vunpack.c.0.s8 %v1586
    %v1588 = vperm.slane %v1582, %v1587
    %v1590 = vunpack.c.l.s4 1934713408
    %v1591 = vunpack.c.0.s8 %v1590
    %v1592 = vperm.slane %v1584, %v1591
    %v1593 = vrot.slane %v1556, 4
    %v1594 = vsel %vm389, %v1593, %v1544
    %v1595 = vrot.slane %v1544, 4
    %v1596 = vsel %vm389, %v1556, %v1595
    %v1598 = vunpack.c.l.s4 1934713408
    %v1599 = vunpack.c.0.s8 %v1598
    %v1600 = vperm.slane %v1594, %v1599
    %v1602 = vunpack.c.l.s4 1934713408
    %v1603 = vunpack.c.0.s8 %v1602
    %v1604 = vperm.slane %v1596, %v1603
    %v1605 = vrot.slane %v1588, 4
    %v1606 = vsel %vm389, %v1605, %v1564
    %v1607 = vrot.slane %v1564, 4
    %v1608 = vsel %vm389, %v1588, %v1607
    %v1609 = vrot.slane %v1592, 4
    %v1610 = vsel %vm389, %v1609, %v1568
    %v1611 = vrot.slane %v1568, 4
    %v1612 = vsel %vm389, %v1592, %v1611
    %v1613 = vrot.slane %v1600, 4
    %v1614 = vsel %vm389, %v1613, %v1576
    %v1615 = vrot.slane %v1576, 4
    %v1616 = vsel %vm389, %v1600, %v1615
    %v1617 = vrot.slane %v1604, 4
    %v1618 = vsel %vm389, %v1617, %v1580
    %v1619 = vrot.slane %v1580, 4
    %v1620 = vsel %vm389, %v1604, %v1619
    %v1621 = vrot.slane %v223, 4
    %v1622 = vsel %vm389, %v1621, %v159
    %v1623 = vrot.slane %v159, 4
    %v1624 = vsel %vm389, %v223, %v1623
    %v1626 = vunpack.c.l.s4 1983009808
    %v1627 = vunpack.c.0.s8 %v1626
    %v1628 = vperm.slane %v1622, %v1627
    %v1630 = vunpack.c.l.s4 1983009808
    %v1631 = vunpack.c.0.s8 %v1630
    %v1632 = vperm.slane %v1624, %v1631
    %v1633 = vrot.slane %v255, 4
    %v1634 = vsel %vm389, %v1633, %v191
    %v1635 = vrot.slane %v191, 4
    %v1636 = vsel %vm389, %v255, %v1635
    %v1638 = vunpack.c.l.s4 1983009808
    %v1639 = vunpack.c.0.s8 %v1638
    %v1640 = vperm.slane %v1634, %v1639
    %v1642 = vunpack.c.l.s4 1983009808
    %v1643 = vunpack.c.0.s8 %v1642
    %v1644 = vperm.slane %v1636, %v1643
    %v1645 = vrot.slane %v351, 4
    %v1646 = vsel %vm389, %v1645, %v287
    %v1647 = vrot.slane %v287, 4
    %v1648 = vsel %vm389, %v351, %v1647
    %v1650 = vunpack.c.l.s4 1983009808
    %v1651 = vunpack.c.0.s8 %v1650
    %v1652 = vperm.slane %v1646, %v1651
    %v1654 = vunpack.c.l.s4 1983009808
    %v1655 = vunpack.c.0.s8 %v1654
    %v1656 = vperm.slane %v1648, %v1655
    %v1657 = vrot.slane %v383, 4
    %v1658 = vsel %vm389, %v1657, %v319
    %v1659 = vrot.slane %v319, 4
    %v1660 = vsel %vm389, %v383, %v1659
    %v1662 = vunpack.c.l.s4 1983009808
    %v1663 = vunpack.c.0.s8 %v1662
    %v1664 = vperm.slane %v1658, %v1663
    %v1666 = vunpack.c.l.s4 1983009808
    %v1667 = vunpack.c.0.s8 %v1666
    %v1668 = vperm.slane %v1660, %v1667
    %v1669 = vrot.slane %v1640, 4
    %v1670 = vsel %vm389, %v1669, %v1628
    %v1671 = vrot.slane %v1628, 4
    %v1672 = vsel %vm389, %v1640, %v1671
    %v1674 = vunpack.c.l.s4 1934713408
    %v1675 = vunpack.c.0.s8 %v1674
    %v1676 = vperm.slane %v1670, %v1675
    %v1678 = vunpack.c.l.s4 1934713408
    %v1679 = vunpack.c.0.s8 %v1678
    %v1680 = vperm.slane %v1672, %v1679
    %v1681 = vrot.slane %v1644, 4
    %v1682 = vsel %vm389, %v1681, %v1632
    %v1683 = vrot.slane %v1632, 4
    %v1684 = vsel %vm389, %v1644, %v1683
    %v1686 = vunpack.c.l.s4 1934713408
    %v1687 = vunpack.c.0.s8 %v1686
    %v1688 = vperm.slane %v1682, %v1687
    %v1690 = vunpack.c.l.s4 1934713408
    %v1691 = vunpack.c.0.s8 %v1690
    %v1692 = vperm.slane %v1684, %v1691
    %v1693 = vrot.slane %v1664, 4
    %v1694 = vsel %vm389, %v1693, %v1652
    %v1695 = vrot.slane %v1652, 4
    %v1696 = vsel %vm389, %v1664, %v1695
    %v1698 = vunpack.c.l.s4 1934713408
    %v1699 = vunpack.c.0.s8 %v1698
    %v1700 = vperm.slane %v1694, %v1699
    %v1702 = vunpack.c.l.s4 1934713408
    %v1703 = vunpack.c.0.s8 %v1702
    %v1704 = vperm.slane %v1696, %v1703
    %v1705 = vrot.slane %v1668, 4
    %v1706 = vsel %vm389, %v1705, %v1656
    %v1707 = vrot.slane %v1656, 4
    %v1708 = vsel %vm389, %v1668, %v1707
    %v1710 = vunpack.c.l.s4 1934713408
    %v1711 = vunpack.c.0.s8 %v1710
    %v1712 = vperm.slane %v1706, %v1711
    %v1714 = vunpack.c.l.s4 1934713408
    %v1715 = vunpack.c.0.s8 %v1714
    %v1716 = vperm.slane %v1708, %v1715
    %v1717 = vrot.slane %v1700, 4
    %v1718 = vsel %vm389, %v1717, %v1676
    %v1719 = vrot.slane %v1676, 4
    %v1720 = vsel %vm389, %v1700, %v1719
    %v1721 = vrot.slane %v1704, 4
    %v1722 = vsel %vm389, %v1721, %v1680
    %v1723 = vrot.slane %v1680, 4
    %v1724 = vsel %vm389, %v1704, %v1723
    %v1725 = vrot.slane %v1712, 4
    %v1726 = vsel %vm389, %v1725, %v1688
    %v1727 = vrot.slane %v1688, 4
    %v1728 = vsel %vm389, %v1712, %v1727
    %v1729 = vrot.slane %v1716, 4
    %v1730 = vsel %vm389, %v1729, %v1692
    %v1731 = vrot.slane %v1692, 4
    %v1732 = vsel %vm389, %v1716, %v1731
    %v1733 = vrot.slane %v224, 4
    %v1734 = vsel %vm389, %v1733, %v160
    %v1735 = vrot.slane %v160, 4
    %v1736 = vsel %vm389, %v224, %v1735
    %v1738 = vunpack.c.l.s4 1983009808
    %v1739 = vunpack.c.0.s8 %v1738
    %v1740 = vperm.slane %v1734, %v1739
    %v1742 = vunpack.c.l.s4 1983009808
    %v1743 = vunpack.c.0.s8 %v1742
    %v1744 = vperm.slane %v1736, %v1743
    %v1745 = vrot.slane %v256, 4
    %v1746 = vsel %vm389, %v1745, %v192
    %v1747 = vrot.slane %v192, 4
    %v1748 = vsel %vm389, %v256, %v1747
    %v1750 = vunpack.c.l.s4 1983009808
    %v1751 = vunpack.c.0.s8 %v1750
    %v1752 = vperm.slane %v1746, %v1751
    %v1754 = vunpack.c.l.s4 1983009808
    %v1755 = vunpack.c.0.s8 %v1754
    %v1756 = vperm.slane %v1748, %v1755
    %v1757 = vrot.slane %v352, 4
    %v1758 = vsel %vm389, %v1757, %v288
    %v1759 = vrot.slane %v288, 4
    %v1760 = vsel %vm389, %v352, %v1759
    %v1762 = vunpack.c.l.s4 1983009808
    %v1763 = vunpack.c.0.s8 %v1762
    %v1764 = vperm.slane %v1758, %v1763
    %v1766 = vunpack.c.l.s4 1983009808
    %v1767 = vunpack.c.0.s8 %v1766
    %v1768 = vperm.slane %v1760, %v1767
    %v1769 = vrot.slane %v384, 4
    %v1770 = vsel %vm389, %v1769, %v320
    %v1771 = vrot.slane %v320, 4
    %v1772 = vsel %vm389, %v384, %v1771
    %v1774 = vunpack.c.l.s4 1983009808
    %v1775 = vunpack.c.0.s8 %v1774
    %v1776 = vperm.slane %v1770, %v1775
    %v1778 = vunpack.c.l.s4 1983009808
    %v1779 = vunpack.c.0.s8 %v1778
    %v1780 = vperm.slane %v1772, %v1779
    %v1781 = vrot.slane %v1752, 4
    %v1782 = vsel %vm389, %v1781, %v1740
    %v1783 = vrot.slane %v1740, 4
    %v1784 = vsel %vm389, %v1752, %v1783
    %v1786 = vunpack.c.l.s4 1934713408
    %v1787 = vunpack.c.0.s8 %v1786
    %v1788 = vperm.slane %v1782, %v1787
    %v1790 = vunpack.c.l.s4 1934713408
    %v1791 = vunpack.c.0.s8 %v1790
    %v1792 = vperm.slane %v1784, %v1791
    %v1793 = vrot.slane %v1756, 4
    %v1794 = vsel %vm389, %v1793, %v1744
    %v1795 = vrot.slane %v1744, 4
    %v1796 = vsel %vm389, %v1756, %v1795
    %v1798 = vunpack.c.l.s4 1934713408
    %v1799 = vunpack.c.0.s8 %v1798
    %v1800 = vperm.slane %v1794, %v1799
    %v1802 = vunpack.c.l.s4 1934713408
    %v1803 = vunpack.c.0.s8 %v1802
    %v1804 = vperm.slane %v1796, %v1803
    %v1805 = vrot.slane %v1776, 4
    %v1806 = vsel %vm389, %v1805, %v1764
    %v1807 = vrot.slane %v1764, 4
    %v1808 = vsel %vm389, %v1776, %v1807
    %v1810 = vunpack.c.l.s4 1934713408
    %v1811 = vunpack.c.0.s8 %v1810
    %v1812 = vperm.slane %v1806, %v1811
    %v1814 = vunpack.c.l.s4 1934713408
    %v1815 = vunpack.c.0.s8 %v1814
    %v1816 = vperm.slane %v1808, %v1815
    %v1817 = vrot.slane %v1780, 4
    %v1818 = vsel %vm389, %v1817, %v1768
    %v1819 = vrot.slane %v1768, 4
    %v1820 = vsel %vm389, %v1780, %v1819
    %v1822 = vunpack.c.l.s4 1934713408
    %v1823 = vunpack.c.0.s8 %v1822
    %v1824 = vperm.slane %v1818, %v1823
    %v1826 = vunpack.c.l.s4 1934713408
    %v1827 = vunpack.c.0.s8 %v1826
    %v1828 = vperm.slane %v1820, %v1827
    %v1829 = vrot.slane %v1812, 4
    %v1830 = vsel %vm389, %v1829, %v1788
    %v1831 = vrot.slane %v1788, 4
    %v1832 = vsel %vm389, %v1812, %v1831
    %v1833 = vrot.slane %v1816, 4
    %v1834 = vsel %vm389, %v1833, %v1792
    %v1835 = vrot.slane %v1792, 4
    %v1836 = vsel %vm389, %v1816, %v1835
    %v1837 = vrot.slane %v1824, 4
    %v1838 = vsel %vm389, %v1837, %v1800
    %v1839 = vrot.slane %v1800, 4
    %v1840 = vsel %vm389, %v1824, %v1839
    %v1841 = vrot.slane %v1828, 4
    %v1842 = vsel %vm389, %v1841, %v1804
    %v1843 = vrot.slane %v1804, 4
    %v1844 = vsel %vm389, %v1828, %v1843
    %v1845 = vrot.slane %v225, 4
    %v1846 = vsel %vm389, %v1845, %v161
    %v1847 = vrot.slane %v161, 4
    %v1848 = vsel %vm389, %v225, %v1847
    %v1850 = vunpack.c.l.s4 1983009808
    %v1851 = vunpack.c.0.s8 %v1850
    %v1852 = vperm.slane %v1846, %v1851
    %v1854 = vunpack.c.l.s4 1983009808
    %v1855 = vunpack.c.0.s8 %v1854
    %v1856 = vperm.slane %v1848, %v1855
    %v1857 = vrot.slane %v257, 4
    %v1858 = vsel %vm389, %v1857, %v193
    %v1859 = vrot.slane %v193, 4
    %v1860 = vsel %vm389, %v257, %v1859
    %v1862 = vunpack.c.l.s4 1983009808
    %v1863 = vunpack.c.0.s8 %v1862
    %v1864 = vperm.slane %v1858, %v1863
    %v1866 = vunpack.c.l.s4 1983009808
    %v1867 = vunpack.c.0.s8 %v1866
    %v1868 = vperm.slane %v1860, %v1867
    %v1869 = vrot.slane %v353, 4
    %v1870 = vsel %vm389, %v1869, %v289
    %v1871 = vrot.slane %v289, 4
    %v1872 = vsel %vm389, %v353, %v1871
    %v1874 = vunpack.c.l.s4 1983009808
    %v1875 = vunpack.c.0.s8 %v1874
    %v1876 = vperm.slane %v1870, %v1875
    %v1878 = vunpack.c.l.s4 1983009808
    %v1879 = vunpack.c.0.s8 %v1878
    %v1880 = vperm.slane %v1872, %v1879
    %v1881 = vrot.slane %v385, 4
    %v1882 = vsel %vm389, %v1881, %v321
    %v1883 = vrot.slane %v321, 4
    %v1884 = vsel %vm389, %v385, %v1883
    %v1886 = vunpack.c.l.s4 1983009808
    %v1887 = vunpack.c.0.s8 %v1886
    %v1888 = vperm.slane %v1882, %v1887
    %v1890 = vunpack.c.l.s4 1983009808
    %v1891 = vunpack.c.0.s8 %v1890
    %v1892 = vperm.slane %v1884, %v1891
    %v1893 = vrot.slane %v1864, 4
    %v1894 = vsel %vm389, %v1893, %v1852
    %v1895 = vrot.slane %v1852, 4
    %v1896 = vsel %vm389, %v1864, %v1895
    %v1898 = vunpack.c.l.s4 1934713408
    %v1899 = vunpack.c.0.s8 %v1898
    %v1900 = vperm.slane %v1894, %v1899
    %v1902 = vunpack.c.l.s4 1934713408
    %v1903 = vunpack.c.0.s8 %v1902
    %v1904 = vperm.slane %v1896, %v1903
    %v1905 = vrot.slane %v1868, 4
    %v1906 = vsel %vm389, %v1905, %v1856
    %v1907 = vrot.slane %v1856, 4
    %v1908 = vsel %vm389, %v1868, %v1907
    %v1910 = vunpack.c.l.s4 1934713408
    %v1911 = vunpack.c.0.s8 %v1910
    %v1912 = vperm.slane %v1906, %v1911
    %v1914 = vunpack.c.l.s4 1934713408
    %v1915 = vunpack.c.0.s8 %v1914
    %v1916 = vperm.slane %v1908, %v1915
    %v1917 = vrot.slane %v1888, 4
    %v1918 = vsel %vm389, %v1917, %v1876
    %v1919 = vrot.slane %v1876, 4
    %v1920 = vsel %vm389, %v1888, %v1919
    %v1922 = vunpack.c.l.s4 1934713408
    %v1923 = vunpack.c.0.s8 %v1922
    %v1924 = vperm.slane %v1918, %v1923
    %v1926 = vunpack.c.l.s4 1934713408
    %v1927 = vunpack.c.0.s8 %v1926
    %v1928 = vperm.slane %v1920, %v1927
    %v1929 = vrot.slane %v1892, 4
    %v1930 = vsel %vm389, %v1929, %v1880
    %v1931 = vrot.slane %v1880, 4
    %v1932 = vsel %vm389, %v1892, %v1931
    %v1934 = vunpack.c.l.s4 1934713408
    %v1935 = vunpack.c.0.s8 %v1934
    %v1936 = vperm.slane %v1930, %v1935
    %v1938 = vunpack.c.l.s4 1934713408
    %v1939 = vunpack.c.0.s8 %v1938
    %v1940 = vperm.slane %v1932, %v1939
    %v1941 = vrot.slane %v1924, 4
    %v1942 = vsel %vm389, %v1941, %v1900
    %v1943 = vrot.slane %v1900, 4
    %v1944 = vsel %vm389, %v1924, %v1943
    %v1945 = vrot.slane %v1928, 4
    %v1946 = vsel %vm389, %v1945, %v1904
    %v1947 = vrot.slane %v1904, 4
    %v1948 = vsel %vm389, %v1928, %v1947
    %v1949 = vrot.slane %v1936, 4
    %v1950 = vsel %vm389, %v1949, %v1912
    %v1951 = vrot.slane %v1912, 4
    %v1952 = vsel %vm389, %v1936, %v1951
    %v1953 = vrot.slane %v1940, 4
    %v1954 = vsel %vm389, %v1953, %v1916
    %v1955 = vrot.slane %v1916, 4
    %v1956 = vsel %vm389, %v1940, %v1955
    %v1957 = vrot.slane %v226, 4
    %v1958 = vsel %vm389, %v1957, %v162
    %v1959 = vrot.slane %v162, 4
    %v1960 = vsel %vm389, %v226, %v1959
    %v1962 = vunpack.c.l.s4 1983009808
    %v1963 = vunpack.c.0.s8 %v1962
    %v1964 = vperm.slane %v1958, %v1963
    %v1966 = vunpack.c.l.s4 1983009808
    %v1967 = vunpack.c.0.s8 %v1966
    %v1968 = vperm.slane %v1960, %v1967
    %v1969 = vrot.slane %v258, 4
    %v1970 = vsel %vm389, %v1969, %v194
    %v1971 = vrot.slane %v194, 4
    %v1972 = vsel %vm389, %v258, %v1971
    %v1974 = vunpack.c.l.s4 1983009808
    %v1975 = vunpack.c.0.s8 %v1974
    %v1976 = vperm.slane %v1970, %v1975
    %v1978 = vunpack.c.l.s4 1983009808
    %v1979 = vunpack.c.0.s8 %v1978
    %v1980 = vperm.slane %v1972, %v1979
    %v1981 = vrot.slane %v354, 4
    %v1982 = vsel %vm389, %v1981, %v290
    %v1983 = vrot.slane %v290, 4
    %v1984 = vsel %vm389, %v354, %v1983
    %v1986 = vunpack.c.l.s4 1983009808
    %v1987 = vunpack.c.0.s8 %v1986
    %v1988 = vperm.slane %v1982, %v1987
    %v1990 = vunpack.c.l.s4 1983009808
    %v1991 = vunpack.c.0.s8 %v1990
    %v1992 = vperm.slane %v1984, %v1991
    %v1993 = vrot.slane %v386, 4
    %v1994 = vsel %vm389, %v1993, %v322
    %v1995 = vrot.slane %v322, 4
    %v1996 = vsel %vm389, %v386, %v1995
    %v1998 = vunpack.c.l.s4 1983009808
    %v1999 = vunpack.c.0.s8 %v1998
    %v2000 = vperm.slane %v1994, %v1999
    %v2002 = vunpack.c.l.s4 1983009808
    %v2003 = vunpack.c.0.s8 %v2002
    %v2004 = vperm.slane %v1996, %v2003
    %v2005 = vrot.slane %v1976, 4
    %v2006 = vsel %vm389, %v2005, %v1964
    %v2007 = vrot.slane %v1964, 4
    %v2008 = vsel %vm389, %v1976, %v2007
    %v2010 = vunpack.c.l.s4 1934713408
    %v2011 = vunpack.c.0.s8 %v2010
    %v2012 = vperm.slane %v2006, %v2011
    %v2014 = vunpack.c.l.s4 1934713408
    %v2015 = vunpack.c.0.s8 %v2014
    %v2016 = vperm.slane %v2008, %v2015
    %v2017 = vrot.slane %v1980, 4
    %v2018 = vsel %vm389, %v2017, %v1968
    %v2019 = vrot.slane %v1968, 4
    %v2020 = vsel %vm389, %v1980, %v2019
    %v2022 = vunpack.c.l.s4 1934713408
    %v2023 = vunpack.c.0.s8 %v2022
    %v2024 = vperm.slane %v2018, %v2023
    %v2026 = vunpack.c.l.s4 1934713408
    %v2027 = vunpack.c.0.s8 %v2026
    %v2028 = vperm.slane %v2020, %v2027
    %v2029 = vrot.slane %v2000, 4
    %v2030 = vsel %vm389, %v2029, %v1988
    %v2031 = vrot.slane %v1988, 4
    %v2032 = vsel %vm389, %v2000, %v2031
    %v2034 = vunpack.c.l.s4 1934713408
    %v2035 = vunpack.c.0.s8 %v2034
    %v2036 = vperm.slane %v2030, %v2035
    %v2038 = vunpack.c.l.s4 1934713408
    %v2039 = vunpack.c.0.s8 %v2038
    %v2040 = vperm.slane %v2032, %v2039
    %v2041 = vrot.slane %v2004, 4
    %v2042 = vsel %vm389, %v2041, %v1992
    %v2043 = vrot.slane %v1992, 4
    %v2044 = vsel %vm389, %v2004, %v2043
    %v2046 = vunpack.c.l.s4 1934713408
    %v2047 = vunpack.c.0.s8 %v2046
    %v2048 = vperm.slane %v2042, %v2047
    %v2050 = vunpack.c.l.s4 1934713408
    %v2051 = vunpack.c.0.s8 %v2050
    %v2052 = vperm.slane %v2044, %v2051
    %v2053 = vrot.slane %v2036, 4
    %v2054 = vsel %vm389, %v2053, %v2012
    %v2055 = vrot.slane %v2012, 4
    %v2056 = vsel %vm389, %v2036, %v2055
    %v2057 = vrot.slane %v2040, 4
    %v2058 = vsel %vm389, %v2057, %v2016
    %v2059 = vrot.slane %v2016, 4
    %v2060 = vsel %vm389, %v2040, %v2059
    %v2061 = vrot.slane %v2048, 4
    %v2062 = vsel %vm389, %v2061, %v2024
    %v2063 = vrot.slane %v2024, 4
    %v2064 = vsel %vm389, %v2048, %v2063
    %v2065 = vrot.slane %v2052, 4
    %v2066 = vsel %vm389, %v2065, %v2028
    %v2067 = vrot.slane %v2028, 4
    %v2068 = vsel %vm389, %v2052, %v2067
    %v2069 = vrot.slane %v227, 4
    %v2070 = vsel %vm389, %v2069, %v163
    %v2071 = vrot.slane %v163, 4
    %v2072 = vsel %vm389, %v227, %v2071
    %v2074 = vunpack.c.l.s4 1983009808
    %v2075 = vunpack.c.0.s8 %v2074
    %v2076 = vperm.slane %v2070, %v2075
    %v2078 = vunpack.c.l.s4 1983009808
    %v2079 = vunpack.c.0.s8 %v2078
    %v2080 = vperm.slane %v2072, %v2079
    %v2081 = vrot.slane %v259, 4
    %v2082 = vsel %vm389, %v2081, %v195
    %v2083 = vrot.slane %v195, 4
    %v2084 = vsel %vm389, %v259, %v2083
    %v2086 = vunpack.c.l.s4 1983009808
    %v2087 = vunpack.c.0.s8 %v2086
    %v2088 = vperm.slane %v2082, %v2087
    %v2090 = vunpack.c.l.s4 1983009808
    %v2091 = vunpack.c.0.s8 %v2090
    %v2092 = vperm.slane %v2084, %v2091
    %v2093 = vrot.slane %v355, 4
    %v2094 = vsel %vm389, %v2093, %v291
    %v2095 = vrot.slane %v291, 4
    %v2096 = vsel %vm389, %v355, %v2095
    %v2098 = vunpack.c.l.s4 1983009808
    %v2099 = vunpack.c.0.s8 %v2098
    %v2100 = vperm.slane %v2094, %v2099
    %v2102 = vunpack.c.l.s4 1983009808
    %v2103 = vunpack.c.0.s8 %v2102
    %v2104 = vperm.slane %v2096, %v2103
    %v2105 = vrot.slane %v387, 4
    %v2106 = vsel %vm389, %v2105, %v323
    %v2107 = vrot.slane %v323, 4
    %v2108 = vsel %vm389, %v387, %v2107
    %v2110 = vunpack.c.l.s4 1983009808
    %v2111 = vunpack.c.0.s8 %v2110
    %v2112 = vperm.slane %v2106, %v2111
    %v2114 = vunpack.c.l.s4 1983009808
    %v2115 = vunpack.c.0.s8 %v2114
    %v2116 = vperm.slane %v2108, %v2115
    %v2117 = vrot.slane %v2088, 4
    %v2118 = vsel %vm389, %v2117, %v2076
    %v2119 = vrot.slane %v2076, 4
    %v2120 = vsel %vm389, %v2088, %v2119
    %v2122 = vunpack.c.l.s4 1934713408
    %v2123 = vunpack.c.0.s8 %v2122
    %v2124 = vperm.slane %v2118, %v2123
    %v2126 = vunpack.c.l.s4 1934713408
    %v2127 = vunpack.c.0.s8 %v2126
    %v2128 = vperm.slane %v2120, %v2127
    %v2129 = vrot.slane %v2092, 4
    %v2130 = vsel %vm389, %v2129, %v2080
    %v2131 = vrot.slane %v2080, 4
    %v2132 = vsel %vm389, %v2092, %v2131
    %v2134 = vunpack.c.l.s4 1934713408
    %v2135 = vunpack.c.0.s8 %v2134
    %v2136 = vperm.slane %v2130, %v2135
    %v2138 = vunpack.c.l.s4 1934713408
    %v2139 = vunpack.c.0.s8 %v2138
    %v2140 = vperm.slane %v2132, %v2139
    %v2141 = vrot.slane %v2112, 4
    %v2142 = vsel %vm389, %v2141, %v2100
    %v2143 = vrot.slane %v2100, 4
    %v2144 = vsel %vm389, %v2112, %v2143
    %v2146 = vunpack.c.l.s4 1934713408
    %v2147 = vunpack.c.0.s8 %v2146
    %v2148 = vperm.slane %v2142, %v2147
    %v2150 = vunpack.c.l.s4 1934713408
    %v2151 = vunpack.c.0.s8 %v2150
    %v2152 = vperm.slane %v2144, %v2151
    %v2153 = vrot.slane %v2116, 4
    %v2154 = vsel %vm389, %v2153, %v2104
    %v2155 = vrot.slane %v2104, 4
    %v2156 = vsel %vm389, %v2116, %v2155
    %v2158 = vunpack.c.l.s4 1934713408
    %v2159 = vunpack.c.0.s8 %v2158
    %v2160 = vperm.slane %v2154, %v2159
    %v2162 = vunpack.c.l.s4 1934713408
    %v2163 = vunpack.c.0.s8 %v2162
    %v2164 = vperm.slane %v2156, %v2163
    %v2165 = vrot.slane %v2148, 4
    %v2166 = vsel %vm389, %v2165, %v2124
    %v2167 = vrot.slane %v2124, 4
    %v2168 = vsel %vm389, %v2148, %v2167
    %v2169 = vrot.slane %v2152, 4
    %v2170 = vsel %vm389, %v2169, %v2128
    %v2171 = vrot.slane %v2128, 4
    %v2172 = vsel %vm389, %v2152, %v2171
    %v2173 = vrot.slane %v2160, 4
    %v2174 = vsel %vm389, %v2173, %v2136
    %v2175 = vrot.slane %v2136, 4
    %v2176 = vsel %vm389, %v2160, %v2175
    %v2177 = vrot.slane %v2164, 4
    %v2178 = vsel %vm389, %v2177, %v2140
    %v2179 = vrot.slane %v2140, 4
    %v2180 = vsel %vm389, %v2164, %v2179
    %2181 = vxpose.xlu0.b32.start [1/16] %v486, 128
    %2182 = vxpose.xlu0.b32.cont [2/16] 0.0, 128
    %2183 = vxpose.xlu0.b32.cont [3/16] 0.0, 128
    %2184 = vxpose.xlu0.b32.cont [4/16] 0.0, 128
    %2185 = vxpose.xlu0.b32.cont [5/16] 0.0, 128
    %2186 = vxpose.xlu0.b32.cont [6/16] 0.0, 128
    %2187 = vxpose.xlu0.b32.cont [7/16] 0.0, 128
    %2188 = vxpose.xlu0.b32.cont [8/16] 0.0, 128
    %2189 = vxpose.xlu0.b32.cont [9/16] 0.0, 128
    %2190 = vxpose.xlu0.b32.cont [10/16] 0.0, 128
    %2191 = vxpose.xlu0.b32.cont [11/16] 0.0, 128
    %2192 = vxpose.xlu0.b32.cont [12/16] 0.0, 128
    %2193 = vxpose.xlu0.b32.cont [13/16] 0.0, 128
    %2194 = vxpose.xlu0.b32.cont [14/16] 0.0, 128
    %2195 = vxpose.xlu0.b32.cont [15/16] 0.0, 128
    %2196 = vxpose.xlu0.b32.end [16/16] 0.0, 128
    %v2197 = vpop.trf.xlu0
    %v2198 = vpop.trf.xlu0
    %v2199 = vpop.trf.xlu0
    %v2200 = vpop.trf.xlu0
    %v2201 = vpop.trf.xlu0
    %v2202 = vpop.trf.xlu0
    %v2203 = vpop.trf.xlu0
    %v2204 = vpop.trf.xlu0
    %v2205 = vpop.trf.xlu0
    %v2206 = vpop.trf.xlu0
    %v2207 = vpop.trf.xlu0
    %v2208 = vpop.trf.xlu0
    %v2209 = vpop.trf.xlu0
    %v2210 = vpop.trf.xlu0
    %v2211 = vpop.trf.xlu0
    %v2212 = vpop.trf.xlu0
    %2213 = vxpose.xlu0.b32.start [1/16] %v488, 128
    %2214 = vxpose.xlu0.b32.cont [2/16] 0.0, 128
    %2215 = vxpose.xlu0.b32.cont [3/16] 0.0, 128
    %2216 = vxpose.xlu0.b32.cont [4/16] 0.0, 128
    %2217 = vxpose.xlu0.b32.cont [5/16] 0.0, 128
    %2218 = vxpose.xlu0.b32.cont [6/16] 0.0, 128
    %2219 = vxpose.xlu0.b32.cont [7/16] 0.0, 128
    %2220 = vxpose.xlu0.b32.cont [8/16] 0.0, 128
    %2221 = vxpose.xlu0.b32.cont [9/16] 0.0, 128
    %2222 = vxpose.xlu0.b32.cont [10/16] 0.0, 128
    %2223 = vxpose.xlu0.b32.cont [11/16] 0.0, 128
    %2224 = vxpose.xlu0.b32.cont [12/16] 0.0, 128
    %2225 = vxpose.xlu0.b32.cont [13/16] 0.0, 128
    %2226 = vxpose.xlu0.b32.cont [14/16] 0.0, 128
    %2227 = vxpose.xlu0.b32.cont [15/16] 0.0, 128
    %2228 = vxpose.xlu0.b32.end [16/16] 0.0, 128
    %v2229 = vpop.trf.xlu0
    %v2230 = vpop.trf.xlu0
    %v2231 = vpop.trf.xlu0
    %v2232 = vpop.trf.xlu0
    %v2233 = vpop.trf.xlu0
    %v2234 = vpop.trf.xlu0
    %v2235 = vpop.trf.xlu0
    %v2236 = vpop.trf.xlu0
    %v2237 = vpop.trf.xlu0
    %v2238 = vpop.trf.xlu0
    %v2239 = vpop.trf.xlu0
    %v2240 = vpop.trf.xlu0
    %v2241 = vpop.trf.xlu0
    %v2242 = vpop.trf.xlu0
    %v2243 = vpop.trf.xlu0
    %v2244 = vpop.trf.xlu0
    %2245 = vxpose.xlu0.b32.start [1/16] %v490, 128
    %2246 = vxpose.xlu0.b32.cont [2/16] 0.0, 128
    %2247 = vxpose.xlu0.b32.cont [3/16] 0.0, 128
    %2248 = vxpose.xlu0.b32.cont [4/16] 0.0, 128
    %2249 = vxpose.xlu0.b32.cont [5/16] 0.0, 128
    %2250 = vxpose.xlu0.b32.cont [6/16] 0.0, 128
    %2251 = vxpose.xlu0.b32.cont [7/16] 0.0, 128
    %2252 = vxpose.xlu0.b32.cont [8/16] 0.0, 128
    %2253 = vxpose.xlu0.b32.cont [9/16] 0.0, 128
    %2254 = vxpose.xlu0.b32.cont [10/16] 0.0, 128
    %2255 = vxpose.xlu0.b32.cont [11/16] 0.0, 128
    %2256 = vxpose.xlu0.b32.cont [12/16] 0.0, 128
    %2257 = vxpose.xlu0.b32.cont [13/16] 0.0, 128
    %2258 = vxpose.xlu0.b32.cont [14/16] 0.0, 128
    %2259 = vxpose.xlu0.b32.cont [15/16] 0.0, 128
    %2260 = vxpose.xlu0.b32.end [16/16] 0.0, 128
    %v2261 = vpop.trf.xlu0
    %v2262 = vpop.trf.xlu0
    %v2263 = vpop.trf.xlu0
    %v2264 = vpop.trf.xlu0
    %v2265 = vpop.trf.xlu0
    %v2266 = vpop.trf.xlu0
    %v2267 = vpop.trf.xlu0
    %v2268 = vpop.trf.xlu0
    %v2269 = vpop.trf.xlu0
    %v2270 = vpop.trf.xlu0
    %v2271 = vpop.trf.xlu0
    %v2272 = vpop.trf.xlu0
    %v2273 = vpop.trf.xlu0
    %v2274 = vpop.trf.xlu0
    %v2275 = vpop.trf.xlu0
    %v2276 = vpop.trf.xlu0
    %2277 = vxpose.xlu0.b32.start [1/16] %v492, 128
    %2278 = vxpose.xlu0.b32.cont [2/16] 0.0, 128
    %2279 = vxpose.xlu0.b32.cont [3/16] 0.0, 128
    %2280 = vxpose.xlu0.b32.cont [4/16] 0.0, 128
    %2281 = vxpose.xlu0.b32.cont [5/16] 0.0, 128
    %2282 = vxpose.xlu0.b32.cont [6/16] 0.0, 128
    %2283 = vxpose.xlu0.b32.cont [7/16] 0.0, 128
    %2284 = vxpose.xlu0.b32.cont [8/16] 0.0, 128
    %2285 = vxpose.xlu0.b32.cont [9/16] 0.0, 128
    %2286 = vxpose.xlu0.b32.cont [10/16] 0.0, 128
    %2287 = vxpose.xlu0.b32.cont [11/16] 0.0, 128
    %2288 = vxpose.xlu0.b32.cont [12/16] 0.0, 128
    %2289 = vxpose.xlu0.b32.cont [13/16] 0.0, 128
    %2290 = vxpose.xlu0.b32.cont [14/16] 0.0, 128
    %2291 = vxpose.xlu0.b32.cont [15/16] 0.0, 128
    %2292 = vxpose.xlu0.b32.end [16/16] 0.0, 128
    %v2293 = vpop.trf.xlu0
    %v2294 = vpop.trf.xlu0
    %v2295 = vpop.trf.xlu0
    %v2296 = vpop.trf.xlu0
    %v2297 = vpop.trf.xlu0
    %v2298 = vpop.trf.xlu0
    %v2299 = vpop.trf.xlu0
    %v2300 = vpop.trf.xlu0
    %v2301 = vpop.trf.xlu0
    %v2302 = vpop.trf.xlu0
    %v2303 = vpop.trf.xlu0
    %v2304 = vpop.trf.xlu0
    %v2305 = vpop.trf.xlu0
    %v2306 = vpop.trf.xlu0
    %v2307 = vpop.trf.xlu0
    %v2308 = vpop.trf.xlu0
    %2309 = vxpose.xlu0.b32.start [1/16] %v494, 128
    %2310 = vxpose.xlu0.b32.cont [2/16] 0.0, 128
    %2311 = vxpose.xlu0.b32.cont [3/16] 0.0, 128
    %2312 = vxpose.xlu0.b32.cont [4/16] 0.0, 128
    %2313 = vxpose.xlu0.b32.cont [5/16] 0.0, 128
    %2314 = vxpose.xlu0.b32.cont [6/16] 0.0, 128
    %2315 = vxpose.xlu0.b32.cont [7/16] 0.0, 128
    %2316 = vxpose.xlu0.b32.cont [8/16] 0.0, 128
    %2317 = vxpose.xlu0.b32.cont [9/16] 0.0, 128
    %2318 = vxpose.xlu0.b32.cont [10/16] 0.0, 128
    %2319 = vxpose.xlu0.b32.cont [11/16] 0.0, 128
    %2320 = vxpose.xlu0.b32.cont [12/16] 0.0, 128
    %2321 = vxpose.xlu0.b32.cont [13/16] 0.0, 128
    %2322 = vxpose.xlu0.b32.cont [14/16] 0.0, 128
    %2323 = vxpose.xlu0.b32.cont [15/16] 0.0, 128
    %2324 = vxpose.xlu0.b32.end [16/16] 0.0, 128
    %v2325 = vpop.trf.xlu0
    %v2326 = vpop.trf.xlu0
    %v2327 = vpop.trf.xlu0
    %v2328 = vpop.trf.xlu0
    %v2329 = vpop.trf.xlu0
    %v2330 = vpop.trf.xlu0
    %v2331 = vpop.trf.xlu0
    %v2332 = vpop.trf.xlu0
    %v2333 = vpop.trf.xlu0
    %v2334 = vpop.trf.xlu0
    %v2335 = vpop.trf.xlu0
    %v2336 = vpop.trf.xlu0
    %v2337 = vpop.trf.xlu0
    %v2338 = vpop.trf.xlu0
    %v2339 = vpop.trf.xlu0
    %v2340 = vpop.trf.xlu0
    %2341 = vxpose.xlu0.b32.start [1/16] %v496, 128
    %2342 = vxpose.xlu0.b32.cont [2/16] 0.0, 128
    %2343 = vxpose.xlu0.b32.cont [3/16] 0.0, 128
    %2344 = vxpose.xlu0.b32.cont [4/16] 0.0, 128
    %2345 = vxpose.xlu0.b32.cont [5/16] 0.0, 128
    %2346 = vxpose.xlu0.b32.cont [6/16] 0.0, 128
    %2347 = vxpose.xlu0.b32.cont [7/16] 0.0, 128
    %2348 = vxpose.xlu0.b32.cont [8/16] 0.0, 128
    %2349 = vxpose.xlu0.b32.cont [9/16] 0.0, 128
    %2350 = vxpose.xlu0.b32.cont [10/16] 0.0, 128
    %2351 = vxpose.xlu0.b32.cont [11/16] 0.0, 128
    %2352 = vxpose.xlu0.b32.cont [12/16] 0.0, 128
    %2353 = vxpose.xlu0.b32.cont [13/16] 0.0, 128
    %2354 = vxpose.xlu0.b32.cont [14/16] 0.0, 128
    %2355 = vxpose.xlu0.b32.cont [15/16] 0.0, 128
    %2356 = vxpose.xlu0.b32.end [16/16] 0.0, 128
    %v2357 = vpop.trf.xlu0
    %v2358 = vpop.trf.xlu0
    %v2359 = vpop.trf.xlu0
    %v2360 = vpop.trf.xlu0
    %v2361 = vpop.trf.xlu0
    %v2362 = vpop.trf.xlu0
    %v2363 = vpop.trf.xlu0
    %v2364 = vpop.trf.xlu0
    %v2365 = vpop.trf.xlu0
    %v2366 = vpop.trf.xlu0
    %v2367 = vpop.trf.xlu0
    %v2368 = vpop.trf.xlu0
    %v2369 = vpop.trf.xlu0
    %v2370 = vpop.trf.xlu0
    %v2371 = vpop.trf.xlu0
    %v2372 = vpop.trf.xlu0
    %2373 = vxpose.xlu0.b32.start [1/16] %v498, 128
    %2374 = vxpose.xlu0.b32.cont [2/16] 0.0, 128
    %2375 = vxpose.xlu0.b32.cont [3/16] 0.0, 128
    %2376 = vxpose.xlu0.b32.cont [4/16] 0.0, 128
    %2377 = vxpose.xlu0.b32.cont [5/16] 0.0, 128
    %2378 = vxpose.xlu0.b32.cont [6/16] 0.0, 128
    %2379 = vxpose.xlu0.b32.cont [7/16] 0.0, 128
    %2380 = vxpose.xlu0.b32.cont [8/16] 0.0, 128
    %2381 = vxpose.xlu0.b32.cont [9/16] 0.0, 128
    %2382 = vxpose.xlu0.b32.cont [10/16] 0.0, 128
    %2383 = vxpose.xlu0.b32.cont [11/16] 0.0, 128
    %2384 = vxpose.xlu0.b32.cont [12/16] 0.0, 128
    %2385 = vxpose.xlu0.b32.cont [13/16] 0.0, 128
    %2386 = vxpose.xlu0.b32.cont [14/16] 0.0, 128
    %2387 = vxpose.xlu0.b32.cont [15/16] 0.0, 128
    %2388 = vxpose.xlu0.b32.end [16/16] 0.0, 128
    %v2389 = vpop.trf.xlu0
    %v2390 = vpop.trf.xlu0
    %v2391 = vpop.trf.xlu0
    %v2392 = vpop.trf.xlu0
    %v2393 = vpop.trf.xlu0
    %v2394 = vpop.trf.xlu0
    %v2395 = vpop.trf.xlu0
    %v2396 = vpop.trf.xlu0
    %v2397 = vpop.trf.xlu0
    %v2398 = vpop.trf.xlu0
    %v2399 = vpop.trf.xlu0
    %v2400 = vpop.trf.xlu0
    %v2401 = vpop.trf.xlu0
    %v2402 = vpop.trf.xlu0
    %v2403 = vpop.trf.xlu0
    %v2404 = vpop.trf.xlu0
    %2405 = vxpose.xlu0.b32.start [1/16] %v500, 128
    %2406 = vxpose.xlu0.b32.cont [2/16] 0.0, 128
    %2407 = vxpose.xlu0.b32.cont [3/16] 0.0, 128
    %2408 = vxpose.xlu0.b32.cont [4/16] 0.0, 128
    %2409 = vxpose.xlu0.b32.cont [5/16] 0.0, 128
    %2410 = vxpose.xlu0.b32.cont [6/16] 0.0, 128
    %2411 = vxpose.xlu0.b32.cont [7/16] 0.0, 128
    %2412 = vxpose.xlu0.b32.cont [8/16] 0.0, 128
    %2413 = vxpose.xlu0.b32.cont [9/16] 0.0, 128
    %2414 = vxpose.xlu0.b32.cont [10/16] 0.0, 128
    %2415 = vxpose.xlu0.b32.cont [11/16] 0.0, 128
    %2416 = vxpose.xlu0.b32.cont [12/16] 0.0, 128
    %2417 = vxpose.xlu0.b32.cont [13/16] 0.0, 128
    %2418 = vxpose.xlu0.b32.cont [14/16] 0.0, 128
    %2419 = vxpose.xlu0.b32.cont [15/16] 0.0, 128
    %2420 = vxpose.xlu0.b32.end [16/16] 0.0, 128
    %v2421 = vpop.trf.xlu0
    %v2422 = vpop.trf.xlu0
    %v2423 = vpop.trf.xlu0
    %v2424 = vpop.trf.xlu0
    %v2425 = vpop.trf.xlu0
    %v2426 = vpop.trf.xlu0
    %v2427 = vpop.trf.xlu0
    %v2428 = vpop.trf.xlu0
    %v2429 = vpop.trf.xlu0
    %v2430 = vpop.trf.xlu0
    %v2431 = vpop.trf.xlu0
    %v2432 = vpop.trf.xlu0
    %v2433 = vpop.trf.xlu0
    %v2434 = vpop.trf.xlu0
    %v2435 = vpop.trf.xlu0
    %v2436 = vpop.trf.xlu0
    %2437 = vxpose.xlu0.b32.start [1/16] %v598, 128
    %2438 = vxpose.xlu0.b32.cont [2/16] 0.0, 128
    %2439 = vxpose.xlu0.b32.cont [3/16] 0.0, 128
    %2440 = vxpose.xlu0.b32.cont [4/16] 0.0, 128
    %2441 = vxpose.xlu0.b32.cont [5/16] 0.0, 128
    %2442 = vxpose.xlu0.b32.cont [6/16] 0.0, 128
    %2443 = vxpose.xlu0.b32.cont [7/16] 0.0, 128
    %2444 = vxpose.xlu0.b32.cont [8/16] 0.0, 128
    %2445 = vxpose.xlu0.b32.cont [9/16] 0.0, 128
    %2446 = vxpose.xlu0.b32.cont [10/16] 0.0, 128
    %2447 = vxpose.xlu0.b32.cont [11/16] 0.0, 128
    %2448 = vxpose.xlu0.b32.cont [12/16] 0.0, 128
    %2449 = vxpose.xlu0.b32.cont [13/16] 0.0, 128
    %2450 = vxpose.xlu0.b32.cont [14/16] 0.0, 128
    %2451 = vxpose.xlu0.b32.cont [15/16] 0.0, 128
    %2452 = vxpose.xlu0.b32.end [16/16] 0.0, 128
    %v2453 = vpop.trf.xlu0
    %v2454 = vpop.trf.xlu0
    %v2455 = vpop.trf.xlu0
    %v2456 = vpop.trf.xlu0
    %v2457 = vpop.trf.xlu0
    %v2458 = vpop.trf.xlu0
    %v2459 = vpop.trf.xlu0
    %v2460 = vpop.trf.xlu0
    %v2461 = vpop.trf.xlu0
    %v2462 = vpop.trf.xlu0
    %v2463 = vpop.trf.xlu0
    %v2464 = vpop.trf.xlu0
    %v2465 = vpop.trf.xlu0
    %v2466 = vpop.trf.xlu0
    %v2467 = vpop.trf.xlu0
    %v2468 = vpop.trf.xlu0
    %2469 = vxpose.xlu0.b32.start [1/16] %v600, 128
    %2470 = vxpose.xlu0.b32.cont [2/16] 0.0, 128
    %2471 = vxpose.xlu0.b32.cont [3/16] 0.0, 128
    %2472 = vxpose.xlu0.b32.cont [4/16] 0.0, 128
    %2473 = vxpose.xlu0.b32.cont [5/16] 0.0, 128
    %2474 = vxpose.xlu0.b32.cont [6/16] 0.0, 128
    %2475 = vxpose.xlu0.b32.cont [7/16] 0.0, 128
    %2476 = vxpose.xlu0.b32.cont [8/16] 0.0, 128
    %2477 = vxpose.xlu0.b32.cont [9/16] 0.0, 128
    %2478 = vxpose.xlu0.b32.cont [10/16] 0.0, 128
    %2479 = vxpose.xlu0.b32.cont [11/16] 0.0, 128
    %2480 = vxpose.xlu0.b32.cont [12/16] 0.0, 128
    %2481 = vxpose.xlu0.b32.cont [13/16] 0.0, 128
    %2482 = vxpose.xlu0.b32.cont [14/16] 0.0, 128
    %2483 = vxpose.xlu0.b32.cont [15/16] 0.0, 128
    %2484 = vxpose.xlu0.b32.end [16/16] 0.0, 128
    %v2485 = vpop.trf.xlu0
    %v2486 = vpop.trf.xlu0
    %v2487 = vpop.trf.xlu0
    %v2488 = vpop.trf.xlu0
    %v2489 = vpop.trf.xlu0
    %v2490 = vpop.trf.xlu0
    %v2491 = vpop.trf.xlu0
    %v2492 = vpop.trf.xlu0
    %v2493 = vpop.trf.xlu0
    %v2494 = vpop.trf.xlu0
    %v2495 = vpop.trf.xlu0
    %v2496 = vpop.trf.xlu0
    %v2497 = vpop.trf.xlu0
    %v2498 = vpop.trf.xlu0
    %v2499 = vpop.trf.xlu0
    %v2500 = vpop.trf.xlu0
    %2501 = vxpose.xlu0.b32.start [1/16] %v602, 128
    %2502 = vxpose.xlu0.b32.cont [2/16] 0.0, 128
    %2503 = vxpose.xlu0.b32.cont [3/16] 0.0, 128
    %2504 = vxpose.xlu0.b32.cont [4/16] 0.0, 128
    %2505 = vxpose.xlu0.b32.cont [5/16] 0.0, 128
    %2506 = vxpose.xlu0.b32.cont [6/16] 0.0, 128
    %2507 = vxpose.xlu0.b32.cont [7/16] 0.0, 128
    %2508 = vxpose.xlu0.b32.cont [8/16] 0.0, 128
    %2509 = vxpose.xlu0.b32.cont [9/16] 0.0, 128
    %2510 = vxpose.xlu0.b32.cont [10/16] 0.0, 128
    %2511 = vxpose.xlu0.b32.cont [11/16] 0.0, 128
    %2512 = vxpose.xlu0.b32.cont [12/16] 0.0, 128
    %2513 = vxpose.xlu0.b32.cont [13/16] 0.0, 128
    %2514 = vxpose.xlu0.b32.cont [14/16] 0.0, 128
    %2515 = vxpose.xlu0.b32.cont [15/16] 0.0, 128
    %2516 = vxpose.xlu0.b32.end [16/16] 0.0, 128
    %v2517 = vpop.trf.xlu0
    %v2518 = vpop.trf.xlu0
    %v2519 = vpop.trf.xlu0
    %v2520 = vpop.trf.xlu0
    %v2521 = vpop.trf.xlu0
    %v2522 = vpop.trf.xlu0
    %v2523 = vpop.trf.xlu0
    %v2524 = vpop.trf.xlu0
    %v2525 = vpop.trf.xlu0
    %v2526 = vpop.trf.xlu0
    %v2527 = vpop.trf.xlu0
    %v2528 = vpop.trf.xlu0
    %v2529 = vpop.trf.xlu0
    %v2530 = vpop.trf.xlu0
    %v2531 = vpop.trf.xlu0
    %v2532 = vpop.trf.xlu0
    %2533 = vxpose.xlu0.b32.start [1/16] %v604, 128
    %2534 = vxpose.xlu0.b32.cont [2/16] 0.0, 128
    %2535 = vxpose.xlu0.b32.cont [3/16] 0.0, 128
    %2536 = vxpose.xlu0.b32.cont [4/16] 0.0, 128
    %2537 = vxpose.xlu0.b32.cont [5/16] 0.0, 128
    %2538 = vxpose.xlu0.b32.cont [6/16] 0.0, 128
    %2539 = vxpose.xlu0.b32.cont [7/16] 0.0, 128
    %2540 = vxpose.xlu0.b32.cont [8/16] 0.0, 128
    %2541 = vxpose.xlu0.b32.cont [9/16] 0.0, 128
    %2542 = vxpose.xlu0.b32.cont [10/16] 0.0, 128
    %2543 = vxpose.xlu0.b32.cont [11/16] 0.0, 128
    %2544 = vxpose.xlu0.b32.cont [12/16] 0.0, 128
    %2545 = vxpose.xlu0.b32.cont [13/16] 0.0, 128
    %2546 = vxpose.xlu0.b32.cont [14/16] 0.0, 128
    %2547 = vxpose.xlu0.b32.cont [15/16] 0.0, 128
    %2548 = vxpose.xlu0.b32.end [16/16] 0.0, 128
    %v2549 = vpop.trf.xlu0
    %v2550 = vpop.trf.xlu0
    %v2551 = vpop.trf.xlu0
    %v2552 = vpop.trf.xlu0
    %v2553 = vpop.trf.xlu0
    %v2554 = vpop.trf.xlu0
    %v2555 = vpop.trf.xlu0
    %v2556 = vpop.trf.xlu0
    %v2557 = vpop.trf.xlu0
    %v2558 = vpop.trf.xlu0
    %v2559 = vpop.trf.xlu0
    %v2560 = vpop.trf.xlu0
    %v2561 = vpop.trf.xlu0
    %v2562 = vpop.trf.xlu0
    %v2563 = vpop.trf.xlu0
    %v2564 = vpop.trf.xlu0
    %2565 = vxpose.xlu0.b32.start [1/16] %v606, 128
    %2566 = vxpose.xlu0.b32.cont [2/16] 0.0, 128
    %2567 = vxpose.xlu0.b32.cont [3/16] 0.0, 128
    %2568 = vxpose.xlu0.b32.cont [4/16] 0.0, 128
    %2569 = vxpose.xlu0.b32.cont [5/16] 0.0, 128
    %2570 = vxpose.xlu0.b32.cont [6/16] 0.0, 128
    %2571 = vxpose.xlu0.b32.cont [7/16] 0.0, 128
    %2572 = vxpose.xlu0.b32.cont [8/16] 0.0, 128
    %2573 = vxpose.xlu0.b32.cont [9/16] 0.0, 128
    %2574 = vxpose.xlu0.b32.cont [10/16] 0.0, 128
    %2575 = vxpose.xlu0.b32.cont [11/16] 0.0, 128
    %2576 = vxpose.xlu0.b32.cont [12/16] 0.0, 128
    %2577 = vxpose.xlu0.b32.cont [13/16] 0.0, 128
    %2578 = vxpose.xlu0.b32.cont [14/16] 0.0, 128
    %2579 = vxpose.xlu0.b32.cont [15/16] 0.0, 128
    %2580 = vxpose.xlu0.b32.end [16/16] 0.0, 128
    %v2581 = vpop.trf.xlu0
    %v2582 = vpop.trf.xlu0
    %v2583 = vpop.trf.xlu0
    %v2584 = vpop.trf.xlu0
    %v2585 = vpop.trf.xlu0
    %v2586 = vpop.trf.xlu0
    %v2587 = vpop.trf.xlu0
    %v2588 = vpop.trf.xlu0
    %v2589 = vpop.trf.xlu0
    %v2590 = vpop.trf.xlu0
    %v2591 = vpop.trf.xlu0
    %v2592 = vpop.trf.xlu0
    %v2593 = vpop.trf.xlu0
    %v2594 = vpop.trf.xlu0
    %v2595 = vpop.trf.xlu0
    %v2596 = vpop.trf.xlu0
    %2597 = vxpose.xlu0.b32.start [1/16] %v608, 128
    %2598 = vxpose.xlu0.b32.cont [2/16] 0.0, 128
    %2599 = vxpose.xlu0.b32.cont [3/16] 0.0, 128
    %2600 = vxpose.xlu0.b32.cont [4/16] 0.0, 128
    %2601 = vxpose.xlu0.b32.cont [5/16] 0.0, 128
    %2602 = vxpose.xlu0.b32.cont [6/16] 0.0, 128
    %2603 = vxpose.xlu0.b32.cont [7/16] 0.0, 128
    %2604 = vxpose.xlu0.b32.cont [8/16] 0.0, 128
    %2605 = vxpose.xlu0.b32.cont [9/16] 0.0, 128
    %2606 = vxpose.xlu0.b32.cont [10/16] 0.0, 128
    %2607 = vxpose.xlu0.b32.cont [11/16] 0.0, 128
    %2608 = vxpose.xlu0.b32.cont [12/16] 0.0, 128
    %2609 = vxpose.xlu0.b32.cont [13/16] 0.0, 128
    %2610 = vxpose.xlu0.b32.cont [14/16] 0.0, 128
    %2611 = vxpose.xlu0.b32.cont [15/16] 0.0, 128
    %2612 = vxpose.xlu0.b32.end [16/16] 0.0, 128
    %v2613 = vpop.trf.xlu0
    %v2614 = vpop.trf.xlu0
    %v2615 = vpop.trf.xlu0
    %v2616 = vpop.trf.xlu0
    %v2617 = vpop.trf.xlu0
    %v2618 = vpop.trf.xlu0
    %v2619 = vpop.trf.xlu0
    %v2620 = vpop.trf.xlu0
    %v2621 = vpop.trf.xlu0
    %v2622 = vpop.trf.xlu0
    %v2623 = vpop.trf.xlu0
    %v2624 = vpop.trf.xlu0
    %v2625 = vpop.trf.xlu0
    %v2626 = vpop.trf.xlu0
    %v2627 = vpop.trf.xlu0
    %v2628 = vpop.trf.xlu0
    %2629 = vxpose.xlu0.b32.start [1/16] %v610, 128
    %2630 = vxpose.xlu0.b32.cont [2/16] 0.0, 128
    %2631 = vxpose.xlu0.b32.cont [3/16] 0.0, 128
    %2632 = vxpose.xlu0.b32.cont [4/16] 0.0, 128
    %2633 = vxpose.xlu0.b32.cont [5/16] 0.0, 128
    %2634 = vxpose.xlu0.b32.cont [6/16] 0.0, 128
    %2635 = vxpose.xlu0.b32.cont [7/16] 0.0, 128
    %2636 = vxpose.xlu0.b32.cont [8/16] 0.0, 128
    %2637 = vxpose.xlu0.b32.cont [9/16] 0.0, 128
    %2638 = vxpose.xlu0.b32.cont [10/16] 0.0, 128
    %2639 = vxpose.xlu0.b32.cont [11/16] 0.0, 128
    %2640 = vxpose.xlu0.b32.cont [12/16] 0.0, 128
    %2641 = vxpose.xlu0.b32.cont [13/16] 0.0, 128
    %2642 = vxpose.xlu0.b32.cont [14/16] 0.0, 128
    %2643 = vxpose.xlu0.b32.cont [15/16] 0.0, 128
    %2644 = vxpose.xlu0.b32.end [16/16] 0.0, 128
    %v2645 = vpop.trf.xlu0
    %v2646 = vpop.trf.xlu0
    %v2647 = vpop.trf.xlu0
    %v2648 = vpop.trf.xlu0
    %v2649 = vpop.trf.xlu0
    %v2650 = vpop.trf.xlu0
    %v2651 = vpop.trf.xlu0
    %v2652 = vpop.trf.xlu0
    %v2653 = vpop.trf.xlu0
    %v2654 = vpop.trf.xlu0
    %v2655 = vpop.trf.xlu0
    %v2656 = vpop.trf.xlu0
    %v2657 = vpop.trf.xlu0
    %v2658 = vpop.trf.xlu0
    %v2659 = vpop.trf.xlu0
    %v2660 = vpop.trf.xlu0
    %2661 = vxpose.xlu0.b32.start [1/16] %v612, 128
    %2662 = vxpose.xlu0.b32.cont [2/16] 0.0, 128
    %2663 = vxpose.xlu0.b32.cont [3/16] 0.0, 128
    %2664 = vxpose.xlu0.b32.cont [4/16] 0.0, 128
    %2665 = vxpose.xlu0.b32.cont [5/16] 0.0, 128
    %2666 = vxpose.xlu0.b32.cont [6/16] 0.0, 128
    %2667 = vxpose.xlu0.b32.cont [7/16] 0.0, 128
    %2668 = vxpose.xlu0.b32.cont [8/16] 0.0, 128
    %2669 = vxpose.xlu0.b32.cont [9/16] 0.0, 128
    %2670 = vxpose.xlu0.b32.cont [10/16] 0.0, 128
    %2671 = vxpose.xlu0.b32.cont [11/16] 0.0, 128
    %2672 = vxpose.xlu0.b32.cont [12/16] 0.0, 128
    %2673 = vxpose.xlu0.b32.cont [13/16] 0.0, 128
    %2674 = vxpose.xlu0.b32.cont [14/16] 0.0, 128
    %2675 = vxpose.xlu0.b32.cont [15/16] 0.0, 128
    %2676 = vxpose.xlu0.b32.end [16/16] 0.0, 128
    %v2677 = vpop.trf.xlu0
    %v2678 = vpop.trf.xlu0
    %v2679 = vpop.trf.xlu0
    %v2680 = vpop.trf.xlu0
    %v2681 = vpop.trf.xlu0
    %v2682 = vpop.trf.xlu0
    %v2683 = vpop.trf.xlu0
    %v2684 = vpop.trf.xlu0
    %v2685 = vpop.trf.xlu0
    %v2686 = vpop.trf.xlu0
    %v2687 = vpop.trf.xlu0
    %v2688 = vpop.trf.xlu0
    %v2689 = vpop.trf.xlu0
    %v2690 = vpop.trf.xlu0
    %v2691 = vpop.trf.xlu0
    %v2692 = vpop.trf.xlu0
    %2693 = vxpose.xlu0.b32.start [1/16] %v710, 128
    %2694 = vxpose.xlu0.b32.cont [2/16] 0.0, 128
    %2695 = vxpose.xlu0.b32.cont [3/16] 0.0, 128
    %2696 = vxpose.xlu0.b32.cont [4/16] 0.0, 128
    %2697 = vxpose.xlu0.b32.cont [5/16] 0.0, 128
    %2698 = vxpose.xlu0.b32.cont [6/16] 0.0, 128
    %2699 = vxpose.xlu0.b32.cont [7/16] 0.0, 128
    %2700 = vxpose.xlu0.b32.cont [8/16] 0.0, 128
    %2701 = vxpose.xlu0.b32.cont [9/16] 0.0, 128
    %2702 = vxpose.xlu0.b32.cont [10/16] 0.0, 128
    %2703 = vxpose.xlu0.b32.cont [11/16] 0.0, 128
    %2704 = vxpose.xlu0.b32.cont [12/16] 0.0, 128
    %2705 = vxpose.xlu0.b32.cont [13/16] 0.0, 128
    %2706 = vxpose.xlu0.b32.cont [14/16] 0.0, 128
    %2707 = vxpose.xlu0.b32.cont [15/16] 0.0, 128
    %2708 = vxpose.xlu0.b32.end [16/16] 0.0, 128
    %v2709 = vpop.trf.xlu0
    %v2710 = vpop.trf.xlu0
    %v2711 = vpop.trf.xlu0
    %v2712 = vpop.trf.xlu0
    %v2713 = vpop.trf.xlu0
    %v2714 = vpop.trf.xlu0
    %v2715 = vpop.trf.xlu0
    %v2716 = vpop.trf.xlu0
    %v2717 = vpop.trf.xlu0
    %v2718 = vpop.trf.xlu0
    %v2719 = vpop.trf.xlu0
    %v2720 = vpop.trf.xlu0
    %v2721 = vpop.trf.xlu0
    %v2722 = vpop.trf.xlu0
    %v2723 = vpop.trf.xlu0
    %v2724 = vpop.trf.xlu0
    %2725 = vxpose.xlu0.b32.start [1/16] %v712, 128
    %2726 = vxpose.xlu0.b32.cont [2/16] 0.0, 128
    %2727 = vxpose.xlu0.b32.cont [3/16] 0.0, 128
    %2728 = vxpose.xlu0.b32.cont [4/16] 0.0, 128
    %2729 = vxpose.xlu0.b32.cont [5/16] 0.0, 128
    %2730 = vxpose.xlu0.b32.cont [6/16] 0.0, 128
    %2731 = vxpose.xlu0.b32.cont [7/16] 0.0, 128
    %2732 = vxpose.xlu0.b32.cont [8/16] 0.0, 128
    %2733 = vxpose.xlu0.b32.cont [9/16] 0.0, 128
    %2734 = vxpose.xlu0.b32.cont [10/16] 0.0, 128
    %2735 = vxpose.xlu0.b32.cont [11/16] 0.0, 128
    %2736 = vxpose.xlu0.b32.cont [12/16] 0.0, 128
    %2737 = vxpose.xlu0.b32.cont [13/16] 0.0, 128
    %2738 = vxpose.xlu0.b32.cont [14/16] 0.0, 128
    %2739 = vxpose.xlu0.b32.cont [15/16] 0.0, 128
    %2740 = vxpose.xlu0.b32.end [16/16] 0.0, 128
    %v2741 = vpop.trf.xlu0
    %v2742 = vpop.trf.xlu0
    %v2743 = vpop.trf.xlu0
    %v2744 = vpop.trf.xlu0
    %v2745 = vpop.trf.xlu0
    %v2746 = vpop.trf.xlu0
    %v2747 = vpop.trf.xlu0
    %v2748 = vpop.trf.xlu0
    %v2749 = vpop.trf.xlu0
    %v2750 = vpop.trf.xlu0
    %v2751 = vpop.trf.xlu0
    %v2752 = vpop.trf.xlu0
    %v2753 = vpop.trf.xlu0
    %v2754 = vpop.trf.xlu0
    %v2755 = vpop.trf.xlu0
    %v2756 = vpop.trf.xlu0
    %2757 = vxpose.xlu0.b32.start [1/16] %v714, 128
    %2758 = vxpose.xlu0.b32.cont [2/16] 0.0, 128
    %2759 = vxpose.xlu0.b32.cont [3/16] 0.0, 128
    %2760 = vxpose.xlu0.b32.cont [4/16] 0.0, 128
    %2761 = vxpose.xlu0.b32.cont [5/16] 0.0, 128
    %2762 = vxpose.xlu0.b32.cont [6/16] 0.0, 128
    %2763 = vxpose.xlu0.b32.cont [7/16] 0.0, 128
    %2764 = vxpose.xlu0.b32.cont [8/16] 0.0, 128
    %2765 = vxpose.xlu0.b32.cont [9/16] 0.0, 128
    %2766 = vxpose.xlu0.b32.cont [10/16] 0.0, 128
    %2767 = vxpose.xlu0.b32.cont [11/16] 0.0, 128
    %2768 = vxpose.xlu0.b32.cont [12/16] 0.0, 128
    %2769 = vxpose.xlu0.b32.cont [13/16] 0.0, 128
    %2770 = vxpose.xlu0.b32.cont [14/16] 0.0, 128
    %2771 = vxpose.xlu0.b32.cont [15/16] 0.0, 128
    %2772 = vxpose.xlu0.b32.end [16/16] 0.0, 128
    %v2773 = vpop.trf.xlu0
    %v2774 = vpop.trf.xlu0
    %v2775 = vpop.trf.xlu0
    %v2776 = vpop.trf.xlu0
    %v2777 = vpop.trf.xlu0
    %v2778 = vpop.trf.xlu0
    %v2779 = vpop.trf.xlu0
    %v2780 = vpop.trf.xlu0
    %v2781 = vpop.trf.xlu0
    %v2782 = vpop.trf.xlu0
    %v2783 = vpop.trf.xlu0
    %v2784 = vpop.trf.xlu0
    %v2785 = vpop.trf.xlu0
    %v2786 = vpop.trf.xlu0
    %v2787 = vpop.trf.xlu0
    %v2788 = vpop.trf.xlu0
    %2789 = vxpose.xlu0.b32.start [1/16] %v716, 128
    %2790 = vxpose.xlu0.b32.cont [2/16] 0.0, 128
    %2791 = vxpose.xlu0.b32.cont [3/16] 0.0, 128
    %2792 = vxpose.xlu0.b32.cont [4/16] 0.0, 128
    %2793 = vxpose.xlu0.b32.cont [5/16] 0.0, 128
    %2794 = vxpose.xlu0.b32.cont [6/16] 0.0, 128
    %2795 = vxpose.xlu0.b32.cont [7/16] 0.0, 128
    %2796 = vxpose.xlu0.b32.cont [8/16] 0.0, 128
    %2797 = vxpose.xlu0.b32.cont [9/16] 0.0, 128
    %2798 = vxpose.xlu0.b32.cont [10/16] 0.0, 128
    %2799 = vxpose.xlu0.b32.cont [11/16] 0.0, 128
    %2800 = vxpose.xlu0.b32.cont [12/16] 0.0, 128
    %2801 = vxpose.xlu0.b32.cont [13/16] 0.0, 128
    %2802 = vxpose.xlu0.b32.cont [14/16] 0.0, 128
    %2803 = vxpose.xlu0.b32.cont [15/16] 0.0, 128
    %2804 = vxpose.xlu0.b32.end [16/16] 0.0, 128
    %v2805 = vpop.trf.xlu0
    %v2806 = vpop.trf.xlu0
    %v2807 = vpop.trf.xlu0
    %v2808 = vpop.trf.xlu0
    %v2809 = vpop.trf.xlu0
    %v2810 = vpop.trf.xlu0
    %v2811 = vpop.trf.xlu0
    %v2812 = vpop.trf.xlu0
    %v2813 = vpop.trf.xlu0
    %v2814 = vpop.trf.xlu0
    %v2815 = vpop.trf.xlu0
    %v2816 = vpop.trf.xlu0
    %v2817 = vpop.trf.xlu0
    %v2818 = vpop.trf.xlu0
    %v2819 = vpop.trf.xlu0
    %v2820 = vpop.trf.xlu0
    %2821 = vxpose.xlu0.b32.start [1/16] %v718, 128
    %2822 = vxpose.xlu0.b32.cont [2/16] 0.0, 128
    %2823 = vxpose.xlu0.b32.cont [3/16] 0.0, 128
    %2824 = vxpose.xlu0.b32.cont [4/16] 0.0, 128
    %2825 = vxpose.xlu0.b32.cont [5/16] 0.0, 128
    %2826 = vxpose.xlu0.b32.cont [6/16] 0.0, 128
    %2827 = vxpose.xlu0.b32.cont [7/16] 0.0, 128
    %2828 = vxpose.xlu0.b32.cont [8/16] 0.0, 128
    %2829 = vxpose.xlu0.b32.cont [9/16] 0.0, 128
    %2830 = vxpose.xlu0.b32.cont [10/16] 0.0, 128
    %2831 = vxpose.xlu0.b32.cont [11/16] 0.0, 128
    %2832 = vxpose.xlu0.b32.cont [12/16] 0.0, 128
    %2833 = vxpose.xlu0.b32.cont [13/16] 0.0, 128
    %2834 = vxpose.xlu0.b32.cont [14/16] 0.0, 128
    %2835 = vxpose.xlu0.b32.cont [15/16] 0.0, 128
    %2836 = vxpose.xlu0.b32.end [16/16] 0.0, 128
    %v2837 = vpop.trf.xlu0
    %v2838 = vpop.trf.xlu0
    %v2839 = vpop.trf.xlu0
    %v2840 = vpop.trf.xlu0
    %v2841 = vpop.trf.xlu0
    %v2842 = vpop.trf.xlu0
    %v2843 = vpop.trf.xlu0
    %v2844 = vpop.trf.xlu0
    %v2845 = vpop.trf.xlu0
    %v2846 = vpop.trf.xlu0
    %v2847 = vpop.trf.xlu0
    %v2848 = vpop.trf.xlu0
    %v2849 = vpop.trf.xlu0
    %v2850 = vpop.trf.xlu0
    %v2851 = vpop.trf.xlu0
    %v2852 = vpop.trf.xlu0
    %2853 = vxpose.xlu0.b32.start [1/16] %v720, 128
    %2854 = vxpose.xlu0.b32.cont [2/16] 0.0, 128
    %2855 = vxpose.xlu0.b32.cont [3/16] 0.0, 128
    %2856 = vxpose.xlu0.b32.cont [4/16] 0.0, 128
    %2857 = vxpose.xlu0.b32.cont [5/16] 0.0, 128
    %2858 = vxpose.xlu0.b32.cont [6/16] 0.0, 128
    %2859 = vxpose.xlu0.b32.cont [7/16] 0.0, 128
    %2860 = vxpose.xlu0.b32.cont [8/16] 0.0, 128
    %2861 = vxpose.xlu0.b32.cont [9/16] 0.0, 128
    %2862 = vxpose.xlu0.b32.cont [10/16] 0.0, 128
    %2863 = vxpose.xlu0.b32.cont [11/16] 0.0, 128
    %2864 = vxpose.xlu0.b32.cont [12/16] 0.0, 128
    %2865 = vxpose.xlu0.b32.cont [13/16] 0.0, 128
    %2866 = vxpose.xlu0.b32.cont [14/16] 0.0, 128
    %2867 = vxpose.xlu0.b32.cont [15/16] 0.0, 128
    %2868 = vxpose.xlu0.b32.end [16/16] 0.0, 128
    %v2869 = vpop.trf.xlu0
    %v2870 = vpop.trf.xlu0
    %v2871 = vpop.trf.xlu0
    %v2872 = vpop.trf.xlu0
    %v2873 = vpop.trf.xlu0
    %v2874 = vpop.trf.xlu0
    %v2875 = vpop.trf.xlu0
    %v2876 = vpop.trf.xlu0
    %v2877 = vpop.trf.xlu0
    %v2878 = vpop.trf.xlu0
    %v2879 = vpop.trf.xlu0
    %v2880 = vpop.trf.xlu0
    %v2881 = vpop.trf.xlu0
    %v2882 = vpop.trf.xlu0
    %v2883 = vpop.trf.xlu0
    %v2884 = vpop.trf.xlu0
    %2885 = vxpose.xlu0.b32.start [1/16] %v722, 128
    %2886 = vxpose.xlu0.b32.cont [2/16] 0.0, 128
    %2887 = vxpose.xlu0.b32.cont [3/16] 0.0, 128
    %2888 = vxpose.xlu0.b32.cont [4/16] 0.0, 128
    %2889 = vxpose.xlu0.b32.cont [5/16] 0.0, 128
    %2890 = vxpose.xlu0.b32.cont [6/16] 0.0, 128
    %2891 = vxpose.xlu0.b32.cont [7/16] 0.0, 128
    %2892 = vxpose.xlu0.b32.cont [8/16] 0.0, 128
    %2893 = vxpose.xlu0.b32.cont [9/16] 0.0, 128
    %2894 = vxpose.xlu0.b32.cont [10/16] 0.0, 128
    %2895 = vxpose.xlu0.b32.cont [11/16] 0.0, 128
    %2896 = vxpose.xlu0.b32.cont [12/16] 0.0, 128
    %2897 = vxpose.xlu0.b32.cont [13/16] 0.0, 128
    %2898 = vxpose.xlu0.b32.cont [14/16] 0.0, 128
    %2899 = vxpose.xlu0.b32.cont [15/16] 0.0, 128
    %2900 = vxpose.xlu0.b32.end [16/16] 0.0, 128
    %v2901 = vpop.trf.xlu0
    %v2902 = vpop.trf.xlu0
    %v2903 = vpop.trf.xlu0
    %v2904 = vpop.trf.xlu0
    %v2905 = vpop.trf.xlu0
    %v2906 = vpop.trf.xlu0
    %v2907 = vpop.trf.xlu0
    %v2908 = vpop.trf.xlu0
    %v2909 = vpop.trf.xlu0
    %v2910 = vpop.trf.xlu0
    %v2911 = vpop.trf.xlu0
    %v2912 = vpop.trf.xlu0
    %v2913 = vpop.trf.xlu0
    %v2914 = vpop.trf.xlu0
    %v2915 = vpop.trf.xlu0
    %v2916 = vpop.trf.xlu0
    %2917 = vxpose.xlu0.b32.start [1/16] %v724, 128
    %2918 = vxpose.xlu0.b32.cont [2/16] 0.0, 128
    %2919 = vxpose.xlu0.b32.cont [3/16] 0.0, 128
    %2920 = vxpose.xlu0.b32.cont [4/16] 0.0, 128
    %2921 = vxpose.xlu0.b32.cont [5/16] 0.0, 128
    %2922 = vxpose.xlu0.b32.cont [6/16] 0.0, 128
    %2923 = vxpose.xlu0.b32.cont [7/16] 0.0, 128
    %2924 = vxpose.xlu0.b32.cont [8/16] 0.0, 128
    %2925 = vxpose.xlu0.b32.cont [9/16] 0.0, 128
    %2926 = vxpose.xlu0.b32.cont [10/16] 0.0, 128
    %2927 = vxpose.xlu0.b32.cont [11/16] 0.0, 128
    %2928 = vxpose.xlu0.b32.cont [12/16] 0.0, 128
    %2929 = vxpose.xlu0.b32.cont [13/16] 0.0, 128
    %2930 = vxpose.xlu0.b32.cont [14/16] 0.0, 128
    %2931 = vxpose.xlu0.b32.cont [15/16] 0.0, 128
    %2932 = vxpose.xlu0.b32.end [16/16] 0.0, 128
    %v2933 = vpop.trf.xlu0
    %v2934 = vpop.trf.xlu0
    %v2935 = vpop.trf.xlu0
    %v2936 = vpop.trf.xlu0
    %v2937 = vpop.trf.xlu0
    %v2938 = vpop.trf.xlu0
    %v2939 = vpop.trf.xlu0
    %v2940 = vpop.trf.xlu0
    %v2941 = vpop.trf.xlu0
    %v2942 = vpop.trf.xlu0
    %v2943 = vpop.trf.xlu0
    %v2944 = vpop.trf.xlu0
    %v2945 = vpop.trf.xlu0
    %v2946 = vpop.trf.xlu0
    %v2947 = vpop.trf.xlu0
    %v2948 = vpop.trf.xlu0
    %2949 = vxpose.xlu0.b32.start [1/16] %v822, 128
    %2950 = vxpose.xlu0.b32.cont [2/16] 0.0, 128
    %2951 = vxpose.xlu0.b32.cont [3/16] 0.0, 128
    %2952 = vxpose.xlu0.b32.cont [4/16] 0.0, 128
    %2953 = vxpose.xlu0.b32.cont [5/16] 0.0, 128
    %2954 = vxpose.xlu0.b32.cont [6/16] 0.0, 128
    %2955 = vxpose.xlu0.b32.cont [7/16] 0.0, 128
    %2956 = vxpose.xlu0.b32.cont [8/16] 0.0, 128
    %2957 = vxpose.xlu0.b32.cont [9/16] 0.0, 128
    %2958 = vxpose.xlu0.b32.cont [10/16] 0.0, 128
    %2959 = vxpose.xlu0.b32.cont [11/16] 0.0, 128
    %2960 = vxpose.xlu0.b32.cont [12/16] 0.0, 128
    %2961 = vxpose.xlu0.b32.cont [13/16] 0.0, 128
    %2962 = vxpose.xlu0.b32.cont [14/16] 0.0, 128
    %2963 = vxpose.xlu0.b32.cont [15/16] 0.0, 128
    %2964 = vxpose.xlu0.b32.end [16/16] 0.0, 128
    %v2965 = vpop.trf.xlu0
    %v2966 = vpop.trf.xlu0
    %v2967 = vpop.trf.xlu0
    %v2968 = vpop.trf.xlu0
    %v2969 = vpop.trf.xlu0
    %v2970 = vpop.trf.xlu0
    %v2971 = vpop.trf.xlu0
    %v2972 = vpop.trf.xlu0
    %v2973 = vpop.trf.xlu0
    %v2974 = vpop.trf.xlu0
    %v2975 = vpop.trf.xlu0
    %v2976 = vpop.trf.xlu0
    %v2977 = vpop.trf.xlu0
    %v2978 = vpop.trf.xlu0
    %v2979 = vpop.trf.xlu0
    %v2980 = vpop.trf.xlu0
    %2981 = vxpose.xlu0.b32.start [1/16] %v824, 128
    %2982 = vxpose.xlu0.b32.cont [2/16] 0.0, 128
    %2983 = vxpose.xlu0.b32.cont [3/16] 0.0, 128
    %2984 = vxpose.xlu0.b32.cont [4/16] 0.0, 128
    %2985 = vxpose.xlu0.b32.cont [5/16] 0.0, 128
    %2986 = vxpose.xlu0.b32.cont [6/16] 0.0, 128
    %2987 = vxpose.xlu0.b32.cont [7/16] 0.0, 128
    %2988 = vxpose.xlu0.b32.cont [8/16] 0.0, 128
    %2989 = vxpose.xlu0.b32.cont [9/16] 0.0, 128
    %2990 = vxpose.xlu0.b32.cont [10/16] 0.0, 128
    %2991 = vxpose.xlu0.b32.cont [11/16] 0.0, 128
    %2992 = vxpose.xlu0.b32.cont [12/16] 0.0, 128
    %2993 = vxpose.xlu0.b32.cont [13/16] 0.0, 128
    %2994 = vxpose.xlu0.b32.cont [14/16] 0.0, 128
    %2995 = vxpose.xlu0.b32.cont [15/16] 0.0, 128
    %2996 = vxpose.xlu0.b32.end [16/16] 0.0, 128
    %v2997 = vpop.trf.xlu0
    %v2998 = vpop.trf.xlu0
    %v2999 = vpop.trf.xlu0
    %v3000 = vpop.trf.xlu0
    %v3001 = vpop.trf.xlu0
    %v3002 = vpop.trf.xlu0
    %v3003 = vpop.trf.xlu0
    %v3004 = vpop.trf.xlu0
    %v3005 = vpop.trf.xlu0
    %v3006 = vpop.trf.xlu0
    %v3007 = vpop.trf.xlu0
    %v3008 = vpop.trf.xlu0
    %v3009 = vpop.trf.xlu0
    %v3010 = vpop.trf.xlu0
    %v3011 = vpop.trf.xlu0
    %v3012 = vpop.trf.xlu0
    %3013 = vxpose.xlu0.b32.start [1/16] %v826, 128
    %3014 = vxpose.xlu0.b32.cont [2/16] 0.0, 128
    %3015 = vxpose.xlu0.b32.cont [3/16] 0.0, 128
    %3016 = vxpose.xlu0.b32.cont [4/16] 0.0, 128
    %3017 = vxpose.xlu0.b32.cont [5/16] 0.0, 128
    %3018 = vxpose.xlu0.b32.cont [6/16] 0.0, 128
    %3019 = vxpose.xlu0.b32.cont [7/16] 0.0, 128
    %3020 = vxpose.xlu0.b32.cont [8/16] 0.0, 128
    %3021 = vxpose.xlu0.b32.cont [9/16] 0.0, 128
    %3022 = vxpose.xlu0.b32.cont [10/16] 0.0, 128
    %3023 = vxpose.xlu0.b32.cont [11/16] 0.0, 128
    %3024 = vxpose.xlu0.b32.cont [12/16] 0.0, 128
    %3025 = vxpose.xlu0.b32.cont [13/16] 0.0, 128
    %3026 = vxpose.xlu0.b32.cont [14/16] 0.0, 128
    %3027 = vxpose.xlu0.b32.cont [15/16] 0.0, 128
    %3028 = vxpose.xlu0.b32.end [16/16] 0.0, 128
    %v3029 = vpop.trf.xlu0
    %v3030 = vpop.trf.xlu0
    %v3031 = vpop.trf.xlu0
    %v3032 = vpop.trf.xlu0
    %v3033 = vpop.trf.xlu0
    %v3034 = vpop.trf.xlu0
    %v3035 = vpop.trf.xlu0
    %v3036 = vpop.trf.xlu0
    %v3037 = vpop.trf.xlu0
    %v3038 = vpop.trf.xlu0
    %v3039 = vpop.trf.xlu0
    %v3040 = vpop.trf.xlu0
    %v3041 = vpop.trf.xlu0
    %v3042 = vpop.trf.xlu0
    %v3043 = vpop.trf.xlu0
    %v3044 = vpop.trf.xlu0
    %3045 = vxpose.xlu0.b32.start [1/16] %v828, 128
    %3046 = vxpose.xlu0.b32.cont [2/16] 0.0, 128
    %3047 = vxpose.xlu0.b32.cont [3/16] 0.0, 128
    %3048 = vxpose.xlu0.b32.cont [4/16] 0.0, 128
    %3049 = vxpose.xlu0.b32.cont [5/16] 0.0, 128
    %3050 = vxpose.xlu0.b32.cont [6/16] 0.0, 128
    %3051 = vxpose.xlu0.b32.cont [7/16] 0.0, 128
    %3052 = vxpose.xlu0.b32.cont [8/16] 0.0, 128
    %3053 = vxpose.xlu0.b32.cont [9/16] 0.0, 128
    %3054 = vxpose.xlu0.b32.cont [10/16] 0.0, 128
    %3055 = vxpose.xlu0.b32.cont [11/16] 0.0, 128
    %3056 = vxpose.xlu0.b32.cont [12/16] 0.0, 128
    %3057 = vxpose.xlu0.b32.cont [13/16] 0.0, 128
    %3058 = vxpose.xlu0.b32.cont [14/16] 0.0, 128
    %3059 = vxpose.xlu0.b32.cont [15/16] 0.0, 128
    %3060 = vxpose.xlu0.b32.end [16/16] 0.0, 128
    %v3061 = vpop.trf.xlu0
    %v3062 = vpop.trf.xlu0
    %v3063 = vpop.trf.xlu0
    %v3064 = vpop.trf.xlu0
    %v3065 = vpop.trf.xlu0
    %v3066 = vpop.trf.xlu0
    %v3067 = vpop.trf.xlu0
    %v3068 = vpop.trf.xlu0
    %v3069 = vpop.trf.xlu0
    %v3070 = vpop.trf.xlu0
    %v3071 = vpop.trf.xlu0
    %v3072 = vpop.trf.xlu0
    %v3073 = vpop.trf.xlu0
    %v3074 = vpop.trf.xlu0
    %v3075 = vpop.trf.xlu0
    %v3076 = vpop.trf.xlu0
    %3077 = vxpose.xlu0.b32.start [1/16] %v830, 128
    %3078 = vxpose.xlu0.b32.cont [2/16] 0.0, 128
    %3079 = vxpose.xlu0.b32.cont [3/16] 0.0, 128
    %3080 = vxpose.xlu0.b32.cont [4/16] 0.0, 128
    %3081 = vxpose.xlu0.b32.cont [5/16] 0.0, 128
    %3082 = vxpose.xlu0.b32.cont [6/16] 0.0, 128
    %3083 = vxpose.xlu0.b32.cont [7/16] 0.0, 128
    %3084 = vxpose.xlu0.b32.cont [8/16] 0.0, 128
    %3085 = vxpose.xlu0.b32.cont [9/16] 0.0, 128
    %3086 = vxpose.xlu0.b32.cont [10/16] 0.0, 128
    %3087 = vxpose.xlu0.b32.cont [11/16] 0.0, 128
    %3088 = vxpose.xlu0.b32.cont [12/16] 0.0, 128
    %3089 = vxpose.xlu0.b32.cont [13/16] 0.0, 128
    %3090 = vxpose.xlu0.b32.cont [14/16] 0.0, 128
    %3091 = vxpose.xlu0.b32.cont [15/16] 0.0, 128
    %3092 = vxpose.xlu0.b32.end [16/16] 0.0, 128
    %v3093 = vpop.trf.xlu0
    %v3094 = vpop.trf.xlu0
    %v3095 = vpop.trf.xlu0
    %v3096 = vpop.trf.xlu0
    %v3097 = vpop.trf.xlu0
    %v3098 = vpop.trf.xlu0
    %v3099 = vpop.trf.xlu0
    %v3100 = vpop.trf.xlu0
    %v3101 = vpop.trf.xlu0
    %v3102 = vpop.trf.xlu0
    %v3103 = vpop.trf.xlu0
    %v3104 = vpop.trf.xlu0
    %v3105 = vpop.trf.xlu0
    %v3106 = vpop.trf.xlu0
    %v3107 = vpop.trf.xlu0
    %v3108 = vpop.trf.xlu0
    %3109 = vxpose.xlu0.b32.start [1/16] %v832, 128
    %3110 = vxpose.xlu0.b32.cont [2/16] 0.0, 128
    %3111 = vxpose.xlu0.b32.cont [3/16] 0.0, 128
    %3112 = vxpose.xlu0.b32.cont [4/16] 0.0, 128
    %3113 = vxpose.xlu0.b32.cont [5/16] 0.0, 128
    %3114 = vxpose.xlu0.b32.cont [6/16] 0.0, 128
    %3115 = vxpose.xlu0.b32.cont [7/16] 0.0, 128
    %3116 = vxpose.xlu0.b32.cont [8/16] 0.0, 128
    %3117 = vxpose.xlu0.b32.cont [9/16] 0.0, 128
    %3118 = vxpose.xlu0.b32.cont [10/16] 0.0, 128
    %3119 = vxpose.xlu0.b32.cont [11/16] 0.0, 128
    %3120 = vxpose.xlu0.b32.cont [12/16] 0.0, 128
    %3121 = vxpose.xlu0.b32.cont [13/16] 0.0, 128
    %3122 = vxpose.xlu0.b32.cont [14/16] 0.0, 128
    %3123 = vxpose.xlu0.b32.cont [15/16] 0.0, 128
    %3124 = vxpose.xlu0.b32.end [16/16] 0.0, 128
    %v3125 = vpop.trf.xlu0
    %v3126 = vpop.trf.xlu0
    %v3127 = vpop.trf.xlu0
    %v3128 = vpop.trf.xlu0
    %v3129 = vpop.trf.xlu0
    %v3130 = vpop.trf.xlu0
    %v3131 = vpop.trf.xlu0
    %v3132 = vpop.trf.xlu0
    %v3133 = vpop.trf.xlu0
    %v3134 = vpop.trf.xlu0
    %v3135 = vpop.trf.xlu0
    %v3136 = vpop.trf.xlu0
    %v3137 = vpop.trf.xlu0
    %v3138 = vpop.trf.xlu0
    %v3139 = vpop.trf.xlu0
    %v3140 = vpop.trf.xlu0
    %3141 = vxpose.xlu0.b32.start [1/16] %v834, 128
    %3142 = vxpose.xlu0.b32.cont [2/16] 0.0, 128
    %3143 = vxpose.xlu0.b32.cont [3/16] 0.0, 128
    %3144 = vxpose.xlu0.b32.cont [4/16] 0.0, 128
    %3145 = vxpose.xlu0.b32.cont [5/16] 0.0, 128
    %3146 = vxpose.xlu0.b32.cont [6/16] 0.0, 128
    %3147 = vxpose.xlu0.b32.cont [7/16] 0.0, 128
    %3148 = vxpose.xlu0.b32.cont [8/16] 0.0, 128
    %3149 = vxpose.xlu0.b32.cont [9/16] 0.0, 128
    %3150 = vxpose.xlu0.b32.cont [10/16] 0.0, 128
    %3151 = vxpose.xlu0.b32.cont [11/16] 0.0, 128
    %3152 = vxpose.xlu0.b32.cont [12/16] 0.0, 128
    %3153 = vxpose.xlu0.b32.cont [13/16] 0.0, 128
    %3154 = vxpose.xlu0.b32.cont [14/16] 0.0, 128
    %3155 = vxpose.xlu0.b32.cont [15/16] 0.0, 128
    %3156 = vxpose.xlu0.b32.end [16/16] 0.0, 128
    %v3157 = vpop.trf.xlu0
    %v3158 = vpop.trf.xlu0
    %v3159 = vpop.trf.xlu0
    %v3160 = vpop.trf.xlu0
    %v3161 = vpop.trf.xlu0
    %v3162 = vpop.trf.xlu0
    %v3163 = vpop.trf.xlu0
    %v3164 = vpop.trf.xlu0
    %v3165 = vpop.trf.xlu0
    %v3166 = vpop.trf.xlu0
    %v3167 = vpop.trf.xlu0
    %v3168 = vpop.trf.xlu0
    %v3169 = vpop.trf.xlu0
    %v3170 = vpop.trf.xlu0
    %v3171 = vpop.trf.xlu0
    %v3172 = vpop.trf.xlu0
    %3173 = vxpose.xlu0.b32.start [1/16] %v836, 128
    %3174 = vxpose.xlu0.b32.cont [2/16] 0.0, 128
    %3175 = vxpose.xlu0.b32.cont [3/16] 0.0, 128
    %3176 = vxpose.xlu0.b32.cont [4/16] 0.0, 128
    %3177 = vxpose.xlu0.b32.cont [5/16] 0.0, 128
    %3178 = vxpose.xlu0.b32.cont [6/16] 0.0, 128
    %3179 = vxpose.xlu0.b32.cont [7/16] 0.0, 128
    %3180 = vxpose.xlu0.b32.cont [8/16] 0.0, 128
    %3181 = vxpose.xlu0.b32.cont [9/16] 0.0, 128
    %3182 = vxpose.xlu0.b32.cont [10/16] 0.0, 128
    %3183 = vxpose.xlu0.b32.cont [11/16] 0.0, 128
    %3184 = vxpose.xlu0.b32.cont [12/16] 0.0, 128
    %3185 = vxpose.xlu0.b32.cont [13/16] 0.0, 128
    %3186 = vxpose.xlu0.b32.cont [14/16] 0.0, 128
    %3187 = vxpose.xlu0.b32.cont [15/16] 0.0, 128
    %3188 = vxpose.xlu0.b32.end [16/16] 0.0, 128
    %v3189 = vpop.trf.xlu0
    %v3190 = vpop.trf.xlu0
    %v3191 = vpop.trf.xlu0
    %v3192 = vpop.trf.xlu0
    %v3193 = vpop.trf.xlu0
    %v3194 = vpop.trf.xlu0
    %v3195 = vpop.trf.xlu0
    %v3196 = vpop.trf.xlu0
    %v3197 = vpop.trf.xlu0
    %v3198 = vpop.trf.xlu0
    %v3199 = vpop.trf.xlu0
    %v3200 = vpop.trf.xlu0
    %v3201 = vpop.trf.xlu0
    %v3202 = vpop.trf.xlu0
    %v3203 = vpop.trf.xlu0
    %v3204 = vpop.trf.xlu0
    %3205 = vxpose.xlu0.b32.start [1/16] %v934, 128
    %3206 = vxpose.xlu0.b32.cont [2/16] 0.0, 128
    %3207 = vxpose.xlu0.b32.cont [3/16] 0.0, 128
    %3208 = vxpose.xlu0.b32.cont [4/16] 0.0, 128
    %3209 = vxpose.xlu0.b32.cont [5/16] 0.0, 128
    %3210 = vxpose.xlu0.b32.cont [6/16] 0.0, 128
    %3211 = vxpose.xlu0.b32.cont [7/16] 0.0, 128
    %3212 = vxpose.xlu0.b32.cont [8/16] 0.0, 128
    %3213 = vxpose.xlu0.b32.cont [9/16] 0.0, 128
    %3214 = vxpose.xlu0.b32.cont [10/16] 0.0, 128
    %3215 = vxpose.xlu0.b32.cont [11/16] 0.0, 128
    %3216 = vxpose.xlu0.b32.cont [12/16] 0.0, 128
    %3217 = vxpose.xlu0.b32.cont [13/16] 0.0, 128
    %3218 = vxpose.xlu0.b32.cont [14/16] 0.0, 128
    %3219 = vxpose.xlu0.b32.cont [15/16] 0.0, 128
    %3220 = vxpose.xlu0.b32.end [16/16] 0.0, 128
    %v3221 = vpop.trf.xlu0
    %v3222 = vpop.trf.xlu0
    %v3223 = vpop.trf.xlu0
    %v3224 = vpop.trf.xlu0
    %v3225 = vpop.trf.xlu0
    %v3226 = vpop.trf.xlu0
    %v3227 = vpop.trf.xlu0
    %v3228 = vpop.trf.xlu0
    %v3229 = vpop.trf.xlu0
    %v3230 = vpop.trf.xlu0
    %v3231 = vpop.trf.xlu0
    %v3232 = vpop.trf.xlu0
    %v3233 = vpop.trf.xlu0
    %v3234 = vpop.trf.xlu0
    %v3235 = vpop.trf.xlu0
    %v3236 = vpop.trf.xlu0
    %3237 = vxpose.xlu0.b32.start [1/16] %v936, 128
    %3238 = vxpose.xlu0.b32.cont [2/16] 0.0, 128
    %3239 = vxpose.xlu0.b32.cont [3/16] 0.0, 128
    %3240 = vxpose.xlu0.b32.cont [4/16] 0.0, 128
    %3241 = vxpose.xlu0.b32.cont [5/16] 0.0, 128
    %3242 = vxpose.xlu0.b32.cont [6/16] 0.0, 128
    %3243 = vxpose.xlu0.b32.cont [7/16] 0.0, 128
    %3244 = vxpose.xlu0.b32.cont [8/16] 0.0, 128
    %3245 = vxpose.xlu0.b32.cont [9/16] 0.0, 128
    %3246 = vxpose.xlu0.b32.cont [10/16] 0.0, 128
    %3247 = vxpose.xlu0.b32.cont [11/16] 0.0, 128
    %3248 = vxpose.xlu0.b32.cont [12/16] 0.0, 128
    %3249 = vxpose.xlu0.b32.cont [13/16] 0.0, 128
    %3250 = vxpose.xlu0.b32.cont [14/16] 0.0, 128
    %3251 = vxpose.xlu0.b32.cont [15/16] 0.0, 128
    %3252 = vxpose.xlu0.b32.end [16/16] 0.0, 128
    %v3253 = vpop.trf.xlu0
    %v3254 = vpop.trf.xlu0
    %v3255 = vpop.trf.xlu0
    %v3256 = vpop.trf.xlu0
    %v3257 = vpop.trf.xlu0
    %v3258 = vpop.trf.xlu0
    %v3259 = vpop.trf.xlu0
    %v3260 = vpop.trf.xlu0
    %v3261 = vpop.trf.xlu0
    %v3262 = vpop.trf.xlu0
    %v3263 = vpop.trf.xlu0
    %v3264 = vpop.trf.xlu0
    %v3265 = vpop.trf.xlu0
    %v3266 = vpop.trf.xlu0
    %v3267 = vpop.trf.xlu0
    %v3268 = vpop.trf.xlu0
    %3269 = vxpose.xlu0.b32.start [1/16] %v938, 128
    %3270 = vxpose.xlu0.b32.cont [2/16] 0.0, 128
    %3271 = vxpose.xlu0.b32.cont [3/16] 0.0, 128
    %3272 = vxpose.xlu0.b32.cont [4/16] 0.0, 128
    %3273 = vxpose.xlu0.b32.cont [5/16] 0.0, 128
    %3274 = vxpose.xlu0.b32.cont [6/16] 0.0, 128
    %3275 = vxpose.xlu0.b32.cont [7/16] 0.0, 128
    %3276 = vxpose.xlu0.b32.cont [8/16] 0.0, 128
    %3277 = vxpose.xlu0.b32.cont [9/16] 0.0, 128
    %3278 = vxpose.xlu0.b32.cont [10/16] 0.0, 128
    %3279 = vxpose.xlu0.b32.cont [11/16] 0.0, 128
    %3280 = vxpose.xlu0.b32.cont [12/16] 0.0, 128
    %3281 = vxpose.xlu0.b32.cont [13/16] 0.0, 128
    %3282 = vxpose.xlu0.b32.cont [14/16] 0.0, 128
    %3283 = vxpose.xlu0.b32.cont [15/16] 0.0, 128
    %3284 = vxpose.xlu0.b32.end [16/16] 0.0, 128
    %v3285 = vpop.trf.xlu0
    %v3286 = vpop.trf.xlu0
    %v3287 = vpop.trf.xlu0
    %v3288 = vpop.trf.xlu0
    %v3289 = vpop.trf.xlu0
    %v3290 = vpop.trf.xlu0
    %v3291 = vpop.trf.xlu0
    %v3292 = vpop.trf.xlu0
    %v3293 = vpop.trf.xlu0
    %v3294 = vpop.trf.xlu0
    %v3295 = vpop.trf.xlu0
    %v3296 = vpop.trf.xlu0
    %v3297 = vpop.trf.xlu0
    %v3298 = vpop.trf.xlu0
    %v3299 = vpop.trf.xlu0
    %v3300 = vpop.trf.xlu0
    %3301 = vxpose.xlu0.b32.start [1/16] %v940, 128
    %3302 = vxpose.xlu0.b32.cont [2/16] 0.0, 128
    %3303 = vxpose.xlu0.b32.cont [3/16] 0.0, 128
    %3304 = vxpose.xlu0.b32.cont [4/16] 0.0, 128
    %3305 = vxpose.xlu0.b32.cont [5/16] 0.0, 128
    %3306 = vxpose.xlu0.b32.cont [6/16] 0.0, 128
    %3307 = vxpose.xlu0.b32.cont [7/16] 0.0, 128
    %3308 = vxpose.xlu0.b32.cont [8/16] 0.0, 128
    %3309 = vxpose.xlu0.b32.cont [9/16] 0.0, 128
    %3310 = vxpose.xlu0.b32.cont [10/16] 0.0, 128
    %3311 = vxpose.xlu0.b32.cont [11/16] 0.0, 128
    %3312 = vxpose.xlu0.b32.cont [12/16] 0.0, 128
    %3313 = vxpose.xlu0.b32.cont [13/16] 0.0, 128
    %3314 = vxpose.xlu0.b32.cont [14/16] 0.0, 128
    %3315 = vxpose.xlu0.b32.cont [15/16] 0.0, 128
    %3316 = vxpose.xlu0.b32.end [16/16] 0.0, 128
    %v3317 = vpop.trf.xlu0
    %v3318 = vpop.trf.xlu0
    %v3319 = vpop.trf.xlu0
    %v3320 = vpop.trf.xlu0
    %v3321 = vpop.trf.xlu0
    %v3322 = vpop.trf.xlu0
    %v3323 = vpop.trf.xlu0
    %v3324 = vpop.trf.xlu0
    %v3325 = vpop.trf.xlu0
    %v3326 = vpop.trf.xlu0
    %v3327 = vpop.trf.xlu0
    %v3328 = vpop.trf.xlu0
    %v3329 = vpop.trf.xlu0
    %v3330 = vpop.trf.xlu0
    %v3331 = vpop.trf.xlu0
    %v3332 = vpop.trf.xlu0
    %3333 = vxpose.xlu0.b32.start [1/16] %v942, 128
    %3334 = vxpose.xlu0.b32.cont [2/16] 0.0, 128
    %3335 = vxpose.xlu0.b32.cont [3/16] 0.0, 128
    %3336 = vxpose.xlu0.b32.cont [4/16] 0.0, 128
    %3337 = vxpose.xlu0.b32.cont [5/16] 0.0, 128
    %3338 = vxpose.xlu0.b32.cont [6/16] 0.0, 128
    %3339 = vxpose.xlu0.b32.cont [7/16] 0.0, 128
    %3340 = vxpose.xlu0.b32.cont [8/16] 0.0, 128
    %3341 = vxpose.xlu0.b32.cont [9/16] 0.0, 128
    %3342 = vxpose.xlu0.b32.cont [10/16] 0.0, 128
    %3343 = vxpose.xlu0.b32.cont [11/16] 0.0, 128
    %3344 = vxpose.xlu0.b32.cont [12/16] 0.0, 128
    %3345 = vxpose.xlu0.b32.cont [13/16] 0.0, 128
    %3346 = vxpose.xlu0.b32.cont [14/16] 0.0, 128
    %3347 = vxpose.xlu0.b32.cont [15/16] 0.0, 128
    %3348 = vxpose.xlu0.b32.end [16/16] 0.0, 128
    %v3349 = vpop.trf.xlu0
    %v3350 = vpop.trf.xlu0
    %v3351 = vpop.trf.xlu0
    %v3352 = vpop.trf.xlu0
    %v3353 = vpop.trf.xlu0
    %v3354 = vpop.trf.xlu0
    %v3355 = vpop.trf.xlu0
    %v3356 = vpop.trf.xlu0
    %v3357 = vpop.trf.xlu0
    %v3358 = vpop.trf.xlu0
    %v3359 = vpop.trf.xlu0
    %v3360 = vpop.trf.xlu0
    %v3361 = vpop.trf.xlu0
    %v3362 = vpop.trf.xlu0
    %v3363 = vpop.trf.xlu0
    %v3364 = vpop.trf.xlu0
    %3365 = vxpose.xlu0.b32.start [1/16] %v944, 128
    %3366 = vxpose.xlu0.b32.cont [2/16] 0.0, 128
    %3367 = vxpose.xlu0.b32.cont [3/16] 0.0, 128
    %3368 = vxpose.xlu0.b32.cont [4/16] 0.0, 128
    %3369 = vxpose.xlu0.b32.cont [5/16] 0.0, 128
    %3370 = vxpose.xlu0.b32.cont [6/16] 0.0, 128
    %3371 = vxpose.xlu0.b32.cont [7/16] 0.0, 128
    %3372 = vxpose.xlu0.b32.cont [8/16] 0.0, 128
    %3373 = vxpose.xlu0.b32.cont [9/16] 0.0, 128
    %3374 = vxpose.xlu0.b32.cont [10/16] 0.0, 128
    %3375 = vxpose.xlu0.b32.cont [11/16] 0.0, 128
    %3376 = vxpose.xlu0.b32.cont [12/16] 0.0, 128
    %3377 = vxpose.xlu0.b32.cont [13/16] 0.0, 128
    %3378 = vxpose.xlu0.b32.cont [14/16] 0.0, 128
    %3379 = vxpose.xlu0.b32.cont [15/16] 0.0, 128
    %3380 = vxpose.xlu0.b32.end [16/16] 0.0, 128
    %v3381 = vpop.trf.xlu0
    %v3382 = vpop.trf.xlu0
    %v3383 = vpop.trf.xlu0
    %v3384 = vpop.trf.xlu0
    %v3385 = vpop.trf.xlu0
    %v3386 = vpop.trf.xlu0
    %v3387 = vpop.trf.xlu0
    %v3388 = vpop.trf.xlu0
    %v3389 = vpop.trf.xlu0
    %v3390 = vpop.trf.xlu0
    %v3391 = vpop.trf.xlu0
    %v3392 = vpop.trf.xlu0
    %v3393 = vpop.trf.xlu0
    %v3394 = vpop.trf.xlu0
    %v3395 = vpop.trf.xlu0
    %v3396 = vpop.trf.xlu0
    %3397 = vxpose.xlu0.b32.start [1/16] %v946, 128
    %3398 = vxpose.xlu0.b32.cont [2/16] 0.0, 128
    %3399 = vxpose.xlu0.b32.cont [3/16] 0.0, 128
    %3400 = vxpose.xlu0.b32.cont [4/16] 0.0, 128
    %3401 = vxpose.xlu0.b32.cont [5/16] 0.0, 128
    %3402 = vxpose.xlu0.b32.cont [6/16] 0.0, 128
    %3403 = vxpose.xlu0.b32.cont [7/16] 0.0, 128
    %3404 = vxpose.xlu0.b32.cont [8/16] 0.0, 128
    %3405 = vxpose.xlu0.b32.cont [9/16] 0.0, 128
    %3406 = vxpose.xlu0.b32.cont [10/16] 0.0, 128
    %3407 = vxpose.xlu0.b32.cont [11/16] 0.0, 128
    %3408 = vxpose.xlu0.b32.cont [12/16] 0.0, 128
    %3409 = vxpose.xlu0.b32.cont [13/16] 0.0, 128
    %3410 = vxpose.xlu0.b32.cont [14/16] 0.0, 128
    %3411 = vxpose.xlu0.b32.cont [15/16] 0.0, 128
    %3412 = vxpose.xlu0.b32.end [16/16] 0.0, 128
    %v3413 = vpop.trf.xlu0
    %v3414 = vpop.trf.xlu0
    %v3415 = vpop.trf.xlu0
    %v3416 = vpop.trf.xlu0
    %v3417 = vpop.trf.xlu0
    %v3418 = vpop.trf.xlu0
    %v3419 = vpop.trf.xlu0
    %v3420 = vpop.trf.xlu0
    %v3421 = vpop.trf.xlu0
    %v3422 = vpop.trf.xlu0
    %v3423 = vpop.trf.xlu0
    %v3424 = vpop.trf.xlu0
    %v3425 = vpop.trf.xlu0
    %v3426 = vpop.trf.xlu0
    %v3427 = vpop.trf.xlu0
    %v3428 = vpop.trf.xlu0
    %3429 = vxpose.xlu0.b32.start [1/16] %v948, 128
    %3430 = vxpose.xlu0.b32.cont [2/16] 0.0, 128
    %3431 = vxpose.xlu0.b32.cont [3/16] 0.0, 128
    %3432 = vxpose.xlu0.b32.cont [4/16] 0.0, 128
    %3433 = vxpose.xlu0.b32.cont [5/16] 0.0, 128
    %3434 = vxpose.xlu0.b32.cont [6/16] 0.0, 128
    %3435 = vxpose.xlu0.b32.cont [7/16] 0.0, 128
    %3436 = vxpose.xlu0.b32.cont [8/16] 0.0, 128
    %3437 = vxpose.xlu0.b32.cont [9/16] 0.0, 128
    %3438 = vxpose.xlu0.b32.cont [10/16] 0.0, 128
    %3439 = vxpose.xlu0.b32.cont [11/16] 0.0, 128
    %3440 = vxpose.xlu0.b32.cont [12/16] 0.0, 128
    %3441 = vxpose.xlu0.b32.cont [13/16] 0.0, 128
    %3442 = vxpose.xlu0.b32.cont [14/16] 0.0, 128
    %3443 = vxpose.xlu0.b32.cont [15/16] 0.0, 128
    %3444 = vxpose.xlu0.b32.end [16/16] 0.0, 128
    %v3445 = vpop.trf.xlu0
    %v3446 = vpop.trf.xlu0
    %v3447 = vpop.trf.xlu0
    %v3448 = vpop.trf.xlu0
    %v3449 = vpop.trf.xlu0
    %v3450 = vpop.trf.xlu0
    %v3451 = vpop.trf.xlu0
    %v3452 = vpop.trf.xlu0
    %v3453 = vpop.trf.xlu0
    %v3454 = vpop.trf.xlu0
    %v3455 = vpop.trf.xlu0
    %v3456 = vpop.trf.xlu0
    %v3457 = vpop.trf.xlu0
    %v3458 = vpop.trf.xlu0
    %v3459 = vpop.trf.xlu0
    %v3460 = vpop.trf.xlu0
    %3461 = vxpose.xlu0.b32.start [1/16] %v1046, 128
    %3462 = vxpose.xlu0.b32.cont [2/16] 0.0, 128
    %3463 = vxpose.xlu0.b32.cont [3/16] 0.0, 128
    %3464 = vxpose.xlu0.b32.cont [4/16] 0.0, 128
    %3465 = vxpose.xlu0.b32.cont [5/16] 0.0, 128
    %3466 = vxpose.xlu0.b32.cont [6/16] 0.0, 128
    %3467 = vxpose.xlu0.b32.cont [7/16] 0.0, 128
    %3468 = vxpose.xlu0.b32.cont [8/16] 0.0, 128
    %3469 = vxpose.xlu0.b32.cont [9/16] 0.0, 128
    %3470 = vxpose.xlu0.b32.cont [10/16] 0.0, 128
    %3471 = vxpose.xlu0.b32.cont [11/16] 0.0, 128
    %3472 = vxpose.xlu0.b32.cont [12/16] 0.0, 128
    %3473 = vxpose.xlu0.b32.cont [13/16] 0.0, 128
    %3474 = vxpose.xlu0.b32.cont [14/16] 0.0, 128
    %3475 = vxpose.xlu0.b32.cont [15/16] 0.0, 128
    %3476 = vxpose.xlu0.b32.end [16/16] 0.0, 128
    %v3477 = vpop.trf.xlu0
    %v3478 = vpop.trf.xlu0
    %v3479 = vpop.trf.xlu0
    %v3480 = vpop.trf.xlu0
    %v3481 = vpop.trf.xlu0
    %v3482 = vpop.trf.xlu0
    %v3483 = vpop.trf.xlu0
    %v3484 = vpop.trf.xlu0
    %v3485 = vpop.trf.xlu0
    %v3486 = vpop.trf.xlu0
    %v3487 = vpop.trf.xlu0
    %v3488 = vpop.trf.xlu0
    %v3489 = vpop.trf.xlu0
    %v3490 = vpop.trf.xlu0
    %v3491 = vpop.trf.xlu0
    %v3492 = vpop.trf.xlu0
    %3493 = vxpose.xlu0.b32.start [1/16] %v1048, 128
    %3494 = vxpose.xlu0.b32.cont [2/16] 0.0, 128
    %3495 = vxpose.xlu0.b32.cont [3/16] 0.0, 128
    %3496 = vxpose.xlu0.b32.cont [4/16] 0.0, 128
    %3497 = vxpose.xlu0.b32.cont [5/16] 0.0, 128
    %3498 = vxpose.xlu0.b32.cont [6/16] 0.0, 128
    %3499 = vxpose.xlu0.b32.cont [7/16] 0.0, 128
    %3500 = vxpose.xlu0.b32.cont [8/16] 0.0, 128
    %3501 = vxpose.xlu0.b32.cont [9/16] 0.0, 128
    %3502 = vxpose.xlu0.b32.cont [10/16] 0.0, 128
    %3503 = vxpose.xlu0.b32.cont [11/16] 0.0, 128
    %3504 = vxpose.xlu0.b32.cont [12/16] 0.0, 128
    %3505 = vxpose.xlu0.b32.cont [13/16] 0.0, 128
    %3506 = vxpose.xlu0.b32.cont [14/16] 0.0, 128
    %3507 = vxpose.xlu0.b32.cont [15/16] 0.0, 128
    %3508 = vxpose.xlu0.b32.end [16/16] 0.0, 128
    %v3509 = vpop.trf.xlu0
    %v3510 = vpop.trf.xlu0
    %v3511 = vpop.trf.xlu0
    %v3512 = vpop.trf.xlu0
    %v3513 = vpop.trf.xlu0
    %v3514 = vpop.trf.xlu0
    %v3515 = vpop.trf.xlu0
    %v3516 = vpop.trf.xlu0
    %v3517 = vpop.trf.xlu0
    %v3518 = vpop.trf.xlu0
    %v3519 = vpop.trf.xlu0
    %v3520 = vpop.trf.xlu0
    %v3521 = vpop.trf.xlu0
    %v3522 = vpop.trf.xlu0
    %v3523 = vpop.trf.xlu0
    %v3524 = vpop.trf.xlu0
    %3525 = vxpose.xlu0.b32.start [1/16] %v1050, 128
    %3526 = vxpose.xlu0.b32.cont [2/16] 0.0, 128
    %3527 = vxpose.xlu0.b32.cont [3/16] 0.0, 128
    %3528 = vxpose.xlu0.b32.cont [4/16] 0.0, 128
    %3529 = vxpose.xlu0.b32.cont [5/16] 0.0, 128
    %3530 = vxpose.xlu0.b32.cont [6/16] 0.0, 128
    %3531 = vxpose.xlu0.b32.cont [7/16] 0.0, 128
    %3532 = vxpose.xlu0.b32.cont [8/16] 0.0, 128
    %3533 = vxpose.xlu0.b32.cont [9/16] 0.0, 128
    %3534 = vxpose.xlu0.b32.cont [10/16] 0.0, 128
    %3535 = vxpose.xlu0.b32.cont [11/16] 0.0, 128
    %3536 = vxpose.xlu0.b32.cont [12/16] 0.0, 128
    %3537 = vxpose.xlu0.b32.cont [13/16] 0.0, 128
    %3538 = vxpose.xlu0.b32.cont [14/16] 0.0, 128
    %3539 = vxpose.xlu0.b32.cont [15/16] 0.0, 128
    %3540 = vxpose.xlu0.b32.end [16/16] 0.0, 128
    %v3541 = vpop.trf.xlu0
    %v3542 = vpop.trf.xlu0
    %v3543 = vpop.trf.xlu0
    %v3544 = vpop.trf.xlu0
    %v3545 = vpop.trf.xlu0
    %v3546 = vpop.trf.xlu0
    %v3547 = vpop.trf.xlu0
    %v3548 = vpop.trf.xlu0
    %v3549 = vpop.trf.xlu0
    %v3550 = vpop.trf.xlu0
    %v3551 = vpop.trf.xlu0
    %v3552 = vpop.trf.xlu0
    %v3553 = vpop.trf.xlu0
    %v3554 = vpop.trf.xlu0
    %v3555 = vpop.trf.xlu0
    %v3556 = vpop.trf.xlu0
    %3557 = vxpose.xlu0.b32.start [1/16] %v1052, 128
    %3558 = vxpose.xlu0.b32.cont [2/16] 0.0, 128
    %3559 = vxpose.xlu0.b32.cont [3/16] 0.0, 128
    %3560 = vxpose.xlu0.b32.cont [4/16] 0.0, 128
    %3561 = vxpose.xlu0.b32.cont [5/16] 0.0, 128
    %3562 = vxpose.xlu0.b32.cont [6/16] 0.0, 128
    %3563 = vxpose.xlu0.b32.cont [7/16] 0.0, 128
    %3564 = vxpose.xlu0.b32.cont [8/16] 0.0, 128
    %3565 = vxpose.xlu0.b32.cont [9/16] 0.0, 128
    %3566 = vxpose.xlu0.b32.cont [10/16] 0.0, 128
    %3567 = vxpose.xlu0.b32.cont [11/16] 0.0, 128
    %3568 = vxpose.xlu0.b32.cont [12/16] 0.0, 128
    %3569 = vxpose.xlu0.b32.cont [13/16] 0.0, 128
    %3570 = vxpose.xlu0.b32.cont [14/16] 0.0, 128
    %3571 = vxpose.xlu0.b32.cont [15/16] 0.0, 128
    %3572 = vxpose.xlu0.b32.end [16/16] 0.0, 128
    %v3573 = vpop.trf.xlu0
    %v3574 = vpop.trf.xlu0
    %v3575 = vpop.trf.xlu0
    %v3576 = vpop.trf.xlu0
    %v3577 = vpop.trf.xlu0
    %v3578 = vpop.trf.xlu0
    %v3579 = vpop.trf.xlu0
    %v3580 = vpop.trf.xlu0
    %v3581 = vpop.trf.xlu0
    %v3582 = vpop.trf.xlu0
    %v3583 = vpop.trf.xlu0
    %v3584 = vpop.trf.xlu0
    %v3585 = vpop.trf.xlu0
    %v3586 = vpop.trf.xlu0
    %v3587 = vpop.trf.xlu0
    %v3588 = vpop.trf.xlu0
    %3589 = vxpose.xlu0.b32.start [1/16] %v1054, 128
    %3590 = vxpose.xlu0.b32.cont [2/16] 0.0, 128
    %3591 = vxpose.xlu0.b32.cont [3/16] 0.0, 128
    %3592 = vxpose.xlu0.b32.cont [4/16] 0.0, 128
    %3593 = vxpose.xlu0.b32.cont [5/16] 0.0, 128
    %3594 = vxpose.xlu0.b32.cont [6/16] 0.0, 128
    %3595 = vxpose.xlu0.b32.cont [7/16] 0.0, 128
    %3596 = vxpose.xlu0.b32.cont [8/16] 0.0, 128
    %3597 = vxpose.xlu0.b32.cont [9/16] 0.0, 128
    %3598 = vxpose.xlu0.b32.cont [10/16] 0.0, 128
    %3599 = vxpose.xlu0.b32.cont [11/16] 0.0, 128
    %3600 = vxpose.xlu0.b32.cont [12/16] 0.0, 128
    %3601 = vxpose.xlu0.b32.cont [13/16] 0.0, 128
    %3602 = vxpose.xlu0.b32.cont [14/16] 0.0, 128
    %3603 = vxpose.xlu0.b32.cont [15/16] 0.0, 128
    %3604 = vxpose.xlu0.b32.end [16/16] 0.0, 128
    %v3605 = vpop.trf.xlu0
    %v3606 = vpop.trf.xlu0
    %v3607 = vpop.trf.xlu0
    %v3608 = vpop.trf.xlu0
    %v3609 = vpop.trf.xlu0
    %v3610 = vpop.trf.xlu0
    %v3611 = vpop.trf.xlu0
    %v3612 = vpop.trf.xlu0
    %v3613 = vpop.trf.xlu0
    %v3614 = vpop.trf.xlu0
    %v3615 = vpop.trf.xlu0
    %v3616 = vpop.trf.xlu0
    %v3617 = vpop.trf.xlu0
    %v3618 = vpop.trf.xlu0
    %v3619 = vpop.trf.xlu0
    %v3620 = vpop.trf.xlu0
    %3621 = vxpose.xlu0.b32.start [1/16] %v1056, 128
    %3622 = vxpose.xlu0.b32.cont [2/16] 0.0, 128
    %3623 = vxpose.xlu0.b32.cont [3/16] 0.0, 128
    %3624 = vxpose.xlu0.b32.cont [4/16] 0.0, 128
    %3625 = vxpose.xlu0.b32.cont [5/16] 0.0, 128
    %3626 = vxpose.xlu0.b32.cont [6/16] 0.0, 128
    %3627 = vxpose.xlu0.b32.cont [7/16] 0.0, 128
    %3628 = vxpose.xlu0.b32.cont [8/16] 0.0, 128
    %3629 = vxpose.xlu0.b32.cont [9/16] 0.0, 128
    %3630 = vxpose.xlu0.b32.cont [10/16] 0.0, 128
    %3631 = vxpose.xlu0.b32.cont [11/16] 0.0, 128
    %3632 = vxpose.xlu0.b32.cont [12/16] 0.0, 128
    %3633 = vxpose.xlu0.b32.cont [13/16] 0.0, 128
    %3634 = vxpose.xlu0.b32.cont [14/16] 0.0, 128
    %3635 = vxpose.xlu0.b32.cont [15/16] 0.0, 128
    %3636 = vxpose.xlu0.b32.end [16/16] 0.0, 128
    %v3637 = vpop.trf.xlu0
    %v3638 = vpop.trf.xlu0
    %v3639 = vpop.trf.xlu0
    %v3640 = vpop.trf.xlu0
    %v3641 = vpop.trf.xlu0
    %v3642 = vpop.trf.xlu0
    %v3643 = vpop.trf.xlu0
    %v3644 = vpop.trf.xlu0
    %v3645 = vpop.trf.xlu0
    %v3646 = vpop.trf.xlu0
    %v3647 = vpop.trf.xlu0
    %v3648 = vpop.trf.xlu0
    %v3649 = vpop.trf.xlu0
    %v3650 = vpop.trf.xlu0
    %v3651 = vpop.trf.xlu0
    %v3652 = vpop.trf.xlu0
    %3653 = vxpose.xlu0.b32.start [1/16] %v1058, 128
    %3654 = vxpose.xlu0.b32.cont [2/16] 0.0, 128
    %3655 = vxpose.xlu0.b32.cont [3/16] 0.0, 128
    %3656 = vxpose.xlu0.b32.cont [4/16] 0.0, 128
    %3657 = vxpose.xlu0.b32.cont [5/16] 0.0, 128
    %3658 = vxpose.xlu0.b32.cont [6/16] 0.0, 128
    %3659 = vxpose.xlu0.b32.cont [7/16] 0.0, 128
    %3660 = vxpose.xlu0.b32.cont [8/16] 0.0, 128
    %3661 = vxpose.xlu0.b32.cont [9/16] 0.0, 128
    %3662 = vxpose.xlu0.b32.cont [10/16] 0.0, 128
    %3663 = vxpose.xlu0.b32.cont [11/16] 0.0, 128
    %3664 = vxpose.xlu0.b32.cont [12/16] 0.0, 128
    %3665 = vxpose.xlu0.b32.cont [13/16] 0.0, 128
    %3666 = vxpose.xlu0.b32.cont [14/16] 0.0, 128
    %3667 = vxpose.xlu0.b32.cont [15/16] 0.0, 128
    %3668 = vxpose.xlu0.b32.end [16/16] 0.0, 128
    %v3669 = vpop.trf.xlu0
    %v3670 = vpop.trf.xlu0
    %v3671 = vpop.trf.xlu0
    %v3672 = vpop.trf.xlu0
    %v3673 = vpop.trf.xlu0
    %v3674 = vpop.trf.xlu0
    %v3675 = vpop.trf.xlu0
    %v3676 = vpop.trf.xlu0
    %v3677 = vpop.trf.xlu0
    %v3678 = vpop.trf.xlu0
    %v3679 = vpop.trf.xlu0
    %v3680 = vpop.trf.xlu0
    %v3681 = vpop.trf.xlu0
    %v3682 = vpop.trf.xlu0
    %v3683 = vpop.trf.xlu0
    %v3684 = vpop.trf.xlu0
    %3685 = vxpose.xlu0.b32.start [1/16] %v1060, 128
    %3686 = vxpose.xlu0.b32.cont [2/16] 0.0, 128
    %3687 = vxpose.xlu0.b32.cont [3/16] 0.0, 128
    %3688 = vxpose.xlu0.b32.cont [4/16] 0.0, 128
    %3689 = vxpose.xlu0.b32.cont [5/16] 0.0, 128
    %3690 = vxpose.xlu0.b32.cont [6/16] 0.0, 128
    %3691 = vxpose.xlu0.b32.cont [7/16] 0.0, 128
    %3692 = vxpose.xlu0.b32.cont [8/16] 0.0, 128
    %3693 = vxpose.xlu0.b32.cont [9/16] 0.0, 128
    %3694 = vxpose.xlu0.b32.cont [10/16] 0.0, 128
    %3695 = vxpose.xlu0.b32.cont [11/16] 0.0, 128
    %3696 = vxpose.xlu0.b32.cont [12/16] 0.0, 128
    %3697 = vxpose.xlu0.b32.cont [13/16] 0.0, 128
    %3698 = vxpose.xlu0.b32.cont [14/16] 0.0, 128
    %3699 = vxpose.xlu0.b32.cont [15/16] 0.0, 128
    %3700 = vxpose.xlu0.b32.end [16/16] 0.0, 128
    %v3701 = vpop.trf.xlu0
    %v3702 = vpop.trf.xlu0
    %v3703 = vpop.trf.xlu0
    %v3704 = vpop.trf.xlu0
    %v3705 = vpop.trf.xlu0
    %v3706 = vpop.trf.xlu0
    %v3707 = vpop.trf.xlu0
    %v3708 = vpop.trf.xlu0
    %v3709 = vpop.trf.xlu0
    %v3710 = vpop.trf.xlu0
    %v3711 = vpop.trf.xlu0
    %v3712 = vpop.trf.xlu0
    %v3713 = vpop.trf.xlu0
    %v3714 = vpop.trf.xlu0
    %v3715 = vpop.trf.xlu0
    %v3716 = vpop.trf.xlu0
    %3717 = vxpose.xlu0.b32.start [1/16] %v1158, 128
    %3718 = vxpose.xlu0.b32.cont [2/16] 0.0, 128
    %3719 = vxpose.xlu0.b32.cont [3/16] 0.0, 128
    %3720 = vxpose.xlu0.b32.cont [4/16] 0.0, 128
    %3721 = vxpose.xlu0.b32.cont [5/16] 0.0, 128
    %3722 = vxpose.xlu0.b32.cont [6/16] 0.0, 128
    %3723 = vxpose.xlu0.b32.cont [7/16] 0.0, 128
    %3724 = vxpose.xlu0.b32.cont [8/16] 0.0, 128
    %3725 = vxpose.xlu0.b32.cont [9/16] 0.0, 128
    %3726 = vxpose.xlu0.b32.cont [10/16] 0.0, 128
    %3727 = vxpose.xlu0.b32.cont [11/16] 0.0, 128
    %3728 = vxpose.xlu0.b32.cont [12/16] 0.0, 128
    %3729 = vxpose.xlu0.b32.cont [13/16] 0.0, 128
    %3730 = vxpose.xlu0.b32.cont [14/16] 0.0, 128
    %3731 = vxpose.xlu0.b32.cont [15/16] 0.0, 128
    %3732 = vxpose.xlu0.b32.end [16/16] 0.0, 128
    %v3733 = vpop.trf.xlu0
    %v3734 = vpop.trf.xlu0
    %v3735 = vpop.trf.xlu0
    %v3736 = vpop.trf.xlu0
    %v3737 = vpop.trf.xlu0
    %v3738 = vpop.trf.xlu0
    %v3739 = vpop.trf.xlu0
    %v3740 = vpop.trf.xlu0
    %v3741 = vpop.trf.xlu0
    %v3742 = vpop.trf.xlu0
    %v3743 = vpop.trf.xlu0
    %v3744 = vpop.trf.xlu0
    %v3745 = vpop.trf.xlu0
    %v3746 = vpop.trf.xlu0
    %v3747 = vpop.trf.xlu0
    %v3748 = vpop.trf.xlu0
    %3749 = vxpose.xlu0.b32.start [1/16] %v1160, 128
    %3750 = vxpose.xlu0.b32.cont [2/16] 0.0, 128
    %3751 = vxpose.xlu0.b32.cont [3/16] 0.0, 128
    %3752 = vxpose.xlu0.b32.cont [4/16] 0.0, 128
    %3753 = vxpose.xlu0.b32.cont [5/16] 0.0, 128
    %3754 = vxpose.xlu0.b32.cont [6/16] 0.0, 128
    %3755 = vxpose.xlu0.b32.cont [7/16] 0.0, 128
    %3756 = vxpose.xlu0.b32.cont [8/16] 0.0, 128
    %3757 = vxpose.xlu0.b32.cont [9/16] 0.0, 128
    %3758 = vxpose.xlu0.b32.cont [10/16] 0.0, 128
    %3759 = vxpose.xlu0.b32.cont [11/16] 0.0, 128
    %3760 = vxpose.xlu0.b32.cont [12/16] 0.0, 128
    %3761 = vxpose.xlu0.b32.cont [13/16] 0.0, 128
    %3762 = vxpose.xlu0.b32.cont [14/16] 0.0, 128
    %3763 = vxpose.xlu0.b32.cont [15/16] 0.0, 128
    %3764 = vxpose.xlu0.b32.end [16/16] 0.0, 128
    %v3765 = vpop.trf.xlu0
    %v3766 = vpop.trf.xlu0
    %v3767 = vpop.trf.xlu0
    %v3768 = vpop.trf.xlu0
    %v3769 = vpop.trf.xlu0
    %v3770 = vpop.trf.xlu0
    %v3771 = vpop.trf.xlu0
    %v3772 = vpop.trf.xlu0
    %v3773 = vpop.trf.xlu0
    %v3774 = vpop.trf.xlu0
    %v3775 = vpop.trf.xlu0
    %v3776 = vpop.trf.xlu0
    %v3777 = vpop.trf.xlu0
    %v3778 = vpop.trf.xlu0
    %v3779 = vpop.trf.xlu0
    %v3780 = vpop.trf.xlu0
    %3781 = vxpose.xlu0.b32.start [1/16] %v1162, 128
    %3782 = vxpose.xlu0.b32.cont [2/16] 0.0, 128
    %3783 = vxpose.xlu0.b32.cont [3/16] 0.0, 128
    %3784 = vxpose.xlu0.b32.cont [4/16] 0.0, 128
    %3785 = vxpose.xlu0.b32.cont [5/16] 0.0, 128
    %3786 = vxpose.xlu0.b32.cont [6/16] 0.0, 128
    %3787 = vxpose.xlu0.b32.cont [7/16] 0.0, 128
    %3788 = vxpose.xlu0.b32.cont [8/16] 0.0, 128
    %3789 = vxpose.xlu0.b32.cont [9/16] 0.0, 128
    %3790 = vxpose.xlu0.b32.cont [10/16] 0.0, 128
    %3791 = vxpose.xlu0.b32.cont [11/16] 0.0, 128
    %3792 = vxpose.xlu0.b32.cont [12/16] 0.0, 128
    %3793 = vxpose.xlu0.b32.cont [13/16] 0.0, 128
    %3794 = vxpose.xlu0.b32.cont [14/16] 0.0, 128
    %3795 = vxpose.xlu0.b32.cont [15/16] 0.0, 128
    %3796 = vxpose.xlu0.b32.end [16/16] 0.0, 128
    %v3797 = vpop.trf.xlu0
    %v3798 = vpop.trf.xlu0
    %v3799 = vpop.trf.xlu0
    %v3800 = vpop.trf.xlu0
    %v3801 = vpop.trf.xlu0
    %v3802 = vpop.trf.xlu0
    %v3803 = vpop.trf.xlu0
    %v3804 = vpop.trf.xlu0
    %v3805 = vpop.trf.xlu0
    %v3806 = vpop.trf.xlu0
    %v3807 = vpop.trf.xlu0
    %v3808 = vpop.trf.xlu0
    %v3809 = vpop.trf.xlu0
    %v3810 = vpop.trf.xlu0
    %v3811 = vpop.trf.xlu0
    %v3812 = vpop.trf.xlu0
    %3813 = vxpose.xlu0.b32.start [1/16] %v1164, 128
    %3814 = vxpose.xlu0.b32.cont [2/16] 0.0, 128
    %3815 = vxpose.xlu0.b32.cont [3/16] 0.0, 128
    %3816 = vxpose.xlu0.b32.cont [4/16] 0.0, 128
    %3817 = vxpose.xlu0.b32.cont [5/16] 0.0, 128
    %3818 = vxpose.xlu0.b32.cont [6/16] 0.0, 128
    %3819 = vxpose.xlu0.b32.cont [7/16] 0.0, 128
    %3820 = vxpose.xlu0.b32.cont [8/16] 0.0, 128
    %3821 = vxpose.xlu0.b32.cont [9/16] 0.0, 128
    %3822 = vxpose.xlu0.b32.cont [10/16] 0.0, 128
    %3823 = vxpose.xlu0.b32.cont [11/16] 0.0, 128
    %3824 = vxpose.xlu0.b32.cont [12/16] 0.0, 128
    %3825 = vxpose.xlu0.b32.cont [13/16] 0.0, 128
    %3826 = vxpose.xlu0.b32.cont [14/16] 0.0, 128
    %3827 = vxpose.xlu0.b32.cont [15/16] 0.0, 128
    %3828 = vxpose.xlu0.b32.end [16/16] 0.0, 128
    %v3829 = vpop.trf.xlu0
    %v3830 = vpop.trf.xlu0
    %v3831 = vpop.trf.xlu0
    %v3832 = vpop.trf.xlu0
    %v3833 = vpop.trf.xlu0
    %v3834 = vpop.trf.xlu0
    %v3835 = vpop.trf.xlu0
    %v3836 = vpop.trf.xlu0
    %v3837 = vpop.trf.xlu0
    %v3838 = vpop.trf.xlu0
    %v3839 = vpop.trf.xlu0
    %v3840 = vpop.trf.xlu0
    %v3841 = vpop.trf.xlu0
    %v3842 = vpop.trf.xlu0
    %v3843 = vpop.trf.xlu0
    %v3844 = vpop.trf.xlu0
    %3845 = vxpose.xlu0.b32.start [1/16] %v1166, 128
    %3846 = vxpose.xlu0.b32.cont [2/16] 0.0, 128
    %3847 = vxpose.xlu0.b32.cont [3/16] 0.0, 128
    %3848 = vxpose.xlu0.b32.cont [4/16] 0.0, 128
    %3849 = vxpose.xlu0.b32.cont [5/16] 0.0, 128
    %3850 = vxpose.xlu0.b32.cont [6/16] 0.0, 128
    %3851 = vxpose.xlu0.b32.cont [7/16] 0.0, 128
    %3852 = vxpose.xlu0.b32.cont [8/16] 0.0, 128
    %3853 = vxpose.xlu0.b32.cont [9/16] 0.0, 128
    %3854 = vxpose.xlu0.b32.cont [10/16] 0.0, 128
    %3855 = vxpose.xlu0.b32.cont [11/16] 0.0, 128
    %3856 = vxpose.xlu0.b32.cont [12/16] 0.0, 128
    %3857 = vxpose.xlu0.b32.cont [13/16] 0.0, 128
    %3858 = vxpose.xlu0.b32.cont [14/16] 0.0, 128
    %3859 = vxpose.xlu0.b32.cont [15/16] 0.0, 128
    %3860 = vxpose.xlu0.b32.end [16/16] 0.0, 128
    %v3861 = vpop.trf.xlu0
    %v3862 = vpop.trf.xlu0
    %v3863 = vpop.trf.xlu0
    %v3864 = vpop.trf.xlu0
    %v3865 = vpop.trf.xlu0
    %v3866 = vpop.trf.xlu0
    %v3867 = vpop.trf.xlu0
    %v3868 = vpop.trf.xlu0
    %v3869 = vpop.trf.xlu0
    %v3870 = vpop.trf.xlu0
    %v3871 = vpop.trf.xlu0
    %v3872 = vpop.trf.xlu0
    %v3873 = vpop.trf.xlu0
    %v3874 = vpop.trf.xlu0
    %v3875 = vpop.trf.xlu0
    %v3876 = vpop.trf.xlu0
    %3877 = vxpose.xlu0.b32.start [1/16] %v1168, 128
    %3878 = vxpose.xlu0.b32.cont [2/16] 0.0, 128
    %3879 = vxpose.xlu0.b32.cont [3/16] 0.0, 128
    %3880 = vxpose.xlu0.b32.cont [4/16] 0.0, 128
    %3881 = vxpose.xlu0.b32.cont [5/16] 0.0, 128
    %3882 = vxpose.xlu0.b32.cont [6/16] 0.0, 128
    %3883 = vxpose.xlu0.b32.cont [7/16] 0.0, 128
    %3884 = vxpose.xlu0.b32.cont [8/16] 0.0, 128
    %3885 = vxpose.xlu0.b32.cont [9/16] 0.0, 128
    %3886 = vxpose.xlu0.b32.cont [10/16] 0.0, 128
    %3887 = vxpose.xlu0.b32.cont [11/16] 0.0, 128
    %3888 = vxpose.xlu0.b32.cont [12/16] 0.0, 128
    %3889 = vxpose.xlu0.b32.cont [13/16] 0.0, 128
    %3890 = vxpose.xlu0.b32.cont [14/16] 0.0, 128
    %3891 = vxpose.xlu0.b32.cont [15/16] 0.0, 128
    %3892 = vxpose.xlu0.b32.end [16/16] 0.0, 128
    %v3893 = vpop.trf.xlu0
    %v3894 = vpop.trf.xlu0
    %v3895 = vpop.trf.xlu0
    %v3896 = vpop.trf.xlu0
    %v3897 = vpop.trf.xlu0
    %v3898 = vpop.trf.xlu0
    %v3899 = vpop.trf.xlu0
    %v3900 = vpop.trf.xlu0
    %v3901 = vpop.trf.xlu0
    %v3902 = vpop.trf.xlu0
    %v3903 = vpop.trf.xlu0
    %v3904 = vpop.trf.xlu0
    %v3905 = vpop.trf.xlu0
    %v3906 = vpop.trf.xlu0
    %v3907 = vpop.trf.xlu0
    %v3908 = vpop.trf.xlu0
    %3909 = vxpose.xlu0.b32.start [1/16] %v1170, 128
    %3910 = vxpose.xlu0.b32.cont [2/16] 0.0, 128
    %3911 = vxpose.xlu0.b32.cont [3/16] 0.0, 128
    %3912 = vxpose.xlu0.b32.cont [4/16] 0.0, 128
    %3913 = vxpose.xlu0.b32.cont [5/16] 0.0, 128
    %3914 = vxpose.xlu0.b32.cont [6/16] 0.0, 128
    %3915 = vxpose.xlu0.b32.cont [7/16] 0.0, 128
    %3916 = vxpose.xlu0.b32.cont [8/16] 0.0, 128
    %3917 = vxpose.xlu0.b32.cont [9/16] 0.0, 128
    %3918 = vxpose.xlu0.b32.cont [10/16] 0.0, 128
    %3919 = vxpose.xlu0.b32.cont [11/16] 0.0, 128
    %3920 = vxpose.xlu0.b32.cont [12/16] 0.0, 128
    %3921 = vxpose.xlu0.b32.cont [13/16] 0.0, 128
    %3922 = vxpose.xlu0.b32.cont [14/16] 0.0, 128
    %3923 = vxpose.xlu0.b32.cont [15/16] 0.0, 128
    %3924 = vxpose.xlu0.b32.end [16/16] 0.0, 128
    %v3925 = vpop.trf.xlu0
    %v3926 = vpop.trf.xlu0
    %v3927 = vpop.trf.xlu0
    %v3928 = vpop.trf.xlu0
    %v3929 = vpop.trf.xlu0
    %v3930 = vpop.trf.xlu0
    %v3931 = vpop.trf.xlu0
    %v3932 = vpop.trf.xlu0
    %v3933 = vpop.trf.xlu0
    %v3934 = vpop.trf.xlu0
    %v3935 = vpop.trf.xlu0
    %v3936 = vpop.trf.xlu0
    %v3937 = vpop.trf.xlu0
    %v3938 = vpop.trf.xlu0
    %v3939 = vpop.trf.xlu0
    %v3940 = vpop.trf.xlu0
    %3941 = vxpose.xlu0.b32.start [1/16] %v1172, 128
    %3942 = vxpose.xlu0.b32.cont [2/16] 0.0, 128
    %3943 = vxpose.xlu0.b32.cont [3/16] 0.0, 128
    %3944 = vxpose.xlu0.b32.cont [4/16] 0.0, 128
    %3945 = vxpose.xlu0.b32.cont [5/16] 0.0, 128
    %3946 = vxpose.xlu0.b32.cont [6/16] 0.0, 128
    %3947 = vxpose.xlu0.b32.cont [7/16] 0.0, 128
    %3948 = vxpose.xlu0.b32.cont [8/16] 0.0, 128
    %3949 = vxpose.xlu0.b32.cont [9/16] 0.0, 128
    %3950 = vxpose.xlu0.b32.cont [10/16] 0.0, 128
    %3951 = vxpose.xlu0.b32.cont [11/16] 0.0, 128
    %3952 = vxpose.xlu0.b32.cont [12/16] 0.0, 128
    %3953 = vxpose.xlu0.b32.cont [13/16] 0.0, 128
    %3954 = vxpose.xlu0.b32.cont [14/16] 0.0, 128
    %3955 = vxpose.xlu0.b32.cont [15/16] 0.0, 128
    %3956 = vxpose.xlu0.b32.end [16/16] 0.0, 128
    %v3957 = vpop.trf.xlu0
    %v3958 = vpop.trf.xlu0
    %v3959 = vpop.trf.xlu0
    %v3960 = vpop.trf.xlu0
    %v3961 = vpop.trf.xlu0
    %v3962 = vpop.trf.xlu0
    %v3963 = vpop.trf.xlu0
    %v3964 = vpop.trf.xlu0
    %v3965 = vpop.trf.xlu0
    %v3966 = vpop.trf.xlu0
    %v3967 = vpop.trf.xlu0
    %v3968 = vpop.trf.xlu0
    %v3969 = vpop.trf.xlu0
    %v3970 = vpop.trf.xlu0
    %v3971 = vpop.trf.xlu0
    %v3972 = vpop.trf.xlu0
    %3973 = vxpose.xlu0.b32.start [1/16] %v1270, 128
    %3974 = vxpose.xlu0.b32.cont [2/16] 0.0, 128
    %3975 = vxpose.xlu0.b32.cont [3/16] 0.0, 128
    %3976 = vxpose.xlu0.b32.cont [4/16] 0.0, 128
    %3977 = vxpose.xlu0.b32.cont [5/16] 0.0, 128
    %3978 = vxpose.xlu0.b32.cont [6/16] 0.0, 128
    %3979 = vxpose.xlu0.b32.cont [7/16] 0.0, 128
    %3980 = vxpose.xlu0.b32.cont [8/16] 0.0, 128
    %3981 = vxpose.xlu0.b32.cont [9/16] 0.0, 128
    %3982 = vxpose.xlu0.b32.cont [10/16] 0.0, 128
    %3983 = vxpose.xlu0.b32.cont [11/16] 0.0, 128
    %3984 = vxpose.xlu0.b32.cont [12/16] 0.0, 128
    %3985 = vxpose.xlu0.b32.cont [13/16] 0.0, 128
    %3986 = vxpose.xlu0.b32.cont [14/16] 0.0, 128
    %3987 = vxpose.xlu0.b32.cont [15/16] 0.0, 128
    %3988 = vxpose.xlu0.b32.end [16/16] 0.0, 128
    %v3989 = vpop.trf.xlu0
    %v3990 = vpop.trf.xlu0
    %v3991 = vpop.trf.xlu0
    %v3992 = vpop.trf.xlu0
    %v3993 = vpop.trf.xlu0
    %v3994 = vpop.trf.xlu0
    %v3995 = vpop.trf.xlu0
    %v3996 = vpop.trf.xlu0
    %v3997 = vpop.trf.xlu0
    %v3998 = vpop.trf.xlu0
    %v3999 = vpop.trf.xlu0
    %v4000 = vpop.trf.xlu0
    %v4001 = vpop.trf.xlu0
    %v4002 = vpop.trf.xlu0
    %v4003 = vpop.trf.xlu0
    %v4004 = vpop.trf.xlu0
    %4005 = vxpose.xlu0.b32.start [1/16] %v1272, 128
    %4006 = vxpose.xlu0.b32.cont [2/16] 0.0, 128
    %4007 = vxpose.xlu0.b32.cont [3/16] 0.0, 128
    %4008 = vxpose.xlu0.b32.cont [4/16] 0.0, 128
    %4009 = vxpose.xlu0.b32.cont [5/16] 0.0, 128
    %4010 = vxpose.xlu0.b32.cont [6/16] 0.0, 128
    %4011 = vxpose.xlu0.b32.cont [7/16] 0.0, 128
    %4012 = vxpose.xlu0.b32.cont [8/16] 0.0, 128
    %4013 = vxpose.xlu0.b32.cont [9/16] 0.0, 128
    %4014 = vxpose.xlu0.b32.cont [10/16] 0.0, 128
    %4015 = vxpose.xlu0.b32.cont [11/16] 0.0, 128
    %4016 = vxpose.xlu0.b32.cont [12/16] 0.0, 128
    %4017 = vxpose.xlu0.b32.cont [13/16] 0.0, 128
    %4018 = vxpose.xlu0.b32.cont [14/16] 0.0, 128
    %4019 = vxpose.xlu0.b32.cont [15/16] 0.0, 128
    %4020 = vxpose.xlu0.b32.end [16/16] 0.0, 128
    %v4021 = vpop.trf.xlu0
    %v4022 = vpop.trf.xlu0
    %v4023 = vpop.trf.xlu0
    %v4024 = vpop.trf.xlu0
    %v4025 = vpop.trf.xlu0
    %v4026 = vpop.trf.xlu0
    %v4027 = vpop.trf.xlu0
    %v4028 = vpop.trf.xlu0
    %v4029 = vpop.trf.xlu0
    %v4030 = vpop.trf.xlu0
    %v4031 = vpop.trf.xlu0
    %v4032 = vpop.trf.xlu0
    %v4033 = vpop.trf.xlu0
    %v4034 = vpop.trf.xlu0
    %v4035 = vpop.trf.xlu0
    %v4036 = vpop.trf.xlu0
    %4037 = vxpose.xlu0.b32.start [1/16] %v1274, 128
    %4038 = vxpose.xlu0.b32.cont [2/16] 0.0, 128
    %4039 = vxpose.xlu0.b32.cont [3/16] 0.0, 128
    %4040 = vxpose.xlu0.b32.cont [4/16] 0.0, 128
    %4041 = vxpose.xlu0.b32.cont [5/16] 0.0, 128
    %4042 = vxpose.xlu0.b32.cont [6/16] 0.0, 128
    %4043 = vxpose.xlu0.b32.cont [7/16] 0.0, 128
    %4044 = vxpose.xlu0.b32.cont [8/16] 0.0, 128
    %4045 = vxpose.xlu0.b32.cont [9/16] 0.0, 128
    %4046 = vxpose.xlu0.b32.cont [10/16] 0.0, 128
    %4047 = vxpose.xlu0.b32.cont [11/16] 0.0, 128
    %4048 = vxpose.xlu0.b32.cont [12/16] 0.0, 128
    %4049 = vxpose.xlu0.b32.cont [13/16] 0.0, 128
    %4050 = vxpose.xlu0.b32.cont [14/16] 0.0, 128
    %4051 = vxpose.xlu0.b32.cont [15/16] 0.0, 128
    %4052 = vxpose.xlu0.b32.end [16/16] 0.0, 128
    %v4053 = vpop.trf.xlu0
    %v4054 = vpop.trf.xlu0
    %v4055 = vpop.trf.xlu0
    %v4056 = vpop.trf.xlu0
    %v4057 = vpop.trf.xlu0
    %v4058 = vpop.trf.xlu0
    %v4059 = vpop.trf.xlu0
    %v4060 = vpop.trf.xlu0
    %v4061 = vpop.trf.xlu0
    %v4062 = vpop.trf.xlu0
    %v4063 = vpop.trf.xlu0
    %v4064 = vpop.trf.xlu0
    %v4065 = vpop.trf.xlu0
    %v4066 = vpop.trf.xlu0
    %v4067 = vpop.trf.xlu0
    %v4068 = vpop.trf.xlu0
    %4069 = vxpose.xlu0.b32.start [1/16] %v1276, 128
    %4070 = vxpose.xlu0.b32.cont [2/16] 0.0, 128
    %4071 = vxpose.xlu0.b32.cont [3/16] 0.0, 128
    %4072 = vxpose.xlu0.b32.cont [4/16] 0.0, 128
    %4073 = vxpose.xlu0.b32.cont [5/16] 0.0, 128
    %4074 = vxpose.xlu0.b32.cont [6/16] 0.0, 128
    %4075 = vxpose.xlu0.b32.cont [7/16] 0.0, 128
    %4076 = vxpose.xlu0.b32.cont [8/16] 0.0, 128
    %4077 = vxpose.xlu0.b32.cont [9/16] 0.0, 128
    %4078 = vxpose.xlu0.b32.cont [10/16] 0.0, 128
    %4079 = vxpose.xlu0.b32.cont [11/16] 0.0, 128
    %4080 = vxpose.xlu0.b32.cont [12/16] 0.0, 128
    %4081 = vxpose.xlu0.b32.cont [13/16] 0.0, 128
    %4082 = vxpose.xlu0.b32.cont [14/16] 0.0, 128
    %4083 = vxpose.xlu0.b32.cont [15/16] 0.0, 128
    %4084 = vxpose.xlu0.b32.end [16/16] 0.0, 128
    %v4085 = vpop.trf.xlu0
    %v4086 = vpop.trf.xlu0
    %v4087 = vpop.trf.xlu0
    %v4088 = vpop.trf.xlu0
    %v4089 = vpop.trf.xlu0
    %v4090 = vpop.trf.xlu0
    %v4091 = vpop.trf.xlu0
    %v4092 = vpop.trf.xlu0
    %v4093 = vpop.trf.xlu0
    %v4094 = vpop.trf.xlu0
    %v4095 = vpop.trf.xlu0
    %v4096 = vpop.trf.xlu0
    %v4097 = vpop.trf.xlu0
    %v4098 = vpop.trf.xlu0
    %v4099 = vpop.trf.xlu0
    %v4100 = vpop.trf.xlu0
    %4101 = vxpose.xlu0.b32.start [1/16] %v1278, 128
    %4102 = vxpose.xlu0.b32.cont [2/16] 0.0, 128
    %4103 = vxpose.xlu0.b32.cont [3/16] 0.0, 128
    %4104 = vxpose.xlu0.b32.cont [4/16] 0.0, 128
    %4105 = vxpose.xlu0.b32.cont [5/16] 0.0, 128
    %4106 = vxpose.xlu0.b32.cont [6/16] 0.0, 128
    %4107 = vxpose.xlu0.b32.cont [7/16] 0.0, 128
    %4108 = vxpose.xlu0.b32.cont [8/16] 0.0, 128
    %4109 = vxpose.xlu0.b32.cont [9/16] 0.0, 128
    %4110 = vxpose.xlu0.b32.cont [10/16] 0.0, 128
    %4111 = vxpose.xlu0.b32.cont [11/16] 0.0, 128
    %4112 = vxpose.xlu0.b32.cont [12/16] 0.0, 128
    %4113 = vxpose.xlu0.b32.cont [13/16] 0.0, 128
    %4114 = vxpose.xlu0.b32.cont [14/16] 0.0, 128
    %4115 = vxpose.xlu0.b32.cont [15/16] 0.0, 128
    %4116 = vxpose.xlu0.b32.end [16/16] 0.0, 128
    %v4117 = vpop.trf.xlu0
    %v4118 = vpop.trf.xlu0
    %v4119 = vpop.trf.xlu0
    %v4120 = vpop.trf.xlu0
    %v4121 = vpop.trf.xlu0
    %v4122 = vpop.trf.xlu0
    %v4123 = vpop.trf.xlu0
    %v4124 = vpop.trf.xlu0
    %v4125 = vpop.trf.xlu0
    %v4126 = vpop.trf.xlu0
    %v4127 = vpop.trf.xlu0
    %v4128 = vpop.trf.xlu0
    %v4129 = vpop.trf.xlu0
    %v4130 = vpop.trf.xlu0
    %v4131 = vpop.trf.xlu0
    %v4132 = vpop.trf.xlu0
    %4133 = vxpose.xlu0.b32.start [1/16] %v1280, 128
    %4134 = vxpose.xlu0.b32.cont [2/16] 0.0, 128
    %4135 = vxpose.xlu0.b32.cont [3/16] 0.0, 128
    %4136 = vxpose.xlu0.b32.cont [4/16] 0.0, 128
    %4137 = vxpose.xlu0.b32.cont [5/16] 0.0, 128
    %4138 = vxpose.xlu0.b32.cont [6/16] 0.0, 128
    %4139 = vxpose.xlu0.b32.cont [7/16] 0.0, 128
    %4140 = vxpose.xlu0.b32.cont [8/16] 0.0, 128
    %4141 = vxpose.xlu0.b32.cont [9/16] 0.0, 128
    %4142 = vxpose.xlu0.b32.cont [10/16] 0.0, 128
    %4143 = vxpose.xlu0.b32.cont [11/16] 0.0, 128
    %4144 = vxpose.xlu0.b32.cont [12/16] 0.0, 128
    %4145 = vxpose.xlu0.b32.cont [13/16] 0.0, 128
    %4146 = vxpose.xlu0.b32.cont [14/16] 0.0, 128
    %4147 = vxpose.xlu0.b32.cont [15/16] 0.0, 128
    %4148 = vxpose.xlu0.b32.end [16/16] 0.0, 128
    %v4149 = vpop.trf.xlu0
    %v4150 = vpop.trf.xlu0
    %v4151 = vpop.trf.xlu0
    %v4152 = vpop.trf.xlu0
    %v4153 = vpop.trf.xlu0
    %v4154 = vpop.trf.xlu0
    %v4155 = vpop.trf.xlu0
    %v4156 = vpop.trf.xlu0
    %v4157 = vpop.trf.xlu0
    %v4158 = vpop.trf.xlu0
    %v4159 = vpop.trf.xlu0
    %v4160 = vpop.trf.xlu0
    %v4161 = vpop.trf.xlu0
    %v4162 = vpop.trf.xlu0
    %v4163 = vpop.trf.xlu0
    %v4164 = vpop.trf.xlu0
    %4165 = vxpose.xlu0.b32.start [1/16] %v1282, 128
    %4166 = vxpose.xlu0.b32.cont [2/16] 0.0, 128
    %4167 = vxpose.xlu0.b32.cont [3/16] 0.0, 128
    %4168 = vxpose.xlu0.b32.cont [4/16] 0.0, 128
    %4169 = vxpose.xlu0.b32.cont [5/16] 0.0, 128
    %4170 = vxpose.xlu0.b32.cont [6/16] 0.0, 128
    %4171 = vxpose.xlu0.b32.cont [7/16] 0.0, 128
    %4172 = vxpose.xlu0.b32.cont [8/16] 0.0, 128
    %4173 = vxpose.xlu0.b32.cont [9/16] 0.0, 128
    %4174 = vxpose.xlu0.b32.cont [10/16] 0.0, 128
    %4175 = vxpose.xlu0.b32.cont [11/16] 0.0, 128
    %4176 = vxpose.xlu0.b32.cont [12/16] 0.0, 128
    %4177 = vxpose.xlu0.b32.cont [13/16] 0.0, 128
    %4178 = vxpose.xlu0.b32.cont [14/16] 0.0, 128
    %4179 = vxpose.xlu0.b32.cont [15/16] 0.0, 128
    %4180 = vxpose.xlu0.b32.end [16/16] 0.0, 128
    %v4181 = vpop.trf.xlu0
    %v4182 = vpop.trf.xlu0
    %v4183 = vpop.trf.xlu0
    %v4184 = vpop.trf.xlu0
    %v4185 = vpop.trf.xlu0
    %v4186 = vpop.trf.xlu0
    %v4187 = vpop.trf.xlu0
    %v4188 = vpop.trf.xlu0
    %v4189 = vpop.trf.xlu0
    %v4190 = vpop.trf.xlu0
    %v4191 = vpop.trf.xlu0
    %v4192 = vpop.trf.xlu0
    %v4193 = vpop.trf.xlu0
    %v4194 = vpop.trf.xlu0
    %v4195 = vpop.trf.xlu0
    %v4196 = vpop.trf.xlu0
    %4197 = vxpose.xlu0.b32.start [1/16] %v1284, 128
    %4198 = vxpose.xlu0.b32.cont [2/16] 0.0, 128
    %4199 = vxpose.xlu0.b32.cont [3/16] 0.0, 128
    %4200 = vxpose.xlu0.b32.cont [4/16] 0.0, 128
    %4201 = vxpose.xlu0.b32.cont [5/16] 0.0, 128
    %4202 = vxpose.xlu0.b32.cont [6/16] 0.0, 128
    %4203 = vxpose.xlu0.b32.cont [7/16] 0.0, 128
    %4204 = vxpose.xlu0.b32.cont [8/16] 0.0, 128
    %4205 = vxpose.xlu0.b32.cont [9/16] 0.0, 128
    %4206 = vxpose.xlu0.b32.cont [10/16] 0.0, 128
    %4207 = vxpose.xlu0.b32.cont [11/16] 0.0, 128
    %4208 = vxpose.xlu0.b32.cont [12/16] 0.0, 128
    %4209 = vxpose.xlu0.b32.cont [13/16] 0.0, 128
    %4210 = vxpose.xlu0.b32.cont [14/16] 0.0, 128
    %4211 = vxpose.xlu0.b32.cont [15/16] 0.0, 128
    %4212 = vxpose.xlu0.b32.end [16/16] 0.0, 128
    %v4213 = vpop.trf.xlu0
    %v4214 = vpop.trf.xlu0
    %v4215 = vpop.trf.xlu0
    %v4216 = vpop.trf.xlu0
    %v4217 = vpop.trf.xlu0
    %v4218 = vpop.trf.xlu0
    %v4219 = vpop.trf.xlu0
    %v4220 = vpop.trf.xlu0
    %v4221 = vpop.trf.xlu0
    %v4222 = vpop.trf.xlu0
    %v4223 = vpop.trf.xlu0
    %v4224 = vpop.trf.xlu0
    %v4225 = vpop.trf.xlu0
    %v4226 = vpop.trf.xlu0
    %v4227 = vpop.trf.xlu0
    %v4228 = vpop.trf.xlu0
    %4229 = vxpose.xlu0.b32.start [1/16] %v1382, 128
    %4230 = vxpose.xlu0.b32.cont [2/16] 0.0, 128
    %4231 = vxpose.xlu0.b32.cont [3/16] 0.0, 128
    %4232 = vxpose.xlu0.b32.cont [4/16] 0.0, 128
    %4233 = vxpose.xlu0.b32.cont [5/16] 0.0, 128
    %4234 = vxpose.xlu0.b32.cont [6/16] 0.0, 128
    %4235 = vxpose.xlu0.b32.cont [7/16] 0.0, 128
    %4236 = vxpose.xlu0.b32.cont [8/16] 0.0, 128
    %4237 = vxpose.xlu0.b32.cont [9/16] 0.0, 128
    %4238 = vxpose.xlu0.b32.cont [10/16] 0.0, 128
    %4239 = vxpose.xlu0.b32.cont [11/16] 0.0, 128
    %4240 = vxpose.xlu0.b32.cont [12/16] 0.0, 128
    %4241 = vxpose.xlu0.b32.cont [13/16] 0.0, 128
    %4242 = vxpose.xlu0.b32.cont [14/16] 0.0, 128
    %4243 = vxpose.xlu0.b32.cont [15/16] 0.0, 128
    %4244 = vxpose.xlu0.b32.end [16/16] 0.0, 128
    %v4245 = vpop.trf.xlu0
    %v4246 = vpop.trf.xlu0
    %v4247 = vpop.trf.xlu0
    %v4248 = vpop.trf.xlu0
    %v4249 = vpop.trf.xlu0
    %v4250 = vpop.trf.xlu0
    %v4251 = vpop.trf.xlu0
    %v4252 = vpop.trf.xlu0
    %v4253 = vpop.trf.xlu0
    %v4254 = vpop.trf.xlu0
    %v4255 = vpop.trf.xlu0
    %v4256 = vpop.trf.xlu0
    %v4257 = vpop.trf.xlu0
    %v4258 = vpop.trf.xlu0
    %v4259 = vpop.trf.xlu0
    %v4260 = vpop.trf.xlu0
    %4261 = vxpose.xlu0.b32.start [1/16] %v1384, 128
    %4262 = vxpose.xlu0.b32.cont [2/16] 0.0, 128
    %4263 = vxpose.xlu0.b32.cont [3/16] 0.0, 128
    %4264 = vxpose.xlu0.b32.cont [4/16] 0.0, 128
    %4265 = vxpose.xlu0.b32.cont [5/16] 0.0, 128
    %4266 = vxpose.xlu0.b32.cont [6/16] 0.0, 128
    %4267 = vxpose.xlu0.b32.cont [7/16] 0.0, 128
    %4268 = vxpose.xlu0.b32.cont [8/16] 0.0, 128
    %4269 = vxpose.xlu0.b32.cont [9/16] 0.0, 128
    %4270 = vxpose.xlu0.b32.cont [10/16] 0.0, 128
    %4271 = vxpose.xlu0.b32.cont [11/16] 0.0, 128
    %4272 = vxpose.xlu0.b32.cont [12/16] 0.0, 128
    %4273 = vxpose.xlu0.b32.cont [13/16] 0.0, 128
    %4274 = vxpose.xlu0.b32.cont [14/16] 0.0, 128
    %4275 = vxpose.xlu0.b32.cont [15/16] 0.0, 128
    %4276 = vxpose.xlu0.b32.end [16/16] 0.0, 128
    %v4277 = vpop.trf.xlu0
    %v4278 = vpop.trf.xlu0
    %v4279 = vpop.trf.xlu0
    %v4280 = vpop.trf.xlu0
    %v4281 = vpop.trf.xlu0
    %v4282 = vpop.trf.xlu0
    %v4283 = vpop.trf.xlu0
    %v4284 = vpop.trf.xlu0
    %v4285 = vpop.trf.xlu0
    %v4286 = vpop.trf.xlu0
    %v4287 = vpop.trf.xlu0
    %v4288 = vpop.trf.xlu0
    %v4289 = vpop.trf.xlu0
    %v4290 = vpop.trf.xlu0
    %v4291 = vpop.trf.xlu0
    %v4292 = vpop.trf.xlu0
    %4293 = vxpose.xlu0.b32.start [1/16] %v1386, 128
    %4294 = vxpose.xlu0.b32.cont [2/16] 0.0, 128
    %4295 = vxpose.xlu0.b32.cont [3/16] 0.0, 128
    %4296 = vxpose.xlu0.b32.cont [4/16] 0.0, 128
    %4297 = vxpose.xlu0.b32.cont [5/16] 0.0, 128
    %4298 = vxpose.xlu0.b32.cont [6/16] 0.0, 128
    %4299 = vxpose.xlu0.b32.cont [7/16] 0.0, 128
    %4300 = vxpose.xlu0.b32.cont [8/16] 0.0, 128
    %4301 = vxpose.xlu0.b32.cont [9/16] 0.0, 128
    %4302 = vxpose.xlu0.b32.cont [10/16] 0.0, 128
    %4303 = vxpose.xlu0.b32.cont [11/16] 0.0, 128
    %4304 = vxpose.xlu0.b32.cont [12/16] 0.0, 128
    %4305 = vxpose.xlu0.b32.cont [13/16] 0.0, 128
    %4306 = vxpose.xlu0.b32.cont [14/16] 0.0, 128
    %4307 = vxpose.xlu0.b32.cont [15/16] 0.0, 128
    %4308 = vxpose.xlu0.b32.end [16/16] 0.0, 128
    %v4309 = vpop.trf.xlu0
    %v4310 = vpop.trf.xlu0
    %v4311 = vpop.trf.xlu0
    %v4312 = vpop.trf.xlu0
    %v4313 = vpop.trf.xlu0
    %v4314 = vpop.trf.xlu0
    %v4315 = vpop.trf.xlu0
    %v4316 = vpop.trf.xlu0
    %v4317 = vpop.trf.xlu0
    %v4318 = vpop.trf.xlu0
    %v4319 = vpop.trf.xlu0
    %v4320 = vpop.trf.xlu0
    %v4321 = vpop.trf.xlu0
    %v4322 = vpop.trf.xlu0
    %v4323 = vpop.trf.xlu0
    %v4324 = vpop.trf.xlu0
    %4325 = vxpose.xlu0.b32.start [1/16] %v1388, 128
    %4326 = vxpose.xlu0.b32.cont [2/16] 0.0, 128
    %4327 = vxpose.xlu0.b32.cont [3/16] 0.0, 128
    %4328 = vxpose.xlu0.b32.cont [4/16] 0.0, 128
    %4329 = vxpose.xlu0.b32.cont [5/16] 0.0, 128
    %4330 = vxpose.xlu0.b32.cont [6/16] 0.0, 128
    %4331 = vxpose.xlu0.b32.cont [7/16] 0.0, 128
    %4332 = vxpose.xlu0.b32.cont [8/16] 0.0, 128
    %4333 = vxpose.xlu0.b32.cont [9/16] 0.0, 128
    %4334 = vxpose.xlu0.b32.cont [10/16] 0.0, 128
    %4335 = vxpose.xlu0.b32.cont [11/16] 0.0, 128
    %4336 = vxpose.xlu0.b32.cont [12/16] 0.0, 128
    %4337 = vxpose.xlu0.b32.cont [13/16] 0.0, 128
    %4338 = vxpose.xlu0.b32.cont [14/16] 0.0, 128
    %4339 = vxpose.xlu0.b32.cont [15/16] 0.0, 128
    %4340 = vxpose.xlu0.b32.end [16/16] 0.0, 128
    %v4341 = vpop.trf.xlu0
    %v4342 = vpop.trf.xlu0
    %v4343 = vpop.trf.xlu0
    %v4344 = vpop.trf.xlu0
    %v4345 = vpop.trf.xlu0
    %v4346 = vpop.trf.xlu0
    %v4347 = vpop.trf.xlu0
    %v4348 = vpop.trf.xlu0
    %v4349 = vpop.trf.xlu0
    %v4350 = vpop.trf.xlu0
    %v4351 = vpop.trf.xlu0
    %v4352 = vpop.trf.xlu0
    %v4353 = vpop.trf.xlu0
    %v4354 = vpop.trf.xlu0
    %v4355 = vpop.trf.xlu0
    %v4356 = vpop.trf.xlu0
    %4357 = vxpose.xlu0.b32.start [1/16] %v1390, 128
    %4358 = vxpose.xlu0.b32.cont [2/16] 0.0, 128
    %4359 = vxpose.xlu0.b32.cont [3/16] 0.0, 128
    %4360 = vxpose.xlu0.b32.cont [4/16] 0.0, 128
    %4361 = vxpose.xlu0.b32.cont [5/16] 0.0, 128
    %4362 = vxpose.xlu0.b32.cont [6/16] 0.0, 128
    %4363 = vxpose.xlu0.b32.cont [7/16] 0.0, 128
    %4364 = vxpose.xlu0.b32.cont [8/16] 0.0, 128
    %4365 = vxpose.xlu0.b32.cont [9/16] 0.0, 128
    %4366 = vxpose.xlu0.b32.cont [10/16] 0.0, 128
    %4367 = vxpose.xlu0.b32.cont [11/16] 0.0, 128
    %4368 = vxpose.xlu0.b32.cont [12/16] 0.0, 128
    %4369 = vxpose.xlu0.b32.cont [13/16] 0.0, 128
    %4370 = vxpose.xlu0.b32.cont [14/16] 0.0, 128
    %4371 = vxpose.xlu0.b32.cont [15/16] 0.0, 128
    %4372 = vxpose.xlu0.b32.end [16/16] 0.0, 128
    %v4373 = vpop.trf.xlu0
    %v4374 = vpop.trf.xlu0
    %v4375 = vpop.trf.xlu0
    %v4376 = vpop.trf.xlu0
    %v4377 = vpop.trf.xlu0
    %v4378 = vpop.trf.xlu0
    %v4379 = vpop.trf.xlu0
    %v4380 = vpop.trf.xlu0
    %v4381 = vpop.trf.xlu0
    %v4382 = vpop.trf.xlu0
    %v4383 = vpop.trf.xlu0
    %v4384 = vpop.trf.xlu0
    %v4385 = vpop.trf.xlu0
    %v4386 = vpop.trf.xlu0
    %v4387 = vpop.trf.xlu0
    %v4388 = vpop.trf.xlu0
    %4389 = vxpose.xlu0.b32.start [1/16] %v1392, 128
    %4390 = vxpose.xlu0.b32.cont [2/16] 0.0, 128
    %4391 = vxpose.xlu0.b32.cont [3/16] 0.0, 128
    %4392 = vxpose.xlu0.b32.cont [4/16] 0.0, 128
    %4393 = vxpose.xlu0.b32.cont [5/16] 0.0, 128
    %4394 = vxpose.xlu0.b32.cont [6/16] 0.0, 128
    %4395 = vxpose.xlu0.b32.cont [7/16] 0.0, 128
    %4396 = vxpose.xlu0.b32.cont [8/16] 0.0, 128
    %4397 = vxpose.xlu0.b32.cont [9/16] 0.0, 128
    %4398 = vxpose.xlu0.b32.cont [10/16] 0.0, 128
    %4399 = vxpose.xlu0.b32.cont [11/16] 0.0, 128
    %4400 = vxpose.xlu0.b32.cont [12/16] 0.0, 128
    %4401 = vxpose.xlu0.b32.cont [13/16] 0.0, 128
    %4402 = vxpose.xlu0.b32.cont [14/16] 0.0, 128
    %4403 = vxpose.xlu0.b32.cont [15/16] 0.0, 128
    %4404 = vxpose.xlu0.b32.end [16/16] 0.0, 128
    %v4405 = vpop.trf.xlu0
    %v4406 = vpop.trf.xlu0
    %v4407 = vpop.trf.xlu0
    %v4408 = vpop.trf.xlu0
    %v4409 = vpop.trf.xlu0
    %v4410 = vpop.trf.xlu0
    %v4411 = vpop.trf.xlu0
    %v4412 = vpop.trf.xlu0
    %v4413 = vpop.trf.xlu0
    %v4414 = vpop.trf.xlu0
    %v4415 = vpop.trf.xlu0
    %v4416 = vpop.trf.xlu0
    %v4417 = vpop.trf.xlu0
    %v4418 = vpop.trf.xlu0
    %v4419 = vpop.trf.xlu0
    %v4420 = vpop.trf.xlu0
    %4421 = vxpose.xlu0.b32.start [1/16] %v1394, 128
    %4422 = vxpose.xlu0.b32.cont [2/16] 0.0, 128
    %4423 = vxpose.xlu0.b32.cont [3/16] 0.0, 128
    %4424 = vxpose.xlu0.b32.cont [4/16] 0.0, 128
    %4425 = vxpose.xlu0.b32.cont [5/16] 0.0, 128
    %4426 = vxpose.xlu0.b32.cont [6/16] 0.0, 128
    %4427 = vxpose.xlu0.b32.cont [7/16] 0.0, 128
    %4428 = vxpose.xlu0.b32.cont [8/16] 0.0, 128
    %4429 = vxpose.xlu0.b32.cont [9/16] 0.0, 128
    %4430 = vxpose.xlu0.b32.cont [10/16] 0.0, 128
    %4431 = vxpose.xlu0.b32.cont [11/16] 0.0, 128
    %4432 = vxpose.xlu0.b32.cont [12/16] 0.0, 128
    %4433 = vxpose.xlu0.b32.cont [13/16] 0.0, 128
    %4434 = vxpose.xlu0.b32.cont [14/16] 0.0, 128
    %4435 = vxpose.xlu0.b32.cont [15/16] 0.0, 128
    %4436 = vxpose.xlu0.b32.end [16/16] 0.0, 128
    %v4437 = vpop.trf.xlu0
    %v4438 = vpop.trf.xlu0
    %v4439 = vpop.trf.xlu0
    %v4440 = vpop.trf.xlu0
    %v4441 = vpop.trf.xlu0
    %v4442 = vpop.trf.xlu0
    %v4443 = vpop.trf.xlu0
    %v4444 = vpop.trf.xlu0
    %v4445 = vpop.trf.xlu0
    %v4446 = vpop.trf.xlu0
    %v4447 = vpop.trf.xlu0
    %v4448 = vpop.trf.xlu0
    %v4449 = vpop.trf.xlu0
    %v4450 = vpop.trf.xlu0
    %v4451 = vpop.trf.xlu0
    %v4452 = vpop.trf.xlu0
    %4453 = vxpose.xlu0.b32.start [1/16] %v1396, 128
    %4454 = vxpose.xlu0.b32.cont [2/16] 0.0, 128
    %4455 = vxpose.xlu0.b32.cont [3/16] 0.0, 128
    %4456 = vxpose.xlu0.b32.cont [4/16] 0.0, 128
    %4457 = vxpose.xlu0.b32.cont [5/16] 0.0, 128
    %4458 = vxpose.xlu0.b32.cont [6/16] 0.0, 128
    %4459 = vxpose.xlu0.b32.cont [7/16] 0.0, 128
    %4460 = vxpose.xlu0.b32.cont [8/16] 0.0, 128
    %4461 = vxpose.xlu0.b32.cont [9/16] 0.0, 128
    %4462 = vxpose.xlu0.b32.cont [10/16] 0.0, 128
    %4463 = vxpose.xlu0.b32.cont [11/16] 0.0, 128
    %4464 = vxpose.xlu0.b32.cont [12/16] 0.0, 128
    %4465 = vxpose.xlu0.b32.cont [13/16] 0.0, 128
    %4466 = vxpose.xlu0.b32.cont [14/16] 0.0, 128
    %4467 = vxpose.xlu0.b32.cont [15/16] 0.0, 128
    %4468 = vxpose.xlu0.b32.end [16/16] 0.0, 128
    %v4469 = vpop.trf.xlu0
    %v4470 = vpop.trf.xlu0
    %v4471 = vpop.trf.xlu0
    %v4472 = vpop.trf.xlu0
    %v4473 = vpop.trf.xlu0
    %v4474 = vpop.trf.xlu0
    %v4475 = vpop.trf.xlu0
    %v4476 = vpop.trf.xlu0
    %v4477 = vpop.trf.xlu0
    %v4478 = vpop.trf.xlu0
    %v4479 = vpop.trf.xlu0
    %v4480 = vpop.trf.xlu0
    %v4481 = vpop.trf.xlu0
    %v4482 = vpop.trf.xlu0
    %v4483 = vpop.trf.xlu0
    %v4484 = vpop.trf.xlu0
    %4485 = vxpose.xlu0.b32.start [1/16] %v1494, 128
    %4486 = vxpose.xlu0.b32.cont [2/16] 0.0, 128
    %4487 = vxpose.xlu0.b32.cont [3/16] 0.0, 128
    %4488 = vxpose.xlu0.b32.cont [4/16] 0.0, 128
    %4489 = vxpose.xlu0.b32.cont [5/16] 0.0, 128
    %4490 = vxpose.xlu0.b32.cont [6/16] 0.0, 128
    %4491 = vxpose.xlu0.b32.cont [7/16] 0.0, 128
    %4492 = vxpose.xlu0.b32.cont [8/16] 0.0, 128
    %4493 = vxpose.xlu0.b32.cont [9/16] 0.0, 128
    %4494 = vxpose.xlu0.b32.cont [10/16] 0.0, 128
    %4495 = vxpose.xlu0.b32.cont [11/16] 0.0, 128
    %4496 = vxpose.xlu0.b32.cont [12/16] 0.0, 128
    %4497 = vxpose.xlu0.b32.cont [13/16] 0.0, 128
    %4498 = vxpose.xlu0.b32.cont [14/16] 0.0, 128
    %4499 = vxpose.xlu0.b32.cont [15/16] 0.0, 128
    %4500 = vxpose.xlu0.b32.end [16/16] 0.0, 128
    %v4501 = vpop.trf.xlu0
    %v4502 = vpop.trf.xlu0
    %v4503 = vpop.trf.xlu0
    %v4504 = vpop.trf.xlu0
    %v4505 = vpop.trf.xlu0
    %v4506 = vpop.trf.xlu0
    %v4507 = vpop.trf.xlu0
    %v4508 = vpop.trf.xlu0
    %v4509 = vpop.trf.xlu0
    %v4510 = vpop.trf.xlu0
    %v4511 = vpop.trf.xlu0
    %v4512 = vpop.trf.xlu0
    %v4513 = vpop.trf.xlu0
    %v4514 = vpop.trf.xlu0
    %v4515 = vpop.trf.xlu0
    %v4516 = vpop.trf.xlu0
    %4517 = vxpose.xlu0.b32.start [1/16] %v1496, 128
    %4518 = vxpose.xlu0.b32.cont [2/16] 0.0, 128
    %4519 = vxpose.xlu0.b32.cont [3/16] 0.0, 128
    %4520 = vxpose.xlu0.b32.cont [4/16] 0.0, 128
    %4521 = vxpose.xlu0.b32.cont [5/16] 0.0, 128
    %4522 = vxpose.xlu0.b32.cont [6/16] 0.0, 128
    %4523 = vxpose.xlu0.b32.cont [7/16] 0.0, 128
    %4524 = vxpose.xlu0.b32.cont [8/16] 0.0, 128
    %4525 = vxpose.xlu0.b32.cont [9/16] 0.0, 128
    %4526 = vxpose.xlu0.b32.cont [10/16] 0.0, 128
    %4527 = vxpose.xlu0.b32.cont [11/16] 0.0, 128
    %4528 = vxpose.xlu0.b32.cont [12/16] 0.0, 128
    %4529 = vxpose.xlu0.b32.cont [13/16] 0.0, 128
    %4530 = vxpose.xlu0.b32.cont [14/16] 0.0, 128
    %4531 = vxpose.xlu0.b32.cont [15/16] 0.0, 128
    %4532 = vxpose.xlu0.b32.end [16/16] 0.0, 128
    %v4533 = vpop.trf.xlu0
    %v4534 = vpop.trf.xlu0
    %v4535 = vpop.trf.xlu0
    %v4536 = vpop.trf.xlu0
    %v4537 = vpop.trf.xlu0
    %v4538 = vpop.trf.xlu0
    %v4539 = vpop.trf.xlu0
    %v4540 = vpop.trf.xlu0
    %v4541 = vpop.trf.xlu0
    %v4542 = vpop.trf.xlu0
    %v4543 = vpop.trf.xlu0
    %v4544 = vpop.trf.xlu0
    %v4545 = vpop.trf.xlu0
    %v4546 = vpop.trf.xlu0
    %v4547 = vpop.trf.xlu0
    %v4548 = vpop.trf.xlu0
    %4549 = vxpose.xlu0.b32.start [1/16] %v1498, 128
    %4550 = vxpose.xlu0.b32.cont [2/16] 0.0, 128
    %4551 = vxpose.xlu0.b32.cont [3/16] 0.0, 128
    %4552 = vxpose.xlu0.b32.cont [4/16] 0.0, 128
    %4553 = vxpose.xlu0.b32.cont [5/16] 0.0, 128
    %4554 = vxpose.xlu0.b32.cont [6/16] 0.0, 128
    %4555 = vxpose.xlu0.b32.cont [7/16] 0.0, 128
    %4556 = vxpose.xlu0.b32.cont [8/16] 0.0, 128
    %4557 = vxpose.xlu0.b32.cont [9/16] 0.0, 128
    %4558 = vxpose.xlu0.b32.cont [10/16] 0.0, 128
    %4559 = vxpose.xlu0.b32.cont [11/16] 0.0, 128
    %4560 = vxpose.xlu0.b32.cont [12/16] 0.0, 128
    %4561 = vxpose.xlu0.b32.cont [13/16] 0.0, 128
    %4562 = vxpose.xlu0.b32.cont [14/16] 0.0, 128
    %4563 = vxpose.xlu0.b32.cont [15/16] 0.0, 128
    %4564 = vxpose.xlu0.b32.end [16/16] 0.0, 128
    %v4565 = vpop.trf.xlu0
    %v4566 = vpop.trf.xlu0
    %v4567 = vpop.trf.xlu0
    %v4568 = vpop.trf.xlu0
    %v4569 = vpop.trf.xlu0
    %v4570 = vpop.trf.xlu0
    %v4571 = vpop.trf.xlu0
    %v4572 = vpop.trf.xlu0
    %v4573 = vpop.trf.xlu0
    %v4574 = vpop.trf.xlu0
    %v4575 = vpop.trf.xlu0
    %v4576 = vpop.trf.xlu0
    %v4577 = vpop.trf.xlu0
    %v4578 = vpop.trf.xlu0
    %v4579 = vpop.trf.xlu0
    %v4580 = vpop.trf.xlu0
    %4581 = vxpose.xlu0.b32.start [1/16] %v1500, 128
    %4582 = vxpose.xlu0.b32.cont [2/16] 0.0, 128
    %4583 = vxpose.xlu0.b32.cont [3/16] 0.0, 128
    %4584 = vxpose.xlu0.b32.cont [4/16] 0.0, 128
    %4585 = vxpose.xlu0.b32.cont [5/16] 0.0, 128
    %4586 = vxpose.xlu0.b32.cont [6/16] 0.0, 128
    %4587 = vxpose.xlu0.b32.cont [7/16] 0.0, 128
    %4588 = vxpose.xlu0.b32.cont [8/16] 0.0, 128
    %4589 = vxpose.xlu0.b32.cont [9/16] 0.0, 128
    %4590 = vxpose.xlu0.b32.cont [10/16] 0.0, 128
    %4591 = vxpose.xlu0.b32.cont [11/16] 0.0, 128
    %4592 = vxpose.xlu0.b32.cont [12/16] 0.0, 128
    %4593 = vxpose.xlu0.b32.cont [13/16] 0.0, 128
    %4594 = vxpose.xlu0.b32.cont [14/16] 0.0, 128
    %4595 = vxpose.xlu0.b32.cont [15/16] 0.0, 128
    %4596 = vxpose.xlu0.b32.end [16/16] 0.0, 128
    %v4597 = vpop.trf.xlu0
    %v4598 = vpop.trf.xlu0
    %v4599 = vpop.trf.xlu0
    %v4600 = vpop.trf.xlu0
    %v4601 = vpop.trf.xlu0
    %v4602 = vpop.trf.xlu0
    %v4603 = vpop.trf.xlu0
    %v4604 = vpop.trf.xlu0
    %v4605 = vpop.trf.xlu0
    %v4606 = vpop.trf.xlu0
    %v4607 = vpop.trf.xlu0
    %v4608 = vpop.trf.xlu0
    %v4609 = vpop.trf.xlu0
    %v4610 = vpop.trf.xlu0
    %v4611 = vpop.trf.xlu0
    %v4612 = vpop.trf.xlu0
    %4613 = vxpose.xlu0.b32.start [1/16] %v1502, 128
    %4614 = vxpose.xlu0.b32.cont [2/16] 0.0, 128
    %4615 = vxpose.xlu0.b32.cont [3/16] 0.0, 128
    %4616 = vxpose.xlu0.b32.cont [4/16] 0.0, 128
    %4617 = vxpose.xlu0.b32.cont [5/16] 0.0, 128
    %4618 = vxpose.xlu0.b32.cont [6/16] 0.0, 128
    %4619 = vxpose.xlu0.b32.cont [7/16] 0.0, 128
    %4620 = vxpose.xlu0.b32.cont [8/16] 0.0, 128
    %4621 = vxpose.xlu0.b32.cont [9/16] 0.0, 128
    %4622 = vxpose.xlu0.b32.cont [10/16] 0.0, 128
    %4623 = vxpose.xlu0.b32.cont [11/16] 0.0, 128
    %4624 = vxpose.xlu0.b32.cont [12/16] 0.0, 128
    %4625 = vxpose.xlu0.b32.cont [13/16] 0.0, 128
    %4626 = vxpose.xlu0.b32.cont [14/16] 0.0, 128
    %4627 = vxpose.xlu0.b32.cont [15/16] 0.0, 128
    %4628 = vxpose.xlu0.b32.end [16/16] 0.0, 128
    %v4629 = vpop.trf.xlu0
    %v4630 = vpop.trf.xlu0
    %v4631 = vpop.trf.xlu0
    %v4632 = vpop.trf.xlu0
    %v4633 = vpop.trf.xlu0
    %v4634 = vpop.trf.xlu0
    %v4635 = vpop.trf.xlu0
    %v4636 = vpop.trf.xlu0
    %v4637 = vpop.trf.xlu0
    %v4638 = vpop.trf.xlu0
    %v4639 = vpop.trf.xlu0
    %v4640 = vpop.trf.xlu0
    %v4641 = vpop.trf.xlu0
    %v4642 = vpop.trf.xlu0
    %v4643 = vpop.trf.xlu0
    %v4644 = vpop.trf.xlu0
    %4645 = vxpose.xlu0.b32.start [1/16] %v1504, 128
    %4646 = vxpose.xlu0.b32.cont [2/16] 0.0, 128
    %4647 = vxpose.xlu0.b32.cont [3/16] 0.0, 128
    %4648 = vxpose.xlu0.b32.cont [4/16] 0.0, 128
    %4649 = vxpose.xlu0.b32.cont [5/16] 0.0, 128
    %4650 = vxpose.xlu0.b32.cont [6/16] 0.0, 128
    %4651 = vxpose.xlu0.b32.cont [7/16] 0.0, 128
    %4652 = vxpose.xlu0.b32.cont [8/16] 0.0, 128
    %4653 = vxpose.xlu0.b32.cont [9/16] 0.0, 128
    %4654 = vxpose.xlu0.b32.cont [10/16] 0.0, 128
    %4655 = vxpose.xlu0.b32.cont [11/16] 0.0, 128
    %4656 = vxpose.xlu0.b32.cont [12/16] 0.0, 128
    %4657 = vxpose.xlu0.b32.cont [13/16] 0.0, 128
    %4658 = vxpose.xlu0.b32.cont [14/16] 0.0, 128
    %4659 = vxpose.xlu0.b32.cont [15/16] 0.0, 128
    %4660 = vxpose.xlu0.b32.end [16/16] 0.0, 128
    %v4661 = vpop.trf.xlu0
    %v4662 = vpop.trf.xlu0
    %v4663 = vpop.trf.xlu0
    %v4664 = vpop.trf.xlu0
    %v4665 = vpop.trf.xlu0
    %v4666 = vpop.trf.xlu0
    %v4667 = vpop.trf.xlu0
    %v4668 = vpop.trf.xlu0
    %v4669 = vpop.trf.xlu0
    %v4670 = vpop.trf.xlu0
    %v4671 = vpop.trf.xlu0
    %v4672 = vpop.trf.xlu0
    %v4673 = vpop.trf.xlu0
    %v4674 = vpop.trf.xlu0
    %v4675 = vpop.trf.xlu0
    %v4676 = vpop.trf.xlu0
    %4677 = vxpose.xlu0.b32.start [1/16] %v1506, 128
    %4678 = vxpose.xlu0.b32.cont [2/16] 0.0, 128
    %4679 = vxpose.xlu0.b32.cont [3/16] 0.0, 128
    %4680 = vxpose.xlu0.b32.cont [4/16] 0.0, 128
    %4681 = vxpose.xlu0.b32.cont [5/16] 0.0, 128
    %4682 = vxpose.xlu0.b32.cont [6/16] 0.0, 128
    %4683 = vxpose.xlu0.b32.cont [7/16] 0.0, 128
    %4684 = vxpose.xlu0.b32.cont [8/16] 0.0, 128
    %4685 = vxpose.xlu0.b32.cont [9/16] 0.0, 128
    %4686 = vxpose.xlu0.b32.cont [10/16] 0.0, 128
    %4687 = vxpose.xlu0.b32.cont [11/16] 0.0, 128
    %4688 = vxpose.xlu0.b32.cont [12/16] 0.0, 128
    %4689 = vxpose.xlu0.b32.cont [13/16] 0.0, 128
    %4690 = vxpose.xlu0.b32.cont [14/16] 0.0, 128
    %4691 = vxpose.xlu0.b32.cont [15/16] 0.0, 128
    %4692 = vxpose.xlu0.b32.end [16/16] 0.0, 128
    %v4693 = vpop.trf.xlu0
    %v4694 = vpop.trf.xlu0
    %v4695 = vpop.trf.xlu0
    %v4696 = vpop.trf.xlu0
    %v4697 = vpop.trf.xlu0
    %v4698 = vpop.trf.xlu0
    %v4699 = vpop.trf.xlu0
    %v4700 = vpop.trf.xlu0
    %v4701 = vpop.trf.xlu0
    %v4702 = vpop.trf.xlu0
    %v4703 = vpop.trf.xlu0
    %v4704 = vpop.trf.xlu0
    %v4705 = vpop.trf.xlu0
    %v4706 = vpop.trf.xlu0
    %v4707 = vpop.trf.xlu0
    %v4708 = vpop.trf.xlu0
    %4709 = vxpose.xlu0.b32.start [1/16] %v1508, 128
    %4710 = vxpose.xlu0.b32.cont [2/16] 0.0, 128
    %4711 = vxpose.xlu0.b32.cont [3/16] 0.0, 128
    %4712 = vxpose.xlu0.b32.cont [4/16] 0.0, 128
    %4713 = vxpose.xlu0.b32.cont [5/16] 0.0, 128
    %4714 = vxpose.xlu0.b32.cont [6/16] 0.0, 128
    %4715 = vxpose.xlu0.b32.cont [7/16] 0.0, 128
    %4716 = vxpose.xlu0.b32.cont [8/16] 0.0, 128
    %4717 = vxpose.xlu0.b32.cont [9/16] 0.0, 128
    %4718 = vxpose.xlu0.b32.cont [10/16] 0.0, 128
    %4719 = vxpose.xlu0.b32.cont [11/16] 0.0, 128
    %4720 = vxpose.xlu0.b32.cont [12/16] 0.0, 128
    %4721 = vxpose.xlu0.b32.cont [13/16] 0.0, 128
    %4722 = vxpose.xlu0.b32.cont [14/16] 0.0, 128
    %4723 = vxpose.xlu0.b32.cont [15/16] 0.0, 128
    %4724 = vxpose.xlu0.b32.end [16/16] 0.0, 128
    %v4725 = vpop.trf.xlu0
    %v4726 = vpop.trf.xlu0
    %v4727 = vpop.trf.xlu0
    %v4728 = vpop.trf.xlu0
    %v4729 = vpop.trf.xlu0
    %v4730 = vpop.trf.xlu0
    %v4731 = vpop.trf.xlu0
    %v4732 = vpop.trf.xlu0
    %v4733 = vpop.trf.xlu0
    %v4734 = vpop.trf.xlu0
    %v4735 = vpop.trf.xlu0
    %v4736 = vpop.trf.xlu0
    %v4737 = vpop.trf.xlu0
    %v4738 = vpop.trf.xlu0
    %v4739 = vpop.trf.xlu0
    %v4740 = vpop.trf.xlu0
    %4741 = vxpose.xlu0.b32.start [1/16] %v1606, 128
    %4742 = vxpose.xlu0.b32.cont [2/16] 0.0, 128
    %4743 = vxpose.xlu0.b32.cont [3/16] 0.0, 128
    %4744 = vxpose.xlu0.b32.cont [4/16] 0.0, 128
    %4745 = vxpose.xlu0.b32.cont [5/16] 0.0, 128
    %4746 = vxpose.xlu0.b32.cont [6/16] 0.0, 128
    %4747 = vxpose.xlu0.b32.cont [7/16] 0.0, 128
    %4748 = vxpose.xlu0.b32.cont [8/16] 0.0, 128
    %4749 = vxpose.xlu0.b32.cont [9/16] 0.0, 128
    %4750 = vxpose.xlu0.b32.cont [10/16] 0.0, 128
    %4751 = vxpose.xlu0.b32.cont [11/16] 0.0, 128
    %4752 = vxpose.xlu0.b32.cont [12/16] 0.0, 128
    %4753 = vxpose.xlu0.b32.cont [13/16] 0.0, 128
    %4754 = vxpose.xlu0.b32.cont [14/16] 0.0, 128
    %4755 = vxpose.xlu0.b32.cont [15/16] 0.0, 128
    %4756 = vxpose.xlu0.b32.end [16/16] 0.0, 128
    %v4757 = vpop.trf.xlu0
    %v4758 = vpop.trf.xlu0
    %v4759 = vpop.trf.xlu0
    %v4760 = vpop.trf.xlu0
    %v4761 = vpop.trf.xlu0
    %v4762 = vpop.trf.xlu0
    %v4763 = vpop.trf.xlu0
    %v4764 = vpop.trf.xlu0
    %v4765 = vpop.trf.xlu0
    %v4766 = vpop.trf.xlu0
    %v4767 = vpop.trf.xlu0
    %v4768 = vpop.trf.xlu0
    %v4769 = vpop.trf.xlu0
    %v4770 = vpop.trf.xlu0
    %v4771 = vpop.trf.xlu0
    %v4772 = vpop.trf.xlu0
    %4773 = vxpose.xlu0.b32.start [1/16] %v1608, 128
    %4774 = vxpose.xlu0.b32.cont [2/16] 0.0, 128
    %4775 = vxpose.xlu0.b32.cont [3/16] 0.0, 128
    %4776 = vxpose.xlu0.b32.cont [4/16] 0.0, 128
    %4777 = vxpose.xlu0.b32.cont [5/16] 0.0, 128
    %4778 = vxpose.xlu0.b32.cont [6/16] 0.0, 128
    %4779 = vxpose.xlu0.b32.cont [7/16] 0.0, 128
    %4780 = vxpose.xlu0.b32.cont [8/16] 0.0, 128
    %4781 = vxpose.xlu0.b32.cont [9/16] 0.0, 128
    %4782 = vxpose.xlu0.b32.cont [10/16] 0.0, 128
    %4783 = vxpose.xlu0.b32.cont [11/16] 0.0, 128
    %4784 = vxpose.xlu0.b32.cont [12/16] 0.0, 128
    %4785 = vxpose.xlu0.b32.cont [13/16] 0.0, 128
    %4786 = vxpose.xlu0.b32.cont [14/16] 0.0, 128
    %4787 = vxpose.xlu0.b32.cont [15/16] 0.0, 128
    %4788 = vxpose.xlu0.b32.end [16/16] 0.0, 128
    %v4789 = vpop.trf.xlu0
    %v4790 = vpop.trf.xlu0
    %v4791 = vpop.trf.xlu0
    %v4792 = vpop.trf.xlu0
    %v4793 = vpop.trf.xlu0
    %v4794 = vpop.trf.xlu0
    %v4795 = vpop.trf.xlu0
    %v4796 = vpop.trf.xlu0
    %v4797 = vpop.trf.xlu0
    %v4798 = vpop.trf.xlu0
    %v4799 = vpop.trf.xlu0
    %v4800 = vpop.trf.xlu0
    %v4801 = vpop.trf.xlu0
    %v4802 = vpop.trf.xlu0
    %v4803 = vpop.trf.xlu0
    %v4804 = vpop.trf.xlu0
    %4805 = vxpose.xlu0.b32.start [1/16] %v1610, 128
    %4806 = vxpose.xlu0.b32.cont [2/16] 0.0, 128
    %4807 = vxpose.xlu0.b32.cont [3/16] 0.0, 128
    %4808 = vxpose.xlu0.b32.cont [4/16] 0.0, 128
    %4809 = vxpose.xlu0.b32.cont [5/16] 0.0, 128
    %4810 = vxpose.xlu0.b32.cont [6/16] 0.0, 128
    %4811 = vxpose.xlu0.b32.cont [7/16] 0.0, 128
    %4812 = vxpose.xlu0.b32.cont [8/16] 0.0, 128
    %4813 = vxpose.xlu0.b32.cont [9/16] 0.0, 128
    %4814 = vxpose.xlu0.b32.cont [10/16] 0.0, 128
    %4815 = vxpose.xlu0.b32.cont [11/16] 0.0, 128
    %4816 = vxpose.xlu0.b32.cont [12/16] 0.0, 128
    %4817 = vxpose.xlu0.b32.cont [13/16] 0.0, 128
    %4818 = vxpose.xlu0.b32.cont [14/16] 0.0, 128
    %4819 = vxpose.xlu0.b32.cont [15/16] 0.0, 128
    %4820 = vxpose.xlu0.b32.end [16/16] 0.0, 128
    %v4821 = vpop.trf.xlu0
    %v4822 = vpop.trf.xlu0
    %v4823 = vpop.trf.xlu0
    %v4824 = vpop.trf.xlu0
    %v4825 = vpop.trf.xlu0
    %v4826 = vpop.trf.xlu0
    %v4827 = vpop.trf.xlu0
    %v4828 = vpop.trf.xlu0
    %v4829 = vpop.trf.xlu0
    %v4830 = vpop.trf.xlu0
    %v4831 = vpop.trf.xlu0
    %v4832 = vpop.trf.xlu0
    %v4833 = vpop.trf.xlu0
    %v4834 = vpop.trf.xlu0
    %v4835 = vpop.trf.xlu0
    %v4836 = vpop.trf.xlu0
    %4837 = vxpose.xlu0.b32.start [1/16] %v1612, 128
    %4838 = vxpose.xlu0.b32.cont [2/16] 0.0, 128
    %4839 = vxpose.xlu0.b32.cont [3/16] 0.0, 128
    %4840 = vxpose.xlu0.b32.cont [4/16] 0.0, 128
    %4841 = vxpose.xlu0.b32.cont [5/16] 0.0, 128
    %4842 = vxpose.xlu0.b32.cont [6/16] 0.0, 128
    %4843 = vxpose.xlu0.b32.cont [7/16] 0.0, 128
    %4844 = vxpose.xlu0.b32.cont [8/16] 0.0, 128
    %4845 = vxpose.xlu0.b32.cont [9/16] 0.0, 128
    %4846 = vxpose.xlu0.b32.cont [10/16] 0.0, 128
    %4847 = vxpose.xlu0.b32.cont [11/16] 0.0, 128
    %4848 = vxpose.xlu0.b32.cont [12/16] 0.0, 128
    %4849 = vxpose.xlu0.b32.cont [13/16] 0.0, 128
    %4850 = vxpose.xlu0.b32.cont [14/16] 0.0, 128
    %4851 = vxpose.xlu0.b32.cont [15/16] 0.0, 128
    %4852 = vxpose.xlu0.b32.end [16/16] 0.0, 128
    %v4853 = vpop.trf.xlu0
    %v4854 = vpop.trf.xlu0
    %v4855 = vpop.trf.xlu0
    %v4856 = vpop.trf.xlu0
    %v4857 = vpop.trf.xlu0
    %v4858 = vpop.trf.xlu0
    %v4859 = vpop.trf.xlu0
    %v4860 = vpop.trf.xlu0
    %v4861 = vpop.trf.xlu0
    %v4862 = vpop.trf.xlu0
    %v4863 = vpop.trf.xlu0
    %v4864 = vpop.trf.xlu0
    %v4865 = vpop.trf.xlu0
    %v4866 = vpop.trf.xlu0
    %v4867 = vpop.trf.xlu0
    %v4868 = vpop.trf.xlu0
    %4869 = vxpose.xlu0.b32.start [1/16] %v1614, 128
    %4870 = vxpose.xlu0.b32.cont [2/16] 0.0, 128
    %4871 = vxpose.xlu0.b32.cont [3/16] 0.0, 128
    %4872 = vxpose.xlu0.b32.cont [4/16] 0.0, 128
    %4873 = vxpose.xlu0.b32.cont [5/16] 0.0, 128
    %4874 = vxpose.xlu0.b32.cont [6/16] 0.0, 128
    %4875 = vxpose.xlu0.b32.cont [7/16] 0.0, 128
    %4876 = vxpose.xlu0.b32.cont [8/16] 0.0, 128
    %4877 = vxpose.xlu0.b32.cont [9/16] 0.0, 128
    %4878 = vxpose.xlu0.b32.cont [10/16] 0.0, 128
    %4879 = vxpose.xlu0.b32.cont [11/16] 0.0, 128
    %4880 = vxpose.xlu0.b32.cont [12/16] 0.0, 128
    %4881 = vxpose.xlu0.b32.cont [13/16] 0.0, 128
    %4882 = vxpose.xlu0.b32.cont [14/16] 0.0, 128
    %4883 = vxpose.xlu0.b32.cont [15/16] 0.0, 128
    %4884 = vxpose.xlu0.b32.end [16/16] 0.0, 128
    %v4885 = vpop.trf.xlu0
    %v4886 = vpop.trf.xlu0
    %v4887 = vpop.trf.xlu0
    %v4888 = vpop.trf.xlu0
    %v4889 = vpop.trf.xlu0
    %v4890 = vpop.trf.xlu0
    %v4891 = vpop.trf.xlu0
    %v4892 = vpop.trf.xlu0
    %v4893 = vpop.trf.xlu0
    %v4894 = vpop.trf.xlu0
    %v4895 = vpop.trf.xlu0
    %v4896 = vpop.trf.xlu0
    %v4897 = vpop.trf.xlu0
    %v4898 = vpop.trf.xlu0
    %v4899 = vpop.trf.xlu0
    %v4900 = vpop.trf.xlu0
    %4901 = vxpose.xlu0.b32.start [1/16] %v1616, 128
    %4902 = vxpose.xlu0.b32.cont [2/16] 0.0, 128
    %4903 = vxpose.xlu0.b32.cont [3/16] 0.0, 128
    %4904 = vxpose.xlu0.b32.cont [4/16] 0.0, 128
    %4905 = vxpose.xlu0.b32.cont [5/16] 0.0, 128
    %4906 = vxpose.xlu0.b32.cont [6/16] 0.0, 128
    %4907 = vxpose.xlu0.b32.cont [7/16] 0.0, 128
    %4908 = vxpose.xlu0.b32.cont [8/16] 0.0, 128
    %4909 = vxpose.xlu0.b32.cont [9/16] 0.0, 128
    %4910 = vxpose.xlu0.b32.cont [10/16] 0.0, 128
    %4911 = vxpose.xlu0.b32.cont [11/16] 0.0, 128
    %4912 = vxpose.xlu0.b32.cont [12/16] 0.0, 128
    %4913 = vxpose.xlu0.b32.cont [13/16] 0.0, 128
    %4914 = vxpose.xlu0.b32.cont [14/16] 0.0, 128
    %4915 = vxpose.xlu0.b32.cont [15/16] 0.0, 128
    %4916 = vxpose.xlu0.b32.end [16/16] 0.0, 128
    %v4917 = vpop.trf.xlu0
    %v4918 = vpop.trf.xlu0
    %v4919 = vpop.trf.xlu0
    %v4920 = vpop.trf.xlu0
    %v4921 = vpop.trf.xlu0
    %v4922 = vpop.trf.xlu0
    %v4923 = vpop.trf.xlu0
    %v4924 = vpop.trf.xlu0
    %v4925 = vpop.trf.xlu0
    %v4926 = vpop.trf.xlu0
    %v4927 = vpop.trf.xlu0
    %v4928 = vpop.trf.xlu0
    %v4929 = vpop.trf.xlu0
    %v4930 = vpop.trf.xlu0
    %v4931 = vpop.trf.xlu0
    %v4932 = vpop.trf.xlu0
    %4933 = vxpose.xlu0.b32.start [1/16] %v1618, 128
    %4934 = vxpose.xlu0.b32.cont [2/16] 0.0, 128
    %4935 = vxpose.xlu0.b32.cont [3/16] 0.0, 128
    %4936 = vxpose.xlu0.b32.cont [4/16] 0.0, 128
    %4937 = vxpose.xlu0.b32.cont [5/16] 0.0, 128
    %4938 = vxpose.xlu0.b32.cont [6/16] 0.0, 128
    %4939 = vxpose.xlu0.b32.cont [7/16] 0.0, 128
    %4940 = vxpose.xlu0.b32.cont [8/16] 0.0, 128
    %4941 = vxpose.xlu0.b32.cont [9/16] 0.0, 128
    %4942 = vxpose.xlu0.b32.cont [10/16] 0.0, 128
    %4943 = vxpose.xlu0.b32.cont [11/16] 0.0, 128
    %4944 = vxpose.xlu0.b32.cont [12/16] 0.0, 128
    %4945 = vxpose.xlu0.b32.cont [13/16] 0.0, 128
    %4946 = vxpose.xlu0.b32.cont [14/16] 0.0, 128
    %4947 = vxpose.xlu0.b32.cont [15/16] 0.0, 128
    %4948 = vxpose.xlu0.b32.end [16/16] 0.0, 128
    %v4949 = vpop.trf.xlu0
    %v4950 = vpop.trf.xlu0
    %v4951 = vpop.trf.xlu0
    %v4952 = vpop.trf.xlu0
    %v4953 = vpop.trf.xlu0
    %v4954 = vpop.trf.xlu0
    %v4955 = vpop.trf.xlu0
    %v4956 = vpop.trf.xlu0
    %v4957 = vpop.trf.xlu0
    %v4958 = vpop.trf.xlu0
    %v4959 = vpop.trf.xlu0
    %v4960 = vpop.trf.xlu0
    %v4961 = vpop.trf.xlu0
    %v4962 = vpop.trf.xlu0
    %v4963 = vpop.trf.xlu0
    %v4964 = vpop.trf.xlu0
    %4965 = vxpose.xlu0.b32.start [1/16] %v1620, 128
    %4966 = vxpose.xlu0.b32.cont [2/16] 0.0, 128
    %4967 = vxpose.xlu0.b32.cont [3/16] 0.0, 128
    %4968 = vxpose.xlu0.b32.cont [4/16] 0.0, 128
    %4969 = vxpose.xlu0.b32.cont [5/16] 0.0, 128
    %4970 = vxpose.xlu0.b32.cont [6/16] 0.0, 128
    %4971 = vxpose.xlu0.b32.cont [7/16] 0.0, 128
    %4972 = vxpose.xlu0.b32.cont [8/16] 0.0, 128
    %4973 = vxpose.xlu0.b32.cont [9/16] 0.0, 128
    %4974 = vxpose.xlu0.b32.cont [10/16] 0.0, 128
    %4975 = vxpose.xlu0.b32.cont [11/16] 0.0, 128
    %4976 = vxpose.xlu0.b32.cont [12/16] 0.0, 128
    %4977 = vxpose.xlu0.b32.cont [13/16] 0.0, 128
    %4978 = vxpose.xlu0.b32.cont [14/16] 0.0, 128
    %4979 = vxpose.xlu0.b32.cont [15/16] 0.0, 128
    %4980 = vxpose.xlu0.b32.end [16/16] 0.0, 128
    %v4981 = vpop.trf.xlu0
    %v4982 = vpop.trf.xlu0
    %v4983 = vpop.trf.xlu0
    %v4984 = vpop.trf.xlu0
    %v4985 = vpop.trf.xlu0
    %v4986 = vpop.trf.xlu0
    %v4987 = vpop.trf.xlu0
    %v4988 = vpop.trf.xlu0
    %v4989 = vpop.trf.xlu0
    %v4990 = vpop.trf.xlu0
    %v4991 = vpop.trf.xlu0
    %v4992 = vpop.trf.xlu0
    %v4993 = vpop.trf.xlu0
    %v4994 = vpop.trf.xlu0
    %v4995 = vpop.trf.xlu0
    %v4996 = vpop.trf.xlu0
    %4997 = vxpose.xlu0.b32.start [1/16] %v1718, 128
    %4998 = vxpose.xlu0.b32.cont [2/16] 0.0, 128
    %4999 = vxpose.xlu0.b32.cont [3/16] 0.0, 128
    %5000 = vxpose.xlu0.b32.cont [4/16] 0.0, 128
    %5001 = vxpose.xlu0.b32.cont [5/16] 0.0, 128
    %5002 = vxpose.xlu0.b32.cont [6/16] 0.0, 128
    %5003 = vxpose.xlu0.b32.cont [7/16] 0.0, 128
    %5004 = vxpose.xlu0.b32.cont [8/16] 0.0, 128
    %5005 = vxpose.xlu0.b32.cont [9/16] 0.0, 128
    %5006 = vxpose.xlu0.b32.cont [10/16] 0.0, 128
    %5007 = vxpose.xlu0.b32.cont [11/16] 0.0, 128
    %5008 = vxpose.xlu0.b32.cont [12/16] 0.0, 128
    %5009 = vxpose.xlu0.b32.cont [13/16] 0.0, 128
    %5010 = vxpose.xlu0.b32.cont [14/16] 0.0, 128
    %5011 = vxpose.xlu0.b32.cont [15/16] 0.0, 128
    %5012 = vxpose.xlu0.b32.end [16/16] 0.0, 128
    %v5013 = vpop.trf.xlu0
    %v5014 = vpop.trf.xlu0
    %v5015 = vpop.trf.xlu0
    %v5016 = vpop.trf.xlu0
    %v5017 = vpop.trf.xlu0
    %v5018 = vpop.trf.xlu0
    %v5019 = vpop.trf.xlu0
    %v5020 = vpop.trf.xlu0
    %v5021 = vpop.trf.xlu0
    %v5022 = vpop.trf.xlu0
    %v5023 = vpop.trf.xlu0
    %v5024 = vpop.trf.xlu0
    %v5025 = vpop.trf.xlu0
    %v5026 = vpop.trf.xlu0
    %v5027 = vpop.trf.xlu0
    %v5028 = vpop.trf.xlu0
    %5029 = vxpose.xlu0.b32.start [1/16] %v1720, 128
    %5030 = vxpose.xlu0.b32.cont [2/16] 0.0, 128
    %5031 = vxpose.xlu0.b32.cont [3/16] 0.0, 128
    %5032 = vxpose.xlu0.b32.cont [4/16] 0.0, 128
    %5033 = vxpose.xlu0.b32.cont [5/16] 0.0, 128
    %5034 = vxpose.xlu0.b32.cont [6/16] 0.0, 128
    %5035 = vxpose.xlu0.b32.cont [7/16] 0.0, 128
    %5036 = vxpose.xlu0.b32.cont [8/16] 0.0, 128
    %5037 = vxpose.xlu0.b32.cont [9/16] 0.0, 128
    %5038 = vxpose.xlu0.b32.cont [10/16] 0.0, 128
    %5039 = vxpose.xlu0.b32.cont [11/16] 0.0, 128
    %5040 = vxpose.xlu0.b32.cont [12/16] 0.0, 128
    %5041 = vxpose.xlu0.b32.cont [13/16] 0.0, 128
    %5042 = vxpose.xlu0.b32.cont [14/16] 0.0, 128
    %5043 = vxpose.xlu0.b32.cont [15/16] 0.0, 128
    %5044 = vxpose.xlu0.b32.end [16/16] 0.0, 128
    %v5045 = vpop.trf.xlu0
    %v5046 = vpop.trf.xlu0
    %v5047 = vpop.trf.xlu0
    %v5048 = vpop.trf.xlu0
    %v5049 = vpop.trf.xlu0
    %v5050 = vpop.trf.xlu0
    %v5051 = vpop.trf.xlu0
    %v5052 = vpop.trf.xlu0
    %v5053 = vpop.trf.xlu0
    %v5054 = vpop.trf.xlu0
    %v5055 = vpop.trf.xlu0
    %v5056 = vpop.trf.xlu0
    %v5057 = vpop.trf.xlu0
    %v5058 = vpop.trf.xlu0
    %v5059 = vpop.trf.xlu0
    %v5060 = vpop.trf.xlu0
    %5061 = vxpose.xlu0.b32.start [1/16] %v1722, 128
    %5062 = vxpose.xlu0.b32.cont [2/16] 0.0, 128
    %5063 = vxpose.xlu0.b32.cont [3/16] 0.0, 128
    %5064 = vxpose.xlu0.b32.cont [4/16] 0.0, 128
    %5065 = vxpose.xlu0.b32.cont [5/16] 0.0, 128
    %5066 = vxpose.xlu0.b32.cont [6/16] 0.0, 128
    %5067 = vxpose.xlu0.b32.cont [7/16] 0.0, 128
    %5068 = vxpose.xlu0.b32.cont [8/16] 0.0, 128
    %5069 = vxpose.xlu0.b32.cont [9/16] 0.0, 128
    %5070 = vxpose.xlu0.b32.cont [10/16] 0.0, 128
    %5071 = vxpose.xlu0.b32.cont [11/16] 0.0, 128
    %5072 = vxpose.xlu0.b32.cont [12/16] 0.0, 128
    %5073 = vxpose.xlu0.b32.cont [13/16] 0.0, 128
    %5074 = vxpose.xlu0.b32.cont [14/16] 0.0, 128
    %5075 = vxpose.xlu0.b32.cont [15/16] 0.0, 128
    %5076 = vxpose.xlu0.b32.end [16/16] 0.0, 128
    %v5077 = vpop.trf.xlu0
    %v5078 = vpop.trf.xlu0
    %v5079 = vpop.trf.xlu0
    %v5080 = vpop.trf.xlu0
    %v5081 = vpop.trf.xlu0
    %v5082 = vpop.trf.xlu0
    %v5083 = vpop.trf.xlu0
    %v5084 = vpop.trf.xlu0
    %v5085 = vpop.trf.xlu0
    %v5086 = vpop.trf.xlu0
    %v5087 = vpop.trf.xlu0
    %v5088 = vpop.trf.xlu0
    %v5089 = vpop.trf.xlu0
    %v5090 = vpop.trf.xlu0
    %v5091 = vpop.trf.xlu0
    %v5092 = vpop.trf.xlu0
    %5093 = vxpose.xlu0.b32.start [1/16] %v1724, 128
    %5094 = vxpose.xlu0.b32.cont [2/16] 0.0, 128
    %5095 = vxpose.xlu0.b32.cont [3/16] 0.0, 128
    %5096 = vxpose.xlu0.b32.cont [4/16] 0.0, 128
    %5097 = vxpose.xlu0.b32.cont [5/16] 0.0, 128
    %5098 = vxpose.xlu0.b32.cont [6/16] 0.0, 128
    %5099 = vxpose.xlu0.b32.cont [7/16] 0.0, 128
    %5100 = vxpose.xlu0.b32.cont [8/16] 0.0, 128
    %5101 = vxpose.xlu0.b32.cont [9/16] 0.0, 128
    %5102 = vxpose.xlu0.b32.cont [10/16] 0.0, 128
    %5103 = vxpose.xlu0.b32.cont [11/16] 0.0, 128
    %5104 = vxpose.xlu0.b32.cont [12/16] 0.0, 128
    %5105 = vxpose.xlu0.b32.cont [13/16] 0.0, 128
    %5106 = vxpose.xlu0.b32.cont [14/16] 0.0, 128
    %5107 = vxpose.xlu0.b32.cont [15/16] 0.0, 128
    %5108 = vxpose.xlu0.b32.end [16/16] 0.0, 128
    %v5109 = vpop.trf.xlu0
    %v5110 = vpop.trf.xlu0
    %v5111 = vpop.trf.xlu0
    %v5112 = vpop.trf.xlu0
    %v5113 = vpop.trf.xlu0
    %v5114 = vpop.trf.xlu0
    %v5115 = vpop.trf.xlu0
    %v5116 = vpop.trf.xlu0
    %v5117 = vpop.trf.xlu0
    %v5118 = vpop.trf.xlu0
    %v5119 = vpop.trf.xlu0
    %v5120 = vpop.trf.xlu0
    %v5121 = vpop.trf.xlu0
    %v5122 = vpop.trf.xlu0
    %v5123 = vpop.trf.xlu0
    %v5124 = vpop.trf.xlu0
    %5125 = vxpose.xlu0.b32.start [1/16] %v1726, 128
    %5126 = vxpose.xlu0.b32.cont [2/16] 0.0, 128
    %5127 = vxpose.xlu0.b32.cont [3/16] 0.0, 128
    %5128 = vxpose.xlu0.b32.cont [4/16] 0.0, 128
    %5129 = vxpose.xlu0.b32.cont [5/16] 0.0, 128
    %5130 = vxpose.xlu0.b32.cont [6/16] 0.0, 128
    %5131 = vxpose.xlu0.b32.cont [7/16] 0.0, 128
    %5132 = vxpose.xlu0.b32.cont [8/16] 0.0, 128
    %5133 = vxpose.xlu0.b32.cont [9/16] 0.0, 128
    %5134 = vxpose.xlu0.b32.cont [10/16] 0.0, 128
    %5135 = vxpose.xlu0.b32.cont [11/16] 0.0, 128
    %5136 = vxpose.xlu0.b32.cont [12/16] 0.0, 128
    %5137 = vxpose.xlu0.b32.cont [13/16] 0.0, 128
    %5138 = vxpose.xlu0.b32.cont [14/16] 0.0, 128
    %5139 = vxpose.xlu0.b32.cont [15/16] 0.0, 128
    %5140 = vxpose.xlu0.b32.end [16/16] 0.0, 128
    %v5141 = vpop.trf.xlu0
    %v5142 = vpop.trf.xlu0
    %v5143 = vpop.trf.xlu0
    %v5144 = vpop.trf.xlu0
    %v5145 = vpop.trf.xlu0
    %v5146 = vpop.trf.xlu0
    %v5147 = vpop.trf.xlu0
    %v5148 = vpop.trf.xlu0
    %v5149 = vpop.trf.xlu0
    %v5150 = vpop.trf.xlu0
    %v5151 = vpop.trf.xlu0
    %v5152 = vpop.trf.xlu0
    %v5153 = vpop.trf.xlu0
    %v5154 = vpop.trf.xlu0
    %v5155 = vpop.trf.xlu0
    %v5156 = vpop.trf.xlu0
    %5157 = vxpose.xlu0.b32.start [1/16] %v1728, 128
    %5158 = vxpose.xlu0.b32.cont [2/16] 0.0, 128
    %5159 = vxpose.xlu0.b32.cont [3/16] 0.0, 128
    %5160 = vxpose.xlu0.b32.cont [4/16] 0.0, 128
    %5161 = vxpose.xlu0.b32.cont [5/16] 0.0, 128
    %5162 = vxpose.xlu0.b32.cont [6/16] 0.0, 128
    %5163 = vxpose.xlu0.b32.cont [7/16] 0.0, 128
    %5164 = vxpose.xlu0.b32.cont [8/16] 0.0, 128
    %5165 = vxpose.xlu0.b32.cont [9/16] 0.0, 128
    %5166 = vxpose.xlu0.b32.cont [10/16] 0.0, 128
    %5167 = vxpose.xlu0.b32.cont [11/16] 0.0, 128
    %5168 = vxpose.xlu0.b32.cont [12/16] 0.0, 128
    %5169 = vxpose.xlu0.b32.cont [13/16] 0.0, 128
    %5170 = vxpose.xlu0.b32.cont [14/16] 0.0, 128
    %5171 = vxpose.xlu0.b32.cont [15/16] 0.0, 128
    %5172 = vxpose.xlu0.b32.end [16/16] 0.0, 128
    %v5173 = vpop.trf.xlu0
    %v5174 = vpop.trf.xlu0
    %v5175 = vpop.trf.xlu0
    %v5176 = vpop.trf.xlu0
    %v5177 = vpop.trf.xlu0
    %v5178 = vpop.trf.xlu0
    %v5179 = vpop.trf.xlu0
    %v5180 = vpop.trf.xlu0
    %v5181 = vpop.trf.xlu0
    %v5182 = vpop.trf.xlu0
    %v5183 = vpop.trf.xlu0
    %v5184 = vpop.trf.xlu0
    %v5185 = vpop.trf.xlu0
    %v5186 = vpop.trf.xlu0
    %v5187 = vpop.trf.xlu0
    %v5188 = vpop.trf.xlu0
    %5189 = vxpose.xlu0.b32.start [1/16] %v1730, 128
    %5190 = vxpose.xlu0.b32.cont [2/16] 0.0, 128
    %5191 = vxpose.xlu0.b32.cont [3/16] 0.0, 128
    %5192 = vxpose.xlu0.b32.cont [4/16] 0.0, 128
    %5193 = vxpose.xlu0.b32.cont [5/16] 0.0, 128
    %5194 = vxpose.xlu0.b32.cont [6/16] 0.0, 128
    %5195 = vxpose.xlu0.b32.cont [7/16] 0.0, 128
    %5196 = vxpose.xlu0.b32.cont [8/16] 0.0, 128
    %5197 = vxpose.xlu0.b32.cont [9/16] 0.0, 128
    %5198 = vxpose.xlu0.b32.cont [10/16] 0.0, 128
    %5199 = vxpose.xlu0.b32.cont [11/16] 0.0, 128
    %5200 = vxpose.xlu0.b32.cont [12/16] 0.0, 128
    %5201 = vxpose.xlu0.b32.cont [13/16] 0.0, 128
    %5202 = vxpose.xlu0.b32.cont [14/16] 0.0, 128
    %5203 = vxpose.xlu0.b32.cont [15/16] 0.0, 128
    %5204 = vxpose.xlu0.b32.end [16/16] 0.0, 128
    %v5205 = vpop.trf.xlu0
    %v5206 = vpop.trf.xlu0
    %v5207 = vpop.trf.xlu0
    %v5208 = vpop.trf.xlu0
    %v5209 = vpop.trf.xlu0
    %v5210 = vpop.trf.xlu0
    %v5211 = vpop.trf.xlu0
    %v5212 = vpop.trf.xlu0
    %v5213 = vpop.trf.xlu0
    %v5214 = vpop.trf.xlu0
    %v5215 = vpop.trf.xlu0
    %v5216 = vpop.trf.xlu0
    %v5217 = vpop.trf.xlu0
    %v5218 = vpop.trf.xlu0
    %v5219 = vpop.trf.xlu0
    %v5220 = vpop.trf.xlu0
    %5221 = vxpose.xlu0.b32.start [1/16] %v1732, 128
    %5222 = vxpose.xlu0.b32.cont [2/16] 0.0, 128
    %5223 = vxpose.xlu0.b32.cont [3/16] 0.0, 128
    %5224 = vxpose.xlu0.b32.cont [4/16] 0.0, 128
    %5225 = vxpose.xlu0.b32.cont [5/16] 0.0, 128
    %5226 = vxpose.xlu0.b32.cont [6/16] 0.0, 128
    %5227 = vxpose.xlu0.b32.cont [7/16] 0.0, 128
    %5228 = vxpose.xlu0.b32.cont [8/16] 0.0, 128
    %5229 = vxpose.xlu0.b32.cont [9/16] 0.0, 128
    %5230 = vxpose.xlu0.b32.cont [10/16] 0.0, 128
    %5231 = vxpose.xlu0.b32.cont [11/16] 0.0, 128
    %5232 = vxpose.xlu0.b32.cont [12/16] 0.0, 128
    %5233 = vxpose.xlu0.b32.cont [13/16] 0.0, 128
    %5234 = vxpose.xlu0.b32.cont [14/16] 0.0, 128
    %5235 = vxpose.xlu0.b32.cont [15/16] 0.0, 128
    %5236 = vxpose.xlu0.b32.end [16/16] 0.0, 128
    %v5237 = vpop.trf.xlu0
    %v5238 = vpop.trf.xlu0
    %v5239 = vpop.trf.xlu0
    %v5240 = vpop.trf.xlu0
    %v5241 = vpop.trf.xlu0
    %v5242 = vpop.trf.xlu0
    %v5243 = vpop.trf.xlu0
    %v5244 = vpop.trf.xlu0
    %v5245 = vpop.trf.xlu0
    %v5246 = vpop.trf.xlu0
    %v5247 = vpop.trf.xlu0
    %v5248 = vpop.trf.xlu0
    %v5249 = vpop.trf.xlu0
    %v5250 = vpop.trf.xlu0
    %v5251 = vpop.trf.xlu0
    %v5252 = vpop.trf.xlu0
    %5253 = vxpose.xlu0.b32.start [1/16] %v1830, 128
    %5254 = vxpose.xlu0.b32.cont [2/16] 0.0, 128
    %5255 = vxpose.xlu0.b32.cont [3/16] 0.0, 128
    %5256 = vxpose.xlu0.b32.cont [4/16] 0.0, 128
    %5257 = vxpose.xlu0.b32.cont [5/16] 0.0, 128
    %5258 = vxpose.xlu0.b32.cont [6/16] 0.0, 128
    %5259 = vxpose.xlu0.b32.cont [7/16] 0.0, 128
    %5260 = vxpose.xlu0.b32.cont [8/16] 0.0, 128
    %5261 = vxpose.xlu0.b32.cont [9/16] 0.0, 128
    %5262 = vxpose.xlu0.b32.cont [10/16] 0.0, 128
    %5263 = vxpose.xlu0.b32.cont [11/16] 0.0, 128
    %5264 = vxpose.xlu0.b32.cont [12/16] 0.0, 128
    %5265 = vxpose.xlu0.b32.cont [13/16] 0.0, 128
    %5266 = vxpose.xlu0.b32.cont [14/16] 0.0, 128
    %5267 = vxpose.xlu0.b32.cont [15/16] 0.0, 128
    %5268 = vxpose.xlu0.b32.end [16/16] 0.0, 128
    %v5269 = vpop.trf.xlu0
    %v5270 = vpop.trf.xlu0
    %v5271 = vpop.trf.xlu0
    %v5272 = vpop.trf.xlu0
    %v5273 = vpop.trf.xlu0
    %v5274 = vpop.trf.xlu0
    %v5275 = vpop.trf.xlu0
    %v5276 = vpop.trf.xlu0
    %v5277 = vpop.trf.xlu0
    %v5278 = vpop.trf.xlu0
    %v5279 = vpop.trf.xlu0
    %v5280 = vpop.trf.xlu0
    %v5281 = vpop.trf.xlu0
    %v5282 = vpop.trf.xlu0
    %v5283 = vpop.trf.xlu0
    %v5284 = vpop.trf.xlu0
    %5285 = vxpose.xlu0.b32.start [1/16] %v1832, 128
    %5286 = vxpose.xlu0.b32.cont [2/16] 0.0, 128
    %5287 = vxpose.xlu0.b32.cont [3/16] 0.0, 128
    %5288 = vxpose.xlu0.b32.cont [4/16] 0.0, 128
    %5289 = vxpose.xlu0.b32.cont [5/16] 0.0, 128
    %5290 = vxpose.xlu0.b32.cont [6/16] 0.0, 128
    %5291 = vxpose.xlu0.b32.cont [7/16] 0.0, 128
    %5292 = vxpose.xlu0.b32.cont [8/16] 0.0, 128
    %5293 = vxpose.xlu0.b32.cont [9/16] 0.0, 128
    %5294 = vxpose.xlu0.b32.cont [10/16] 0.0, 128
    %5295 = vxpose.xlu0.b32.cont [11/16] 0.0, 128
    %5296 = vxpose.xlu0.b32.cont [12/16] 0.0, 128
    %5297 = vxpose.xlu0.b32.cont [13/16] 0.0, 128
    %5298 = vxpose.xlu0.b32.cont [14/16] 0.0, 128
    %5299 = vxpose.xlu0.b32.cont [15/16] 0.0, 128
    %5300 = vxpose.xlu0.b32.end [16/16] 0.0, 128
    %v5301 = vpop.trf.xlu0
    %v5302 = vpop.trf.xlu0
    %v5303 = vpop.trf.xlu0
    %v5304 = vpop.trf.xlu0
    %v5305 = vpop.trf.xlu0
    %v5306 = vpop.trf.xlu0
    %v5307 = vpop.trf.xlu0
    %v5308 = vpop.trf.xlu0
    %v5309 = vpop.trf.xlu0
    %v5310 = vpop.trf.xlu0
    %v5311 = vpop.trf.xlu0
    %v5312 = vpop.trf.xlu0
    %v5313 = vpop.trf.xlu0
    %v5314 = vpop.trf.xlu0
    %v5315 = vpop.trf.xlu0
    %v5316 = vpop.trf.xlu0
    %5317 = vxpose.xlu0.b32.start [1/16] %v1834, 128
    %5318 = vxpose.xlu0.b32.cont [2/16] 0.0, 128
    %5319 = vxpose.xlu0.b32.cont [3/16] 0.0, 128
    %5320 = vxpose.xlu0.b32.cont [4/16] 0.0, 128
    %5321 = vxpose.xlu0.b32.cont [5/16] 0.0, 128
    %5322 = vxpose.xlu0.b32.cont [6/16] 0.0, 128
    %5323 = vxpose.xlu0.b32.cont [7/16] 0.0, 128
    %5324 = vxpose.xlu0.b32.cont [8/16] 0.0, 128
    %5325 = vxpose.xlu0.b32.cont [9/16] 0.0, 128
    %5326 = vxpose.xlu0.b32.cont [10/16] 0.0, 128
    %5327 = vxpose.xlu0.b32.cont [11/16] 0.0, 128
    %5328 = vxpose.xlu0.b32.cont [12/16] 0.0, 128
    %5329 = vxpose.xlu0.b32.cont [13/16] 0.0, 128
    %5330 = vxpose.xlu0.b32.cont [14/16] 0.0, 128
    %5331 = vxpose.xlu0.b32.cont [15/16] 0.0, 128
    %5332 = vxpose.xlu0.b32.end [16/16] 0.0, 128
    %v5333 = vpop.trf.xlu0
    %v5334 = vpop.trf.xlu0
    %v5335 = vpop.trf.xlu0
    %v5336 = vpop.trf.xlu0
    %v5337 = vpop.trf.xlu0
    %v5338 = vpop.trf.xlu0
    %v5339 = vpop.trf.xlu0
    %v5340 = vpop.trf.xlu0
    %v5341 = vpop.trf.xlu0
    %v5342 = vpop.trf.xlu0
    %v5343 = vpop.trf.xlu0
    %v5344 = vpop.trf.xlu0
    %v5345 = vpop.trf.xlu0
    %v5346 = vpop.trf.xlu0
    %v5347 = vpop.trf.xlu0
    %v5348 = vpop.trf.xlu0
    %5349 = vxpose.xlu0.b32.start [1/16] %v1836, 128
    %5350 = vxpose.xlu0.b32.cont [2/16] 0.0, 128
    %5351 = vxpose.xlu0.b32.cont [3/16] 0.0, 128
    %5352 = vxpose.xlu0.b32.cont [4/16] 0.0, 128
    %5353 = vxpose.xlu0.b32.cont [5/16] 0.0, 128
    %5354 = vxpose.xlu0.b32.cont [6/16] 0.0, 128
    %5355 = vxpose.xlu0.b32.cont [7/16] 0.0, 128
    %5356 = vxpose.xlu0.b32.cont [8/16] 0.0, 128
    %5357 = vxpose.xlu0.b32.cont [9/16] 0.0, 128
    %5358 = vxpose.xlu0.b32.cont [10/16] 0.0, 128
    %5359 = vxpose.xlu0.b32.cont [11/16] 0.0, 128
    %5360 = vxpose.xlu0.b32.cont [12/16] 0.0, 128
    %5361 = vxpose.xlu0.b32.cont [13/16] 0.0, 128
    %5362 = vxpose.xlu0.b32.cont [14/16] 0.0, 128
    %5363 = vxpose.xlu0.b32.cont [15/16] 0.0, 128
    %5364 = vxpose.xlu0.b32.end [16/16] 0.0, 128
    %v5365 = vpop.trf.xlu0
    %v5366 = vpop.trf.xlu0
    %v5367 = vpop.trf.xlu0
    %v5368 = vpop.trf.xlu0
    %v5369 = vpop.trf.xlu0
    %v5370 = vpop.trf.xlu0
    %v5371 = vpop.trf.xlu0
    %v5372 = vpop.trf.xlu0
    %v5373 = vpop.trf.xlu0
    %v5374 = vpop.trf.xlu0
    %v5375 = vpop.trf.xlu0
    %v5376 = vpop.trf.xlu0
    %v5377 = vpop.trf.xlu0
    %v5378 = vpop.trf.xlu0
    %v5379 = vpop.trf.xlu0
    %v5380 = vpop.trf.xlu0
    %5381 = vxpose.xlu0.b32.start [1/16] %v1838, 128
    %5382 = vxpose.xlu0.b32.cont [2/16] 0.0, 128
    %5383 = vxpose.xlu0.b32.cont [3/16] 0.0, 128
    %5384 = vxpose.xlu0.b32.cont [4/16] 0.0, 128
    %5385 = vxpose.xlu0.b32.cont [5/16] 0.0, 128
    %5386 = vxpose.xlu0.b32.cont [6/16] 0.0, 128
    %5387 = vxpose.xlu0.b32.cont [7/16] 0.0, 128
    %5388 = vxpose.xlu0.b32.cont [8/16] 0.0, 128
    %5389 = vxpose.xlu0.b32.cont [9/16] 0.0, 128
    %5390 = vxpose.xlu0.b32.cont [10/16] 0.0, 128
    %5391 = vxpose.xlu0.b32.cont [11/16] 0.0, 128
    %5392 = vxpose.xlu0.b32.cont [12/16] 0.0, 128
    %5393 = vxpose.xlu0.b32.cont [13/16] 0.0, 128
    %5394 = vxpose.xlu0.b32.cont [14/16] 0.0, 128
    %5395 = vxpose.xlu0.b32.cont [15/16] 0.0, 128
    %5396 = vxpose.xlu0.b32.end [16/16] 0.0, 128
    %v5397 = vpop.trf.xlu0
    %v5398 = vpop.trf.xlu0
    %v5399 = vpop.trf.xlu0
    %v5400 = vpop.trf.xlu0
    %v5401 = vpop.trf.xlu0
    %v5402 = vpop.trf.xlu0
    %v5403 = vpop.trf.xlu0
    %v5404 = vpop.trf.xlu0
    %v5405 = vpop.trf.xlu0
    %v5406 = vpop.trf.xlu0
    %v5407 = vpop.trf.xlu0
    %v5408 = vpop.trf.xlu0
    %v5409 = vpop.trf.xlu0
    %v5410 = vpop.trf.xlu0
    %v5411 = vpop.trf.xlu0
    %v5412 = vpop.trf.xlu0
    %5413 = vxpose.xlu0.b32.start [1/16] %v1840, 128
    %5414 = vxpose.xlu0.b32.cont [2/16] 0.0, 128
    %5415 = vxpose.xlu0.b32.cont [3/16] 0.0, 128
    %5416 = vxpose.xlu0.b32.cont [4/16] 0.0, 128
    %5417 = vxpose.xlu0.b32.cont [5/16] 0.0, 128
    %5418 = vxpose.xlu0.b32.cont [6/16] 0.0, 128
    %5419 = vxpose.xlu0.b32.cont [7/16] 0.0, 128
    %5420 = vxpose.xlu0.b32.cont [8/16] 0.0, 128
    %5421 = vxpose.xlu0.b32.cont [9/16] 0.0, 128
    %5422 = vxpose.xlu0.b32.cont [10/16] 0.0, 128
    %5423 = vxpose.xlu0.b32.cont [11/16] 0.0, 128
    %5424 = vxpose.xlu0.b32.cont [12/16] 0.0, 128
    %5425 = vxpose.xlu0.b32.cont [13/16] 0.0, 128
    %5426 = vxpose.xlu0.b32.cont [14/16] 0.0, 128
    %5427 = vxpose.xlu0.b32.cont [15/16] 0.0, 128
    %5428 = vxpose.xlu0.b32.end [16/16] 0.0, 128
    %v5429 = vpop.trf.xlu0
    %v5430 = vpop.trf.xlu0
    %v5431 = vpop.trf.xlu0
    %v5432 = vpop.trf.xlu0
    %v5433 = vpop.trf.xlu0
    %v5434 = vpop.trf.xlu0
    %v5435 = vpop.trf.xlu0
    %v5436 = vpop.trf.xlu0
    %v5437 = vpop.trf.xlu0
    %v5438 = vpop.trf.xlu0
    %v5439 = vpop.trf.xlu0
    %v5440 = vpop.trf.xlu0
    %v5441 = vpop.trf.xlu0
    %v5442 = vpop.trf.xlu0
    %v5443 = vpop.trf.xlu0
    %v5444 = vpop.trf.xlu0
    %5445 = vxpose.xlu0.b32.start [1/16] %v1842, 128
    %5446 = vxpose.xlu0.b32.cont [2/16] 0.0, 128
    %5447 = vxpose.xlu0.b32.cont [3/16] 0.0, 128
    %5448 = vxpose.xlu0.b32.cont [4/16] 0.0, 128
    %5449 = vxpose.xlu0.b32.cont [5/16] 0.0, 128
    %5450 = vxpose.xlu0.b32.cont [6/16] 0.0, 128
    %5451 = vxpose.xlu0.b32.cont [7/16] 0.0, 128
    %5452 = vxpose.xlu0.b32.cont [8/16] 0.0, 128
    %5453 = vxpose.xlu0.b32.cont [9/16] 0.0, 128
    %5454 = vxpose.xlu0.b32.cont [10/16] 0.0, 128
    %5455 = vxpose.xlu0.b32.cont [11/16] 0.0, 128
    %5456 = vxpose.xlu0.b32.cont [12/16] 0.0, 128
    %5457 = vxpose.xlu0.b32.cont [13/16] 0.0, 128
    %5458 = vxpose.xlu0.b32.cont [14/16] 0.0, 128
    %5459 = vxpose.xlu0.b32.cont [15/16] 0.0, 128
    %5460 = vxpose.xlu0.b32.end [16/16] 0.0, 128
    %v5461 = vpop.trf.xlu0
    %v5462 = vpop.trf.xlu0
    %v5463 = vpop.trf.xlu0
    %v5464 = vpop.trf.xlu0
    %v5465 = vpop.trf.xlu0
    %v5466 = vpop.trf.xlu0
    %v5467 = vpop.trf.xlu0
    %v5468 = vpop.trf.xlu0
    %v5469 = vpop.trf.xlu0
    %v5470 = vpop.trf.xlu0
    %v5471 = vpop.trf.xlu0
    %v5472 = vpop.trf.xlu0
    %v5473 = vpop.trf.xlu0
    %v5474 = vpop.trf.xlu0
    %v5475 = vpop.trf.xlu0
    %v5476 = vpop.trf.xlu0
    %5477 = vxpose.xlu0.b32.start [1/16] %v1844, 128
    %5478 = vxpose.xlu0.b32.cont [2/16] 0.0, 128
    %5479 = vxpose.xlu0.b32.cont [3/16] 0.0, 128
    %5480 = vxpose.xlu0.b32.cont [4/16] 0.0, 128
    %5481 = vxpose.xlu0.b32.cont [5/16] 0.0, 128
    %5482 = vxpose.xlu0.b32.cont [6/16] 0.0, 128
    %5483 = vxpose.xlu0.b32.cont [7/16] 0.0, 128
    %5484 = vxpose.xlu0.b32.cont [8/16] 0.0, 128
    %5485 = vxpose.xlu0.b32.cont [9/16] 0.0, 128
    %5486 = vxpose.xlu0.b32.cont [10/16] 0.0, 128
    %5487 = vxpose.xlu0.b32.cont [11/16] 0.0, 128
    %5488 = vxpose.xlu0.b32.cont [12/16] 0.0, 128
    %5489 = vxpose.xlu0.b32.cont [13/16] 0.0, 128
    %5490 = vxpose.xlu0.b32.cont [14/16] 0.0, 128
    %5491 = vxpose.xlu0.b32.cont [15/16] 0.0, 128
    %5492 = vxpose.xlu0.b32.end [16/16] 0.0, 128
    %v5493 = vpop.trf.xlu0
    %v5494 = vpop.trf.xlu0
    %v5495 = vpop.trf.xlu0
    %v5496 = vpop.trf.xlu0
    %v5497 = vpop.trf.xlu0
    %v5498 = vpop.trf.xlu0
    %v5499 = vpop.trf.xlu0
    %v5500 = vpop.trf.xlu0
    %v5501 = vpop.trf.xlu0
    %v5502 = vpop.trf.xlu0
    %v5503 = vpop.trf.xlu0
    %v5504 = vpop.trf.xlu0
    %v5505 = vpop.trf.xlu0
    %v5506 = vpop.trf.xlu0
    %v5507 = vpop.trf.xlu0
    %v5508 = vpop.trf.xlu0
    %5509 = vxpose.xlu0.b32.start [1/16] %v1942, 128
    %5510 = vxpose.xlu0.b32.cont [2/16] 0.0, 128
    %5511 = vxpose.xlu0.b32.cont [3/16] 0.0, 128
    %5512 = vxpose.xlu0.b32.cont [4/16] 0.0, 128
    %5513 = vxpose.xlu0.b32.cont [5/16] 0.0, 128
    %5514 = vxpose.xlu0.b32.cont [6/16] 0.0, 128
    %5515 = vxpose.xlu0.b32.cont [7/16] 0.0, 128
    %5516 = vxpose.xlu0.b32.cont [8/16] 0.0, 128
    %5517 = vxpose.xlu0.b32.cont [9/16] 0.0, 128
    %5518 = vxpose.xlu0.b32.cont [10/16] 0.0, 128
    %5519 = vxpose.xlu0.b32.cont [11/16] 0.0, 128
    %5520 = vxpose.xlu0.b32.cont [12/16] 0.0, 128
    %5521 = vxpose.xlu0.b32.cont [13/16] 0.0, 128
    %5522 = vxpose.xlu0.b32.cont [14/16] 0.0, 128
    %5523 = vxpose.xlu0.b32.cont [15/16] 0.0, 128
    %5524 = vxpose.xlu0.b32.end [16/16] 0.0, 128
    %v5525 = vpop.trf.xlu0
    %v5526 = vpop.trf.xlu0
    %v5527 = vpop.trf.xlu0
    %v5528 = vpop.trf.xlu0
    %v5529 = vpop.trf.xlu0
    %v5530 = vpop.trf.xlu0
    %v5531 = vpop.trf.xlu0
    %v5532 = vpop.trf.xlu0
    %v5533 = vpop.trf.xlu0
    %v5534 = vpop.trf.xlu0
    %v5535 = vpop.trf.xlu0
    %v5536 = vpop.trf.xlu0
    %v5537 = vpop.trf.xlu0
    %v5538 = vpop.trf.xlu0
    %v5539 = vpop.trf.xlu0
    %v5540 = vpop.trf.xlu0
    %5541 = vxpose.xlu0.b32.start [1/16] %v1944, 128
    %5542 = vxpose.xlu0.b32.cont [2/16] 0.0, 128
    %5543 = vxpose.xlu0.b32.cont [3/16] 0.0, 128
    %5544 = vxpose.xlu0.b32.cont [4/16] 0.0, 128
    %5545 = vxpose.xlu0.b32.cont [5/16] 0.0, 128
    %5546 = vxpose.xlu0.b32.cont [6/16] 0.0, 128
    %5547 = vxpose.xlu0.b32.cont [7/16] 0.0, 128
    %5548 = vxpose.xlu0.b32.cont [8/16] 0.0, 128
    %5549 = vxpose.xlu0.b32.cont [9/16] 0.0, 128
    %5550 = vxpose.xlu0.b32.cont [10/16] 0.0, 128
    %5551 = vxpose.xlu0.b32.cont [11/16] 0.0, 128
    %5552 = vxpose.xlu0.b32.cont [12/16] 0.0, 128
    %5553 = vxpose.xlu0.b32.cont [13/16] 0.0, 128
    %5554 = vxpose.xlu0.b32.cont [14/16] 0.0, 128
    %5555 = vxpose.xlu0.b32.cont [15/16] 0.0, 128
    %5556 = vxpose.xlu0.b32.end [16/16] 0.0, 128
    %v5557 = vpop.trf.xlu0
    %v5558 = vpop.trf.xlu0
    %v5559 = vpop.trf.xlu0
    %v5560 = vpop.trf.xlu0
    %v5561 = vpop.trf.xlu0
    %v5562 = vpop.trf.xlu0
    %v5563 = vpop.trf.xlu0
    %v5564 = vpop.trf.xlu0
    %v5565 = vpop.trf.xlu0
    %v5566 = vpop.trf.xlu0
    %v5567 = vpop.trf.xlu0
    %v5568 = vpop.trf.xlu0
    %v5569 = vpop.trf.xlu0
    %v5570 = vpop.trf.xlu0
    %v5571 = vpop.trf.xlu0
    %v5572 = vpop.trf.xlu0
    %5573 = vxpose.xlu0.b32.start [1/16] %v1946, 128
    %5574 = vxpose.xlu0.b32.cont [2/16] 0.0, 128
    %5575 = vxpose.xlu0.b32.cont [3/16] 0.0, 128
    %5576 = vxpose.xlu0.b32.cont [4/16] 0.0, 128
    %5577 = vxpose.xlu0.b32.cont [5/16] 0.0, 128
    %5578 = vxpose.xlu0.b32.cont [6/16] 0.0, 128
    %5579 = vxpose.xlu0.b32.cont [7/16] 0.0, 128
    %5580 = vxpose.xlu0.b32.cont [8/16] 0.0, 128
    %5581 = vxpose.xlu0.b32.cont [9/16] 0.0, 128
    %5582 = vxpose.xlu0.b32.cont [10/16] 0.0, 128
    %5583 = vxpose.xlu0.b32.cont [11/16] 0.0, 128
    %5584 = vxpose.xlu0.b32.cont [12/16] 0.0, 128
    %5585 = vxpose.xlu0.b32.cont [13/16] 0.0, 128
    %5586 = vxpose.xlu0.b32.cont [14/16] 0.0, 128
    %5587 = vxpose.xlu0.b32.cont [15/16] 0.0, 128
    %5588 = vxpose.xlu0.b32.end [16/16] 0.0, 128
    %v5589 = vpop.trf.xlu0
    %v5590 = vpop.trf.xlu0
    %v5591 = vpop.trf.xlu0
    %v5592 = vpop.trf.xlu0
    %v5593 = vpop.trf.xlu0
    %v5594 = vpop.trf.xlu0
    %v5595 = vpop.trf.xlu0
    %v5596 = vpop.trf.xlu0
    %v5597 = vpop.trf.xlu0
    %v5598 = vpop.trf.xlu0
    %v5599 = vpop.trf.xlu0
    %v5600 = vpop.trf.xlu0
    %v5601 = vpop.trf.xlu0
    %v5602 = vpop.trf.xlu0
    %v5603 = vpop.trf.xlu0
    %v5604 = vpop.trf.xlu0
    %5605 = vxpose.xlu0.b32.start [1/16] %v1948, 128
    %5606 = vxpose.xlu0.b32.cont [2/16] 0.0, 128
    %5607 = vxpose.xlu0.b32.cont [3/16] 0.0, 128
    %5608 = vxpose.xlu0.b32.cont [4/16] 0.0, 128
    %5609 = vxpose.xlu0.b32.cont [5/16] 0.0, 128
    %5610 = vxpose.xlu0.b32.cont [6/16] 0.0, 128
    %5611 = vxpose.xlu0.b32.cont [7/16] 0.0, 128
    %5612 = vxpose.xlu0.b32.cont [8/16] 0.0, 128
    %5613 = vxpose.xlu0.b32.cont [9/16] 0.0, 128
    %5614 = vxpose.xlu0.b32.cont [10/16] 0.0, 128
    %5615 = vxpose.xlu0.b32.cont [11/16] 0.0, 128
    %5616 = vxpose.xlu0.b32.cont [12/16] 0.0, 128
    %5617 = vxpose.xlu0.b32.cont [13/16] 0.0, 128
    %5618 = vxpose.xlu0.b32.cont [14/16] 0.0, 128
    %5619 = vxpose.xlu0.b32.cont [15/16] 0.0, 128
    %5620 = vxpose.xlu0.b32.end [16/16] 0.0, 128
    %v5621 = vpop.trf.xlu0
    %v5622 = vpop.trf.xlu0
    %v5623 = vpop.trf.xlu0
    %v5624 = vpop.trf.xlu0
    %v5625 = vpop.trf.xlu0
    %v5626 = vpop.trf.xlu0
    %v5627 = vpop.trf.xlu0
    %v5628 = vpop.trf.xlu0
    %v5629 = vpop.trf.xlu0
    %v5630 = vpop.trf.xlu0
    %v5631 = vpop.trf.xlu0
    %v5632 = vpop.trf.xlu0
    %v5633 = vpop.trf.xlu0
    %v5634 = vpop.trf.xlu0
    %v5635 = vpop.trf.xlu0
    %v5636 = vpop.trf.xlu0
    %5637 = vxpose.xlu0.b32.start [1/16] %v1950, 128
    %5638 = vxpose.xlu0.b32.cont [2/16] 0.0, 128
    %5639 = vxpose.xlu0.b32.cont [3/16] 0.0, 128
    %5640 = vxpose.xlu0.b32.cont [4/16] 0.0, 128
    %5641 = vxpose.xlu0.b32.cont [5/16] 0.0, 128
    %5642 = vxpose.xlu0.b32.cont [6/16] 0.0, 128
    %5643 = vxpose.xlu0.b32.cont [7/16] 0.0, 128
    %5644 = vxpose.xlu0.b32.cont [8/16] 0.0, 128
    %5645 = vxpose.xlu0.b32.cont [9/16] 0.0, 128
    %5646 = vxpose.xlu0.b32.cont [10/16] 0.0, 128
    %5647 = vxpose.xlu0.b32.cont [11/16] 0.0, 128
    %5648 = vxpose.xlu0.b32.cont [12/16] 0.0, 128
    %5649 = vxpose.xlu0.b32.cont [13/16] 0.0, 128
    %5650 = vxpose.xlu0.b32.cont [14/16] 0.0, 128
    %5651 = vxpose.xlu0.b32.cont [15/16] 0.0, 128
    %5652 = vxpose.xlu0.b32.end [16/16] 0.0, 128
    %v5653 = vpop.trf.xlu0
    %v5654 = vpop.trf.xlu0
    %v5655 = vpop.trf.xlu0
    %v5656 = vpop.trf.xlu0
    %v5657 = vpop.trf.xlu0
    %v5658 = vpop.trf.xlu0
    %v5659 = vpop.trf.xlu0
    %v5660 = vpop.trf.xlu0
    %v5661 = vpop.trf.xlu0
    %v5662 = vpop.trf.xlu0
    %v5663 = vpop.trf.xlu0
    %v5664 = vpop.trf.xlu0
    %v5665 = vpop.trf.xlu0
    %v5666 = vpop.trf.xlu0
    %v5667 = vpop.trf.xlu0
    %v5668 = vpop.trf.xlu0
    %5669 = vxpose.xlu0.b32.start [1/16] %v1952, 128
    %5670 = vxpose.xlu0.b32.cont [2/16] 0.0, 128
    %5671 = vxpose.xlu0.b32.cont [3/16] 0.0, 128
    %5672 = vxpose.xlu0.b32.cont [4/16] 0.0, 128
    %5673 = vxpose.xlu0.b32.cont [5/16] 0.0, 128
    %5674 = vxpose.xlu0.b32.cont [6/16] 0.0, 128
    %5675 = vxpose.xlu0.b32.cont [7/16] 0.0, 128
    %5676 = vxpose.xlu0.b32.cont [8/16] 0.0, 128
    %5677 = vxpose.xlu0.b32.cont [9/16] 0.0, 128
    %5678 = vxpose.xlu0.b32.cont [10/16] 0.0, 128
    %5679 = vxpose.xlu0.b32.cont [11/16] 0.0, 128
    %5680 = vxpose.xlu0.b32.cont [12/16] 0.0, 128
    %5681 = vxpose.xlu0.b32.cont [13/16] 0.0, 128
    %5682 = vxpose.xlu0.b32.cont [14/16] 0.0, 128
    %5683 = vxpose.xlu0.b32.cont [15/16] 0.0, 128
    %5684 = vxpose.xlu0.b32.end [16/16] 0.0, 128
    %v5685 = vpop.trf.xlu0
    %v5686 = vpop.trf.xlu0
    %v5687 = vpop.trf.xlu0
    %v5688 = vpop.trf.xlu0
    %v5689 = vpop.trf.xlu0
    %v5690 = vpop.trf.xlu0
    %v5691 = vpop.trf.xlu0
    %v5692 = vpop.trf.xlu0
    %v5693 = vpop.trf.xlu0
    %v5694 = vpop.trf.xlu0
    %v5695 = vpop.trf.xlu0
    %v5696 = vpop.trf.xlu0
    %v5697 = vpop.trf.xlu0
    %v5698 = vpop.trf.xlu0
    %v5699 = vpop.trf.xlu0
    %v5700 = vpop.trf.xlu0
    %5701 = vxpose.xlu0.b32.start [1/16] %v1954, 128
    %5702 = vxpose.xlu0.b32.cont [2/16] 0.0, 128
    %5703 = vxpose.xlu0.b32.cont [3/16] 0.0, 128
    %5704 = vxpose.xlu0.b32.cont [4/16] 0.0, 128
    %5705 = vxpose.xlu0.b32.cont [5/16] 0.0, 128
    %5706 = vxpose.xlu0.b32.cont [6/16] 0.0, 128
    %5707 = vxpose.xlu0.b32.cont [7/16] 0.0, 128
    %5708 = vxpose.xlu0.b32.cont [8/16] 0.0, 128
    %5709 = vxpose.xlu0.b32.cont [9/16] 0.0, 128
    %5710 = vxpose.xlu0.b32.cont [10/16] 0.0, 128
    %5711 = vxpose.xlu0.b32.cont [11/16] 0.0, 128
    %5712 = vxpose.xlu0.b32.cont [12/16] 0.0, 128
    %5713 = vxpose.xlu0.b32.cont [13/16] 0.0, 128
    %5714 = vxpose.xlu0.b32.cont [14/16] 0.0, 128
    %5715 = vxpose.xlu0.b32.cont [15/16] 0.0, 128
    %5716 = vxpose.xlu0.b32.end [16/16] 0.0, 128
    %v5717 = vpop.trf.xlu0
    %v5718 = vpop.trf.xlu0
    %v5719 = vpop.trf.xlu0
    %v5720 = vpop.trf.xlu0
    %v5721 = vpop.trf.xlu0
    %v5722 = vpop.trf.xlu0
    %v5723 = vpop.trf.xlu0
    %v5724 = vpop.trf.xlu0
    %v5725 = vpop.trf.xlu0
    %v5726 = vpop.trf.xlu0
    %v5727 = vpop.trf.xlu0
    %v5728 = vpop.trf.xlu0
    %v5729 = vpop.trf.xlu0
    %v5730 = vpop.trf.xlu0
    %v5731 = vpop.trf.xlu0
    %v5732 = vpop.trf.xlu0
    %5733 = vxpose.xlu0.b32.start [1/16] %v1956, 128
    %5734 = vxpose.xlu0.b32.cont [2/16] 0.0, 128
    %5735 = vxpose.xlu0.b32.cont [3/16] 0.0, 128
    %5736 = vxpose.xlu0.b32.cont [4/16] 0.0, 128
    %5737 = vxpose.xlu0.b32.cont [5/16] 0.0, 128
    %5738 = vxpose.xlu0.b32.cont [6/16] 0.0, 128
    %5739 = vxpose.xlu0.b32.cont [7/16] 0.0, 128
    %5740 = vxpose.xlu0.b32.cont [8/16] 0.0, 128
    %5741 = vxpose.xlu0.b32.cont [9/16] 0.0, 128
    %5742 = vxpose.xlu0.b32.cont [10/16] 0.0, 128
    %5743 = vxpose.xlu0.b32.cont [11/16] 0.0, 128
    %5744 = vxpose.xlu0.b32.cont [12/16] 0.0, 128
    %5745 = vxpose.xlu0.b32.cont [13/16] 0.0, 128
    %5746 = vxpose.xlu0.b32.cont [14/16] 0.0, 128
    %5747 = vxpose.xlu0.b32.cont [15/16] 0.0, 128
    %5748 = vxpose.xlu0.b32.end [16/16] 0.0, 128
    %v5749 = vpop.trf.xlu0
    %v5750 = vpop.trf.xlu0
    %v5751 = vpop.trf.xlu0
    %v5752 = vpop.trf.xlu0
    %v5753 = vpop.trf.xlu0
    %v5754 = vpop.trf.xlu0
    %v5755 = vpop.trf.xlu0
    %v5756 = vpop.trf.xlu0
    %v5757 = vpop.trf.xlu0
    %v5758 = vpop.trf.xlu0
    %v5759 = vpop.trf.xlu0
    %v5760 = vpop.trf.xlu0
    %v5761 = vpop.trf.xlu0
    %v5762 = vpop.trf.xlu0
    %v5763 = vpop.trf.xlu0
    %v5764 = vpop.trf.xlu0
    %5765 = vxpose.xlu0.b32.start [1/16] %v2054, 128
    %5766 = vxpose.xlu0.b32.cont [2/16] 0.0, 128
    %5767 = vxpose.xlu0.b32.cont [3/16] 0.0, 128
    %5768 = vxpose.xlu0.b32.cont [4/16] 0.0, 128
    %5769 = vxpose.xlu0.b32.cont [5/16] 0.0, 128
    %5770 = vxpose.xlu0.b32.cont [6/16] 0.0, 128
    %5771 = vxpose.xlu0.b32.cont [7/16] 0.0, 128
    %5772 = vxpose.xlu0.b32.cont [8/16] 0.0, 128
    %5773 = vxpose.xlu0.b32.cont [9/16] 0.0, 128
    %5774 = vxpose.xlu0.b32.cont [10/16] 0.0, 128
    %5775 = vxpose.xlu0.b32.cont [11/16] 0.0, 128
    %5776 = vxpose.xlu0.b32.cont [12/16] 0.0, 128
    %5777 = vxpose.xlu0.b32.cont [13/16] 0.0, 128
    %5778 = vxpose.xlu0.b32.cont [14/16] 0.0, 128
    %5779 = vxpose.xlu0.b32.cont [15/16] 0.0, 128
    %5780 = vxpose.xlu0.b32.end [16/16] 0.0, 128
    %v5781 = vpop.trf.xlu0
    %v5782 = vpop.trf.xlu0
    %v5783 = vpop.trf.xlu0
    %v5784 = vpop.trf.xlu0
    %v5785 = vpop.trf.xlu0
    %v5786 = vpop.trf.xlu0
    %v5787 = vpop.trf.xlu0
    %v5788 = vpop.trf.xlu0
    %v5789 = vpop.trf.xlu0
    %v5790 = vpop.trf.xlu0
    %v5791 = vpop.trf.xlu0
    %v5792 = vpop.trf.xlu0
    %v5793 = vpop.trf.xlu0
    %v5794 = vpop.trf.xlu0
    %v5795 = vpop.trf.xlu0
    %v5796 = vpop.trf.xlu0
    %5797 = vxpose.xlu0.b32.start [1/16] %v2056, 128
    %5798 = vxpose.xlu0.b32.cont [2/16] 0.0, 128
    %5799 = vxpose.xlu0.b32.cont [3/16] 0.0, 128
    %5800 = vxpose.xlu0.b32.cont [4/16] 0.0, 128
    %5801 = vxpose.xlu0.b32.cont [5/16] 0.0, 128
    %5802 = vxpose.xlu0.b32.cont [6/16] 0.0, 128
    %5803 = vxpose.xlu0.b32.cont [7/16] 0.0, 128
    %5804 = vxpose.xlu0.b32.cont [8/16] 0.0, 128
    %5805 = vxpose.xlu0.b32.cont [9/16] 0.0, 128
    %5806 = vxpose.xlu0.b32.cont [10/16] 0.0, 128
    %5807 = vxpose.xlu0.b32.cont [11/16] 0.0, 128
    %5808 = vxpose.xlu0.b32.cont [12/16] 0.0, 128
    %5809 = vxpose.xlu0.b32.cont [13/16] 0.0, 128
    %5810 = vxpose.xlu0.b32.cont [14/16] 0.0, 128
    %5811 = vxpose.xlu0.b32.cont [15/16] 0.0, 128
    %5812 = vxpose.xlu0.b32.end [16/16] 0.0, 128
    %v5813 = vpop.trf.xlu0
    %v5814 = vpop.trf.xlu0
    %v5815 = vpop.trf.xlu0
    %v5816 = vpop.trf.xlu0
    %v5817 = vpop.trf.xlu0
    %v5818 = vpop.trf.xlu0
    %v5819 = vpop.trf.xlu0
    %v5820 = vpop.trf.xlu0
    %v5821 = vpop.trf.xlu0
    %v5822 = vpop.trf.xlu0
    %v5823 = vpop.trf.xlu0
    %v5824 = vpop.trf.xlu0
    %v5825 = vpop.trf.xlu0
    %v5826 = vpop.trf.xlu0
    %v5827 = vpop.trf.xlu0
    %v5828 = vpop.trf.xlu0
    %5829 = vxpose.xlu0.b32.start [1/16] %v2058, 128
    %5830 = vxpose.xlu0.b32.cont [2/16] 0.0, 128
    %5831 = vxpose.xlu0.b32.cont [3/16] 0.0, 128
    %5832 = vxpose.xlu0.b32.cont [4/16] 0.0, 128
    %5833 = vxpose.xlu0.b32.cont [5/16] 0.0, 128
    %5834 = vxpose.xlu0.b32.cont [6/16] 0.0, 128
    %5835 = vxpose.xlu0.b32.cont [7/16] 0.0, 128
    %5836 = vxpose.xlu0.b32.cont [8/16] 0.0, 128
    %5837 = vxpose.xlu0.b32.cont [9/16] 0.0, 128
    %5838 = vxpose.xlu0.b32.cont [10/16] 0.0, 128
    %5839 = vxpose.xlu0.b32.cont [11/16] 0.0, 128
    %5840 = vxpose.xlu0.b32.cont [12/16] 0.0, 128
    %5841 = vxpose.xlu0.b32.cont [13/16] 0.0, 128
    %5842 = vxpose.xlu0.b32.cont [14/16] 0.0, 128
    %5843 = vxpose.xlu0.b32.cont [15/16] 0.0, 128
    %5844 = vxpose.xlu0.b32.end [16/16] 0.0, 128
    %v5845 = vpop.trf.xlu0
    %v5846 = vpop.trf.xlu0
    %v5847 = vpop.trf.xlu0
    %v5848 = vpop.trf.xlu0
    %v5849 = vpop.trf.xlu0
    %v5850 = vpop.trf.xlu0
    %v5851 = vpop.trf.xlu0
    %v5852 = vpop.trf.xlu0
    %v5853 = vpop.trf.xlu0
    %v5854 = vpop.trf.xlu0
    %v5855 = vpop.trf.xlu0
    %v5856 = vpop.trf.xlu0
    %v5857 = vpop.trf.xlu0
    %v5858 = vpop.trf.xlu0
    %v5859 = vpop.trf.xlu0
    %v5860 = vpop.trf.xlu0
    %5861 = vxpose.xlu0.b32.start [1/16] %v2060, 128
    %5862 = vxpose.xlu0.b32.cont [2/16] 0.0, 128
    %5863 = vxpose.xlu0.b32.cont [3/16] 0.0, 128
    %5864 = vxpose.xlu0.b32.cont [4/16] 0.0, 128
    %5865 = vxpose.xlu0.b32.cont [5/16] 0.0, 128
    %5866 = vxpose.xlu0.b32.cont [6/16] 0.0, 128
    %5867 = vxpose.xlu0.b32.cont [7/16] 0.0, 128
    %5868 = vxpose.xlu0.b32.cont [8/16] 0.0, 128
    %5869 = vxpose.xlu0.b32.cont [9/16] 0.0, 128
    %5870 = vxpose.xlu0.b32.cont [10/16] 0.0, 128
    %5871 = vxpose.xlu0.b32.cont [11/16] 0.0, 128
    %5872 = vxpose.xlu0.b32.cont [12/16] 0.0, 128
    %5873 = vxpose.xlu0.b32.cont [13/16] 0.0, 128
    %5874 = vxpose.xlu0.b32.cont [14/16] 0.0, 128
    %5875 = vxpose.xlu0.b32.cont [15/16] 0.0, 128
    %5876 = vxpose.xlu0.b32.end [16/16] 0.0, 128
    %v5877 = vpop.trf.xlu0
    %v5878 = vpop.trf.xlu0
    %v5879 = vpop.trf.xlu0
    %v5880 = vpop.trf.xlu0
    %v5881 = vpop.trf.xlu0
    %v5882 = vpop.trf.xlu0
    %v5883 = vpop.trf.xlu0
    %v5884 = vpop.trf.xlu0
    %v5885 = vpop.trf.xlu0
    %v5886 = vpop.trf.xlu0
    %v5887 = vpop.trf.xlu0
    %v5888 = vpop.trf.xlu0
    %v5889 = vpop.trf.xlu0
    %v5890 = vpop.trf.xlu0
    %v5891 = vpop.trf.xlu0
    %v5892 = vpop.trf.xlu0
    %5893 = vxpose.xlu0.b32.start [1/16] %v2062, 128
    %5894 = vxpose.xlu0.b32.cont [2/16] 0.0, 128
    %5895 = vxpose.xlu0.b32.cont [3/16] 0.0, 128
    %5896 = vxpose.xlu0.b32.cont [4/16] 0.0, 128
    %5897 = vxpose.xlu0.b32.cont [5/16] 0.0, 128
    %5898 = vxpose.xlu0.b32.cont [6/16] 0.0, 128
    %5899 = vxpose.xlu0.b32.cont [7/16] 0.0, 128
    %5900 = vxpose.xlu0.b32.cont [8/16] 0.0, 128
    %5901 = vxpose.xlu0.b32.cont [9/16] 0.0, 128
    %5902 = vxpose.xlu0.b32.cont [10/16] 0.0, 128
    %5903 = vxpose.xlu0.b32.cont [11/16] 0.0, 128
    %5904 = vxpose.xlu0.b32.cont [12/16] 0.0, 128
    %5905 = vxpose.xlu0.b32.cont [13/16] 0.0, 128
    %5906 = vxpose.xlu0.b32.cont [14/16] 0.0, 128
    %5907 = vxpose.xlu0.b32.cont [15/16] 0.0, 128
    %5908 = vxpose.xlu0.b32.end [16/16] 0.0, 128
    %v5909 = vpop.trf.xlu0
    %v5910 = vpop.trf.xlu0
    %v5911 = vpop.trf.xlu0
    %v5912 = vpop.trf.xlu0
    %v5913 = vpop.trf.xlu0
    %v5914 = vpop.trf.xlu0
    %v5915 = vpop.trf.xlu0
    %v5916 = vpop.trf.xlu0
    %v5917 = vpop.trf.xlu0
    %v5918 = vpop.trf.xlu0
    %v5919 = vpop.trf.xlu0
    %v5920 = vpop.trf.xlu0
    %v5921 = vpop.trf.xlu0
    %v5922 = vpop.trf.xlu0
    %v5923 = vpop.trf.xlu0
    %v5924 = vpop.trf.xlu0
    %5925 = vxpose.xlu0.b32.start [1/16] %v2064, 128
    %5926 = vxpose.xlu0.b32.cont [2/16] 0.0, 128
    %5927 = vxpose.xlu0.b32.cont [3/16] 0.0, 128
    %5928 = vxpose.xlu0.b32.cont [4/16] 0.0, 128
    %5929 = vxpose.xlu0.b32.cont [5/16] 0.0, 128
    %5930 = vxpose.xlu0.b32.cont [6/16] 0.0, 128
    %5931 = vxpose.xlu0.b32.cont [7/16] 0.0, 128
    %5932 = vxpose.xlu0.b32.cont [8/16] 0.0, 128
    %5933 = vxpose.xlu0.b32.cont [9/16] 0.0, 128
    %5934 = vxpose.xlu0.b32.cont [10/16] 0.0, 128
    %5935 = vxpose.xlu0.b32.cont [11/16] 0.0, 128
    %5936 = vxpose.xlu0.b32.cont [12/16] 0.0, 128
    %5937 = vxpose.xlu0.b32.cont [13/16] 0.0, 128
    %5938 = vxpose.xlu0.b32.cont [14/16] 0.0, 128
    %5939 = vxpose.xlu0.b32.cont [15/16] 0.0, 128
    %5940 = vxpose.xlu0.b32.end [16/16] 0.0, 128
    %v5941 = vpop.trf.xlu0
    %v5942 = vpop.trf.xlu0
    %v5943 = vpop.trf.xlu0
    %v5944 = vpop.trf.xlu0
    %v5945 = vpop.trf.xlu0
    %v5946 = vpop.trf.xlu0
    %v5947 = vpop.trf.xlu0
    %v5948 = vpop.trf.xlu0
    %v5949 = vpop.trf.xlu0
    %v5950 = vpop.trf.xlu0
    %v5951 = vpop.trf.xlu0
    %v5952 = vpop.trf.xlu0
    %v5953 = vpop.trf.xlu0
    %v5954 = vpop.trf.xlu0
    %v5955 = vpop.trf.xlu0
    %v5956 = vpop.trf.xlu0
    %5957 = vxpose.xlu0.b32.start [1/16] %v2066, 128
    %5958 = vxpose.xlu0.b32.cont [2/16] 0.0, 128
    %5959 = vxpose.xlu0.b32.cont [3/16] 0.0, 128
    %5960 = vxpose.xlu0.b32.cont [4/16] 0.0, 128
    %5961 = vxpose.xlu0.b32.cont [5/16] 0.0, 128
    %5962 = vxpose.xlu0.b32.cont [6/16] 0.0, 128
    %5963 = vxpose.xlu0.b32.cont [7/16] 0.0, 128
    %5964 = vxpose.xlu0.b32.cont [8/16] 0.0, 128
    %5965 = vxpose.xlu0.b32.cont [9/16] 0.0, 128
    %5966 = vxpose.xlu0.b32.cont [10/16] 0.0, 128
    %5967 = vxpose.xlu0.b32.cont [11/16] 0.0, 128
    %5968 = vxpose.xlu0.b32.cont [12/16] 0.0, 128
    %5969 = vxpose.xlu0.b32.cont [13/16] 0.0, 128
    %5970 = vxpose.xlu0.b32.cont [14/16] 0.0, 128
    %5971 = vxpose.xlu0.b32.cont [15/16] 0.0, 128
    %5972 = vxpose.xlu0.b32.end [16/16] 0.0, 128
    %v5973 = vpop.trf.xlu0
    %v5974 = vpop.trf.xlu0
    %v5975 = vpop.trf.xlu0
    %v5976 = vpop.trf.xlu0
    %v5977 = vpop.trf.xlu0
    %v5978 = vpop.trf.xlu0
    %v5979 = vpop.trf.xlu0
    %v5980 = vpop.trf.xlu0
    %v5981 = vpop.trf.xlu0
    %v5982 = vpop.trf.xlu0
    %v5983 = vpop.trf.xlu0
    %v5984 = vpop.trf.xlu0
    %v5985 = vpop.trf.xlu0
    %v5986 = vpop.trf.xlu0
    %v5987 = vpop.trf.xlu0
    %v5988 = vpop.trf.xlu0
    %5989 = vxpose.xlu0.b32.start [1/16] %v2068, 128
    %5990 = vxpose.xlu0.b32.cont [2/16] 0.0, 128
    %5991 = vxpose.xlu0.b32.cont [3/16] 0.0, 128
    %5992 = vxpose.xlu0.b32.cont [4/16] 0.0, 128
    %5993 = vxpose.xlu0.b32.cont [5/16] 0.0, 128
    %5994 = vxpose.xlu0.b32.cont [6/16] 0.0, 128
    %5995 = vxpose.xlu0.b32.cont [7/16] 0.0, 128
    %5996 = vxpose.xlu0.b32.cont [8/16] 0.0, 128
    %5997 = vxpose.xlu0.b32.cont [9/16] 0.0, 128
    %5998 = vxpose.xlu0.b32.cont [10/16] 0.0, 128
    %5999 = vxpose.xlu0.b32.cont [11/16] 0.0, 128
    %6000 = vxpose.xlu0.b32.cont [12/16] 0.0, 128
    %6001 = vxpose.xlu0.b32.cont [13/16] 0.0, 128
    %6002 = vxpose.xlu0.b32.cont [14/16] 0.0, 128
    %6003 = vxpose.xlu0.b32.cont [15/16] 0.0, 128
    %6004 = vxpose.xlu0.b32.end [16/16] 0.0, 128
    %v6005 = vpop.trf.xlu0
    %v6006 = vpop.trf.xlu0
    %v6007 = vpop.trf.xlu0
    %v6008 = vpop.trf.xlu0
    %v6009 = vpop.trf.xlu0
    %v6010 = vpop.trf.xlu0
    %v6011 = vpop.trf.xlu0
    %v6012 = vpop.trf.xlu0
    %v6013 = vpop.trf.xlu0
    %v6014 = vpop.trf.xlu0
    %v6015 = vpop.trf.xlu0
    %v6016 = vpop.trf.xlu0
    %v6017 = vpop.trf.xlu0
    %v6018 = vpop.trf.xlu0
    %v6019 = vpop.trf.xlu0
    %v6020 = vpop.trf.xlu0
    %6021 = vxpose.xlu0.b32.start [1/16] %v2166, 128
    %6022 = vxpose.xlu0.b32.cont [2/16] 0.0, 128
    %6023 = vxpose.xlu0.b32.cont [3/16] 0.0, 128
    %6024 = vxpose.xlu0.b32.cont [4/16] 0.0, 128
    %6025 = vxpose.xlu0.b32.cont [5/16] 0.0, 128
    %6026 = vxpose.xlu0.b32.cont [6/16] 0.0, 128
    %6027 = vxpose.xlu0.b32.cont [7/16] 0.0, 128
    %6028 = vxpose.xlu0.b32.cont [8/16] 0.0, 128
    %6029 = vxpose.xlu0.b32.cont [9/16] 0.0, 128
    %6030 = vxpose.xlu0.b32.cont [10/16] 0.0, 128
    %6031 = vxpose.xlu0.b32.cont [11/16] 0.0, 128
    %6032 = vxpose.xlu0.b32.cont [12/16] 0.0, 128
    %6033 = vxpose.xlu0.b32.cont [13/16] 0.0, 128
    %6034 = vxpose.xlu0.b32.cont [14/16] 0.0, 128
    %6035 = vxpose.xlu0.b32.cont [15/16] 0.0, 128
    %6036 = vxpose.xlu0.b32.end [16/16] 0.0, 128
    %v6037 = vpop.trf.xlu0
    %v6038 = vpop.trf.xlu0
    %v6039 = vpop.trf.xlu0
    %v6040 = vpop.trf.xlu0
    %v6041 = vpop.trf.xlu0
    %v6042 = vpop.trf.xlu0
    %v6043 = vpop.trf.xlu0
    %v6044 = vpop.trf.xlu0
    %v6045 = vpop.trf.xlu0
    %v6046 = vpop.trf.xlu0
    %v6047 = vpop.trf.xlu0
    %v6048 = vpop.trf.xlu0
    %v6049 = vpop.trf.xlu0
    %v6050 = vpop.trf.xlu0
    %v6051 = vpop.trf.xlu0
    %v6052 = vpop.trf.xlu0
    %6053 = vxpose.xlu0.b32.start [1/16] %v2168, 128
    %6054 = vxpose.xlu0.b32.cont [2/16] 0.0, 128
    %6055 = vxpose.xlu0.b32.cont [3/16] 0.0, 128
    %6056 = vxpose.xlu0.b32.cont [4/16] 0.0, 128
    %6057 = vxpose.xlu0.b32.cont [5/16] 0.0, 128
    %6058 = vxpose.xlu0.b32.cont [6/16] 0.0, 128
    %6059 = vxpose.xlu0.b32.cont [7/16] 0.0, 128
    %6060 = vxpose.xlu0.b32.cont [8/16] 0.0, 128
    %6061 = vxpose.xlu0.b32.cont [9/16] 0.0, 128
    %6062 = vxpose.xlu0.b32.cont [10/16] 0.0, 128
    %6063 = vxpose.xlu0.b32.cont [11/16] 0.0, 128
    %6064 = vxpose.xlu0.b32.cont [12/16] 0.0, 128
    %6065 = vxpose.xlu0.b32.cont [13/16] 0.0, 128
    %6066 = vxpose.xlu0.b32.cont [14/16] 0.0, 128
    %6067 = vxpose.xlu0.b32.cont [15/16] 0.0, 128
    %6068 = vxpose.xlu0.b32.end [16/16] 0.0, 128
    %v6069 = vpop.trf.xlu0
    %v6070 = vpop.trf.xlu0
    %v6071 = vpop.trf.xlu0
    %v6072 = vpop.trf.xlu0
    %v6073 = vpop.trf.xlu0
    %v6074 = vpop.trf.xlu0
    %v6075 = vpop.trf.xlu0
    %v6076 = vpop.trf.xlu0
    %v6077 = vpop.trf.xlu0
    %v6078 = vpop.trf.xlu0
    %v6079 = vpop.trf.xlu0
    %v6080 = vpop.trf.xlu0
    %v6081 = vpop.trf.xlu0
    %v6082 = vpop.trf.xlu0
    %v6083 = vpop.trf.xlu0
    %v6084 = vpop.trf.xlu0
    %6085 = vxpose.xlu0.b32.start [1/16] %v2170, 128
    %6086 = vxpose.xlu0.b32.cont [2/16] 0.0, 128
    %6087 = vxpose.xlu0.b32.cont [3/16] 0.0, 128
    %6088 = vxpose.xlu0.b32.cont [4/16] 0.0, 128
    %6089 = vxpose.xlu0.b32.cont [5/16] 0.0, 128
    %6090 = vxpose.xlu0.b32.cont [6/16] 0.0, 128
    %6091 = vxpose.xlu0.b32.cont [7/16] 0.0, 128
    %6092 = vxpose.xlu0.b32.cont [8/16] 0.0, 128
    %6093 = vxpose.xlu0.b32.cont [9/16] 0.0, 128
    %6094 = vxpose.xlu0.b32.cont [10/16] 0.0, 128
    %6095 = vxpose.xlu0.b32.cont [11/16] 0.0, 128
    %6096 = vxpose.xlu0.b32.cont [12/16] 0.0, 128
    %6097 = vxpose.xlu0.b32.cont [13/16] 0.0, 128
    %6098 = vxpose.xlu0.b32.cont [14/16] 0.0, 128
    %6099 = vxpose.xlu0.b32.cont [15/16] 0.0, 128
    %6100 = vxpose.xlu0.b32.end [16/16] 0.0, 128
    %v6101 = vpop.trf.xlu0
    %v6102 = vpop.trf.xlu0
    %v6103 = vpop.trf.xlu0
    %v6104 = vpop.trf.xlu0
    %v6105 = vpop.trf.xlu0
    %v6106 = vpop.trf.xlu0
    %v6107 = vpop.trf.xlu0
    %v6108 = vpop.trf.xlu0
    %v6109 = vpop.trf.xlu0
    %v6110 = vpop.trf.xlu0
    %v6111 = vpop.trf.xlu0
    %v6112 = vpop.trf.xlu0
    %v6113 = vpop.trf.xlu0
    %v6114 = vpop.trf.xlu0
    %v6115 = vpop.trf.xlu0
    %v6116 = vpop.trf.xlu0
    %6117 = vxpose.xlu0.b32.start [1/16] %v2172, 128
    %6118 = vxpose.xlu0.b32.cont [2/16] 0.0, 128
    %6119 = vxpose.xlu0.b32.cont [3/16] 0.0, 128
    %6120 = vxpose.xlu0.b32.cont [4/16] 0.0, 128
    %6121 = vxpose.xlu0.b32.cont [5/16] 0.0, 128
    %6122 = vxpose.xlu0.b32.cont [6/16] 0.0, 128
    %6123 = vxpose.xlu0.b32.cont [7/16] 0.0, 128
    %6124 = vxpose.xlu0.b32.cont [8/16] 0.0, 128
    %6125 = vxpose.xlu0.b32.cont [9/16] 0.0, 128
    %6126 = vxpose.xlu0.b32.cont [10/16] 0.0, 128
    %6127 = vxpose.xlu0.b32.cont [11/16] 0.0, 128
    %6128 = vxpose.xlu0.b32.cont [12/16] 0.0, 128
    %6129 = vxpose.xlu0.b32.cont [13/16] 0.0, 128
    %6130 = vxpose.xlu0.b32.cont [14/16] 0.0, 128
    %6131 = vxpose.xlu0.b32.cont [15/16] 0.0, 128
    %6132 = vxpose.xlu0.b32.end [16/16] 0.0, 128
    %v6133 = vpop.trf.xlu0
    %v6134 = vpop.trf.xlu0
    %v6135 = vpop.trf.xlu0
    %v6136 = vpop.trf.xlu0
    %v6137 = vpop.trf.xlu0
    %v6138 = vpop.trf.xlu0
    %v6139 = vpop.trf.xlu0
    %v6140 = vpop.trf.xlu0
    %v6141 = vpop.trf.xlu0
    %v6142 = vpop.trf.xlu0
    %v6143 = vpop.trf.xlu0
    %v6144 = vpop.trf.xlu0
    %v6145 = vpop.trf.xlu0
    %v6146 = vpop.trf.xlu0
    %v6147 = vpop.trf.xlu0
    %v6148 = vpop.trf.xlu0
    %6149 = vxpose.xlu0.b32.start [1/16] %v2174, 128
    %6150 = vxpose.xlu0.b32.cont [2/16] 0.0, 128
    %6151 = vxpose.xlu0.b32.cont [3/16] 0.0, 128
    %6152 = vxpose.xlu0.b32.cont [4/16] 0.0, 128
    %6153 = vxpose.xlu0.b32.cont [5/16] 0.0, 128
    %6154 = vxpose.xlu0.b32.cont [6/16] 0.0, 128
    %6155 = vxpose.xlu0.b32.cont [7/16] 0.0, 128
    %6156 = vxpose.xlu0.b32.cont [8/16] 0.0, 128
    %6157 = vxpose.xlu0.b32.cont [9/16] 0.0, 128
    %6158 = vxpose.xlu0.b32.cont [10/16] 0.0, 128
    %6159 = vxpose.xlu0.b32.cont [11/16] 0.0, 128
    %6160 = vxpose.xlu0.b32.cont [12/16] 0.0, 128
    %6161 = vxpose.xlu0.b32.cont [13/16] 0.0, 128
    %6162 = vxpose.xlu0.b32.cont [14/16] 0.0, 128
    %6163 = vxpose.xlu0.b32.cont [15/16] 0.0, 128
    %6164 = vxpose.xlu0.b32.end [16/16] 0.0, 128
    %v6165 = vpop.trf.xlu0
    %v6166 = vpop.trf.xlu0
    %v6167 = vpop.trf.xlu0
    %v6168 = vpop.trf.xlu0
    %v6169 = vpop.trf.xlu0
    %v6170 = vpop.trf.xlu0
    %v6171 = vpop.trf.xlu0
    %v6172 = vpop.trf.xlu0
    %v6173 = vpop.trf.xlu0
    %v6174 = vpop.trf.xlu0
    %v6175 = vpop.trf.xlu0
    %v6176 = vpop.trf.xlu0
    %v6177 = vpop.trf.xlu0
    %v6178 = vpop.trf.xlu0
    %v6179 = vpop.trf.xlu0
    %v6180 = vpop.trf.xlu0
    %6181 = vxpose.xlu0.b32.start [1/16] %v2176, 128
    %6182 = vxpose.xlu0.b32.cont [2/16] 0.0, 128
    %6183 = vxpose.xlu0.b32.cont [3/16] 0.0, 128
    %6184 = vxpose.xlu0.b32.cont [4/16] 0.0, 128
    %6185 = vxpose.xlu0.b32.cont [5/16] 0.0, 128
    %6186 = vxpose.xlu0.b32.cont [6/16] 0.0, 128
    %6187 = vxpose.xlu0.b32.cont [7/16] 0.0, 128
    %6188 = vxpose.xlu0.b32.cont [8/16] 0.0, 128
    %6189 = vxpose.xlu0.b32.cont [9/16] 0.0, 128
    %6190 = vxpose.xlu0.b32.cont [10/16] 0.0, 128
    %6191 = vxpose.xlu0.b32.cont [11/16] 0.0, 128
    %6192 = vxpose.xlu0.b32.cont [12/16] 0.0, 128
    %6193 = vxpose.xlu0.b32.cont [13/16] 0.0, 128
    %6194 = vxpose.xlu0.b32.cont [14/16] 0.0, 128
    %6195 = vxpose.xlu0.b32.cont [15/16] 0.0, 128
    %6196 = vxpose.xlu0.b32.end [16/16] 0.0, 128
    %v6197 = vpop.trf.xlu0
    %v6198 = vpop.trf.xlu0
    %v6199 = vpop.trf.xlu0
    %v6200 = vpop.trf.xlu0
    %v6201 = vpop.trf.xlu0
    %v6202 = vpop.trf.xlu0
    %v6203 = vpop.trf.xlu0
    %v6204 = vpop.trf.xlu0
    %v6205 = vpop.trf.xlu0
    %v6206 = vpop.trf.xlu0
    %v6207 = vpop.trf.xlu0
    %v6208 = vpop.trf.xlu0
    %v6209 = vpop.trf.xlu0
    %v6210 = vpop.trf.xlu0
    %v6211 = vpop.trf.xlu0
    %v6212 = vpop.trf.xlu0
    %6213 = vxpose.xlu0.b32.start [1/16] %v2178, 128
    %6214 = vxpose.xlu0.b32.cont [2/16] 0.0, 128
    %6215 = vxpose.xlu0.b32.cont [3/16] 0.0, 128
    %6216 = vxpose.xlu0.b32.cont [4/16] 0.0, 128
    %6217 = vxpose.xlu0.b32.cont [5/16] 0.0, 128
    %6218 = vxpose.xlu0.b32.cont [6/16] 0.0, 128
    %6219 = vxpose.xlu0.b32.cont [7/16] 0.0, 128
    %6220 = vxpose.xlu0.b32.cont [8/16] 0.0, 128
    %6221 = vxpose.xlu0.b32.cont [9/16] 0.0, 128
    %6222 = vxpose.xlu0.b32.cont [10/16] 0.0, 128
    %6223 = vxpose.xlu0.b32.cont [11/16] 0.0, 128
    %6224 = vxpose.xlu0.b32.cont [12/16] 0.0, 128
    %6225 = vxpose.xlu0.b32.cont [13/16] 0.0, 128
    %6226 = vxpose.xlu0.b32.cont [14/16] 0.0, 128
    %6227 = vxpose.xlu0.b32.cont [15/16] 0.0, 128
    %6228 = vxpose.xlu0.b32.end [16/16] 0.0, 128
    %v6229 = vpop.trf.xlu0
    %v6230 = vpop.trf.xlu0
    %v6231 = vpop.trf.xlu0
    %v6232 = vpop.trf.xlu0
    %v6233 = vpop.trf.xlu0
    %v6234 = vpop.trf.xlu0
    %v6235 = vpop.trf.xlu0
    %v6236 = vpop.trf.xlu0
    %v6237 = vpop.trf.xlu0
    %v6238 = vpop.trf.xlu0
    %v6239 = vpop.trf.xlu0
    %v6240 = vpop.trf.xlu0
    %v6241 = vpop.trf.xlu0
    %v6242 = vpop.trf.xlu0
    %v6243 = vpop.trf.xlu0
    %v6244 = vpop.trf.xlu0
    %6245 = vxpose.xlu0.b32.start [1/16] %v2180, 128
    %6246 = vxpose.xlu0.b32.cont [2/16] 0.0, 128
    %6247 = vxpose.xlu0.b32.cont [3/16] 0.0, 128
    %6248 = vxpose.xlu0.b32.cont [4/16] 0.0, 128
    %6249 = vxpose.xlu0.b32.cont [5/16] 0.0, 128
    %6250 = vxpose.xlu0.b32.cont [6/16] 0.0, 128
    %6251 = vxpose.xlu0.b32.cont [7/16] 0.0, 128
    %6252 = vxpose.xlu0.b32.cont [8/16] 0.0, 128
    %6253 = vxpose.xlu0.b32.cont [9/16] 0.0, 128
    %6254 = vxpose.xlu0.b32.cont [10/16] 0.0, 128
    %6255 = vxpose.xlu0.b32.cont [11/16] 0.0, 128
    %6256 = vxpose.xlu0.b32.cont [12/16] 0.0, 128
    %6257 = vxpose.xlu0.b32.cont [13/16] 0.0, 128
    %6258 = vxpose.xlu0.b32.cont [14/16] 0.0, 128
    %6259 = vxpose.xlu0.b32.cont [15/16] 0.0, 128
    %6260 = vxpose.xlu0.b32.end [16/16] 0.0, 128
    %v6261 = vpop.trf.xlu0
    %v6262 = vpop.trf.xlu0
    %v6263 = vpop.trf.xlu0
    %v6264 = vpop.trf.xlu0
    %v6265 = vpop.trf.xlu0
    %v6266 = vpop.trf.xlu0
    %v6267 = vpop.trf.xlu0
    %v6268 = vpop.trf.xlu0
    %v6269 = vpop.trf.xlu0
    %v6270 = vpop.trf.xlu0
    %v6271 = vpop.trf.xlu0
    %v6272 = vpop.trf.xlu0
    %v6273 = vpop.trf.xlu0
    %v6274 = vpop.trf.xlu0
    %v6275 = vpop.trf.xlu0
    %v6276 = vpop.trf.xlu0
    %v6277 = vrot.slane %v2261, 4
    %v6278 = vsel %vm389, %v6277, %v2197
    %v6280 = vunpack.c.l.s4 1983009808
    %v6281 = vunpack.c.0.s8 %v6280
    %v6282 = vperm.slane %v6278, %v6281
    %v6283 = vrot.slane %v2293, 4
    %v6284 = vsel %vm389, %v6283, %v2229
    %v6286 = vunpack.c.l.s4 1983009808
    %v6287 = vunpack.c.0.s8 %v6286
    %v6288 = vperm.slane %v6284, %v6287
    %v6289 = vrot.slane %v2389, 4
    %v6290 = vsel %vm389, %v6289, %v2325
    %v6292 = vunpack.c.l.s4 1983009808
    %v6293 = vunpack.c.0.s8 %v6292
    %v6294 = vperm.slane %v6290, %v6293
    %v6295 = vrot.slane %v2421, 4
    %v6296 = vsel %vm389, %v6295, %v2357
    %v6298 = vunpack.c.l.s4 1983009808
    %v6299 = vunpack.c.0.s8 %v6298
    %v6300 = vperm.slane %v6296, %v6299
    %v6301 = vrot.slane %v6288, 4
    %v6302 = vsel %vm389, %v6301, %v6282
    %v6303 = vrot.slane %v6282, 4
    %v6304 = vsel %vm389, %v6288, %v6303
    %v6306 = vunpack.c.l.s4 1934713408
    %v6307 = vunpack.c.0.s8 %v6306
    %v6308 = vperm.slane %v6302, %v6307
    %v6310 = vunpack.c.l.s4 1934713408
    %v6311 = vunpack.c.0.s8 %v6310
    %v6312 = vperm.slane %v6304, %v6311
    %v6313 = vrot.slane %v6300, 4
    %v6314 = vsel %vm389, %v6313, %v6294
    %v6315 = vrot.slane %v6294, 4
    %v6316 = vsel %vm389, %v6300, %v6315
    %v6318 = vunpack.c.l.s4 1934713408
    %v6319 = vunpack.c.0.s8 %v6318
    %v6320 = vperm.slane %v6314, %v6319
    %v6322 = vunpack.c.l.s4 1934713408
    %v6323 = vunpack.c.0.s8 %v6322
    %v6324 = vperm.slane %v6316, %v6323
    %v6325 = vrot.slane %v6320, 4
    %v6326 = vsel %vm389, %v6325, %v6308
    %v6327 = vrot.slane %v6308, 4
    %v6328 = vsel %vm389, %v6320, %v6327
    %v6329 = vrot.slane %v6324, 4
    %v6330 = vsel %vm389, %v6329, %v6312
    %v6331 = vrot.slane %v6312, 4
    %v6332 = vsel %vm389, %v6324, %v6331
    %v6333 = vrot.slane %v2517, 4
    %v6334 = vsel %vm389, %v6333, %v2453
    %v6336 = vunpack.c.l.s4 1983009808
    %v6337 = vunpack.c.0.s8 %v6336
    %v6338 = vperm.slane %v6334, %v6337
    %v6339 = vrot.slane %v2549, 4
    %v6340 = vsel %vm389, %v6339, %v2485
    %v6342 = vunpack.c.l.s4 1983009808
    %v6343 = vunpack.c.0.s8 %v6342
    %v6344 = vperm.slane %v6340, %v6343
    %v6345 = vrot.slane %v2645, 4
    %v6346 = vsel %vm389, %v6345, %v2581
    %v6348 = vunpack.c.l.s4 1983009808
    %v6349 = vunpack.c.0.s8 %v6348
    %v6350 = vperm.slane %v6346, %v6349
    %v6351 = vrot.slane %v2677, 4
    %v6352 = vsel %vm389, %v6351, %v2613
    %v6354 = vunpack.c.l.s4 1983009808
    %v6355 = vunpack.c.0.s8 %v6354
    %v6356 = vperm.slane %v6352, %v6355
    %v6357 = vrot.slane %v6344, 4
    %v6358 = vsel %vm389, %v6357, %v6338
    %v6359 = vrot.slane %v6338, 4
    %v6360 = vsel %vm389, %v6344, %v6359
    %v6362 = vunpack.c.l.s4 1934713408
    %v6363 = vunpack.c.0.s8 %v6362
    %v6364 = vperm.slane %v6358, %v6363
    %v6366 = vunpack.c.l.s4 1934713408
    %v6367 = vunpack.c.0.s8 %v6366
    %v6368 = vperm.slane %v6360, %v6367
    %v6369 = vrot.slane %v6356, 4
    %v6370 = vsel %vm389, %v6369, %v6350
    %v6371 = vrot.slane %v6350, 4
    %v6372 = vsel %vm389, %v6356, %v6371
    %v6374 = vunpack.c.l.s4 1934713408
    %v6375 = vunpack.c.0.s8 %v6374
    %v6376 = vperm.slane %v6370, %v6375
    %v6378 = vunpack.c.l.s4 1934713408
    %v6379 = vunpack.c.0.s8 %v6378
    %v6380 = vperm.slane %v6372, %v6379
    %v6381 = vrot.slane %v6376, 4
    %v6382 = vsel %vm389, %v6381, %v6364
    %v6383 = vrot.slane %v6364, 4
    %v6384 = vsel %vm389, %v6376, %v6383
    %v6385 = vrot.slane %v6380, 4
    %v6386 = vsel %vm389, %v6385, %v6368
    %v6387 = vrot.slane %v6368, 4
    %v6388 = vsel %vm389, %v6380, %v6387
    %v6389 = vrot.slane %v2773, 4
    %v6390 = vsel %vm389, %v6389, %v2709
    %v6392 = vunpack.c.l.s4 1983009808
    %v6393 = vunpack.c.0.s8 %v6392
    %v6394 = vperm.slane %v6390, %v6393
    %v6395 = vrot.slane %v2805, 4
    %v6396 = vsel %vm389, %v6395, %v2741
    %v6398 = vunpack.c.l.s4 1983009808
    %v6399 = vunpack.c.0.s8 %v6398
    %v6400 = vperm.slane %v6396, %v6399
    %v6401 = vrot.slane %v2901, 4
    %v6402 = vsel %vm389, %v6401, %v2837
    %v6404 = vunpack.c.l.s4 1983009808
    %v6405 = vunpack.c.0.s8 %v6404
    %v6406 = vperm.slane %v6402, %v6405
    %v6407 = vrot.slane %v2933, 4
    %v6408 = vsel %vm389, %v6407, %v2869
    %v6410 = vunpack.c.l.s4 1983009808
    %v6411 = vunpack.c.0.s8 %v6410
    %v6412 = vperm.slane %v6408, %v6411
    %v6413 = vrot.slane %v6400, 4
    %v6414 = vsel %vm389, %v6413, %v6394
    %v6415 = vrot.slane %v6394, 4
    %v6416 = vsel %vm389, %v6400, %v6415
    %v6418 = vunpack.c.l.s4 1934713408
    %v6419 = vunpack.c.0.s8 %v6418
    %v6420 = vperm.slane %v6414, %v6419
    %v6422 = vunpack.c.l.s4 1934713408
    %v6423 = vunpack.c.0.s8 %v6422
    %v6424 = vperm.slane %v6416, %v6423
    %v6425 = vrot.slane %v6412, 4
    %v6426 = vsel %vm389, %v6425, %v6406
    %v6427 = vrot.slane %v6406, 4
    %v6428 = vsel %vm389, %v6412, %v6427
    %v6430 = vunpack.c.l.s4 1934713408
    %v6431 = vunpack.c.0.s8 %v6430
    %v6432 = vperm.slane %v6426, %v6431
    %v6434 = vunpack.c.l.s4 1934713408
    %v6435 = vunpack.c.0.s8 %v6434
    %v6436 = vperm.slane %v6428, %v6435
    %v6437 = vrot.slane %v6432, 4
    %v6438 = vsel %vm389, %v6437, %v6420
    %v6439 = vrot.slane %v6420, 4
    %v6440 = vsel %vm389, %v6432, %v6439
    %v6441 = vrot.slane %v6436, 4
    %v6442 = vsel %vm389, %v6441, %v6424
    %v6443 = vrot.slane %v6424, 4
    %v6444 = vsel %vm389, %v6436, %v6443
    %v6445 = vrot.slane %v3029, 4
    %v6446 = vsel %vm389, %v6445, %v2965
    %v6448 = vunpack.c.l.s4 1983009808
    %v6449 = vunpack.c.0.s8 %v6448
    %v6450 = vperm.slane %v6446, %v6449
    %v6451 = vrot.slane %v3061, 4
    %v6452 = vsel %vm389, %v6451, %v2997
    %v6454 = vunpack.c.l.s4 1983009808
    %v6455 = vunpack.c.0.s8 %v6454
    %v6456 = vperm.slane %v6452, %v6455
    %v6457 = vrot.slane %v3157, 4
    %v6458 = vsel %vm389, %v6457, %v3093
    %v6460 = vunpack.c.l.s4 1983009808
    %v6461 = vunpack.c.0.s8 %v6460
    %v6462 = vperm.slane %v6458, %v6461
    %v6463 = vrot.slane %v3189, 4
    %v6464 = vsel %vm389, %v6463, %v3125
    %v6466 = vunpack.c.l.s4 1983009808
    %v6467 = vunpack.c.0.s8 %v6466
    %v6468 = vperm.slane %v6464, %v6467
    %v6469 = vrot.slane %v6456, 4
    %v6470 = vsel %vm389, %v6469, %v6450
    %v6471 = vrot.slane %v6450, 4
    %v6472 = vsel %vm389, %v6456, %v6471
    %v6474 = vunpack.c.l.s4 1934713408
    %v6475 = vunpack.c.0.s8 %v6474
    %v6476 = vperm.slane %v6470, %v6475
    %v6478 = vunpack.c.l.s4 1934713408
    %v6479 = vunpack.c.0.s8 %v6478
    %v6480 = vperm.slane %v6472, %v6479
    %v6481 = vrot.slane %v6468, 4
    %v6482 = vsel %vm389, %v6481, %v6462
    %v6483 = vrot.slane %v6462, 4
    %v6484 = vsel %vm389, %v6468, %v6483
    %v6486 = vunpack.c.l.s4 1934713408
    %v6487 = vunpack.c.0.s8 %v6486
    %v6488 = vperm.slane %v6482, %v6487
    %v6490 = vunpack.c.l.s4 1934713408
    %v6491 = vunpack.c.0.s8 %v6490
    %v6492 = vperm.slane %v6484, %v6491
    %v6493 = vrot.slane %v6488, 4
    %v6494 = vsel %vm389, %v6493, %v6476
    %v6495 = vrot.slane %v6476, 4
    %v6496 = vsel %vm389, %v6488, %v6495
    %v6497 = vrot.slane %v6492, 4
    %v6498 = vsel %vm389, %v6497, %v6480
    %v6499 = vrot.slane %v6480, 4
    %v6500 = vsel %vm389, %v6492, %v6499
    %v6501 = vrot.slane %v3285, 4
    %v6502 = vsel %vm389, %v6501, %v3221
    %v6504 = vunpack.c.l.s4 1983009808
    %v6505 = vunpack.c.0.s8 %v6504
    %v6506 = vperm.slane %v6502, %v6505
    %v6507 = vrot.slane %v3317, 4
    %v6508 = vsel %vm389, %v6507, %v3253
    %v6510 = vunpack.c.l.s4 1983009808
    %v6511 = vunpack.c.0.s8 %v6510
    %v6512 = vperm.slane %v6508, %v6511
    %v6513 = vrot.slane %v3413, 4
    %v6514 = vsel %vm389, %v6513, %v3349
    %v6516 = vunpack.c.l.s4 1983009808
    %v6517 = vunpack.c.0.s8 %v6516
    %v6518 = vperm.slane %v6514, %v6517
    %v6519 = vrot.slane %v3445, 4
    %v6520 = vsel %vm389, %v6519, %v3381
    %v6522 = vunpack.c.l.s4 1983009808
    %v6523 = vunpack.c.0.s8 %v6522
    %v6524 = vperm.slane %v6520, %v6523
    %v6525 = vrot.slane %v6512, 4
    %v6526 = vsel %vm389, %v6525, %v6506
    %v6527 = vrot.slane %v6506, 4
    %v6528 = vsel %vm389, %v6512, %v6527
    %v6530 = vunpack.c.l.s4 1934713408
    %v6531 = vunpack.c.0.s8 %v6530
    %v6532 = vperm.slane %v6526, %v6531
    %v6534 = vunpack.c.l.s4 1934713408
    %v6535 = vunpack.c.0.s8 %v6534
    %v6536 = vperm.slane %v6528, %v6535
    %v6537 = vrot.slane %v6524, 4
    %v6538 = vsel %vm389, %v6537, %v6518
    %v6539 = vrot.slane %v6518, 4
    %v6540 = vsel %vm389, %v6524, %v6539
    %v6542 = vunpack.c.l.s4 1934713408
    %v6543 = vunpack.c.0.s8 %v6542
    %v6544 = vperm.slane %v6538, %v6543
    %v6546 = vunpack.c.l.s4 1934713408
    %v6547 = vunpack.c.0.s8 %v6546
    %v6548 = vperm.slane %v6540, %v6547
    %v6549 = vrot.slane %v6544, 4
    %v6550 = vsel %vm389, %v6549, %v6532
    %v6551 = vrot.slane %v6532, 4
    %v6552 = vsel %vm389, %v6544, %v6551
    %v6553 = vrot.slane %v6548, 4
    %v6554 = vsel %vm389, %v6553, %v6536
    %v6555 = vrot.slane %v6536, 4
    %v6556 = vsel %vm389, %v6548, %v6555
    %v6557 = vrot.slane %v3541, 4
    %v6558 = vsel %vm389, %v6557, %v3477
    %v6560 = vunpack.c.l.s4 1983009808
    %v6561 = vunpack.c.0.s8 %v6560
    %v6562 = vperm.slane %v6558, %v6561
    %v6563 = vrot.slane %v3573, 4
    %v6564 = vsel %vm389, %v6563, %v3509
    %v6566 = vunpack.c.l.s4 1983009808
    %v6567 = vunpack.c.0.s8 %v6566
    %v6568 = vperm.slane %v6564, %v6567
    %v6569 = vrot.slane %v3669, 4
    %v6570 = vsel %vm389, %v6569, %v3605
    %v6572 = vunpack.c.l.s4 1983009808
    %v6573 = vunpack.c.0.s8 %v6572
    %v6574 = vperm.slane %v6570, %v6573
    %v6575 = vrot.slane %v3701, 4
    %v6576 = vsel %vm389, %v6575, %v3637
    %v6578 = vunpack.c.l.s4 1983009808
    %v6579 = vunpack.c.0.s8 %v6578
    %v6580 = vperm.slane %v6576, %v6579
    %v6581 = vrot.slane %v6568, 4
    %v6582 = vsel %vm389, %v6581, %v6562
    %v6583 = vrot.slane %v6562, 4
    %v6584 = vsel %vm389, %v6568, %v6583
    %v6586 = vunpack.c.l.s4 1934713408
    %v6587 = vunpack.c.0.s8 %v6586
    %v6588 = vperm.slane %v6582, %v6587
    %v6590 = vunpack.c.l.s4 1934713408
    %v6591 = vunpack.c.0.s8 %v6590
    %v6592 = vperm.slane %v6584, %v6591
    %v6593 = vrot.slane %v6580, 4
    %v6594 = vsel %vm389, %v6593, %v6574
    %v6595 = vrot.slane %v6574, 4
    %v6596 = vsel %vm389, %v6580, %v6595
    %v6598 = vunpack.c.l.s4 1934713408
    %v6599 = vunpack.c.0.s8 %v6598
    %v6600 = vperm.slane %v6594, %v6599
    %v6602 = vunpack.c.l.s4 1934713408
    %v6603 = vunpack.c.0.s8 %v6602
    %v6604 = vperm.slane %v6596, %v6603
    %v6605 = vrot.slane %v6600, 4
    %v6606 = vsel %vm389, %v6605, %v6588
    %v6607 = vrot.slane %v6588, 4
    %v6608 = vsel %vm389, %v6600, %v6607
    %v6609 = vrot.slane %v6604, 4
    %v6610 = vsel %vm389, %v6609, %v6592
    %v6611 = vrot.slane %v6592, 4
    %v6612 = vsel %vm389, %v6604, %v6611
    %v6613 = vrot.slane %v3797, 4
    %v6614 = vsel %vm389, %v6613, %v3733
    %v6616 = vunpack.c.l.s4 1983009808
    %v6617 = vunpack.c.0.s8 %v6616
    %v6618 = vperm.slane %v6614, %v6617
    %v6619 = vrot.slane %v3829, 4
    %v6620 = vsel %vm389, %v6619, %v3765
    %v6622 = vunpack.c.l.s4 1983009808
    %v6623 = vunpack.c.0.s8 %v6622
    %v6624 = vperm.slane %v6620, %v6623
    %v6625 = vrot.slane %v3925, 4
    %v6626 = vsel %vm389, %v6625, %v3861
    %v6628 = vunpack.c.l.s4 1983009808
    %v6629 = vunpack.c.0.s8 %v6628
    %v6630 = vperm.slane %v6626, %v6629
    %v6631 = vrot.slane %v3957, 4
    %v6632 = vsel %vm389, %v6631, %v3893
    %v6634 = vunpack.c.l.s4 1983009808
    %v6635 = vunpack.c.0.s8 %v6634
    %v6636 = vperm.slane %v6632, %v6635
    %v6637 = vrot.slane %v6624, 4
    %v6638 = vsel %vm389, %v6637, %v6618
    %v6639 = vrot.slane %v6618, 4
    %v6640 = vsel %vm389, %v6624, %v6639
    %v6642 = vunpack.c.l.s4 1934713408
    %v6643 = vunpack.c.0.s8 %v6642
    %v6644 = vperm.slane %v6638, %v6643
    %v6646 = vunpack.c.l.s4 1934713408
    %v6647 = vunpack.c.0.s8 %v6646
    %v6648 = vperm.slane %v6640, %v6647
    %v6649 = vrot.slane %v6636, 4
    %v6650 = vsel %vm389, %v6649, %v6630
    %v6651 = vrot.slane %v6630, 4
    %v6652 = vsel %vm389, %v6636, %v6651
    %v6654 = vunpack.c.l.s4 1934713408
    %v6655 = vunpack.c.0.s8 %v6654
    %v6656 = vperm.slane %v6650, %v6655
    %v6658 = vunpack.c.l.s4 1934713408
    %v6659 = vunpack.c.0.s8 %v6658
    %v6660 = vperm.slane %v6652, %v6659
    %v6661 = vrot.slane %v6656, 4
    %v6662 = vsel %vm389, %v6661, %v6644
    %v6663 = vrot.slane %v6644, 4
    %v6664 = vsel %vm389, %v6656, %v6663
    %v6665 = vrot.slane %v6660, 4
    %v6666 = vsel %vm389, %v6665, %v6648
    %v6667 = vrot.slane %v6648, 4
    %v6668 = vsel %vm389, %v6660, %v6667
    %v6669 = vrot.slane %v4053, 4
    %v6670 = vsel %vm389, %v6669, %v3989
    %v6672 = vunpack.c.l.s4 1983009808
    %v6673 = vunpack.c.0.s8 %v6672
    %v6674 = vperm.slane %v6670, %v6673
    %v6675 = vrot.slane %v4085, 4
    %v6676 = vsel %vm389, %v6675, %v4021
    %v6678 = vunpack.c.l.s4 1983009808
    %v6679 = vunpack.c.0.s8 %v6678
    %v6680 = vperm.slane %v6676, %v6679
    %v6681 = vrot.slane %v4181, 4
    %v6682 = vsel %vm389, %v6681, %v4117
    %v6684 = vunpack.c.l.s4 1983009808
    %v6685 = vunpack.c.0.s8 %v6684
    %v6686 = vperm.slane %v6682, %v6685
    %v6687 = vrot.slane %v4213, 4
    %v6688 = vsel %vm389, %v6687, %v4149
    %v6690 = vunpack.c.l.s4 1983009808
    %v6691 = vunpack.c.0.s8 %v6690
    %v6692 = vperm.slane %v6688, %v6691
    %v6693 = vrot.slane %v6680, 4
    %v6694 = vsel %vm389, %v6693, %v6674
    %v6695 = vrot.slane %v6674, 4
    %v6696 = vsel %vm389, %v6680, %v6695
    %v6698 = vunpack.c.l.s4 1934713408
    %v6699 = vunpack.c.0.s8 %v6698
    %v6700 = vperm.slane %v6694, %v6699
    %v6702 = vunpack.c.l.s4 1934713408
    %v6703 = vunpack.c.0.s8 %v6702
    %v6704 = vperm.slane %v6696, %v6703
    %v6705 = vrot.slane %v6692, 4
    %v6706 = vsel %vm389, %v6705, %v6686
    %v6707 = vrot.slane %v6686, 4
    %v6708 = vsel %vm389, %v6692, %v6707
    %v6710 = vunpack.c.l.s4 1934713408
    %v6711 = vunpack.c.0.s8 %v6710
    %v6712 = vperm.slane %v6706, %v6711
    %v6714 = vunpack.c.l.s4 1934713408
    %v6715 = vunpack.c.0.s8 %v6714
    %v6716 = vperm.slane %v6708, %v6715
    %v6717 = vrot.slane %v6712, 4
    %v6718 = vsel %vm389, %v6717, %v6700
    %v6719 = vrot.slane %v6700, 4
    %v6720 = vsel %vm389, %v6712, %v6719
    %v6721 = vrot.slane %v6716, 4
    %v6722 = vsel %vm389, %v6721, %v6704
    %v6723 = vrot.slane %v6704, 4
    %v6724 = vsel %vm389, %v6716, %v6723
    %v6725 = vrot.slane %v4309, 4
    %v6726 = vsel %vm389, %v6725, %v4245
    %v6728 = vunpack.c.l.s4 1983009808
    %v6729 = vunpack.c.0.s8 %v6728
    %v6730 = vperm.slane %v6726, %v6729
    %v6731 = vrot.slane %v4341, 4
    %v6732 = vsel %vm389, %v6731, %v4277
    %v6734 = vunpack.c.l.s4 1983009808
    %v6735 = vunpack.c.0.s8 %v6734
    %v6736 = vperm.slane %v6732, %v6735
    %v6737 = vrot.slane %v4437, 4
    %v6738 = vsel %vm389, %v6737, %v4373
    %v6740 = vunpack.c.l.s4 1983009808
    %v6741 = vunpack.c.0.s8 %v6740
    %v6742 = vperm.slane %v6738, %v6741
    %v6743 = vrot.slane %v4469, 4
    %v6744 = vsel %vm389, %v6743, %v4405
    %v6746 = vunpack.c.l.s4 1983009808
    %v6747 = vunpack.c.0.s8 %v6746
    %v6748 = vperm.slane %v6744, %v6747
    %v6749 = vrot.slane %v6736, 4
    %v6750 = vsel %vm389, %v6749, %v6730
    %v6751 = vrot.slane %v6730, 4
    %v6752 = vsel %vm389, %v6736, %v6751
    %v6754 = vunpack.c.l.s4 1934713408
    %v6755 = vunpack.c.0.s8 %v6754
    %v6756 = vperm.slane %v6750, %v6755
    %v6758 = vunpack.c.l.s4 1934713408
    %v6759 = vunpack.c.0.s8 %v6758
    %v6760 = vperm.slane %v6752, %v6759
    %v6761 = vrot.slane %v6748, 4
    %v6762 = vsel %vm389, %v6761, %v6742
    %v6763 = vrot.slane %v6742, 4
    %v6764 = vsel %vm389, %v6748, %v6763
    %v6766 = vunpack.c.l.s4 1934713408
    %v6767 = vunpack.c.0.s8 %v6766
    %v6768 = vperm.slane %v6762, %v6767
    %v6770 = vunpack.c.l.s4 1934713408
    %v6771 = vunpack.c.0.s8 %v6770
    %v6772 = vperm.slane %v6764, %v6771
    %v6773 = vrot.slane %v6768, 4
    %v6774 = vsel %vm389, %v6773, %v6756
    %v6775 = vrot.slane %v6756, 4
    %v6776 = vsel %vm389, %v6768, %v6775
    %v6777 = vrot.slane %v6772, 4
    %v6778 = vsel %vm389, %v6777, %v6760
    %v6779 = vrot.slane %v6760, 4
    %v6780 = vsel %vm389, %v6772, %v6779
    %v6781 = vrot.slane %v4565, 4
    %v6782 = vsel %vm389, %v6781, %v4501
    %v6784 = vunpack.c.l.s4 1983009808
    %v6785 = vunpack.c.0.s8 %v6784
    %v6786 = vperm.slane %v6782, %v6785
    %v6787 = vrot.slane %v4597, 4
    %v6788 = vsel %vm389, %v6787, %v4533
    %v6790 = vunpack.c.l.s4 1983009808
    %v6791 = vunpack.c.0.s8 %v6790
    %v6792 = vperm.slane %v6788, %v6791
    %v6793 = vrot.slane %v4693, 4
    %v6794 = vsel %vm389, %v6793, %v4629
    %v6796 = vunpack.c.l.s4 1983009808
    %v6797 = vunpack.c.0.s8 %v6796
    %v6798 = vperm.slane %v6794, %v6797
    %v6799 = vrot.slane %v4725, 4
    %v6800 = vsel %vm389, %v6799, %v4661
    %v6802 = vunpack.c.l.s4 1983009808
    %v6803 = vunpack.c.0.s8 %v6802
    %v6804 = vperm.slane %v6800, %v6803
    %v6805 = vrot.slane %v6792, 4
    %v6806 = vsel %vm389, %v6805, %v6786
    %v6807 = vrot.slane %v6786, 4
    %v6808 = vsel %vm389, %v6792, %v6807
    %v6810 = vunpack.c.l.s4 1934713408
    %v6811 = vunpack.c.0.s8 %v6810
    %v6812 = vperm.slane %v6806, %v6811
    %v6814 = vunpack.c.l.s4 1934713408
    %v6815 = vunpack.c.0.s8 %v6814
    %v6816 = vperm.slane %v6808, %v6815
    %v6817 = vrot.slane %v6804, 4
    %v6818 = vsel %vm389, %v6817, %v6798
    %v6819 = vrot.slane %v6798, 4
    %v6820 = vsel %vm389, %v6804, %v6819
    %v6822 = vunpack.c.l.s4 1934713408
    %v6823 = vunpack.c.0.s8 %v6822
    %v6824 = vperm.slane %v6818, %v6823
    %v6826 = vunpack.c.l.s4 1934713408
    %v6827 = vunpack.c.0.s8 %v6826
    %v6828 = vperm.slane %v6820, %v6827
    %v6829 = vrot.slane %v6824, 4
    %v6830 = vsel %vm389, %v6829, %v6812
    %v6831 = vrot.slane %v6812, 4
    %v6832 = vsel %vm389, %v6824, %v6831
    %v6833 = vrot.slane %v6828, 4
    %v6834 = vsel %vm389, %v6833, %v6816
    %v6835 = vrot.slane %v6816, 4
    %v6836 = vsel %vm389, %v6828, %v6835
    %v6837 = vrot.slane %v4821, 4
    %v6838 = vsel %vm389, %v6837, %v4757
    %v6840 = vunpack.c.l.s4 1983009808
    %v6841 = vunpack.c.0.s8 %v6840
    %v6842 = vperm.slane %v6838, %v6841
    %v6843 = vrot.slane %v4853, 4
    %v6844 = vsel %vm389, %v6843, %v4789
    %v6846 = vunpack.c.l.s4 1983009808
    %v6847 = vunpack.c.0.s8 %v6846
    %v6848 = vperm.slane %v6844, %v6847
    %v6849 = vrot.slane %v4949, 4
    %v6850 = vsel %vm389, %v6849, %v4885
    %v6852 = vunpack.c.l.s4 1983009808
    %v6853 = vunpack.c.0.s8 %v6852
    %v6854 = vperm.slane %v6850, %v6853
    %v6855 = vrot.slane %v4981, 4
    %v6856 = vsel %vm389, %v6855, %v4917
    %v6858 = vunpack.c.l.s4 1983009808
    %v6859 = vunpack.c.0.s8 %v6858
    %v6860 = vperm.slane %v6856, %v6859
    %v6861 = vrot.slane %v6848, 4
    %v6862 = vsel %vm389, %v6861, %v6842
    %v6863 = vrot.slane %v6842, 4
    %v6864 = vsel %vm389, %v6848, %v6863
    %v6866 = vunpack.c.l.s4 1934713408
    %v6867 = vunpack.c.0.s8 %v6866
    %v6868 = vperm.slane %v6862, %v6867
    %v6870 = vunpack.c.l.s4 1934713408
    %v6871 = vunpack.c.0.s8 %v6870
    %v6872 = vperm.slane %v6864, %v6871
    %v6873 = vrot.slane %v6860, 4
    %v6874 = vsel %vm389, %v6873, %v6854
    %v6875 = vrot.slane %v6854, 4
    %v6876 = vsel %vm389, %v6860, %v6875
    %v6878 = vunpack.c.l.s4 1934713408
    %v6879 = vunpack.c.0.s8 %v6878
    %v6880 = vperm.slane %v6874, %v6879
    %v6882 = vunpack.c.l.s4 1934713408
    %v6883 = vunpack.c.0.s8 %v6882
    %v6884 = vperm.slane %v6876, %v6883
    %v6885 = vrot.slane %v6880, 4
    %v6886 = vsel %vm389, %v6885, %v6868
    %v6887 = vrot.slane %v6868, 4
    %v6888 = vsel %vm389, %v6880, %v6887
    %v6889 = vrot.slane %v6884, 4
    %v6890 = vsel %vm389, %v6889, %v6872
    %v6891 = vrot.slane %v6872, 4
    %v6892 = vsel %vm389, %v6884, %v6891
    %v6893 = vrot.slane %v5077, 4
    %v6894 = vsel %vm389, %v6893, %v5013
    %v6896 = vunpack.c.l.s4 1983009808
    %v6897 = vunpack.c.0.s8 %v6896
    %v6898 = vperm.slane %v6894, %v6897
    %v6899 = vrot.slane %v5109, 4
    %v6900 = vsel %vm389, %v6899, %v5045
    %v6902 = vunpack.c.l.s4 1983009808
    %v6903 = vunpack.c.0.s8 %v6902
    %v6904 = vperm.slane %v6900, %v6903
    %v6905 = vrot.slane %v5205, 4
    %v6906 = vsel %vm389, %v6905, %v5141
    %v6908 = vunpack.c.l.s4 1983009808
    %v6909 = vunpack.c.0.s8 %v6908
    %v6910 = vperm.slane %v6906, %v6909
    %v6911 = vrot.slane %v5237, 4
    %v6912 = vsel %vm389, %v6911, %v5173
    %v6914 = vunpack.c.l.s4 1983009808
    %v6915 = vunpack.c.0.s8 %v6914
    %v6916 = vperm.slane %v6912, %v6915
    %v6917 = vrot.slane %v6904, 4
    %v6918 = vsel %vm389, %v6917, %v6898
    %v6919 = vrot.slane %v6898, 4
    %v6920 = vsel %vm389, %v6904, %v6919
    %v6922 = vunpack.c.l.s4 1934713408
    %v6923 = vunpack.c.0.s8 %v6922
    %v6924 = vperm.slane %v6918, %v6923
    %v6926 = vunpack.c.l.s4 1934713408
    %v6927 = vunpack.c.0.s8 %v6926
    %v6928 = vperm.slane %v6920, %v6927
    %v6929 = vrot.slane %v6916, 4
    %v6930 = vsel %vm389, %v6929, %v6910
    %v6931 = vrot.slane %v6910, 4
    %v6932 = vsel %vm389, %v6916, %v6931
    %v6934 = vunpack.c.l.s4 1934713408
    %v6935 = vunpack.c.0.s8 %v6934
    %v6936 = vperm.slane %v6930, %v6935
    %v6938 = vunpack.c.l.s4 1934713408
    %v6939 = vunpack.c.0.s8 %v6938
    %v6940 = vperm.slane %v6932, %v6939
    %v6941 = vrot.slane %v6936, 4
    %v6942 = vsel %vm389, %v6941, %v6924
    %v6943 = vrot.slane %v6924, 4
    %v6944 = vsel %vm389, %v6936, %v6943
    %v6945 = vrot.slane %v6940, 4
    %v6946 = vsel %vm389, %v6945, %v6928
    %v6947 = vrot.slane %v6928, 4
    %v6948 = vsel %vm389, %v6940, %v6947
    %v6949 = vrot.slane %v5333, 4
    %v6950 = vsel %vm389, %v6949, %v5269
    %v6952 = vunpack.c.l.s4 1983009808
    %v6953 = vunpack.c.0.s8 %v6952
    %v6954 = vperm.slane %v6950, %v6953
    %v6955 = vrot.slane %v5365, 4
    %v6956 = vsel %vm389, %v6955, %v5301
    %v6958 = vunpack.c.l.s4 1983009808
    %v6959 = vunpack.c.0.s8 %v6958
    %v6960 = vperm.slane %v6956, %v6959
    %v6961 = vrot.slane %v5461, 4
    %v6962 = vsel %vm389, %v6961, %v5397
    %v6964 = vunpack.c.l.s4 1983009808
    %v6965 = vunpack.c.0.s8 %v6964
    %v6966 = vperm.slane %v6962, %v6965
    %v6967 = vrot.slane %v5493, 4
    %v6968 = vsel %vm389, %v6967, %v5429
    %v6970 = vunpack.c.l.s4 1983009808
    %v6971 = vunpack.c.0.s8 %v6970
    %v6972 = vperm.slane %v6968, %v6971
    %v6973 = vrot.slane %v6960, 4
    %v6974 = vsel %vm389, %v6973, %v6954
    %v6975 = vrot.slane %v6954, 4
    %v6976 = vsel %vm389, %v6960, %v6975
    %v6978 = vunpack.c.l.s4 1934713408
    %v6979 = vunpack.c.0.s8 %v6978
    %v6980 = vperm.slane %v6974, %v6979
    %v6982 = vunpack.c.l.s4 1934713408
    %v6983 = vunpack.c.0.s8 %v6982
    %v6984 = vperm.slane %v6976, %v6983
    %v6985 = vrot.slane %v6972, 4
    %v6986 = vsel %vm389, %v6985, %v6966
    %v6987 = vrot.slane %v6966, 4
    %v6988 = vsel %vm389, %v6972, %v6987
    %v6990 = vunpack.c.l.s4 1934713408
    %v6991 = vunpack.c.0.s8 %v6990
    %v6992 = vperm.slane %v6986, %v6991
    %v6994 = vunpack.c.l.s4 1934713408
    %v6995 = vunpack.c.0.s8 %v6994
    %v6996 = vperm.slane %v6988, %v6995
    %v6997 = vrot.slane %v6992, 4
    %v6998 = vsel %vm389, %v6997, %v6980
    %v6999 = vrot.slane %v6980, 4
    %v7000 = vsel %vm389, %v6992, %v6999
    %v7001 = vrot.slane %v6996, 4
    %v7002 = vsel %vm389, %v7001, %v6984
    %v7003 = vrot.slane %v6984, 4
    %v7004 = vsel %vm389, %v6996, %v7003
    %v7005 = vrot.slane %v5589, 4
    %v7006 = vsel %vm389, %v7005, %v5525
    %v7008 = vunpack.c.l.s4 1983009808
    %v7009 = vunpack.c.0.s8 %v7008
    %v7010 = vperm.slane %v7006, %v7009
    %v7011 = vrot.slane %v5621, 4
    %v7012 = vsel %vm389, %v7011, %v5557
    %v7014 = vunpack.c.l.s4 1983009808
    %v7015 = vunpack.c.0.s8 %v7014
    %v7016 = vperm.slane %v7012, %v7015
    %v7017 = vrot.slane %v5717, 4
    %v7018 = vsel %vm389, %v7017, %v5653
    %v7020 = vunpack.c.l.s4 1983009808
    %v7021 = vunpack.c.0.s8 %v7020
    %v7022 = vperm.slane %v7018, %v7021
    %v7023 = vrot.slane %v5749, 4
    %v7024 = vsel %vm389, %v7023, %v5685
    %v7026 = vunpack.c.l.s4 1983009808
    %v7027 = vunpack.c.0.s8 %v7026
    %v7028 = vperm.slane %v7024, %v7027
    %v7029 = vrot.slane %v7016, 4
    %v7030 = vsel %vm389, %v7029, %v7010
    %v7031 = vrot.slane %v7010, 4
    %v7032 = vsel %vm389, %v7016, %v7031
    %v7034 = vunpack.c.l.s4 1934713408
    %v7035 = vunpack.c.0.s8 %v7034
    %v7036 = vperm.slane %v7030, %v7035
    %v7038 = vunpack.c.l.s4 1934713408
    %v7039 = vunpack.c.0.s8 %v7038
    %v7040 = vperm.slane %v7032, %v7039
    %v7041 = vrot.slane %v7028, 4
    %v7042 = vsel %vm389, %v7041, %v7022
    %v7043 = vrot.slane %v7022, 4
    %v7044 = vsel %vm389, %v7028, %v7043
    %v7046 = vunpack.c.l.s4 1934713408
    %v7047 = vunpack.c.0.s8 %v7046
    %v7048 = vperm.slane %v7042, %v7047
    %v7050 = vunpack.c.l.s4 1934713408
    %v7051 = vunpack.c.0.s8 %v7050
    %v7052 = vperm.slane %v7044, %v7051
    %v7053 = vrot.slane %v7048, 4
    %v7054 = vsel %vm389, %v7053, %v7036
    %v7055 = vrot.slane %v7036, 4
    %v7056 = vsel %vm389, %v7048, %v7055
    %v7057 = vrot.slane %v7052, 4
    %v7058 = vsel %vm389, %v7057, %v7040
    %v7059 = vrot.slane %v7040, 4
    %v7060 = vsel %vm389, %v7052, %v7059
    %v7061 = vrot.slane %v5845, 4
    %v7062 = vsel %vm389, %v7061, %v5781
    %v7064 = vunpack.c.l.s4 1983009808
    %v7065 = vunpack.c.0.s8 %v7064
    %v7066 = vperm.slane %v7062, %v7065
    %v7067 = vrot.slane %v5877, 4
    %v7068 = vsel %vm389, %v7067, %v5813
    %v7070 = vunpack.c.l.s4 1983009808
    %v7071 = vunpack.c.0.s8 %v7070
    %v7072 = vperm.slane %v7068, %v7071
    %v7073 = vrot.slane %v5973, 4
    %v7074 = vsel %vm389, %v7073, %v5909
    %v7076 = vunpack.c.l.s4 1983009808
    %v7077 = vunpack.c.0.s8 %v7076
    %v7078 = vperm.slane %v7074, %v7077
    %v7079 = vrot.slane %v6005, 4
    %v7080 = vsel %vm389, %v7079, %v5941
    %v7082 = vunpack.c.l.s4 1983009808
    %v7083 = vunpack.c.0.s8 %v7082
    %v7084 = vperm.slane %v7080, %v7083
    %v7085 = vrot.slane %v7072, 4
    %v7086 = vsel %vm389, %v7085, %v7066
    %v7087 = vrot.slane %v7066, 4
    %v7088 = vsel %vm389, %v7072, %v7087
    %v7090 = vunpack.c.l.s4 1934713408
    %v7091 = vunpack.c.0.s8 %v7090
    %v7092 = vperm.slane %v7086, %v7091
    %v7094 = vunpack.c.l.s4 1934713408
    %v7095 = vunpack.c.0.s8 %v7094
    %v7096 = vperm.slane %v7088, %v7095
    %v7097 = vrot.slane %v7084, 4
    %v7098 = vsel %vm389, %v7097, %v7078
    %v7099 = vrot.slane %v7078, 4
    %v7100 = vsel %vm389, %v7084, %v7099
    %v7102 = vunpack.c.l.s4 1934713408
    %v7103 = vunpack.c.0.s8 %v7102
    %v7104 = vperm.slane %v7098, %v7103
    %v7106 = vunpack.c.l.s4 1934713408
    %v7107 = vunpack.c.0.s8 %v7106
    %v7108 = vperm.slane %v7100, %v7107
    %v7109 = vrot.slane %v7104, 4
    %v7110 = vsel %vm389, %v7109, %v7092
    %v7111 = vrot.slane %v7092, 4
    %v7112 = vsel %vm389, %v7104, %v7111
    %v7113 = vrot.slane %v7108, 4
    %v7114 = vsel %vm389, %v7113, %v7096
    %v7115 = vrot.slane %v7096, 4
    %v7116 = vsel %vm389, %v7108, %v7115
    %v7117 = vrot.slane %v6101, 4
    %v7118 = vsel %vm389, %v7117, %v6037
    %v7120 = vunpack.c.l.s4 1983009808
    %v7121 = vunpack.c.0.s8 %v7120
    %v7122 = vperm.slane %v7118, %v7121
    %v7123 = vrot.slane %v6133, 4
    %v7124 = vsel %vm389, %v7123, %v6069
    %v7126 = vunpack.c.l.s4 1983009808
    %v7127 = vunpack.c.0.s8 %v7126
    %v7128 = vperm.slane %v7124, %v7127
    %v7129 = vrot.slane %v6229, 4
    %v7130 = vsel %vm389, %v7129, %v6165
    %v7132 = vunpack.c.l.s4 1983009808
    %v7133 = vunpack.c.0.s8 %v7132
    %v7134 = vperm.slane %v7130, %v7133
    %v7135 = vrot.slane %v6261, 4
    %v7136 = vsel %vm389, %v7135, %v6197
    %v7138 = vunpack.c.l.s4 1983009808
    %v7139 = vunpack.c.0.s8 %v7138
    %v7140 = vperm.slane %v7136, %v7139
    %v7141 = vrot.slane %v7128, 4
    %v7142 = vsel %vm389, %v7141, %v7122
    %v7143 = vrot.slane %v7122, 4
    %v7144 = vsel %vm389, %v7128, %v7143
    %v7146 = vunpack.c.l.s4 1934713408
    %v7147 = vunpack.c.0.s8 %v7146
    %v7148 = vperm.slane %v7142, %v7147
    %v7150 = vunpack.c.l.s4 1934713408
    %v7151 = vunpack.c.0.s8 %v7150
    %v7152 = vperm.slane %v7144, %v7151
    %v7153 = vrot.slane %v7140, 4
    %v7154 = vsel %vm389, %v7153, %v7134
    %v7155 = vrot.slane %v7134, 4
    %v7156 = vsel %vm389, %v7140, %v7155
    %v7158 = vunpack.c.l.s4 1934713408
    %v7159 = vunpack.c.0.s8 %v7158
    %v7160 = vperm.slane %v7154, %v7159
    %v7162 = vunpack.c.l.s4 1934713408
    %v7163 = vunpack.c.0.s8 %v7162
    %v7164 = vperm.slane %v7156, %v7163
    %v7165 = vrot.slane %v7160, 4
    %v7166 = vsel %vm389, %v7165, %v7148
    %v7167 = vrot.slane %v7148, 4
    %v7168 = vsel %vm389, %v7160, %v7167
    %v7169 = vrot.slane %v7164, 4
    %v7170 = vsel %vm389, %v7169, %v7152
    %v7171 = vrot.slane %v7152, 4
    %v7172 = vsel %vm389, %v7164, %v7171
    %7173 = vxpose.xlu0.b32.start [1/16] %v68, 128
    %7174 = vxpose.xlu0.b32.cont [2/16] %v69, 128
    %7175 = vxpose.xlu0.b32.cont [3/16] %v70, 128
    %7176 = vxpose.xlu0.b32.cont [4/16] %v71, 128
    %7177 = vxpose.xlu0.b32.cont [5/16] %v72, 128
    %7178 = vxpose.xlu0.b32.cont [6/16] %v73, 128
    %7179 = vxpose.xlu0.b32.cont [7/16] %v74, 128
    %7180 = vxpose.xlu0.b32.cont [8/16] %v75, 128
    %7181 = vxpose.xlu0.b32.cont [9/16] %v76, 128
    %7182 = vxpose.xlu0.b32.cont [10/16] %v77, 128
    %7183 = vxpose.xlu0.b32.cont [11/16] %v78, 128
    %7184 = vxpose.xlu0.b32.cont [12/16] %v79, 128
    %7185 = vxpose.xlu0.b32.cont [13/16] %v80, 128
    %7186 = vxpose.xlu0.b32.cont [14/16] %v81, 128
    %7187 = vxpose.xlu0.b32.cont [15/16] %v82, 128
    %7188 = vxpose.xlu0.b32.end [16/16] %v83, 128
    %v7189 = vpop.trf.xlu0
    %v7190 = vpop.trf.xlu0
    %v7191 = vpop.trf.xlu0
    %v7192 = vpop.trf.xlu0
    %v7193 = vpop.trf.xlu0
    %v7194 = vpop.trf.xlu0
    %v7195 = vpop.trf.xlu0
    %v7196 = vpop.trf.xlu0
    %v7197 = vpop.trf.xlu0
    %v7198 = vpop.trf.xlu0
    %v7199 = vpop.trf.xlu0
    %v7200 = vpop.trf.xlu0
    %v7201 = vpop.trf.xlu0
    %v7202 = vpop.trf.xlu0
    %v7203 = vpop.trf.xlu0
    %v7204 = vpop.trf.xlu0
    %7205 = vmatpush.msra.mxu0 %v7166
    %7206 = vmatpush.msra.mxu0 %v7110
    %7207 = vmatpush.msra.mxu0 %v7054
    %7208 = vmatpush.msra.mxu0 %v6998
    %7209 = vmatpush.msra.mxu0 %v6942
    %7210 = vmatpush.msra.mxu0 %v6886
    %7211 = vmatpush.msra.mxu0 %v6830
    %7212 = vmatpush.msra.mxu0 %v6774
    %7213 = vmatpush.msra.mxu0 %v6718
    %7214 = vmatpush.msra.mxu0 %v6662
    %7215 = vmatpush.msra.mxu0 %v6606
    %7216 = vmatpush.msra.mxu0 %v6550
    %7217 = vmatpush.msra.mxu0 %v6494
    %7218 = vmatpush.msra.mxu0 %v6438
    %7219 = vmatpush.msra.mxu0 %v6382
    %7220 = vmatpush.msra.mxu0 %v6326
    %7221 = vmatmul.f32.gmra.mxu0 %v7189
    %v7222 = vpop.f32.mrf.mxu0
    %v7223 = vadd.f32 0.0, %v7222
    %7224 = vmatmul.f32.gmra.mxu0 %v7190
    %v7225 = vpop.f32.mrf.mxu0
    %v7226 = vadd.f32 0.0, %v7225
    %7227 = vmatmul.f32.gmra.mxu0 %v7191
    %v7228 = vpop.f32.mrf.mxu0
    %v7229 = vadd.f32 0.0, %v7228
    %7230 = vmatmul.f32.gmra.mxu0 %v7192
    %v7231 = vpop.f32.mrf.mxu0
    %v7232 = vadd.f32 0.0, %v7231
    %7233 = vmatmul.f32.gmra.mxu0 %v7193
    %v7234 = vpop.f32.mrf.mxu0
    %v7235 = vadd.f32 0.0, %v7234
    %7236 = vmatmul.f32.gmra.mxu0 %v7194
    %v7237 = vpop.f32.mrf.mxu0
    %v7238 = vadd.f32 0.0, %v7237
    %7239 = vmatmul.f32.gmra.mxu0 %v7195
    %v7240 = vpop.f32.mrf.mxu0
    %v7241 = vadd.f32 0.0, %v7240
    %7242 = vmatmul.f32.gmra.mxu0 %v7196
    %v7243 = vpop.f32.mrf.mxu0
    %v7244 = vadd.f32 0.0, %v7243
    %7245 = vmatmul.f32.gmra.mxu0 %v7197
    %v7246 = vpop.f32.mrf.mxu0
    %v7247 = vadd.f32 0.0, %v7246
    %7248 = vmatmul.f32.gmra.mxu0 %v7198
    %v7249 = vpop.f32.mrf.mxu0
    %v7250 = vadd.f32 0.0, %v7249
    %7251 = vmatmul.f32.gmra.mxu0 %v7199
    %v7252 = vpop.f32.mrf.mxu0
    %v7253 = vadd.f32 0.0, %v7252
    %7254 = vmatmul.f32.gmra.mxu0 %v7200
    %v7255 = vpop.f32.mrf.mxu0
    %v7256 = vadd.f32 0.0, %v7255
    %7257 = vmatmul.f32.gmra.mxu0 %v7201
    %v7258 = vpop.f32.mrf.mxu0
    %v7259 = vadd.f32 0.0, %v7258
    %7260 = vmatmul.f32.gmra.mxu0 %v7202
    %v7261 = vpop.f32.mrf.mxu0
    %v7262 = vadd.f32 0.0, %v7261
    %7263 = vmatmul.f32.gmra.mxu0 %v7203
    %v7264 = vpop.f32.mrf.mxu0
    %v7265 = vadd.f32 0.0, %v7264
    %7266 = vmatmul.f32.gmra.mxu0 %v7204
    %v7267 = vpop.f32.mrf.mxu0
    %v7268 = vadd.f32 0.0, %v7267
    %7269 = vdwg.mxu0
    %7270 = vxpose.xlu0.b32.start [1/16] %v84, 128
    %7271 = vxpose.xlu0.b32.cont [2/16] %v85, 128
    %7272 = vxpose.xlu0.b32.cont [3/16] %v86, 128
    %7273 = vxpose.xlu0.b32.cont [4/16] %v87, 128
    %7274 = vxpose.xlu0.b32.cont [5/16] %v88, 128
    %7275 = vxpose.xlu0.b32.cont [6/16] %v89, 128
    %7276 = vxpose.xlu0.b32.cont [7/16] %v90, 128
    %7277 = vxpose.xlu0.b32.cont [8/16] %v91, 128
    %7278 = vxpose.xlu0.b32.cont [9/16] %v92, 128
    %7279 = vxpose.xlu0.b32.cont [10/16] %v93, 128
    %7280 = vxpose.xlu0.b32.cont [11/16] %v94, 128
    %7281 = vxpose.xlu0.b32.cont [12/16] %v95, 128
    %7282 = vxpose.xlu0.b32.cont [13/16] %v96, 128
    %7283 = vxpose.xlu0.b32.cont [14/16] %v97, 128
    %7284 = vxpose.xlu0.b32.cont [15/16] %v98, 128
    %7285 = vxpose.xlu0.b32.end [16/16] %v99, 128
    %v7286 = vpop.trf.xlu0
    %v7287 = vpop.trf.xlu0
    %v7288 = vpop.trf.xlu0
    %v7289 = vpop.trf.xlu0
    %v7290 = vpop.trf.xlu0
    %v7291 = vpop.trf.xlu0
    %v7292 = vpop.trf.xlu0
    %v7293 = vpop.trf.xlu0
    %v7294 = vpop.trf.xlu0
    %v7295 = vpop.trf.xlu0
    %v7296 = vpop.trf.xlu0
    %v7297 = vpop.trf.xlu0
    %v7298 = vpop.trf.xlu0
    %v7299 = vpop.trf.xlu0
    %v7300 = vpop.trf.xlu0
    %v7301 = vpop.trf.xlu0
    %7302 = vmatpush.msra.mxu0 %v7168
    %7303 = vmatpush.msra.mxu0 %v7112
    %7304 = vmatpush.msra.mxu0 %v7056
    %7305 = vmatpush.msra.mxu0 %v7000
    %7306 = vmatpush.msra.mxu0 %v6944
    %7307 = vmatpush.msra.mxu0 %v6888
    %7308 = vmatpush.msra.mxu0 %v6832
    %7309 = vmatpush.msra.mxu0 %v6776
    %7310 = vmatpush.msra.mxu0 %v6720
    %7311 = vmatpush.msra.mxu0 %v6664
    %7312 = vmatpush.msra.mxu0 %v6608
    %7313 = vmatpush.msra.mxu0 %v6552
    %7314 = vmatpush.msra.mxu0 %v6496
    %7315 = vmatpush.msra.mxu0 %v6440
    %7316 = vmatpush.msra.mxu0 %v6384
    %7317 = vmatpush.msra.mxu0 %v6328
    %7318 = vmatmul.f32.gmra.mxu0 %v7286
    %v7319 = vpop.f32.mrf.mxu0
    %v7320 = vadd.f32 0.0, %v7319
    %7321 = vmatmul.f32.gmra.mxu0 %v7287
    %v7322 = vpop.f32.mrf.mxu0
    %v7323 = vadd.f32 0.0, %v7322
    %7324 = vmatmul.f32.gmra.mxu0 %v7288
    %v7325 = vpop.f32.mrf.mxu0
    %v7326 = vadd.f32 0.0, %v7325
    %7327 = vmatmul.f32.gmra.mxu0 %v7289
    %v7328 = vpop.f32.mrf.mxu0
    %v7329 = vadd.f32 0.0, %v7328
    %7330 = vmatmul.f32.gmra.mxu0 %v7290
    %v7331 = vpop.f32.mrf.mxu0
    %v7332 = vadd.f32 0.0, %v7331
    %7333 = vmatmul.f32.gmra.mxu0 %v7291
    %v7334 = vpop.f32.mrf.mxu0
    %v7335 = vadd.f32 0.0, %v7334
    %7336 = vmatmul.f32.gmra.mxu0 %v7292
    %v7337 = vpop.f32.mrf.mxu0
    %v7338 = vadd.f32 0.0, %v7337
    %7339 = vmatmul.f32.gmra.mxu0 %v7293
    %v7340 = vpop.f32.mrf.mxu0
    %v7341 = vadd.f32 0.0, %v7340
    %7342 = vmatmul.f32.gmra.mxu0 %v7294
    %v7343 = vpop.f32.mrf.mxu0
    %v7344 = vadd.f32 0.0, %v7343
    %7345 = vmatmul.f32.gmra.mxu0 %v7295
    %v7346 = vpop.f32.mrf.mxu0
    %v7347 = vadd.f32 0.0, %v7346
    %7348 = vmatmul.f32.gmra.mxu0 %v7296
    %v7349 = vpop.f32.mrf.mxu0
    %v7350 = vadd.f32 0.0, %v7349
    %7351 = vmatmul.f32.gmra.mxu0 %v7297
    %v7352 = vpop.f32.mrf.mxu0
    %v7353 = vadd.f32 0.0, %v7352
    %7354 = vmatmul.f32.gmra.mxu0 %v7298
    %v7355 = vpop.f32.mrf.mxu0
    %v7356 = vadd.f32 0.0, %v7355
    %7357 = vmatmul.f32.gmra.mxu0 %v7299
    %v7358 = vpop.f32.mrf.mxu0
    %v7359 = vadd.f32 0.0, %v7358
    %7360 = vmatmul.f32.gmra.mxu0 %v7300
    %v7361 = vpop.f32.mrf.mxu0
    %v7362 = vadd.f32 0.0, %v7361
    %7363 = vmatmul.f32.gmra.mxu0 %v7301
    %v7364 = vpop.f32.mrf.mxu0
    %v7365 = vadd.f32 0.0, %v7364
    %7366 = vdwg.mxu0
    %7367 = vxpose.xlu0.b32.start [1/16] %v100, 128
    %7368 = vxpose.xlu0.b32.cont [2/16] %v101, 128
    %7369 = vxpose.xlu0.b32.cont [3/16] %v102, 128
    %7370 = vxpose.xlu0.b32.cont [4/16] %v103, 128
    %7371 = vxpose.xlu0.b32.cont [5/16] %v104, 128
    %7372 = vxpose.xlu0.b32.cont [6/16] %v105, 128
    %7373 = vxpose.xlu0.b32.cont [7/16] %v106, 128
    %7374 = vxpose.xlu0.b32.cont [8/16] %v107, 128
    %7375 = vxpose.xlu0.b32.cont [9/16] %v108, 128
    %7376 = vxpose.xlu0.b32.cont [10/16] %v109, 128
    %7377 = vxpose.xlu0.b32.cont [11/16] %v110, 128
    %7378 = vxpose.xlu0.b32.cont [12/16] %v111, 128
    %7379 = vxpose.xlu0.b32.cont [13/16] %v112, 128
    %7380 = vxpose.xlu0.b32.cont [14/16] %v113, 128
    %7381 = vxpose.xlu0.b32.cont [15/16] %v114, 128
    %7382 = vxpose.xlu0.b32.end [16/16] %v115, 128
    %v7383 = vpop.trf.xlu0
    %v7384 = vpop.trf.xlu0
    %v7385 = vpop.trf.xlu0
    %v7386 = vpop.trf.xlu0
    %v7387 = vpop.trf.xlu0
    %v7388 = vpop.trf.xlu0
    %v7389 = vpop.trf.xlu0
    %v7390 = vpop.trf.xlu0
    %v7391 = vpop.trf.xlu0
    %v7392 = vpop.trf.xlu0
    %v7393 = vpop.trf.xlu0
    %v7394 = vpop.trf.xlu0
    %v7395 = vpop.trf.xlu0
    %v7396 = vpop.trf.xlu0
    %v7397 = vpop.trf.xlu0
    %v7398 = vpop.trf.xlu0
    %7399 = vmatpush.msra.mxu0 %v7170
    %7400 = vmatpush.msra.mxu0 %v7114
    %7401 = vmatpush.msra.mxu0 %v7058
    %7402 = vmatpush.msra.mxu0 %v7002
    %7403 = vmatpush.msra.mxu0 %v6946
    %7404 = vmatpush.msra.mxu0 %v6890
    %7405 = vmatpush.msra.mxu0 %v6834
    %7406 = vmatpush.msra.mxu0 %v6778
    %7407 = vmatpush.msra.mxu0 %v6722
    %7408 = vmatpush.msra.mxu0 %v6666
    %7409 = vmatpush.msra.mxu0 %v6610
    %7410 = vmatpush.msra.mxu0 %v6554
    %7411 = vmatpush.msra.mxu0 %v6498
    %7412 = vmatpush.msra.mxu0 %v6442
    %7413 = vmatpush.msra.mxu0 %v6386
    %7414 = vmatpush.msra.mxu0 %v6330
    %7415 = vmatmul.f32.gmra.mxu0 %v7383
    %v7416 = vpop.f32.mrf.mxu0
    %v7417 = vadd.f32 0.0, %v7416
    %7418 = vmatmul.f32.gmra.mxu0 %v7384
    %v7419 = vpop.f32.mrf.mxu0
    %v7420 = vadd.f32 0.0, %v7419
    %7421 = vmatmul.f32.gmra.mxu0 %v7385
    %v7422 = vpop.f32.mrf.mxu0
    %v7423 = vadd.f32 0.0, %v7422
    %7424 = vmatmul.f32.gmra.mxu0 %v7386
    %v7425 = vpop.f32.mrf.mxu0
    %v7426 = vadd.f32 0.0, %v7425
    %7427 = vmatmul.f32.gmra.mxu0 %v7387
    %v7428 = vpop.f32.mrf.mxu0
    %v7429 = vadd.f32 0.0, %v7428
    %7430 = vmatmul.f32.gmra.mxu0 %v7388
    %v7431 = vpop.f32.mrf.mxu0
    %v7432 = vadd.f32 0.0, %v7431
    %7433 = vmatmul.f32.gmra.mxu0 %v7389
    %v7434 = vpop.f32.mrf.mxu0
    %v7435 = vadd.f32 0.0, %v7434
    %7436 = vmatmul.f32.gmra.mxu0 %v7390
    %v7437 = vpop.f32.mrf.mxu0
    %v7438 = vadd.f32 0.0, %v7437
    %7439 = vmatmul.f32.gmra.mxu0 %v7391
    %v7440 = vpop.f32.mrf.mxu0
    %v7441 = vadd.f32 0.0, %v7440
    %7442 = vmatmul.f32.gmra.mxu0 %v7392
    %v7443 = vpop.f32.mrf.mxu0
    %v7444 = vadd.f32 0.0, %v7443
    %7445 = vmatmul.f32.gmra.mxu0 %v7393
    %v7446 = vpop.f32.mrf.mxu0
    %v7447 = vadd.f32 0.0, %v7446
    %7448 = vmatmul.f32.gmra.mxu0 %v7394
    %v7449 = vpop.f32.mrf.mxu0
    %v7450 = vadd.f32 0.0, %v7449
    %7451 = vmatmul.f32.gmra.mxu0 %v7395
    %v7452 = vpop.f32.mrf.mxu0
    %v7453 = vadd.f32 0.0, %v7452
    %7454 = vmatmul.f32.gmra.mxu0 %v7396
    %v7455 = vpop.f32.mrf.mxu0
    %v7456 = vadd.f32 0.0, %v7455
    %7457 = vmatmul.f32.gmra.mxu0 %v7397
    %v7458 = vpop.f32.mrf.mxu0
    %v7459 = vadd.f32 0.0, %v7458
    %7460 = vmatmul.f32.gmra.mxu0 %v7398
    %v7461 = vpop.f32.mrf.mxu0
    %v7462 = vadd.f32 0.0, %v7461
    %7463 = vdwg.mxu0
    %7464 = vxpose.xlu0.b32.start [1/16] %v116, 128
    %7465 = vxpose.xlu0.b32.cont [2/16] %v117, 128
    %7466 = vxpose.xlu0.b32.cont [3/16] %v118, 128
    %7467 = vxpose.xlu0.b32.cont [4/16] %v119, 128
    %7468 = vxpose.xlu0.b32.cont [5/16] %v120, 128
    %7469 = vxpose.xlu0.b32.cont [6/16] %v121, 128
    %7470 = vxpose.xlu0.b32.cont [7/16] %v122, 128
    %7471 = vxpose.xlu0.b32.cont [8/16] %v123, 128
    %7472 = vxpose.xlu0.b32.cont [9/16] %v124, 128
    %7473 = vxpose.xlu0.b32.cont [10/16] %v125, 128
    %7474 = vxpose.xlu0.b32.cont [11/16] %v126, 128
    %7475 = vxpose.xlu0.b32.cont [12/16] %v127, 128
    %7476 = vxpose.xlu0.b32.cont [13/16] %v128, 128
    %7477 = vxpose.xlu0.b32.cont [14/16] %v129, 128
    %7478 = vxpose.xlu0.b32.cont [15/16] %v130, 128
    %7479 = vxpose.xlu0.b32.end [16/16] %v131, 128
    %v7480 = vpop.trf.xlu0
    %v7481 = vpop.trf.xlu0
    %v7482 = vpop.trf.xlu0
    %v7483 = vpop.trf.xlu0
    %v7484 = vpop.trf.xlu0
    %v7485 = vpop.trf.xlu0
    %v7486 = vpop.trf.xlu0
    %v7487 = vpop.trf.xlu0
    %v7488 = vpop.trf.xlu0
    %v7489 = vpop.trf.xlu0
    %v7490 = vpop.trf.xlu0
    %v7491 = vpop.trf.xlu0
    %v7492 = vpop.trf.xlu0
    %v7493 = vpop.trf.xlu0
    %v7494 = vpop.trf.xlu0
    %v7495 = vpop.trf.xlu0
    %7496 = vmatpush.msra.mxu0 %v7172
    %7497 = vmatpush.msra.mxu0 %v7116
    %7498 = vmatpush.msra.mxu0 %v7060
    %7499 = vmatpush.msra.mxu0 %v7004
    %7500 = vmatpush.msra.mxu0 %v6948
    %7501 = vmatpush.msra.mxu0 %v6892
    %7502 = vmatpush.msra.mxu0 %v6836
    %7503 = vmatpush.msra.mxu0 %v6780
    %7504 = vmatpush.msra.mxu0 %v6724
    %7505 = vmatpush.msra.mxu0 %v6668
    %7506 = vmatpush.msra.mxu0 %v6612
    %7507 = vmatpush.msra.mxu0 %v6556
    %7508 = vmatpush.msra.mxu0 %v6500
    %7509 = vmatpush.msra.mxu0 %v6444
    %7510 = vmatpush.msra.mxu0 %v6388
    %7511 = vmatpush.msra.mxu0 %v6332
    %7512 = vmatmul.f32.gmra.mxu0 %v7480
    %v7513 = vpop.f32.mrf.mxu0
    %v7514 = vadd.f32 0.0, %v7513
    %7515 = vmatmul.f32.gmra.mxu0 %v7481
    %v7516 = vpop.f32.mrf.mxu0
    %v7517 = vadd.f32 0.0, %v7516
    %7518 = vmatmul.f32.gmra.mxu0 %v7482
    %v7519 = vpop.f32.mrf.mxu0
    %v7520 = vadd.f32 0.0, %v7519
    %7521 = vmatmul.f32.gmra.mxu0 %v7483
    %v7522 = vpop.f32.mrf.mxu0
    %v7523 = vadd.f32 0.0, %v7522
    %7524 = vmatmul.f32.gmra.mxu0 %v7484
    %v7525 = vpop.f32.mrf.mxu0
    %v7526 = vadd.f32 0.0, %v7525
    %7527 = vmatmul.f32.gmra.mxu0 %v7485
    %v7528 = vpop.f32.mrf.mxu0
    %v7529 = vadd.f32 0.0, %v7528
    %7530 = vmatmul.f32.gmra.mxu0 %v7486
    %v7531 = vpop.f32.mrf.mxu0
    %v7532 = vadd.f32 0.0, %v7531
    %7533 = vmatmul.f32.gmra.mxu0 %v7487
    %v7534 = vpop.f32.mrf.mxu0
    %v7535 = vadd.f32 0.0, %v7534
    %7536 = vmatmul.f32.gmra.mxu0 %v7488
    %v7537 = vpop.f32.mrf.mxu0
    %v7538 = vadd.f32 0.0, %v7537
    %7539 = vmatmul.f32.gmra.mxu0 %v7489
    %v7540 = vpop.f32.mrf.mxu0
    %v7541 = vadd.f32 0.0, %v7540
    %7542 = vmatmul.f32.gmra.mxu0 %v7490
    %v7543 = vpop.f32.mrf.mxu0
    %v7544 = vadd.f32 0.0, %v7543
    %7545 = vmatmul.f32.gmra.mxu0 %v7491
    %v7546 = vpop.f32.mrf.mxu0
    %v7547 = vadd.f32 0.0, %v7546
    %7548 = vmatmul.f32.gmra.mxu0 %v7492
    %v7549 = vpop.f32.mrf.mxu0
    %v7550 = vadd.f32 0.0, %v7549
    %7551 = vmatmul.f32.gmra.mxu0 %v7493
    %v7552 = vpop.f32.mrf.mxu0
    %v7553 = vadd.f32 0.0, %v7552
    %7554 = vmatmul.f32.gmra.mxu0 %v7494
    %v7555 = vpop.f32.mrf.mxu0
    %v7556 = vadd.f32 0.0, %v7555
    %7557 = vmatmul.f32.gmra.mxu0 %v7495
    %v7558 = vpop.f32.mrf.mxu0
    %v7559 = vadd.f32 0.0, %v7558
    %7560 = vdwg.mxu0
    %7561 = vxpose.xlu0.b32.start [1/16] %v7223, 128
    %7562 = vxpose.xlu0.b32.cont [2/16] %v7226, 128
    %7563 = vxpose.xlu0.b32.cont [3/16] %v7229, 128
    %7564 = vxpose.xlu0.b32.cont [4/16] %v7232, 128
    %7565 = vxpose.xlu0.b32.cont [5/16] %v7235, 128
    %7566 = vxpose.xlu0.b32.cont [6/16] %v7238, 128
    %7567 = vxpose.xlu0.b32.cont [7/16] %v7241, 128
    %7568 = vxpose.xlu0.b32.cont [8/16] %v7244, 128
    %7569 = vxpose.xlu0.b32.cont [9/16] %v7247, 128
    %7570 = vxpose.xlu0.b32.cont [10/16] %v7250, 128
    %7571 = vxpose.xlu0.b32.cont [11/16] %v7253, 128
    %7572 = vxpose.xlu0.b32.cont [12/16] %v7256, 128
    %7573 = vxpose.xlu0.b32.cont [13/16] %v7259, 128
    %7574 = vxpose.xlu0.b32.cont [14/16] %v7262, 128
    %7575 = vxpose.xlu0.b32.cont [15/16] %v7265, 128
    %7576 = vxpose.xlu0.b32.end [16/16] %v7268, 128
    %v7577 = vpop.trf.xlu0
    %v7578 = vpop.trf.xlu0
    %v7579 = vpop.trf.xlu0
    %v7580 = vpop.trf.xlu0
    %v7581 = vpop.trf.xlu0
    %v7582 = vpop.trf.xlu0
    %v7583 = vpop.trf.xlu0
    %v7584 = vpop.trf.xlu0
    %v7585 = vpop.trf.xlu0
    %v7586 = vpop.trf.xlu0
    %v7587 = vpop.trf.xlu0
    %v7588 = vpop.trf.xlu0
    %v7589 = vpop.trf.xlu0
    %v7590 = vpop.trf.xlu0
    %v7591 = vpop.trf.xlu0
    %v7592 = vpop.trf.xlu0
    %7593 = vxpose.xlu0.b32.start [1/16] %v7320, 128
    %7594 = vxpose.xlu0.b32.cont [2/16] %v7323, 128
    %7595 = vxpose.xlu0.b32.cont [3/16] %v7326, 128
    %7596 = vxpose.xlu0.b32.cont [4/16] %v7329, 128
    %7597 = vxpose.xlu0.b32.cont [5/16] %v7332, 128
    %7598 = vxpose.xlu0.b32.cont [6/16] %v7335, 128
    %7599 = vxpose.xlu0.b32.cont [7/16] %v7338, 128
    %7600 = vxpose.xlu0.b32.cont [8/16] %v7341, 128
    %7601 = vxpose.xlu0.b32.cont [9/16] %v7344, 128
    %7602 = vxpose.xlu0.b32.cont [10/16] %v7347, 128
    %7603 = vxpose.xlu0.b32.cont [11/16] %v7350, 128
    %7604 = vxpose.xlu0.b32.cont [12/16] %v7353, 128
    %7605 = vxpose.xlu0.b32.cont [13/16] %v7356, 128
    %7606 = vxpose.xlu0.b32.cont [14/16] %v7359, 128
    %7607 = vxpose.xlu0.b32.cont [15/16] %v7362, 128
    %7608 = vxpose.xlu0.b32.end [16/16] %v7365, 128
    %v7609 = vpop.trf.xlu0
    %v7610 = vpop.trf.xlu0
    %v7611 = vpop.trf.xlu0
    %v7612 = vpop.trf.xlu0
    %v7613 = vpop.trf.xlu0
    %v7614 = vpop.trf.xlu0
    %v7615 = vpop.trf.xlu0
    %v7616 = vpop.trf.xlu0
    %v7617 = vpop.trf.xlu0
    %v7618 = vpop.trf.xlu0
    %v7619 = vpop.trf.xlu0
    %v7620 = vpop.trf.xlu0
    %v7621 = vpop.trf.xlu0
    %v7622 = vpop.trf.xlu0
    %v7623 = vpop.trf.xlu0
    %v7624 = vpop.trf.xlu0
    %7625 = vxpose.xlu0.b32.start [1/16] %v7417, 128
    %7626 = vxpose.xlu0.b32.cont [2/16] %v7420, 128
    %7627 = vxpose.xlu0.b32.cont [3/16] %v7423, 128
    %7628 = vxpose.xlu0.b32.cont [4/16] %v7426, 128
    %7629 = vxpose.xlu0.b32.cont [5/16] %v7429, 128
    %7630 = vxpose.xlu0.b32.cont [6/16] %v7432, 128
    %7631 = vxpose.xlu0.b32.cont [7/16] %v7435, 128
    %7632 = vxpose.xlu0.b32.cont [8/16] %v7438, 128
    %7633 = vxpose.xlu0.b32.cont [9/16] %v7441, 128
    %7634 = vxpose.xlu0.b32.cont [10/16] %v7444, 128
    %7635 = vxpose.xlu0.b32.cont [11/16] %v7447, 128
    %7636 = vxpose.xlu0.b32.cont [12/16] %v7450, 128
    %7637 = vxpose.xlu0.b32.cont [13/16] %v7453, 128
    %7638 = vxpose.xlu0.b32.cont [14/16] %v7456, 128
    %7639 = vxpose.xlu0.b32.cont [15/16] %v7459, 128
    %7640 = vxpose.xlu0.b32.end [16/16] %v7462, 128
    %v7641 = vpop.trf.xlu0
    %v7642 = vpop.trf.xlu0
    %v7643 = vpop.trf.xlu0
    %v7644 = vpop.trf.xlu0
    %v7645 = vpop.trf.xlu0
    %v7646 = vpop.trf.xlu0
    %v7647 = vpop.trf.xlu0
    %v7648 = vpop.trf.xlu0
    %v7649 = vpop.trf.xlu0
    %v7650 = vpop.trf.xlu0
    %v7651 = vpop.trf.xlu0
    %v7652 = vpop.trf.xlu0
    %v7653 = vpop.trf.xlu0
    %v7654 = vpop.trf.xlu0
    %v7655 = vpop.trf.xlu0
    %v7656 = vpop.trf.xlu0
    %7657 = vxpose.xlu0.b32.start [1/16] %v7514, 128
    %7658 = vxpose.xlu0.b32.cont [2/16] %v7517, 128
    %7659 = vxpose.xlu0.b32.cont [3/16] %v7520, 128
    %7660 = vxpose.xlu0.b32.cont [4/16] %v7523, 128
    %7661 = vxpose.xlu0.b32.cont [5/16] %v7526, 128
    %7662 = vxpose.xlu0.b32.cont [6/16] %v7529, 128
    %7663 = vxpose.xlu0.b32.cont [7/16] %v7532, 128
    %7664 = vxpose.xlu0.b32.cont [8/16] %v7535, 128
    %7665 = vxpose.xlu0.b32.cont [9/16] %v7538, 128
    %7666 = vxpose.xlu0.b32.cont [10/16] %v7541, 128
    %7667 = vxpose.xlu0.b32.cont [11/16] %v7544, 128
    %7668 = vxpose.xlu0.b32.cont [12/16] %v7547, 128
    %7669 = vxpose.xlu0.b32.cont [13/16] %v7550, 128
    %7670 = vxpose.xlu0.b32.cont [14/16] %v7553, 128
    %7671 = vxpose.xlu0.b32.cont [15/16] %v7556, 128
    %7672 = vxpose.xlu0.b32.end [16/16] %v7559, 128
    %v7673 = vpop.trf.xlu0
    %v7674 = vpop.trf.xlu0
    %v7675 = vpop.trf.xlu0
    %v7676 = vpop.trf.xlu0
    %v7677 = vpop.trf.xlu0
    %v7678 = vpop.trf.xlu0
    %v7679 = vpop.trf.xlu0
    %v7680 = vpop.trf.xlu0
    %v7681 = vpop.trf.xlu0
    %v7682 = vpop.trf.xlu0
    %v7683 = vpop.trf.xlu0
    %v7684 = vpop.trf.xlu0
    %v7685 = vpop.trf.xlu0
    %v7686 = vpop.trf.xlu0
    %v7687 = vpop.trf.xlu0
    %v7688 = vpop.trf.xlu0
    %v7689 = vrot.slane %v7641, 4
    %v7690 = vsel %vm389, %v7689, %v7577
    %v7691 = vrot.slane %v7577, 4
    %v7692 = vsel %vm389, %v7641, %v7691
    %v7694 = vunpack.c.l.s4 1983009808
    %v7695 = vunpack.c.0.s8 %v7694
    %v7696 = vperm.slane %v7690, %v7695
    %v7698 = vunpack.c.l.s4 1983009808
    %v7699 = vunpack.c.0.s8 %v7698
    %v7700 = vperm.slane %v7692, %v7699
    %v7701 = vrot.slane %v7673, 4
    %v7702 = vsel %vm389, %v7701, %v7609
    %v7703 = vrot.slane %v7609, 4
    %v7704 = vsel %vm389, %v7673, %v7703
    %v7706 = vunpack.c.l.s4 1983009808
    %v7707 = vunpack.c.0.s8 %v7706
    %v7708 = vperm.slane %v7702, %v7707
    %v7710 = vunpack.c.l.s4 1983009808
    %v7711 = vunpack.c.0.s8 %v7710
    %v7712 = vperm.slane %v7704, %v7711
    %v7713 = vrot.slane %v7708, 4
    %v7714 = vsel %vm389, %v7713, %v7696
    %v7715 = vrot.slane %v7696, 4
    %v7716 = vsel %vm389, %v7708, %v7715
    %v7718 = vunpack.c.l.s4 1934713408
    %v7719 = vunpack.c.0.s8 %v7718
    %v7720 = vperm.slane %v7714, %v7719
    %v7722 = vunpack.c.l.s4 1934713408
    %v7723 = vunpack.c.0.s8 %v7722
    %v7724 = vperm.slane %v7716, %v7723
    %v7725 = vrot.slane %v7712, 4
    %v7726 = vsel %vm389, %v7725, %v7700
    %v7727 = vrot.slane %v7700, 4
    %v7728 = vsel %vm389, %v7712, %v7727
    %v7730 = vunpack.c.l.s4 1934713408
    %v7731 = vunpack.c.0.s8 %v7730
    %v7732 = vperm.slane %v7726, %v7731
    %v7734 = vunpack.c.l.s4 1934713408
    %v7735 = vunpack.c.0.s8 %v7734
    %v7736 = vperm.slane %v7728, %v7735
    %v7737 = vrot.slane %v7720, 4
    %v7738 = vsel %vm389, 0.0, %v7737
    %v7739 = vrot.slane %v7724, 4
    %v7740 = vsel %vm389, 0.0, %v7739
    %v7741 = vrot.slane %v7732, 4
    %v7742 = vsel %vm389, 0.0, %v7741
    %v7743 = vrot.slane %v7736, 4
    %v7744 = vsel %vm389, 0.0, %v7743
    %v7745 = vld [vmem:[#allocation7] sm:$0xf]
    %v7746 = vadd.f32 %v7720, %v7745
    %v7747 = vadd.f32 %v7738, %v7745
    %v7748 = vadd.f32 %v7724, %v7745
    %v7749 = vadd.f32 %v7740, %v7745
    %v7750 = vadd.f32 %v7732, %v7745
    %v7751 = vadd.f32 %v7742, %v7745
    %v7752 = vadd.f32 %v7736, %v7745
    %v7753 = vadd.f32 %v7744, %v7745
    %7754 = vst [vmem:[#allocation8] sm:$0xf] %v7746
    %7755 = vst [vmem:[#allocation8 + $0x4] sm:$0xf] %v7747
    %7756 = vst [vmem:[#allocation8 + $0x8] sm:$0xf] %v7748
    %7757 = vst [vmem:[#allocation8 + $0xc] sm:$0xf] %v7749
    %7758 = vst [vmem:[#allocation8 + $0x10] sm:$0xf] %v7750
    %7759 = vst [vmem:[#allocation8 + $0x14] sm:$0xf] %v7751
    %7760 = vst [vmem:[#allocation8 + $0x18] sm:$0xf] %v7752
    %7761 = vst [vmem:[#allocation8 + $0x1c] sm:$0xf] %v7753
    // Predicated region
    $region26: #{tpu_custom_call.1} parent=1 // pred_check
      _
    $region27: #{tpu_custom_call.1} parent=1 // pred_check_branch
      %7763 = sbr.rel (0) target = $region29
    $region28: #{tpu_custom_call.1} parent=1 // pred_region
      %7765 = vsyncadd [#allocation4], 0
      %s7766 = sshll.u32 [#allocation8], 4
      %s7767 = int_to_ptr.vmem [resolvable:$true] %s7766
      %s7768 = sshll.u32 %s3, 4
      %s7769 = int_to_ptr.hbm [resolvable:$true] %s7768
      %7774 = dma.vmem_to_hbm [thread:$0]  %s7767, 512, %s7769, [#allocation4], 64, 64, 4
    $region29: #{tpu_custom_call.1} parent=1 // pred_fallthru
      _
    // Predicated region
    $region30: #{tpu_custom_call.1} parent=1 // pred_check
      _
    $region31: #{tpu_custom_call.1} parent=1 // pred_check_branch
      %7776 = sbr.rel (0) target = $region33
    $region32: #{tpu_custom_call.1} parent=1 // pred_region
      %7778 = dma.done [#allocation4], 512
    $region33: #{tpu_custom_call.1} parent=1 // pred_fallthru
      _
    %7779 = vsyncpa [#allocation3], 1
    %7780 = vsyncpa [#allocation6], 1
    %7781 = vsyncpa [#allocation4], 1

</llo_original>
